<compile_context>
chip_gen: v6e
topology: v6e:2x2x1
jax: 0.10.0
libtpu: 0.0.40
codegen_flags: <defaults>
</compile_context>

<pallas_src>
import functools

import jax
import jax.numpy as jnp
from jax.experimental import pallas as pl
from jax.experimental.pallas import tpu as pltpu

# ----------------------------- config ---------------------------------------
BATCH = 2
IN_CH = 1
HID = [32, 64]
EMB_DIM = 64
NUM_EMB = 512
IMG = 16
BETA = 0.25
LEAKY_SLOPE = 0.01

MXU_DTYPE = jnp.bfloat16  # MXU operand dtype (accumulation / epilogue stay f32)


def _rup(x, m):
    return (x + m - 1) // m * m


# ----------------------- Pallas matmul (+bias +act) --------------------------
def _mm_kernel(a_ref, b_ref, bias_ref, o_ref, *, act):
    r = jnp.dot(a_ref[...], b_ref[...], preferred_element_type=jnp.float32)
    r = r + bias_ref[...]
    if act == "leaky_relu":
        r = jnp.where(r > 0, r, LEAKY_SLOPE * r)
    elif act == "relu":
        r = jnp.maximum(r, 0.0)
    o_ref[...] = r


def matmul_bias_act(a, b, bias, act="none", tm=512):
    """act(a @ b + bias). a:[M,K] b:[K,N] bias:[N]; bf16 MXU operands, f32 out."""
    M, K = a.shape
    _, N = b.shape
    a = a.astype(MXU_DTYPE)
    b = b.astype(MXU_DTYPE)
    bias2 = bias.astype(jnp.float32).reshape(1, N)
    kern = functools.partial(_mm_kernel, act=act)

    if M <= tm:
        # Whole problem as one VMEM block: no grid, no K loop, no scratch.
        Mp = _rup(M, 8)
        a_p = a if Mp == M else jnp.pad(a, ((0, Mp - M), (0, 0)))
        out = pl.pallas_call(
            kern,
            out_shape=jax.ShapeDtypeStruct((Mp, N), jnp.float32),
        )(a_p, b, bias2)
        return out if Mp == M else out[:M]

    # Larger M: tile only M (K, N stay whole -> still no accumulator needed).
    # "parallel" M axis lets both v7x TensorCores work; per-tile VMEM is tiny.
    Mp = _rup(M, tm)
    a_p = a if Mp == M else jnp.pad(a, ((0, Mp - M), (0, 0)))
    out = pl.pallas_call(
        kern,
        out_shape=jax.ShapeDtypeStruct((Mp, N), jnp.float32),
        grid_spec=pltpu.PrefetchScalarGridSpec(
            num_scalar_prefetch=0,
            grid=(Mp // tm,),
            in_specs=[
                pl.BlockSpec((tm, K), lambda i: (i, 0)),
                pl.BlockSpec((K, N), lambda i: (0, 0)),
                pl.BlockSpec((1, N), lambda i: (0, 0)),
            ],
            out_specs=pl.BlockSpec((tm, N), lambda i: (i, 0)),
        ),
        compiler_params=pltpu.CompilerParams(
            dimension_semantics=("parallel",)),
    )(a_p, b, bias2)
    return out[:M]


# ---------------------- fused residual block kernel --------------------------
def _res_kernel(x_ref, p_ref, w1_ref, w2_ref, o_ref):
    # 3x3-conv matmul -> ReLU -> 1x1-conv (pure channel matmul) -> skip add.
    h = jnp.dot(p_ref[...], w1_ref[...], preferred_element_type=jnp.float32)
    h = jnp.maximum(h, 0.0).astype(w2_ref.dtype)
    o_ref[...] = x_ref[...] + jnp.dot(h, w2_ref[...],
                                      preferred_element_type=jnp.float32)


def residual_layer(x, rp):
    """x: [N, D, H, W, C] f32; rp['w1']: [C, C, 3,3,3]; rp['w2']: [C, C, 1,1,1]."""
    N, D, H, W, C = x.shape
    patches, _ = _im2col_3d(x, 3, 1, 1)                           # [M, 27*C]
    w1 = jnp.transpose(rp["w1"], (2, 3, 4, 1, 0)).reshape(27 * C, C)
    w2 = rp["w2"].reshape(C, C).T                                  # [Cin, Cout]
    out = pl.pallas_call(
        _res_kernel,
        out_shape=jax.ShapeDtypeStruct((N * D * H * W, C), jnp.float32),
    )(x.reshape(-1, C),
      patches.astype(MXU_DTYPE),
      w1.astype(MXU_DTYPE),
      w2.astype(MXU_DTYPE))
    return out.reshape(N, D, H, W, C)


# --------------------------- Pallas VQ (fused) --------------------------------
def _vq_kernel(x_ref, et_ref, e_ref, esq_ref, q_ref, idx_ref):
    # distance (up to per-row constant ||x||^2): ||e||^2 - 2 x.e    [M, K]
    d = esq_ref[...] - 2.0 * jnp.dot(x_ref[...], et_ref[...],
                                     preferred_element_type=jnp.float32)
    ids = jax.lax.broadcasted_iota(jnp.int32, d.shape, 1)
    dmin = jnp.min(d, axis=1, keepdims=True)
    # first-match tie-break (same as torch.argmin)
    arg = jnp.min(jnp.where(d == dmin, ids, jnp.int32(NUM_EMB)),
                  axis=1, keepdims=True)
    idx_ref[...] = arg
    one_hot = (ids == arg).astype(jnp.float32)                     # [M, K]
    q_ref[...] = jnp.dot(one_hot, e_ref[...],
                         preferred_element_type=jnp.float32)       # gather fused


def vq_quantize(flat, codebook):
    """flat: [M, D] f32, codebook: [K, D] f32 -> (quantized [M, D], idx [M])."""
    M, D = flat.shape
    K = codebook.shape[0]
    esq = jnp.sum(codebook ** 2, axis=1).reshape(1, K)
    q, idx = pl.pallas_call(
        _vq_kernel,
        out_shape=(jax.ShapeDtypeStruct((M, D), jnp.float32),
                   jax.ShapeDtypeStruct((M, 1), jnp.int32)),
    )(flat, codebook.T, codebook, esq)
    return q, idx[:, 0]


# ----------------------------- conv glue (NDHWC) ------------------------------
def _im2col_3d(x, k, stride, pad):
    """x: [N, D, H, W, C] -> patches [N*Do*Ho*Wo, k^3*C] (kd,kh,kw major, C minor)."""
    N, D, H, W, C = x.shape
    if pad:
        x = jnp.pad(x, ((0, 0), (pad, pad), (pad, pad), (pad, pad), (0, 0)))
    Do = (D + 2 * pad - k) // stride + 1
    Ho = (H + 2 * pad - k) // stride + 1
    Wo = (W + 2 * pad - k) // stride + 1
    cols = []
    for kd in range(k):
        for kh in range(k):
            for kw in range(k):
                cols.append(x[:, kd:kd + Do * stride:stride,
                              kh:kh + Ho * stride:stride,
                              kw:kw + Wo * stride:stride, :])
    patches = jnp.stack(cols, axis=4)          # [N, Do, Ho, Wo, k^3, C]
    return patches.reshape(N * Do * Ho * Wo, k ** 3 * C), (N, Do, Ho, Wo)


def conv3d(x, w, b, stride, pad, act="none"):
    """x: [N, D, H, W, Cin] (NDHWC); w (PyTorch Conv3d): [Cout, Cin, k, k, k]."""
    cout, cin, k = w.shape[0], w.shape[1], w.shape[2]
    N, D, H, W, _ = x.shape
    if k == 1 and stride == 1 and pad == 0:
        patches, shp = x.reshape(-1, cin), (N, D, H, W)     # pure reshape, no im2col
    else:
        patches, shp = _im2col_3d(x, k, stride, pad)
    w2 = jnp.transpose(w, (2, 3, 4, 1, 0)).reshape(k ** 3 * cin, cout)
    out = matmul_bias_act(patches, w2, b, act=act)
    return out.reshape(*shp, cout)              # already channels-last


def _subpixel_weight(w):
    """w (PyTorch ConvTranspose3d, k=4): [Cin, Cout, 4,4,4] -> [8*Cin, 8*Cout].

    Row layout (md, mh, mw, ci) matches k=2 im2col; column layout (pd, ph, pw, co).
    Kernel tap for window offset m / output parity p along an axis: 2*(1-m)+(1-p).
    """
    cin, cout = w.shape[0], w.shape[1]
    tap = ((3, 1), (2, 0))                       # tap[p][m]
    blocks = []
    for md in range(2):
        for mh in range(2):
            for mw in range(2):
                cols = []
                for pd in range(2):
                    for ph in range(2):
                        for pw in range(2):
                            cols.append(w[:, :, tap[pd][md], tap[ph][mh], tap[pw][mw]])
                blocks.append(jnp.concatenate(cols, axis=1))   # [Cin, 8*Cout]
    return jnp.concatenate(blocks, axis=0)                     # [8*Cin, 8*Cout]


def conv_transpose3d(x, w, b, stride, pad, act="none"):
    """Sub-pixel ConvTranspose3d. x: [N,D,H,W,Cin]; w: [Cin,Cout,4,4,4].

    Only the module's configuration (k=4, stride=2, pad=1) is supported.
    """
    assert stride == 2 and pad == 1 and w.shape[2] == 4
    N, D, H, W, cin = x.shape
    cout = w.shape[1]
    xp = jnp.pad(x, ((0, 0), (1, 1), (1, 1), (1, 1), (0, 0)))
    patches, _ = _im2col_3d(xp, 2, 1, 0)         # [N*(D+1)*(H+1)*(W+1), 8*Cin]
    w2 = _subpixel_weight(w)                     # [8*Cin, 8*Cout]
    b2 = jnp.tile(b, 8)                          # parity-major, cout-minor
    out = matmul_bias_act(patches, w2, b2, act=act)
    out = out.reshape(N, D + 1, H + 1, W + 1, 2, 2, 2, cout)
    subs = []
    for pd in range(2):
        for ph in range(2):
            for pw in range(2):
                subs.append(out[:, pd:pd + D, ph:ph + H, pw:pw + W, pd, ph, pw, :])
    sub = jnp.stack(subs, axis=4).reshape(N, D, H, W, 2, 2, 2, cout)
    y = jnp.transpose(sub, (0, 1, 4, 2, 5, 3, 6, 7))
    return y.reshape(N, 2 * D, 2 * H, 2 * W, cout)


def leaky_relu(x):
    return jnp.where(x > 0, x, LEAKY_SLOPE * x)


def vector_quantize(lat, codebook, beta):
    """lat: [N, d, h, w, D_emb] (channels-last already)."""
    shape = lat.shape
    flat = lat.reshape(-1, shape[-1])
    quant_flat, idx = vq_quantize(flat, codebook)
    quant = quant_flat.reshape(shape)
    commitment = jnp.mean((jax.lax.stop_gradient(quant) - lat) ** 2)
    embedding = jnp.mean((quant - jax.lax.stop_gradient(lat)) ** 2)
    vq_loss = beta * commitment + embedding
    quant = lat + jax.lax.stop_gradient(quant - lat)   # straight-through estimator
    return quant, vq_loss, idx.reshape(shape[:-1])


# ----------------------------- params ----------------------------------------
def _conv_p(key, cin, cout, k, bias=True):
    k1, k2 = jax.random.split(key)
    w = jax.random.normal(k1, (cout, cin, k, k, k), jnp.float32) / jnp.sqrt(cin * k ** 3)
    b = (jax.random.normal(k2, (cout,), jnp.float32) * 0.01 if bias
         else jnp.zeros((cout,), jnp.float32))
    return w, b


def _convT_p(key, cin, cout, k):
    k1, k2 = jax.random.split(key)
    w = jax.random.normal(k1, (cin, cout, k, k, k), jnp.float32) / jnp.sqrt(cin * k ** 3)
    b = jax.random.normal(k2, (cout,), jnp.float32) * 0.01
    return w, b


def init_params(key):
    keys = iter(jax.random.split(key, 40))
    p = {}
    p["enc_conv1"] = _conv_p(next(keys), IN_CH, HID[0], 4)
    p["enc_conv2"] = _conv_p(next(keys), HID[0], HID[1], 4)
    p["enc_conv3"] = _conv_p(next(keys), HID[1], HID[1], 3)
    p["enc_res"] = [{"w1": _conv_p(next(keys), HID[1], HID[1], 3, bias=False)[0],
                     "w2": _conv_p(next(keys), HID[1], HID[1], 1, bias=False)[0]}
                    for _ in range(6)]
    p["enc_conv4"] = _conv_p(next(keys), HID[1], EMB_DIM, 1)
    p["codebook"] = jax.random.uniform(next(keys), (NUM_EMB, EMB_DIM), jnp.float32,
                                       -1.0 / NUM_EMB, 1.0 / NUM_EMB)
    p["dec_conv1"] = _conv_p(next(keys), EMB_DIM, HID[1], 3)
    p["dec_res"] = [{"w1": _conv_p(next(keys), HID[1], HID[1], 3, bias=False)[0],
                     "w2": _conv_p(next(keys), HID[1], HID[1], 1, bias=False)[0]}
                    for _ in range(6)]
    p["dec_tconv1"] = _convT_p(next(keys), HID[1], HID[0], 4)
    p["dec_tconv2"] = _convT_p(next(keys), HID[0], 1, 4)
    return p


# ----------------------------- forward ----------------------------------------
def vqvae_forward(params, x):
    # NCDHW -> NDHWC once at the module boundary; everything stays channels-last.
    h = jnp.transpose(x, (0, 2, 3, 4, 1))
    # ---- encoder ----
    h = conv3d(h, *params["enc_conv1"], stride=2, pad=1, act="leaky_relu")
    h = conv3d(h, *params["enc_conv2"], stride=2, pad=1, act="leaky_relu")
    h = conv3d(h, *params["enc_conv3"], stride=1, pad=1, act="leaky_relu")
    for rp in params["enc_res"]:
        h = residual_layer(h, rp)
    h = leaky_relu(h)
    h = conv3d(h, *params["enc_conv4"], stride=1, pad=0, act="leaky_relu")
    # ---- vector quantizer ----
    # TODO(synk): original PyTorch forward unpacks 2 of 3 VQ outputs (a bug); we
    # implement the intended semantics and drop the encoding indices here.
    quant, vq_loss, _inds = vector_quantize(h, params["codebook"], BETA)
    # ---- decoder ----
    d = conv3d(quant, *params["dec_conv1"], stride=1, pad=1, act="leaky_relu")
    for rp in params["dec_res"]:
        d = residual_layer(d, rp)
    d = leaky_relu(d)
    d = conv_transpose3d(d, *params["dec_tconv1"], stride=2, pad=1, act="leaky_relu")
    recon = conv_transpose3d(d, *params["dec_tconv2"], stride=2, pad=1, act="none")
    # back to NCDHW at the module boundary
    recon = jnp.transpose(recon, (0, 4, 1, 2, 3))
    quant_out = jnp.transpose(quant, (0, 4, 1, 2, 3))
    return recon, quant_out, vq_loss


# ------------------------------- main ------------------------------------------
if __name__ == "__main__":
    key = jax.random.PRNGKey(0)
    pkey, xkey = jax.random.split(key)
    params = init_params(pkey)
    x = jax.random.normal(xkey, (BATCH, IN_CH, IMG, IMG, IMG), jnp.float32)

    fwd = jax.jit(vqvae_forward)
    recon, quant, vq_loss = fwd(params, x)
    jax.block_until_ready((recon, quant, vq_loss))

    assert recon.shape == (BATCH, 1, IMG, IMG, IMG), recon.shape
    assert quant.shape == (BATCH, EMB_DIM, IMG // 4, IMG // 4, IMG // 4), quant.shape
    assert vq_loss.shape == (), vq_loss.shape
    assert jnp.isfinite(recon).all() and jnp.isfinite(vq_loss)
    print("KERNEL_OK")
</pallas_src>

<mosaic_0001>
module attributes {stable_mosaic.version = 11 : i64} {
  func.func @_mm_kernel(%arg0: i32, %arg1: memref<512x64xbf16, #tpu.memory_space<vmem>>, %arg2: memref<64x32xbf16, #tpu.memory_space<vmem>>, %arg3: memref<1x32xf32, #tpu.memory_space<vmem>>, %arg4: memref<512x32xf32, #tpu.memory_space<vmem>>) attributes {dimension_semantics = [#tpu.dimension_semantics<parallel>], iteration_bounds = array<i64: 2>, scalar_prefetch = 0 : i64, scratch_operands = 0 : i64, tpu.core_type = #tpu.core_type<tc>, window_params = [{transform_indices = @transform_0, window_bounds = array<i64: 512, 64>}, {pipeline_mode = #tpu.pipeline_mode<synchronous>, transform_indices = @transform_1, window_bounds = array<i64: 64, 32>}, {pipeline_mode = #tpu.pipeline_mode<synchronous>, transform_indices = @transform_2, window_bounds = array<i64: 1, 32>}, {transform_indices = @transform_3, window_bounds = array<i64: 512, 32>}]} {
    %c0 = arith.constant 0 : index
    %c0_0 = arith.constant 0 : index
    %0 = vector.load %arg1[%c0, %c0_0] : memref<512x64xbf16, #tpu.memory_space<vmem>>, vector<512x64xbf16>
    %c0_1 = arith.constant 0 : index
    %c0_2 = arith.constant 0 : index
    %1 = vector.load %arg2[%c0_1, %c0_2] : memref<64x32xbf16, #tpu.memory_space<vmem>>, vector<64x32xbf16>
    %cst = arith.constant dense<0.000000e+00> : vector<512x32xf32>
    %2 = tpu.matmul %0, %1, %cst {dimension_numbers = #tpu.dot_dimension_numbers<[1], [0], [0], [1], [0, 0, 1, 1], [], []>} : vector<512x64xbf16>, vector<64x32xbf16>, vector<512x32xf32> -> vector<512x32xf32>
    %c0_3 = arith.constant 0 : index
    %c0_4 = arith.constant 0 : index
    %3 = vector.load %arg3[%c0_3, %c0_4] : memref<1x32xf32, #tpu.memory_space<vmem>>, vector<1x32xf32>
    %4 = vector.broadcast %3 : vector<1x32xf32> to vector<512x32xf32>
    %5 = arith.addf %2, %4 : vector<512x32xf32>
    %cst_5 = arith.constant 0.000000e+00 : f32
    %6 = vector.broadcast %cst_5 : f32 to vector<512x32xf32>
    %7 = arith.cmpf ogt, %5, %6 : vector<512x32xf32>
    %cst_6 = arith.constant 0.00999999977 : f32
    %8 = vector.broadcast %cst_6 : f32 to vector<512x32xf32>
    %9 = arith.mulf %8, %5 : vector<512x32xf32>
    %10 = arith.select %7, %5, %9 : vector<512x32xi1>, vector<512x32xf32>
    %c0_7 = arith.constant 0 : index
    %c0_8 = arith.constant 0 : index
    %11 = vector.load %arg4[%c0_7, %c0_8] : memref<512x32xf32, #tpu.memory_space<vmem>>, vector<512x32xf32>
    tpu.vector_store %arg4[%c0_7, %c0_8], %10 {strides = array<i32>} : memref<512x32xf32, #tpu.memory_space<vmem>>, vector<512x32xf32>,
    return
  }
  func.func @transform_0(%arg0: i32) -> (i32, i32) {
    %c0_i32 = arith.constant 0 : i32
    %c0_i32_0 = arith.constant 0 : i32
    return %arg0, %c0_i32 : i32, i32
  }
  func.func @transform_1(%arg0: i32) -> (i32, i32) {
    %c0_i32 = arith.constant 0 : i32
    %c0_i32_0 = arith.constant 0 : i32
    %c0_i32_1 = arith.constant 0 : i32
    return %c0_i32, %c0_i32_0 : i32, i32
  }
  func.func @transform_2(%arg0: i32) -> (i32, i32) {
    %c0_i32 = arith.constant 0 : i32
    %c0_i32_0 = arith.constant 0 : i32
    %c0_i32_1 = arith.constant 0 : i32
    return %c0_i32, %c0_i32_0 : i32, i32
  }
  func.func @transform_3(%arg0: i32) -> (i32, i32) {
    %c0_i32 = arith.constant 0 : i32
    %c0_i32_0 = arith.constant 0 : i32
    return %arg0, %c0_i32 : i32, i32
  }
}

module attributes {stable_mosaic.version = 11 : i64} {
  func.func @_mm_kernel(%arg0: memref<128x2048xbf16, #tpu.memory_space<vmem>>, %arg1: memref<2048x64xbf16, #tpu.memory_space<vmem>>, %arg2: memref<1x64xf32, #tpu.memory_space<vmem>>, %arg3: memref<128x64xf32, #tpu.memory_space<vmem>>) attributes {dimension_semantics = [], scalar_prefetch = 0 : i64, scratch_operands = 0 : i64, tpu.core_type = #tpu.core_type<tc>} {
    %c0 = arith.constant 0 : index
    %c0_0 = arith.constant 0 : index
    %0 = vector.load %arg0[%c0, %c0_0] : memref<128x2048xbf16, #tpu.memory_space<vmem>>, vector<128x2048xbf16>
    %c0_1 = arith.constant 0 : index
    %c0_2 = arith.constant 0 : index
    %1 = vector.load %arg1[%c0_1, %c0_2] : memref<2048x64xbf16, #tpu.memory_space<vmem>>, vector<2048x64xbf16>
    %cst = arith.constant dense<0.000000e+00> : vector<128x64xf32>
    %2 = tpu.matmul %0, %1, %cst {dimension_numbers = #tpu.dot_dimension_numbers<[1], [0], [0], [1], [0, 0, 1, 1], [], []>} : vector<128x2048xbf16>, vector<2048x64xbf16>, vector<128x64xf32> -> vector<128x64xf32>
    %c0_3 = arith.constant 0 : index
    %c0_4 = arith.constant 0 : index
    %3 = vector.load %arg2[%c0_3, %c0_4] : memref<1x64xf32, #tpu.memory_space<vmem>>, vector<1x64xf32>
    %4 = vector.broadcast %3 : vector<1x64xf32> to vector<128x64xf32>
    %5 = arith.addf %2, %4 : vector<128x64xf32>
    %cst_5 = arith.constant 0.000000e+00 : f32
    %6 = vector.broadcast %cst_5 : f32 to vector<128x64xf32>
    %7 = arith.cmpf ogt, %5, %6 : vector<128x64xf32>
    %cst_6 = arith.constant 0.00999999977 : f32
    %8 = vector.broadcast %cst_6 : f32 to vector<128x64xf32>
    %9 = arith.mulf %8, %5 : vector<128x64xf32>
    %10 = arith.select %7, %5, %9 : vector<128x64xi1>, vector<128x64xf32>
    %c0_7 = arith.constant 0 : index
    %c0_8 = arith.constant 0 : index
    %11 = vector.load %arg3[%c0_7, %c0_8] : memref<128x64xf32, #tpu.memory_space<vmem>>, vector<128x64xf32>
    tpu.vector_store %arg3[%c0_7, %c0_8], %10 {strides = array<i32>} : memref<128x64xf32, #tpu.memory_space<vmem>>, vector<128x64xf32>,
    return
  }
}

module attributes {stable_mosaic.version = 11 : i64} {
  func.func @_mm_kernel(%arg0: memref<128x1728xbf16, #tpu.memory_space<vmem>>, %arg1: memref<1728x64xbf16, #tpu.memory_space<vmem>>, %arg2: memref<1x64xf32, #tpu.memory_space<vmem>>, %arg3: memref<128x64xf32, #tpu.memory_space<vmem>>) attributes {dimension_semantics = [], scalar_prefetch = 0 : i64, scratch_operands = 0 : i64, tpu.core_type = #tpu.core_type<tc>} {
    %c0 = arith.constant 0 : index
    %c0_0 = arith.constant 0 : index
    %0 = vector.load %arg0[%c0, %c0_0] : memref<128x1728xbf16, #tpu.memory_space<vmem>>, vector<128x1728xbf16>
    %c0_1 = arith.constant 0 : index
    %c0_2 = arith.constant 0 : index
    %1 = vector.load %arg1[%c0_1, %c0_2] : memref<1728x64xbf16, #tpu.memory_space<vmem>>, vector<1728x64xbf16>
    %cst = arith.constant dense<0.000000e+00> : vector<128x64xf32>
    %2 = tpu.matmul %0, %1, %cst {dimension_numbers = #tpu.dot_dimension_numbers<[1], [0], [0], [1], [0, 0, 1, 1], [], []>} : vector<128x1728xbf16>, vector<1728x64xbf16>, vector<128x64xf32> -> vector<128x64xf32>
    %c0_3 = arith.constant 0 : index
    %c0_4 = arith.constant 0 : index
    %3 = vector.load %arg2[%c0_3, %c0_4] : memref<1x64xf32, #tpu.memory_space<vmem>>, vector<1x64xf32>
    %4 = vector.broadcast %3 : vector<1x64xf32> to vector<128x64xf32>
    %5 = arith.addf %2, %4 : vector<128x64xf32>
    %cst_5 = arith.constant 0.000000e+00 : f32
    %6 = vector.broadcast %cst_5 : f32 to vector<128x64xf32>
    %7 = arith.cmpf ogt, %5, %6 : vector<128x64xf32>
    %cst_6 = arith.constant 0.00999999977 : f32
    %8 = vector.broadcast %cst_6 : f32 to vector<128x64xf32>
    %9 = arith.mulf %8, %5 : vector<128x64xf32>
    %10 = arith.select %7, %5, %9 : vector<128x64xi1>, vector<128x64xf32>
    %c0_7 = arith.constant 0 : index
    %c0_8 = arith.constant 0 : index
    %11 = vector.load %arg3[%c0_7, %c0_8] : memref<128x64xf32, #tpu.memory_space<vmem>>, vector<128x64xf32>
    tpu.vector_store %arg3[%c0_7, %c0_8], %10 {strides = array<i32>} : memref<128x64xf32, #tpu.memory_space<vmem>>, vector<128x64xf32>,
    return
  }
}

module attributes {stable_mosaic.version = 11 : i64} {
  func.func @_res_kernel(%arg0: memref<128x64xf32, #tpu.memory_space<vmem>>, %arg1: memref<128x1728xbf16, #tpu.memory_space<vmem>>, %arg2: memref<1728x64xbf16, #tpu.memory_space<vmem>>, %arg3: memref<64x64xbf16, #tpu.memory_space<vmem>>, %arg4: memref<128x64xf32, #tpu.memory_space<vmem>>) attributes {dimension_semantics = [], scalar_prefetch = 0 : i64, scratch_operands = 0 : i64, tpu.core_type = #tpu.core_type<tc>} {
    %c0 = arith.constant 0 : index
    %c0_0 = arith.constant 0 : index
    %0 = vector.load %arg1[%c0, %c0_0] : memref<128x1728xbf16, #tpu.memory_space<vmem>>, vector<128x1728xbf16>
    %c0_1 = arith.constant 0 : index
    %c0_2 = arith.constant 0 : index
    %1 = vector.load %arg2[%c0_1, %c0_2] : memref<1728x64xbf16, #tpu.memory_space<vmem>>, vector<1728x64xbf16>
    %cst = arith.constant dense<0.000000e+00> : vector<128x64xf32>
    %2 = tpu.matmul %0, %1, %cst {dimension_numbers = #tpu.dot_dimension_numbers<[1], [0], [0], [1], [0, 0, 1, 1], [], []>} : vector<128x1728xbf16>, vector<1728x64xbf16>, vector<128x64xf32> -> vector<128x64xf32>
    %cst_3 = arith.constant 0.000000e+00 : f32
    %3 = vector.broadcast %cst_3 : f32 to vector<128x64xf32>
    %4 = arith.maximumf %2, %3 : vector<128x64xf32>
    %5 = arith.truncf %4 : vector<128x64xf32> to vector<128x64xbf16>
    %c0_4 = arith.constant 0 : index
    %c0_5 = arith.constant 0 : index
    %6 = vector.load %arg0[%c0_4, %c0_5] : memref<128x64xf32, #tpu.memory_space<vmem>>, vector<128x64xf32>
    %c0_6 = arith.constant 0 : index
    %c0_7 = arith.constant 0 : index
    %7 = vector.load %arg3[%c0_6, %c0_7] : memref<64x64xbf16, #tpu.memory_space<vmem>>, vector<64x64xbf16>
    %cst_8 = arith.constant dense<0.000000e+00> : vector<128x64xf32>
    %8 = tpu.matmul %5, %7, %cst_8 {dimension_numbers = #tpu.dot_dimension_numbers<[1], [0], [0], [1], [0, 0, 1, 1], [], []>} : vector<128x64xbf16>, vector<64x64xbf16>, vector<128x64xf32> -> vector<128x64xf32>
    %9 = arith.addf %6, %8 : vector<128x64xf32>
    %c0_9 = arith.constant 0 : index
    %c0_10 = arith.constant 0 : index
    %10 = vector.load %arg4[%c0_9, %c0_10] : memref<128x64xf32, #tpu.memory_space<vmem>>, vector<128x64xf32>
    tpu.vector_store %arg4[%c0_9, %c0_10], %9 {strides = array<i32>} : memref<128x64xf32, #tpu.memory_space<vmem>>, vector<128x64xf32>,
    return
  }
}

module attributes {stable_mosaic.version = 11 : i64} {
  func.func @_mm_kernel(%arg0: memref<128x64xbf16, #tpu.memory_space<vmem>>, %arg1: memref<64x64xbf16, #tpu.memory_space<vmem>>, %arg2: memref<1x64xf32, #tpu.memory_space<vmem>>, %arg3: memref<128x64xf32, #tpu.memory_space<vmem>>) attributes {dimension_semantics = [], scalar_prefetch = 0 : i64, scratch_operands = 0 : i64, tpu.core_type = #tpu.core_type<tc>} {
    %c0 = arith.constant 0 : index
    %c0_0 = arith.constant 0 : index
    %0 = vector.load %arg0[%c0, %c0_0] : memref<128x64xbf16, #tpu.memory_space<vmem>>, vector<128x64xbf16>
    %c0_1 = arith.constant 0 : index
    %c0_2 = arith.constant 0 : index
    %1 = vector.load %arg1[%c0_1, %c0_2] : memref<64x64xbf16, #tpu.memory_space<vmem>>, vector<64x64xbf16>
    %cst = arith.constant dense<0.000000e+00> : vector<128x64xf32>
    %2 = tpu.matmul %0, %1, %cst {dimension_numbers = #tpu.dot_dimension_numbers<[1], [0], [0], [1], [0, 0, 1, 1], [], []>} : vector<128x64xbf16>, vector<64x64xbf16>, vector<128x64xf32> -> vector<128x64xf32>
    %c0_3 = arith.constant 0 : index
    %c0_4 = arith.constant 0 : index
    %3 = vector.load %arg2[%c0_3, %c0_4] : memref<1x64xf32, #tpu.memory_space<vmem>>, vector<1x64xf32>
    %4 = vector.broadcast %3 : vector<1x64xf32> to vector<128x64xf32>
    %5 = arith.addf %2, %4 : vector<128x64xf32>
    %cst_5 = arith.constant 0.000000e+00 : f32
    %6 = vector.broadcast %cst_5 : f32 to vector<128x64xf32>
    %7 = arith.cmpf ogt, %5, %6 : vector<128x64xf32>
    %cst_6 = arith.constant 0.00999999977 : f32
    %8 = vector.broadcast %cst_6 : f32 to vector<128x64xf32>
    %9 = arith.mulf %8, %5 : vector<128x64xf32>
    %10 = arith.select %7, %5, %9 : vector<128x64xi1>, vector<128x64xf32>
    %c0_7 = arith.constant 0 : index
    %c0_8 = arith.constant 0 : index
    %11 = vector.load %arg3[%c0_7, %c0_8] : memref<128x64xf32, #tpu.memory_space<vmem>>, vector<128x64xf32>
    tpu.vector_store %arg3[%c0_7, %c0_8], %10 {strides = array<i32>} : memref<128x64xf32, #tpu.memory_space<vmem>>, vector<128x64xf32>,
    return
  }
}

module attributes {stable_mosaic.version = 11 : i64} {
  func.func @_vq_kernel(%arg0: memref<128x64xf32, #tpu.memory_space<vmem>>, %arg1: memref<64x512xf32, #tpu.memory_space<vmem>>, %arg2: memref<512x64xf32, #tpu.memory_space<vmem>>, %arg3: memref<1x512xf32, #tpu.memory_space<vmem>>, %arg4: memref<128x64xf32, #tpu.memory_space<vmem>>, %arg5: memref<128x1xi32, #tpu.memory_space<vmem>>) attributes {dimension_semantics = [], scalar_prefetch = 0 : i64, scratch_operands = 0 : i64, tpu.core_type = #tpu.core_type<tc>} {
    %c0 = arith.constant 0 : index
    %c0_0 = arith.constant 0 : index
    %0 = vector.load %arg3[%c0, %c0_0] : memref<1x512xf32, #tpu.memory_space<vmem>>, vector<1x512xf32>
    %c0_1 = arith.constant 0 : index
    %c0_2 = arith.constant 0 : index
    %1 = vector.load %arg0[%c0_1, %c0_2] : memref<128x64xf32, #tpu.memory_space<vmem>>, vector<128x64xf32>
    %c0_3 = arith.constant 0 : index
    %c0_4 = arith.constant 0 : index
    %2 = vector.load %arg1[%c0_3, %c0_4] : memref<64x512xf32, #tpu.memory_space<vmem>>, vector<64x512xf32>
    %cst = arith.constant dense<0.000000e+00> : vector<128x512xf32>
    %3 = tpu.matmul %1, %2, %cst {dimension_numbers = #tpu.dot_dimension_numbers<[1], [0], [0], [1], [0, 0, 1, 1], [], []>} : vector<128x64xf32>, vector<64x512xf32>, vector<128x512xf32> -> vector<128x512xf32>
    %cst_5 = arith.constant 2.000000e+00 : f32
    %4 = vector.broadcast %cst_5 : f32 to vector<128x512xf32>
    %5 = arith.mulf %4, %3 : vector<128x512xf32>
    %6 = vector.broadcast %0 : vector<1x512xf32> to vector<128x512xf32>
    %7 = arith.subf %6, %5 : vector<128x512xf32>
    %8 = tpu.iota {dimensions = array<i32: 1>} : vector<128x512xi32>
    %cst_6 = arith.constant dense<0x7F800000> : vector<128xf32>
    %9 = vector.multi_reduction <minimumf>, %7, %cst_6 [1] : vector<128x512xf32> to vector<128xf32>
    %10 = vector.shape_cast %9 : vector<128xf32> to vector<128x1xf32>
    %11 = vector.broadcast %10 : vector<128x1xf32> to vector<128x512xf32>
    %12 = arith.cmpf oeq, %7, %11 : vector<128x512xf32>
    %c512_i32 = arith.constant 512 : i32
    %13 = vector.broadcast %c512_i32 : i32 to vector<128x512xi32>
    %14 = arith.select %12, %8, %13 : vector<128x512xi1>, vector<128x512xi32>
    %cst_7 = arith.constant dense<2147483647> : vector<128xi32>
    %15 = vector.multi_reduction <minsi>, %14, %cst_7 [1] : vector<128x512xi32> to vector<128xi32>
    %16 = vector.shape_cast %15 : vector<128xi32> to vector<128x1xi32>
    %c0_8 = arith.constant 0 : index
    %c0_9 = arith.constant 0 : index
    %17 = vector.load %arg5[%c0_8, %c0_9] : memref<128x1xi32, #tpu.memory_space<vmem>>, vector<128x1xi32>
    tpu.vector_store %arg5[%c0_8, %c0_9], %16 {strides = array<i32>} : memref<128x1xi32, #tpu.memory_space<vmem>>, vector<128x1xi32>,
    %18 = vector.broadcast %16 : vector<128x1xi32> to vector<128x512xi32>
    %19 = arith.cmpi eq, %8, %18 : vector<128x512xi32>
    %20 = arith.extui %19 : vector<128x512xi1> to vector<128x512xi32>
    %21 = arith.sitofp %20 : vector<128x512xi32> to vector<128x512xf32>
    %c0_10 = arith.constant 0 : index
    %c0_11 = arith.constant 0 : index
    %22 = vector.load %arg2[%c0_10, %c0_11] : memref<512x64xf32, #tpu.memory_space<vmem>>, vector<512x64xf32>
    %cst_12 = arith.constant dense<0.000000e+00> : vector<128x64xf32>
    %23 = tpu.matmul %21, %22, %cst_12 {dimension_numbers = #tpu.dot_dimension_numbers<[1], [0], [0], [1], [0, 0, 1, 1], [], []>} : vector<128x512xf32>, vector<512x64xf32>, vector<128x64xf32> -> vector<128x64xf32>
    %c0_13 = arith.constant 0 : index
    %c0_14 = arith.constant 0 : index
    %24 = vector.load %arg4[%c0_13, %c0_14] : memref<128x64xf32, #tpu.memory_space<vmem>>, vector<128x64xf32>
    tpu.vector_store %arg4[%c0_13, %c0_14], %23 {strides = array<i32>} : memref<128x64xf32, #tpu.memory_space<vmem>>, vector<128x64xf32>,
    return
  }
}

module attributes {stable_mosaic.version = 11 : i64} {
  func.func @_mm_kernel(%arg0: memref<256x512xbf16, #tpu.memory_space<vmem>>, %arg1: memref<512x256xbf16, #tpu.memory_space<vmem>>, %arg2: memref<1x256xf32, #tpu.memory_space<vmem>>, %arg3: memref<256x256xf32, #tpu.memory_space<vmem>>) attributes {dimension_semantics = [], scalar_prefetch = 0 : i64, scratch_operands = 0 : i64, tpu.core_type = #tpu.core_type<tc>} {
    %c0 = arith.constant 0 : index
    %c0_0 = arith.constant 0 : index
    %0 = vector.load %arg0[%c0, %c0_0] : memref<256x512xbf16, #tpu.memory_space<vmem>>, vector<256x512xbf16>
    %c0_1 = arith.constant 0 : index
    %c0_2 = arith.constant 0 : index
    %1 = vector.load %arg1[%c0_1, %c0_2] : memref<512x256xbf16, #tpu.memory_space<vmem>>, vector<512x256xbf16>
    %cst = arith.constant dense<0.000000e+00> : vector<256x256xf32>
    %2 = tpu.matmul %0, %1, %cst {dimension_numbers = #tpu.dot_dimension_numbers<[1], [0], [0], [1], [0, 0, 1, 1], [], []>} : vector<256x512xbf16>, vector<512x256xbf16>, vector<256x256xf32> -> vector<256x256xf32>
    %c0_3 = arith.constant 0 : index
    %c0_4 = arith.constant 0 : index
    %3 = vector.load %arg2[%c0_3, %c0_4] : memref<1x256xf32, #tpu.memory_space<vmem>>, vector<1x256xf32>
    %4 = vector.broadcast %3 : vector<1x256xf32> to vector<256x256xf32>
    %5 = arith.addf %2, %4 : vector<256x256xf32>
    %cst_5 = arith.constant 0.000000e+00 : f32
    %6 = vector.broadcast %cst_5 : f32 to vector<256x256xf32>
    %7 = arith.cmpf ogt, %5, %6 : vector<256x256xf32>
    %cst_6 = arith.constant 0.00999999977 : f32
    %8 = vector.broadcast %cst_6 : f32 to vector<256x256xf32>
    %9 = arith.mulf %8, %5 : vector<256x256xf32>
    %10 = arith.select %7, %5, %9 : vector<256x256xi1>, vector<256x256xf32>
    %c0_7 = arith.constant 0 : index
    %c0_8 = arith.constant 0 : index
    %11 = vector.load %arg3[%c0_7, %c0_8] : memref<256x256xf32, #tpu.memory_space<vmem>>, vector<256x256xf32>
    tpu.vector_store %arg3[%c0_7, %c0_8], %10 {strides = array<i32>} : memref<256x256xf32, #tpu.memory_space<vmem>>, vector<256x256xf32>,
    return
  }
}

module attributes {stable_mosaic.version = 11 : i64} {
  func.func @_mm_kernel(%arg0: i32, %arg1: memref<512x256xbf16, #tpu.memory_space<vmem>>, %arg2: memref<256x8xbf16, #tpu.memory_space<vmem>>, %arg3: memref<1x8xf32, #tpu.memory_space<vmem>>, %arg4: memref<512x8xf32, #tpu.memory_space<vmem>>) attributes {dimension_semantics = [#tpu.dimension_semantics<parallel>], iteration_bounds = array<i64: 3>, scalar_prefetch = 0 : i64, scratch_operands = 0 : i64, tpu.core_type = #tpu.core_type<tc>, window_params = [{transform_indices = @transform_0, window_bounds = array<i64: 512, 256>}, {pipeline_mode = #tpu.pipeline_mode<synchronous>, transform_indices = @transform_1, window_bounds = array<i64: 256, 8>}, {pipeline_mode = #tpu.pipeline_mode<synchronous>, transform_indices = @transform_2, window_bounds = array<i64: 1, 8>}, {transform_indices = @transform_3, window_bounds = array<i64: 512, 8>}]} {
    %c0 = arith.constant 0 : index
    %c0_0 = arith.constant 0 : index
    %0 = vector.load %arg1[%c0, %c0_0] : memref<512x256xbf16, #tpu.memory_space<vmem>>, vector<512x256xbf16>
    %c0_1 = arith.constant 0 : index
    %c0_2 = arith.constant 0 : index
    %1 = vector.load %arg2[%c0_1, %c0_2] : memref<256x8xbf16, #tpu.memory_space<vmem>>, vector<256x8xbf16>
    %cst = arith.constant dense<0.000000e+00> : vector<512x8xf32>
    %2 = tpu.matmul %0, %1, %cst {dimension_numbers = #tpu.dot_dimension_numbers<[1], [0], [0], [1], [0, 0, 1, 1], [], []>} : vector<512x256xbf16>, vector<256x8xbf16>, vector<512x8xf32> -> vector<512x8xf32>
    %c0_3 = arith.constant 0 : index
    %c0_4 = arith.constant 0 : index
    %3 = vector.load %arg3[%c0_3, %c0_4] : memref<1x8xf32, #tpu.memory_space<vmem>>, vector<1x8xf32>
    %4 = vector.broadcast %3 : vector<1x8xf32> to vector<512x8xf32>
    %5 = arith.addf %2, %4 : vector<512x8xf32>
    %c0_5 = arith.constant 0 : index
    %c0_6 = arith.constant 0 : index
    %6 = vector.load %arg4[%c0_5, %c0_6] : memref<512x8xf32, #tpu.memory_space<vmem>>, vector<512x8xf32>
    tpu.vector_store %arg4[%c0_5, %c0_6], %5 {strides = array<i32>} : memref<512x8xf32, #tpu.memory_space<vmem>>, vector<512x8xf32>,
    return
  }
  func.func @transform_0(%arg0: i32) -> (i32, i32) {
    %c0_i32 = arith.constant 0 : i32
    %c0_i32_0 = arith.constant 0 : i32
    return %arg0, %c0_i32 : i32, i32
  }
  func.func @transform_1(%arg0: i32) -> (i32, i32) {
    %c0_i32 = arith.constant 0 : i32
    %c0_i32_0 = arith.constant 0 : i32
    %c0_i32_1 = arith.constant 0 : i32
    return %c0_i32, %c0_i32_0 : i32, i32
  }
  func.func @transform_2(%arg0: i32) -> (i32, i32) {
    %c0_i32 = arith.constant 0 : i32
    %c0_i32_0 = arith.constant 0 : i32
    %c0_i32_1 = arith.constant 0 : i32
    return %c0_i32, %c0_i32_0 : i32, i32
  }
  func.func @transform_3(%arg0: i32) -> (i32, i32) {
    %c0_i32 = arith.constant 0 : i32
    %c0_i32_0 = arith.constant 0 : i32
    return %arg0, %c0_i32 : i32, i32
  }
}

</mosaic_0001>

<llo_original>
// kernel: vqvae_forward.20
$region0: #{vqvae_forward.20}
  #allocation0 [shape = 'u32[]', space=smem, size = 0x4, offset = 0x4, fixed_abs, tag = 'smem constant byte address 0x4 - core index']
  #allocation1 [shape = 'u32[144,128]{1,0:T(1,128)}', space=vmem, size = 0x12000, scoped, tag = 'internal scratch']
  %s0 = inlined_call_operand.vmem [shape: bf16[1024,64], index: 0, kind: input, shape index: {}]
  %s1 = inlined_call_operand.vmem [shape: bf16[64,32], index: 1, kind: input, shape index: {}]
  %s2 = inlined_call_operand.vmem [shape: f32[1,32], index: 2, kind: input, shape index: {}]
  %s3 = inlined_call_operand.vmem [shape: f32[1024,32], index: 3, kind: output, shape index: {}]
  %s4 = sld [smem:[#allocation0]]
  $region45: #{vqvae_forward.20} parent=0
    _
  %s6 = ssub.s32 1, %s4
  %s7 = scalar_select 0, %s6, %s4
  loop: start=0, step=1, limit=4
  $region2: #{vqvae_forward.20} parent=0 // loop_pre_header
    _
  $region3: #{vqvae_forward.20} parent=0 // loop_header
    %s9 = sphi 0, %s13
    %p10 = scmp.ge.s32.totalorder %s9, 4
    %s19 = sphi 0, %s21
    %s22 = sphi 0, %s19
    %s23 = sphi 0, %s22
    %s39 = sphi 0, %s23
    %s43 = sphi 0, %s43
    %s45 = sphi 0, %s43
    %s46 = sphi 0, %s45
    %s60 = sphi 0, %s46
    %s64 = sphi 0, %s64
    %s66 = sphi 0, %s64
    %s67 = sphi 0, %s66
    %s81 = sphi 0, %s67
    %s87 = sphi 0, %s89
    %s90 = sphi 0, %s87
    %s91 = sphi 0, %s90
    %s107 = sphi 0, %s91
  $region4: #{vqvae_forward.20} parent=0 // loop_header_branch
    %12 = sbr.rel (%p10) target = $region8
  $region5: #{vqvae_forward.20} parent=0 // loop_body
    %s14 = ssub.s32 %s9, 1
    %s15 = ssub.s32 %s9, 2
    %s16 = sadd.s32 %s9, 1
    %s17 = ssub.s32 %s9, %s16
    %p18 = scmp.eq.s32.totalorder %s17, 0
    %s20 = sadd.s32 %s19, 1
    %s21 = scalar_select %p18, %s19, %s20
    %p24 = pneg %p18
    %p25 = scmp.eq.s32.totalorder %s9, 1
    %p26 = por %p24, %p25
    %p27 = scmp.ne.s32.totalorder %s19, %s22
    %p28 = scmp.eq.s32.totalorder %s9, 0
    %p29 = por %p27, %p28
    %p30 = scmp.ne.s32.totalorder %s19, %s22
    %p31 = scmp.eq.s32.totalorder %s14, 1
    %p32 = por %p30, %p31
    %p33 = scmp.ne.s32.totalorder %s22, %s23
    %p34 = scmp.eq.s32.totalorder %s14, 0
    %p35 = por %p33, %p34
    %p36 = scmp.ne.s32.totalorder %s22, %s23
    %p37 = scmp.eq.s32.totalorder %s15, 1
    %p38 = por %p36, %p37
    %p40 = scmp.ne.s32.totalorder %s23, %s39
    %p41 = scmp.eq.s32.totalorder %s15, 0
    %p42 = por %p40, %p41
    %s44 = sadd.s32 %s43, 1
    %p47 = scmp.eq.s32.totalorder %s9, 1
    %p48 = scmp.ne.s32.totalorder %s43, %s45
    %p49 = scmp.eq.s32.totalorder %s9, 0
    %p50 = por %p48, %p49
    %p51 = scmp.ne.s32.totalorder %s43, %s45
    %p52 = scmp.eq.s32.totalorder %s14, 1
    %p53 = por %p51, %p52
    %p54 = scmp.ne.s32.totalorder %s45, %s46
    %p55 = scmp.eq.s32.totalorder %s14, 0
    %p56 = por %p54, %p55
    %p57 = scmp.ne.s32.totalorder %s45, %s46
    %p58 = scmp.eq.s32.totalorder %s15, 1
    %p59 = por %p57, %p58
    %p61 = scmp.ne.s32.totalorder %s46, %s60
    %p62 = scmp.eq.s32.totalorder %s15, 0
    %p63 = por %p61, %p62
    %s65 = sadd.s32 %s64, 1
    %p68 = scmp.eq.s32.totalorder %s9, 1
    %p69 = scmp.ne.s32.totalorder %s64, %s66
    %p70 = scmp.eq.s32.totalorder %s9, 0
    %p71 = por %p69, %p70
    %p72 = scmp.ne.s32.totalorder %s64, %s66
    %p73 = scmp.eq.s32.totalorder %s14, 1
    %p74 = por %p72, %p73
    %p75 = scmp.ne.s32.totalorder %s66, %s67
    %p76 = scmp.eq.s32.totalorder %s14, 0
    %p77 = por %p75, %p76
    %p78 = scmp.ne.s32.totalorder %s66, %s67
    %p79 = scmp.eq.s32.totalorder %s15, 1
    %p80 = por %p78, %p79
    %p82 = scmp.ne.s32.totalorder %s67, %s81
    %p83 = scmp.eq.s32.totalorder %s15, 0
    %p84 = por %p82, %p83
    %s85 = ssub.s32 %s9, %s16
    %p86 = scmp.eq.s32.totalorder %s85, 0
    %s88 = sadd.s32 %s87, 1
    %s89 = scalar_select %p86, %s87, %s88
    %p92 = pneg %p86
    %p93 = scmp.eq.s32.totalorder %s9, 1
    %p94 = por %p92, %p93
    %p95 = scmp.ne.s32.totalorder %s87, %s90
    %p96 = scmp.eq.s32.totalorder %s9, 0
    %p97 = por %p95, %p96
    %p98 = scmp.ne.s32.totalorder %s87, %s90
    %p99 = scmp.eq.s32.totalorder %s14, 1
    %p100 = por %p98, %p99
    %p101 = scmp.ne.s32.totalorder %s90, %s91
    %p102 = scmp.eq.s32.totalorder %s14, 0
    %p103 = por %p101, %p102
    %p104 = scmp.ne.s32.totalorder %s90, %s91
    %p105 = scmp.eq.s32.totalorder %s15, 1
    %p106 = por %p104, %p105
    %p108 = scmp.ne.s32.totalorder %s91, %s107
    %p109 = scmp.eq.s32.totalorder %s15, 0
    %p110 = por %p108, %p109
    %p111 = scmp.le.s32.totalorder 1, %s9
    %p112 = scmp.lt.s32.totalorder %s9, 3
    %p113 = pnand %p111, %p112
    %p114 = pneg %p113
    // Predicated region
    $region9: #{vqvae_forward.20} parent=5 // pred_check
      _
    $region10: #{vqvae_forward.20} parent=5 // pred_check_branch
      %116 = sbr.rel (%p113) target = $region12
    $region11: #{vqvae_forward.20} parent=5 // pred_region
      %s117 = ssub.s32 %s9, 1
      // Predicated region
      $region13: #{vqvae_forward.20} parent=11 // pred_check
        %p118 = pneg %p56
      $region14: #{vqvae_forward.20} parent=11 // pred_check_branch
        %120 = sbr.rel (%p118) target = $region16
      $region15: #{vqvae_forward.20} parent=11 // pred_region
        _
      $region16: #{vqvae_forward.20} parent=11 // pred_fallthru
        _
      // Predicated region
      $region17: #{vqvae_forward.20} parent=11 // pred_check
        %p121 = pneg %p77
      $region18: #{vqvae_forward.20} parent=11 // pred_check_branch
        %123 = sbr.rel (%p121) target = $region20
      $region19: #{vqvae_forward.20} parent=11 // pred_region
        _
      $region20: #{vqvae_forward.20} parent=11 // pred_fallthru
        _
    $region12: #{vqvae_forward.20} parent=5 // pred_fallthru
      _
    %p124 = scmp.lt.s32.totalorder %s9, 2
    // Predicated region
    $region21: #{vqvae_forward.20} parent=5 // pred_check
      %p125 = pneg %p124
    $region22: #{vqvae_forward.20} parent=5 // pred_check_branch
      %127 = sbr.rel (%p125) target = $region24
    $region23: #{vqvae_forward.20} parent=5 // pred_region
      // Predicated region
      $region25: #{vqvae_forward.20} parent=23 // pred_check
        %p128 = pneg %p29
      $region26: #{vqvae_forward.20} parent=23 // pred_check_branch
        %130 = sbr.rel (%p128) target = $region28
      $region27: #{vqvae_forward.20} parent=23 // pred_region
        %s131 = smul.u32 64, %s9
        %p132 = scmp.lt.s32.totalorder %s131, 127
        %s133 = scalar_select %p132, %s131, 127
        %s134 = smul.addr %s133, 4
        %s135 = scalar_lea.vmem %s0, %s134
        %s136 = smul.u32 64, %s9
      $region28: #{vqvae_forward.20} parent=23 // pred_fallthru
        _
    $region24: #{vqvae_forward.20} parent=5 // pred_fallthru
      _
    %p137 = scmp.le.s32.totalorder 1, %s9
    %p138 = scmp.lt.s32.totalorder %s9, 3
    %p139 = pnand %p137, %p138
    %p140 = pneg %p139
    // Predicated region
    $region29: #{vqvae_forward.20} parent=5 // pred_check
      _
    $region30: #{vqvae_forward.20} parent=5 // pred_check_branch
      %142 = sbr.rel (%p139) target = $region32
    $region31: #{vqvae_forward.20} parent=5 // pred_region
      %s143 = ssub.s32 %s9, 1
      %s144 = smul.u32 64, %s14
      %p145 = scmp.lt.s32.totalorder %s144, 127
      %s146 = scalar_select %p145, %s144, 127
      %s147 = smul.addr %s146, 4
      %s148 = scalar_lea.vmem %s0, %s147
      %p149 = pneg %p35
      %p150 = pneg %p32
      %p151 = pneg %p56
      %p152 = pneg %p53
      %p153 = pneg %p77
      %p154 = pneg %p74
      %p155 = pneg %p103
      %p156 = pneg %p100
      %s157 = smul.u32 64, %s14
      %p158 = scmp.lt.s32.totalorder %s157, 127
      %s159 = scalar_select %p158, %s157, 127
      %s160 = smul.addr %s159, 8
      %s161 = scalar_lea.vmem %s3, %s160
      %s162 = smul.u32 64, %s14
      %p163 = scmp.lt.s32.totalorder %s162, 127
      %s164 = scalar_select %p163, %s162, 127
      %s165 = smul.addr %s164, 4
      %s166 = scalar_lea.vmem %s0, %s165
      %s167 = smul.u32 64, %s14
      %s168 = smul.u32 64, %s14
      %p169 = scmp.lt.s32.totalorder %s168, 127
      %s170 = scalar_select %p169, %s168, 127
      %s171 = smul.addr %s170, 8
      %s172 = scalar_lea.vmem %s3, %s171
      %s173 = smul.u32 64, %s14
      %v175 = vld [vmem:[%s166] sm:$0xf]
      %v176 = vld [vmem:[%s166 + $0x4] sm:$0xf]
      %v177 = vld [vmem:[%s166 + $0x8] sm:$0xf]
      %v178 = vld [vmem:[%s166 + $0xc] sm:$0xf]
      %v179 = vld [vmem:[%s166 + $0x10] sm:$0xf]
      %v180 = vld [vmem:[%s166 + $0x14] sm:$0xf]
      %v181 = vld [vmem:[%s166 + $0x18] sm:$0xf]
      %v182 = vld [vmem:[%s166 + $0x1c] sm:$0xf]
      %v183 = vld [vmem:[%s166 + $0x20] sm:$0xf]
      %v184 = vld [vmem:[%s166 + $0x24] sm:$0xf]
      %v185 = vld [vmem:[%s166 + $0x28] sm:$0xf]
      %v186 = vld [vmem:[%s166 + $0x2c] sm:$0xf]
      %v187 = vld [vmem:[%s166 + $0x30] sm:$0xf]
      %v188 = vld [vmem:[%s166 + $0x34] sm:$0xf]
      %v189 = vld [vmem:[%s166 + $0x38] sm:$0xf]
      %v190 = vld [vmem:[%s166 + $0x3c] sm:$0xf]
      %v191 = vld [vmem:[%s166 + $0x40] sm:$0xf]
      %v192 = vld [vmem:[%s166 + $0x44] sm:$0xf]
      %v193 = vld [vmem:[%s166 + $0x48] sm:$0xf]
      %v194 = vld [vmem:[%s166 + $0x4c] sm:$0xf]
      %v195 = vld [vmem:[%s166 + $0x50] sm:$0xf]
      %v196 = vld [vmem:[%s166 + $0x54] sm:$0xf]
      %v197 = vld [vmem:[%s166 + $0x58] sm:$0xf]
      %v198 = vld [vmem:[%s166 + $0x5c] sm:$0xf]
      %v199 = vld [vmem:[%s166 + $0x60] sm:$0xf]
      %v200 = vld [vmem:[%s166 + $0x64] sm:$0xf]
      %v201 = vld [vmem:[%s166 + $0x68] sm:$0xf]
      %v202 = vld [vmem:[%s166 + $0x6c] sm:$0xf]
      %v203 = vld [vmem:[%s166 + $0x70] sm:$0xf]
      %v204 = vld [vmem:[%s166 + $0x74] sm:$0xf]
      %v205 = vld [vmem:[%s166 + $0x78] sm:$0xf]
      %v206 = vld [vmem:[%s166 + $0x7c] sm:$0xf]
      %v207 = vld [vmem:[%s166 + $0x80] sm:$0xf]
      %v208 = vld [vmem:[%s166 + $0x84] sm:$0xf]
      %v209 = vld [vmem:[%s166 + $0x88] sm:$0xf]
      %v210 = vld [vmem:[%s166 + $0x8c] sm:$0xf]
      %v211 = vld [vmem:[%s166 + $0x90] sm:$0xf]
      %v212 = vld [vmem:[%s166 + $0x94] sm:$0xf]
      %v213 = vld [vmem:[%s166 + $0x98] sm:$0xf]
      %v214 = vld [vmem:[%s166 + $0x9c] sm:$0xf]
      %v215 = vld [vmem:[%s166 + $0xa0] sm:$0xf]
      %v216 = vld [vmem:[%s166 + $0xa4] sm:$0xf]
      %v217 = vld [vmem:[%s166 + $0xa8] sm:$0xf]
      %v218 = vld [vmem:[%s166 + $0xac] sm:$0xf]
      %v219 = vld [vmem:[%s166 + $0xb0] sm:$0xf]
      %v220 = vld [vmem:[%s166 + $0xb4] sm:$0xf]
      %v221 = vld [vmem:[%s166 + $0xb8] sm:$0xf]
      %v222 = vld [vmem:[%s166 + $0xbc] sm:$0xf]
      %v223 = vld [vmem:[%s166 + $0xc0] sm:$0xf]
      %v224 = vld [vmem:[%s166 + $0xc4] sm:$0xf]
      %v225 = vld [vmem:[%s166 + $0xc8] sm:$0xf]
      %v226 = vld [vmem:[%s166 + $0xcc] sm:$0xf]
      %v227 = vld [vmem:[%s166 + $0xd0] sm:$0xf]
      %v228 = vld [vmem:[%s166 + $0xd4] sm:$0xf]
      %v229 = vld [vmem:[%s166 + $0xd8] sm:$0xf]
      %v230 = vld [vmem:[%s166 + $0xdc] sm:$0xf]
      %v231 = vld [vmem:[%s166 + $0xe0] sm:$0xf]
      %v232 = vld [vmem:[%s166 + $0xe4] sm:$0xf]
      %v233 = vld [vmem:[%s166 + $0xe8] sm:$0xf]
      %v234 = vld [vmem:[%s166 + $0xec] sm:$0xf]
      %v235 = vld [vmem:[%s166 + $0xf0] sm:$0xf]
      %v236 = vld [vmem:[%s166 + $0xf4] sm:$0xf]
      %v237 = vld [vmem:[%s166 + $0xf8] sm:$0xf]
      %v238 = vld [vmem:[%s166 + $0xfc] sm:$0xf]
      %v239 = vld [vmem:[%s1] sm:$0xf]
      %v240 = vld [vmem:[%s1 + $0x4] sm:$0xf]
      %v241 = vld [vmem:[%s1 + $0x8] sm:$0xf]
      %v242 = vld [vmem:[%s1 + $0xc] sm:$0xf]
      %v243 = vld [vmem:[%s1 + $0x10] sm:$0xf]
      %v244 = vld [vmem:[%s1 + $0x14] sm:$0xf]
      %v245 = vld [vmem:[%s1 + $0x18] sm:$0xf]
      %v246 = vld [vmem:[%s1 + $0x1c] sm:$0xf]
      %v247 = vld [vmem:[%s2] sm:$0x1]
      %v249 = vlaneseq
      %v250 = vshrl.u32 %v249, 7
      %v251 = vsub.s32 0, %v250
      %v252 = vrot.slane %v247, %v251
      %v318 = vunpack.c.l.b16 %v175
      %v319 = vunpack.c.l.b16 %v176
      %v320 = vunpack.c.l.b16 %v177
      %v321 = vunpack.c.l.b16 %v178
      %v322 = vunpack.c.l.b16 %v179
      %v323 = vunpack.c.l.b16 %v180
      %v324 = vunpack.c.l.b16 %v181
      %v325 = vunpack.c.l.b16 %v182
      %v326 = vunpack.c.l.b16 %v183
      %v327 = vunpack.c.l.b16 %v184
      %v328 = vunpack.c.l.b16 %v185
      %v329 = vunpack.c.l.b16 %v186
      %v330 = vunpack.c.l.b16 %v187
      %v331 = vunpack.c.l.b16 %v188
      %v332 = vunpack.c.l.b16 %v189
      %v333 = vunpack.c.l.b16 %v190
      %v334 = vunpack.c.l.b16 %v191
      %v335 = vunpack.c.l.b16 %v192
      %v336 = vunpack.c.l.b16 %v193
      %v337 = vunpack.c.l.b16 %v194
      %v338 = vunpack.c.l.b16 %v195
      %v339 = vunpack.c.l.b16 %v196
      %v340 = vunpack.c.l.b16 %v197
      %v341 = vunpack.c.l.b16 %v198
      %v342 = vunpack.c.l.b16 %v199
      %v343 = vunpack.c.l.b16 %v200
      %v344 = vunpack.c.l.b16 %v201
      %v345 = vunpack.c.l.b16 %v202
      %v346 = vunpack.c.l.b16 %v203
      %v347 = vunpack.c.l.b16 %v204
      %v348 = vunpack.c.l.b16 %v205
      %v349 = vunpack.c.l.b16 %v206
      %v350 = vunpack.c.l.b16 %v207
      %v351 = vunpack.c.l.b16 %v208
      %v352 = vunpack.c.l.b16 %v209
      %v353 = vunpack.c.l.b16 %v210
      %v354 = vunpack.c.l.b16 %v211
      %v355 = vunpack.c.l.b16 %v212
      %v356 = vunpack.c.l.b16 %v213
      %v357 = vunpack.c.l.b16 %v214
      %v358 = vunpack.c.l.b16 %v215
      %v359 = vunpack.c.l.b16 %v216
      %v360 = vunpack.c.l.b16 %v217
      %v361 = vunpack.c.l.b16 %v218
      %v362 = vunpack.c.l.b16 %v219
      %v363 = vunpack.c.l.b16 %v220
      %v364 = vunpack.c.l.b16 %v221
      %v365 = vunpack.c.l.b16 %v222
      %v366 = vunpack.c.l.b16 %v223
      %v367 = vunpack.c.l.b16 %v224
      %v368 = vunpack.c.l.b16 %v225
      %v369 = vunpack.c.l.b16 %v226
      %v370 = vunpack.c.l.b16 %v227
      %v371 = vunpack.c.l.b16 %v228
      %v372 = vunpack.c.l.b16 %v229
      %v373 = vunpack.c.l.b16 %v230
      %v374 = vunpack.c.l.b16 %v231
      %v375 = vunpack.c.l.b16 %v232
      %v376 = vunpack.c.l.b16 %v233
      %v377 = vunpack.c.l.b16 %v234
      %v378 = vunpack.c.l.b16 %v235
      %v379 = vunpack.c.l.b16 %v236
      %v380 = vunpack.c.l.b16 %v237
      %v381 = vunpack.c.l.b16 %v238
      %v382 = vpack.c.b16 %v319, %v318
      %v383 = vpack.c.b16 %v321, %v320
      %v384 = vpack.c.b16 %v323, %v322
      %v385 = vpack.c.b16 %v325, %v324
      %v386 = vpack.c.b16 %v327, %v326
      %v387 = vpack.c.b16 %v329, %v328
      %v388 = vpack.c.b16 %v331, %v330
      %v389 = vpack.c.b16 %v333, %v332
      %v390 = vpack.c.b16 %v335, %v334
      %v391 = vpack.c.b16 %v337, %v336
      %v392 = vpack.c.b16 %v339, %v338
      %v393 = vpack.c.b16 %v341, %v340
      %v394 = vpack.c.b16 %v343, %v342
      %v395 = vpack.c.b16 %v345, %v344
      %v396 = vpack.c.b16 %v347, %v346
      %v397 = vpack.c.b16 %v349, %v348
      %v398 = vpack.c.b16 %v351, %v350
      %v399 = vpack.c.b16 %v353, %v352
      %v400 = vpack.c.b16 %v355, %v354
      %v401 = vpack.c.b16 %v357, %v356
      %v402 = vpack.c.b16 %v359, %v358
      %v403 = vpack.c.b16 %v361, %v360
      %v404 = vpack.c.b16 %v363, %v362
      %v405 = vpack.c.b16 %v365, %v364
      %v406 = vpack.c.b16 %v367, %v366
      %v407 = vpack.c.b16 %v369, %v368
      %v408 = vpack.c.b16 %v371, %v370
      %v409 = vpack.c.b16 %v373, %v372
      %v410 = vpack.c.b16 %v375, %v374
      %v411 = vpack.c.b16 %v377, %v376
      %v412 = vpack.c.b16 %v379, %v378
      %v413 = vpack.c.b16 %v381, %v380
      %v422 = vunpack.c.l.b16 %v239
      %v423 = vunpack.c.l.b16 %v240
      %v424 = vunpack.c.l.b16 %v241
      %v425 = vunpack.c.l.b16 %v242
      %v426 = vunpack.c.l.b16 %v243
      %v427 = vunpack.c.l.b16 %v244
      %v428 = vunpack.c.l.b16 %v245
      %v429 = vunpack.c.l.b16 %v246
      %v430 = vpack.c.b16 %v423, %v422
      %v431 = vpack.c.b16 %v425, %v424
      %v432 = vpack.c.b16 %v427, %v426
      %v433 = vpack.c.b16 %v429, %v428
      %vm438 = vcmask 523264
      %v440 = vsel %vm438, %v382, 0
      %v443 = vsel %vm438, %v383, 0
      %v446 = vsel %vm438, %v384, 0
      %v449 = vsel %vm438, %v385, 0
      %v452 = vsel %vm438, %v386, 0
      %v455 = vsel %vm438, %v387, 0
      %v458 = vsel %vm438, %v388, 0
      %v461 = vsel %vm438, %v389, 0
      %v464 = vsel %vm438, %v390, 0
      %v467 = vsel %vm438, %v391, 0
      %v470 = vsel %vm438, %v392, 0
      %v473 = vsel %vm438, %v393, 0
      %v476 = vsel %vm438, %v394, 0
      %v479 = vsel %vm438, %v395, 0
      %v482 = vsel %vm438, %v396, 0
      %v485 = vsel %vm438, %v397, 0
      %v488 = vsel %vm438, %v398, 0
      %v491 = vsel %vm438, %v399, 0
      %v494 = vsel %vm438, %v400, 0
      %v497 = vsel %vm438, %v401, 0
      %v500 = vsel %vm438, %v402, 0
      %v503 = vsel %vm438, %v403, 0
      %v506 = vsel %vm438, %v404, 0
      %v509 = vsel %vm438, %v405, 0
      %v512 = vsel %vm438, %v406, 0
      %v515 = vsel %vm438, %v407, 0
      %v518 = vsel %vm438, %v408, 0
      %v521 = vsel %vm438, %v409, 0
      %v524 = vsel %vm438, %v410, 0
      %v527 = vsel %vm438, %v411, 0
      %v530 = vsel %vm438, %v412, 0
      %v533 = vsel %vm438, %v413, 0
      %535 = vmatprep.subr.bf16.mxu0 0
      %536 = vmatpush1.bf16.msra.mxu0 0
      %537 = vmatprep.subr.bf16.mxu0 0
      %538 = vmatpush1.bf16.msra.mxu0 0
      %539 = vmatprep.subr.bf16.mxu0 0
      %540 = vmatpush1.bf16.msra.mxu0 0
      %541 = vmatprep.subr.bf16.mxu0 0
      %542 = vmatpush1.bf16.msra.mxu0 0
      %543 = vmatprep.subr.bf16.mxu0 0
      %544 = vmatpush1.bf16.msra.mxu0 %v433
      %545 = vmatprep.subr.bf16.mxu0 0
      %546 = vmatpush1.bf16.msra.mxu0 %v432
      %547 = vmatprep.subr.bf16.mxu0 0
      %548 = vmatpush1.bf16.msra.mxu0 %v431
      %549 = vmatprep.subr.bf16.mxu0 0
      %550 = vmatpush1.bf16.msra.mxu0 %v430
      %551 = vmatprep.subr.bf16.mxu0 0
      %552 = vmatpush2.bf16.msra.mxu0 0
      %553 = vmatprep.subr.bf16.mxu0 0
      %554 = vmatpush2.bf16.msra.mxu0 0
      %555 = vmatprep.subr.bf16.mxu0 0
      %556 = vmatpush2.bf16.msra.mxu0 0
      %557 = vmatprep.subr.bf16.mxu0 0
      %558 = vmatpush2.bf16.msra.mxu0 0
      %559 = vmatprep.subr.bf16.mxu0 0
      %560 = vmatpush2.bf16.msra.mxu0 0
      %561 = vmatprep.subr.bf16.mxu0 0
      %562 = vmatpush2.bf16.msra.mxu0 0
      %563 = vmatprep.subr.bf16.mxu0 0
      %564 = vmatpush2.bf16.msra.mxu0 0
      %565 = vmatprep.subr.bf16.mxu0 0
      %566 = vmatpush2.bf16.msra.mxu0 0
      %567 = vmatprep.mubr.bf16.mxu0 0
      %568 = vmatmul.mubr.bf16.gmra.mxu0 %v440
      %v569 = vpop.f32.mrf.mxu0
      %v570 = vadd.f32 %v252, %v569
      %v571 = vpop.f32.mrf.mxu0
      %v572 = vpop.f32.mrf.mxu0
      %v573 = vadd.f32 %v252, %v572
      %v574 = vpop.f32.mrf.mxu0
      %575 = vmatprep.mubr.bf16.mxu0 0
      %576 = vmatmul.mubr.bf16.gmra.mxu0 %v443
      %v577 = vpop.f32.mrf.mxu0
      %v578 = vadd.f32 %v252, %v577
      %v579 = vpop.f32.mrf.mxu0
      %v580 = vpop.f32.mrf.mxu0
      %v581 = vadd.f32 %v252, %v580
      %v582 = vpop.f32.mrf.mxu0
      %583 = vmatprep.mubr.bf16.mxu0 0
      %584 = vmatmul.mubr.bf16.gmra.mxu0 %v446
      %v585 = vpop.f32.mrf.mxu0
      %v586 = vadd.f32 %v252, %v585
      %v587 = vpop.f32.mrf.mxu0
      %v588 = vpop.f32.mrf.mxu0
      %v589 = vadd.f32 %v252, %v588
      %v590 = vpop.f32.mrf.mxu0
      %591 = vmatprep.mubr.bf16.mxu0 0
      %592 = vmatmul.mubr.bf16.gmra.mxu0 %v449
      %v593 = vpop.f32.mrf.mxu0
      %v594 = vadd.f32 %v252, %v593
      %v595 = vpop.f32.mrf.mxu0
      %v596 = vpop.f32.mrf.mxu0
      %v597 = vadd.f32 %v252, %v596
      %v598 = vpop.f32.mrf.mxu0
      %599 = vmatprep.mubr.bf16.mxu0 0
      %600 = vmatmul.mubr.bf16.gmra.mxu0 %v452
      %v601 = vpop.f32.mrf.mxu0
      %v602 = vadd.f32 %v252, %v601
      %v603 = vpop.f32.mrf.mxu0
      %v604 = vpop.f32.mrf.mxu0
      %v605 = vadd.f32 %v252, %v604
      %v606 = vpop.f32.mrf.mxu0
      %607 = vmatprep.mubr.bf16.mxu0 0
      %608 = vmatmul.mubr.bf16.gmra.mxu0 %v455
      %v609 = vpop.f32.mrf.mxu0
      %v610 = vadd.f32 %v252, %v609
      %v611 = vpop.f32.mrf.mxu0
      %v612 = vpop.f32.mrf.mxu0
      %v613 = vadd.f32 %v252, %v612
      %v614 = vpop.f32.mrf.mxu0
      %615 = vmatprep.mubr.bf16.mxu0 0
      %616 = vmatmul.mubr.bf16.gmra.mxu0 %v458
      %v617 = vpop.f32.mrf.mxu0
      %v618 = vadd.f32 %v252, %v617
      %v619 = vpop.f32.mrf.mxu0
      %v620 = vpop.f32.mrf.mxu0
      %v621 = vadd.f32 %v252, %v620
      %v622 = vpop.f32.mrf.mxu0
      %623 = vmatprep.mubr.bf16.mxu0 0
      %624 = vmatmul.mubr.bf16.gmra.mxu0 %v461
      %v625 = vpop.f32.mrf.mxu0
      %v626 = vadd.f32 %v252, %v625
      %v627 = vpop.f32.mrf.mxu0
      %v628 = vpop.f32.mrf.mxu0
      %v629 = vadd.f32 %v252, %v628
      %v630 = vpop.f32.mrf.mxu0
      %631 = vmatprep.mubr.bf16.mxu0 0
      %632 = vmatmul.mubr.bf16.gmra.mxu0 %v464
      %v633 = vpop.f32.mrf.mxu0
      %v634 = vadd.f32 %v252, %v633
      %v635 = vpop.f32.mrf.mxu0
      %v636 = vpop.f32.mrf.mxu0
      %v637 = vadd.f32 %v252, %v636
      %v638 = vpop.f32.mrf.mxu0
      %639 = vmatprep.mubr.bf16.mxu0 0
      %640 = vmatmul.mubr.bf16.gmra.mxu0 %v467
      %v641 = vpop.f32.mrf.mxu0
      %v642 = vadd.f32 %v252, %v641
      %v643 = vpop.f32.mrf.mxu0
      %v644 = vpop.f32.mrf.mxu0
      %v645 = vadd.f32 %v252, %v644
      %v646 = vpop.f32.mrf.mxu0
      %647 = vmatprep.mubr.bf16.mxu0 0
      %648 = vmatmul.mubr.bf16.gmra.mxu0 %v470
      %v649 = vpop.f32.mrf.mxu0
      %v650 = vadd.f32 %v252, %v649
      %v651 = vpop.f32.mrf.mxu0
      %v652 = vpop.f32.mrf.mxu0
      %v653 = vadd.f32 %v252, %v652
      %v654 = vpop.f32.mrf.mxu0
      %655 = vmatprep.mubr.bf16.mxu0 0
      %656 = vmatmul.mubr.bf16.gmra.mxu0 %v473
      %v657 = vpop.f32.mrf.mxu0
      %v658 = vadd.f32 %v252, %v657
      %v659 = vpop.f32.mrf.mxu0
      %v660 = vpop.f32.mrf.mxu0
      %v661 = vadd.f32 %v252, %v660
      %v662 = vpop.f32.mrf.mxu0
      %663 = vmatprep.mubr.bf16.mxu0 0
      %664 = vmatmul.mubr.bf16.gmra.mxu0 %v476
      %v665 = vpop.f32.mrf.mxu0
      %v666 = vadd.f32 %v252, %v665
      %v667 = vpop.f32.mrf.mxu0
      %v668 = vpop.f32.mrf.mxu0
      %v669 = vadd.f32 %v252, %v668
      %v670 = vpop.f32.mrf.mxu0
      %671 = vmatprep.mubr.bf16.mxu0 0
      %672 = vmatmul.mubr.bf16.gmra.mxu0 %v479
      %v673 = vpop.f32.mrf.mxu0
      %v674 = vadd.f32 %v252, %v673
      %v675 = vpop.f32.mrf.mxu0
      %v676 = vpop.f32.mrf.mxu0
      %v677 = vadd.f32 %v252, %v676
      %v678 = vpop.f32.mrf.mxu0
      %679 = vmatprep.mubr.bf16.mxu0 0
      %680 = vmatmul.mubr.bf16.gmra.mxu0 %v482
      %v681 = vpop.f32.mrf.mxu0
      %v682 = vadd.f32 %v252, %v681
      %v683 = vpop.f32.mrf.mxu0
      %v684 = vpop.f32.mrf.mxu0
      %v685 = vadd.f32 %v252, %v684
      %v686 = vpop.f32.mrf.mxu0
      %687 = vmatprep.mubr.bf16.mxu0 0
      %688 = vmatmul.mubr.bf16.gmra.mxu0 %v485
      %v689 = vpop.f32.mrf.mxu0
      %v690 = vadd.f32 %v252, %v689
      %v691 = vpop.f32.mrf.mxu0
      %v692 = vpop.f32.mrf.mxu0
      %v693 = vadd.f32 %v252, %v692
      %v694 = vpop.f32.mrf.mxu0
      %695 = vmatprep.mubr.bf16.mxu0 0
      %696 = vmatmul.mubr.bf16.gmra.mxu0 %v488
      %v697 = vpop.f32.mrf.mxu0
      %v698 = vadd.f32 %v252, %v697
      %v699 = vpop.f32.mrf.mxu0
      %v700 = vpop.f32.mrf.mxu0
      %v701 = vadd.f32 %v252, %v700
      %v702 = vpop.f32.mrf.mxu0
      %703 = vmatprep.mubr.bf16.mxu0 0
      %704 = vmatmul.mubr.bf16.gmra.mxu0 %v491
      %v705 = vpop.f32.mrf.mxu0
      %v706 = vadd.f32 %v252, %v705
      %v707 = vpop.f32.mrf.mxu0
      %v708 = vpop.f32.mrf.mxu0
      %v709 = vadd.f32 %v252, %v708
      %v710 = vpop.f32.mrf.mxu0
      %711 = vmatprep.mubr.bf16.mxu0 0
      %712 = vmatmul.mubr.bf16.gmra.mxu0 %v494
      %v713 = vpop.f32.mrf.mxu0
      %v714 = vadd.f32 %v252, %v713
      %v715 = vpop.f32.mrf.mxu0
      %v716 = vpop.f32.mrf.mxu0
      %v717 = vadd.f32 %v252, %v716
      %v718 = vpop.f32.mrf.mxu0
      %719 = vmatprep.mubr.bf16.mxu0 0
      %720 = vmatmul.mubr.bf16.gmra.mxu0 %v497
      %v721 = vpop.f32.mrf.mxu0
      %v722 = vadd.f32 %v252, %v721
      %v723 = vpop.f32.mrf.mxu0
      %v724 = vpop.f32.mrf.mxu0
      %v725 = vadd.f32 %v252, %v724
      %v726 = vpop.f32.mrf.mxu0
      %727 = vmatprep.mubr.bf16.mxu0 0
      %728 = vmatmul.mubr.bf16.gmra.mxu0 %v500
      %v729 = vpop.f32.mrf.mxu0
      %v730 = vadd.f32 %v252, %v729
      %v731 = vpop.f32.mrf.mxu0
      %v732 = vpop.f32.mrf.mxu0
      %v733 = vadd.f32 %v252, %v732
      %v734 = vpop.f32.mrf.mxu0
      %735 = vmatprep.mubr.bf16.mxu0 0
      %736 = vmatmul.mubr.bf16.gmra.mxu0 %v503
      %v737 = vpop.f32.mrf.mxu0
      %v738 = vadd.f32 %v252, %v737
      %v739 = vpop.f32.mrf.mxu0
      %v740 = vpop.f32.mrf.mxu0
      %v741 = vadd.f32 %v252, %v740
      %v742 = vpop.f32.mrf.mxu0
      %743 = vmatprep.mubr.bf16.mxu0 0
      %744 = vmatmul.mubr.bf16.gmra.mxu0 %v506
      %v745 = vpop.f32.mrf.mxu0
      %v746 = vadd.f32 %v252, %v745
      %v747 = vpop.f32.mrf.mxu0
      %v748 = vpop.f32.mrf.mxu0
      %v749 = vadd.f32 %v252, %v748
      %v750 = vpop.f32.mrf.mxu0
      %751 = vmatprep.mubr.bf16.mxu0 0
      %752 = vmatmul.mubr.bf16.gmra.mxu0 %v509
      %v753 = vpop.f32.mrf.mxu0
      %v754 = vadd.f32 %v252, %v753
      %v755 = vpop.f32.mrf.mxu0
      %v756 = vpop.f32.mrf.mxu0
      %v757 = vadd.f32 %v252, %v756
      %v758 = vpop.f32.mrf.mxu0
      %759 = vmatprep.mubr.bf16.mxu0 0
      %760 = vmatmul.mubr.bf16.gmra.mxu0 %v512
      %v761 = vpop.f32.mrf.mxu0
      %v762 = vadd.f32 %v252, %v761
      %v763 = vpop.f32.mrf.mxu0
      %v764 = vpop.f32.mrf.mxu0
      %v765 = vadd.f32 %v252, %v764
      %v766 = vpop.f32.mrf.mxu0
      %767 = vmatprep.mubr.bf16.mxu0 0
      %768 = vmatmul.mubr.bf16.gmra.mxu0 %v515
      %v769 = vpop.f32.mrf.mxu0
      %v770 = vadd.f32 %v252, %v769
      %v771 = vpop.f32.mrf.mxu0
      %v772 = vpop.f32.mrf.mxu0
      %v773 = vadd.f32 %v252, %v772
      %v774 = vpop.f32.mrf.mxu0
      %775 = vmatprep.mubr.bf16.mxu0 0
      %776 = vmatmul.mubr.bf16.gmra.mxu0 %v518
      %v777 = vpop.f32.mrf.mxu0
      %v778 = vadd.f32 %v252, %v777
      %v779 = vpop.f32.mrf.mxu0
      %v780 = vpop.f32.mrf.mxu0
      %v781 = vadd.f32 %v252, %v780
      %v782 = vpop.f32.mrf.mxu0
      %783 = vmatprep.mubr.bf16.mxu0 0
      %784 = vmatmul.mubr.bf16.gmra.mxu0 %v521
      %v785 = vpop.f32.mrf.mxu0
      %v786 = vadd.f32 %v252, %v785
      %v787 = vpop.f32.mrf.mxu0
      %v788 = vpop.f32.mrf.mxu0
      %v789 = vadd.f32 %v252, %v788
      %v790 = vpop.f32.mrf.mxu0
      %791 = vmatprep.mubr.bf16.mxu0 0
      %792 = vmatmul.mubr.bf16.gmra.mxu0 %v524
      %v793 = vpop.f32.mrf.mxu0
      %v794 = vadd.f32 %v252, %v793
      %v795 = vpop.f32.mrf.mxu0
      %v796 = vpop.f32.mrf.mxu0
      %v797 = vadd.f32 %v252, %v796
      %v798 = vpop.f32.mrf.mxu0
      %799 = vmatprep.mubr.bf16.mxu0 0
      %800 = vmatmul.mubr.bf16.gmra.mxu0 %v527
      %v801 = vpop.f32.mrf.mxu0
      %v802 = vadd.f32 %v252, %v801
      %v803 = vpop.f32.mrf.mxu0
      %v804 = vpop.f32.mrf.mxu0
      %v805 = vadd.f32 %v252, %v804
      %v806 = vpop.f32.mrf.mxu0
      %807 = vmatprep.mubr.bf16.mxu0 0
      %808 = vmatmul.mubr.bf16.gmra.mxu0 %v530
      %v809 = vpop.f32.mrf.mxu0
      %v810 = vadd.f32 %v252, %v809
      %v811 = vpop.f32.mrf.mxu0
      %v812 = vpop.f32.mrf.mxu0
      %v813 = vadd.f32 %v252, %v812
      %v814 = vpop.f32.mrf.mxu0
      %815 = vmatprep.mubr.bf16.mxu0 0
      %816 = vmatmul.mubr.bf16.gmra.mxu0 %v533
      %v817 = vpop.f32.mrf.mxu0
      %v818 = vadd.f32 %v252, %v817
      %v819 = vpop.f32.mrf.mxu0
      %v820 = vpop.f32.mrf.mxu0
      %v821 = vadd.f32 %v252, %v820
      %v822 = vpop.f32.mrf.mxu0
      %823 = vdwg.mxu0
      %vm824 = vcmp.gt.f32.partialorder %v570, 0.0
      %vm825 = vcmp.gt.f32.partialorder %v573, 0.0
      %vm826 = vcmp.gt.f32.partialorder %v578, 0.0
      %vm827 = vcmp.gt.f32.partialorder %v581, 0.0
      %vm828 = vcmp.gt.f32.partialorder %v586, 0.0
      %vm829 = vcmp.gt.f32.partialorder %v589, 0.0
      %vm830 = vcmp.gt.f32.partialorder %v594, 0.0
      %vm831 = vcmp.gt.f32.partialorder %v597, 0.0
      %vm832 = vcmp.gt.f32.partialorder %v602, 0.0
      %vm833 = vcmp.gt.f32.partialorder %v605, 0.0
      %vm834 = vcmp.gt.f32.partialorder %v610, 0.0
      %vm835 = vcmp.gt.f32.partialorder %v613, 0.0
      %vm836 = vcmp.gt.f32.partialorder %v618, 0.0
      %vm837 = vcmp.gt.f32.partialorder %v621, 0.0
      %vm838 = vcmp.gt.f32.partialorder %v626, 0.0
      %vm839 = vcmp.gt.f32.partialorder %v629, 0.0
      %vm840 = vcmp.gt.f32.partialorder %v634, 0.0
      %vm841 = vcmp.gt.f32.partialorder %v637, 0.0
      %vm842 = vcmp.gt.f32.partialorder %v642, 0.0
      %vm843 = vcmp.gt.f32.partialorder %v645, 0.0
      %vm844 = vcmp.gt.f32.partialorder %v650, 0.0
      %vm845 = vcmp.gt.f32.partialorder %v653, 0.0
      %vm846 = vcmp.gt.f32.partialorder %v658, 0.0
      %vm847 = vcmp.gt.f32.partialorder %v661, 0.0
      %vm848 = vcmp.gt.f32.partialorder %v666, 0.0
      %vm849 = vcmp.gt.f32.partialorder %v669, 0.0
      %vm850 = vcmp.gt.f32.partialorder %v674, 0.0
      %vm851 = vcmp.gt.f32.partialorder %v677, 0.0
      %vm852 = vcmp.gt.f32.partialorder %v682, 0.0
      %vm853 = vcmp.gt.f32.partialorder %v685, 0.0
      %vm854 = vcmp.gt.f32.partialorder %v690, 0.0
      %vm855 = vcmp.gt.f32.partialorder %v693, 0.0
      %vm856 = vcmp.gt.f32.partialorder %v698, 0.0
      %vm857 = vcmp.gt.f32.partialorder %v701, 0.0
      %vm858 = vcmp.gt.f32.partialorder %v706, 0.0
      %vm859 = vcmp.gt.f32.partialorder %v709, 0.0
      %vm860 = vcmp.gt.f32.partialorder %v714, 0.0
      %vm861 = vcmp.gt.f32.partialorder %v717, 0.0
      %vm862 = vcmp.gt.f32.partialorder %v722, 0.0
      %vm863 = vcmp.gt.f32.partialorder %v725, 0.0
      %vm864 = vcmp.gt.f32.partialorder %v730, 0.0
      %vm865 = vcmp.gt.f32.partialorder %v733, 0.0
      %vm866 = vcmp.gt.f32.partialorder %v738, 0.0
      %vm867 = vcmp.gt.f32.partialorder %v741, 0.0
      %vm868 = vcmp.gt.f32.partialorder %v746, 0.0
      %vm869 = vcmp.gt.f32.partialorder %v749, 0.0
      %vm870 = vcmp.gt.f32.partialorder %v754, 0.0
      %vm871 = vcmp.gt.f32.partialorder %v757, 0.0
      %vm872 = vcmp.gt.f32.partialorder %v762, 0.0
      %vm873 = vcmp.gt.f32.partialorder %v765, 0.0
      %vm874 = vcmp.gt.f32.partialorder %v770, 0.0
      %vm875 = vcmp.gt.f32.partialorder %v773, 0.0
      %vm876 = vcmp.gt.f32.partialorder %v778, 0.0
      %vm877 = vcmp.gt.f32.partialorder %v781, 0.0
      %vm878 = vcmp.gt.f32.partialorder %v786, 0.0
      %vm879 = vcmp.gt.f32.partialorder %v789, 0.0
      %vm880 = vcmp.gt.f32.partialorder %v794, 0.0
      %vm881 = vcmp.gt.f32.partialorder %v797, 0.0
      %vm882 = vcmp.gt.f32.partialorder %v802, 0.0
      %vm883 = vcmp.gt.f32.partialorder %v805, 0.0
      %vm884 = vcmp.gt.f32.partialorder %v810, 0.0
      %vm885 = vcmp.gt.f32.partialorder %v813, 0.0
      %vm886 = vcmp.gt.f32.partialorder %v818, 0.0
      %vm887 = vcmp.gt.f32.partialorder %v821, 0.0
      %v888 = vmul.f32 %v570, 0.01
      %v889 = vmul.f32 %v573, 0.01
      %v890 = vmul.f32 %v578, 0.01
      %v891 = vmul.f32 %v581, 0.01
      %v892 = vmul.f32 %v586, 0.01
      %v893 = vmul.f32 %v589, 0.01
      %v894 = vmul.f32 %v594, 0.01
      %v895 = vmul.f32 %v597, 0.01
      %v896 = vmul.f32 %v602, 0.01
      %v897 = vmul.f32 %v605, 0.01
      %v898 = vmul.f32 %v610, 0.01
      %v899 = vmul.f32 %v613, 0.01
      %v900 = vmul.f32 %v618, 0.01
      %v901 = vmul.f32 %v621, 0.01
      %v902 = vmul.f32 %v626, 0.01
      %v903 = vmul.f32 %v629, 0.01
      %v904 = vmul.f32 %v634, 0.01
      %v905 = vmul.f32 %v637, 0.01
      %v906 = vmul.f32 %v642, 0.01
      %v907 = vmul.f32 %v645, 0.01
      %v908 = vmul.f32 %v650, 0.01
      %v909 = vmul.f32 %v653, 0.01
      %v910 = vmul.f32 %v658, 0.01
      %v911 = vmul.f32 %v661, 0.01
      %v912 = vmul.f32 %v666, 0.01
      %v913 = vmul.f32 %v669, 0.01
      %v914 = vmul.f32 %v674, 0.01
      %v915 = vmul.f32 %v677, 0.01
      %v916 = vmul.f32 %v682, 0.01
      %v917 = vmul.f32 %v685, 0.01
      %v918 = vmul.f32 %v690, 0.01
      %v919 = vmul.f32 %v693, 0.01
      %v920 = vmul.f32 %v698, 0.01
      %v921 = vmul.f32 %v701, 0.01
      %v922 = vmul.f32 %v706, 0.01
      %v923 = vmul.f32 %v709, 0.01
      %v924 = vmul.f32 %v714, 0.01
      %v925 = vmul.f32 %v717, 0.01
      %v926 = vmul.f32 %v722, 0.01
      %v927 = vmul.f32 %v725, 0.01
      %v928 = vmul.f32 %v730, 0.01
      %v929 = vmul.f32 %v733, 0.01
      %v930 = vmul.f32 %v738, 0.01
      %v931 = vmul.f32 %v741, 0.01
      %v932 = vmul.f32 %v746, 0.01
      %v933 = vmul.f32 %v749, 0.01
      %v934 = vmul.f32 %v754, 0.01
      %v935 = vmul.f32 %v757, 0.01
      %v936 = vmul.f32 %v762, 0.01
      %v937 = vmul.f32 %v765, 0.01
      %v938 = vmul.f32 %v770, 0.01
      %v939 = vmul.f32 %v773, 0.01
      %v940 = vmul.f32 %v778, 0.01
      %v941 = vmul.f32 %v781, 0.01
      %v942 = vmul.f32 %v786, 0.01
      %v943 = vmul.f32 %v789, 0.01
      %v944 = vmul.f32 %v794, 0.01
      %v945 = vmul.f32 %v797, 0.01
      %v946 = vmul.f32 %v802, 0.01
      %v947 = vmul.f32 %v805, 0.01
      %v948 = vmul.f32 %v810, 0.01
      %v949 = vmul.f32 %v813, 0.01
      %v950 = vmul.f32 %v818, 0.01
      %v951 = vmul.f32 %v821, 0.01
      %v952 = vsel %vm824, %v570, %v888
      %v953 = vsel %vm825, %v573, %v889
      %v954 = vsel %vm826, %v578, %v890
      %v955 = vsel %vm827, %v581, %v891
      %v956 = vsel %vm828, %v586, %v892
      %v957 = vsel %vm829, %v589, %v893
      %v958 = vsel %vm830, %v594, %v894
      %v959 = vsel %vm831, %v597, %v895
      %v960 = vsel %vm832, %v602, %v896
      %v961 = vsel %vm833, %v605, %v897
      %v962 = vsel %vm834, %v610, %v898
      %v963 = vsel %vm835, %v613, %v899
      %v964 = vsel %vm836, %v618, %v900
      %v965 = vsel %vm837, %v621, %v901
      %v966 = vsel %vm838, %v626, %v902
      %v967 = vsel %vm839, %v629, %v903
      %v968 = vsel %vm840, %v634, %v904
      %v969 = vsel %vm841, %v637, %v905
      %v970 = vsel %vm842, %v642, %v906
      %v971 = vsel %vm843, %v645, %v907
      %v972 = vsel %vm844, %v650, %v908
      %v973 = vsel %vm845, %v653, %v909
      %v974 = vsel %vm846, %v658, %v910
      %v975 = vsel %vm847, %v661, %v911
      %v976 = vsel %vm848, %v666, %v912
      %v977 = vsel %vm849, %v669, %v913
      %v978 = vsel %vm850, %v674, %v914
      %v979 = vsel %vm851, %v677, %v915
      %v980 = vsel %vm852, %v682, %v916
      %v981 = vsel %vm853, %v685, %v917
      %v982 = vsel %vm854, %v690, %v918
      %v983 = vsel %vm855, %v693, %v919
      %v984 = vsel %vm856, %v698, %v920
      %v985 = vsel %vm857, %v701, %v921
      %v986 = vsel %vm858, %v706, %v922
      %v987 = vsel %vm859, %v709, %v923
      %v988 = vsel %vm860, %v714, %v924
      %v989 = vsel %vm861, %v717, %v925
      %v990 = vsel %vm862, %v722, %v926
      %v991 = vsel %vm863, %v725, %v927
      %v992 = vsel %vm864, %v730, %v928
      %v993 = vsel %vm865, %v733, %v929
      %v994 = vsel %vm866, %v738, %v930
      %v995 = vsel %vm867, %v741, %v931
      %v996 = vsel %vm868, %v746, %v932
      %v997 = vsel %vm869, %v749, %v933
      %v998 = vsel %vm870, %v754, %v934
      %v999 = vsel %vm871, %v757, %v935
      %v1000 = vsel %vm872, %v762, %v936
      %v1001 = vsel %vm873, %v765, %v937
      %v1002 = vsel %vm874, %v770, %v938
      %v1003 = vsel %vm875, %v773, %v939
      %v1004 = vsel %vm876, %v778, %v940
      %v1005 = vsel %vm877, %v781, %v941
      %v1006 = vsel %vm878, %v786, %v942
      %v1007 = vsel %vm879, %v789, %v943
      %v1008 = vsel %vm880, %v794, %v944
      %v1009 = vsel %vm881, %v797, %v945
      %v1010 = vsel %vm882, %v802, %v946
      %v1011 = vsel %vm883, %v805, %v947
      %v1012 = vsel %vm884, %v810, %v948
      %v1013 = vsel %vm885, %v813, %v949
      %v1014 = vsel %vm886, %v818, %v950
      %v1015 = vsel %vm887, %v821, %v951
      %vm1016 = vcmask 261120
      %1017 = vst.msk [vmem:[%s172] sm:$0xff] %vm1016, %v952
      %1018 = vst.msk [vmem:[%s172 + $0x8] sm:$0xff] %vm1016, %v953
      %1019 = vst.msk [vmem:[%s172 + $0x10] sm:$0xff] %vm1016, %v954
      %1020 = vst.msk [vmem:[%s172 + $0x18] sm:$0xff] %vm1016, %v955
      %1021 = vst.msk [vmem:[%s172 + $0x20] sm:$0xff] %vm1016, %v956
      %1022 = vst.msk [vmem:[%s172 + $0x28] sm:$0xff] %vm1016, %v957
      %1023 = vst.msk [vmem:[%s172 + $0x30] sm:$0xff] %vm1016, %v958
      %1024 = vst.msk [vmem:[%s172 + $0x38] sm:$0xff] %vm1016, %v959
      %1025 = vst.msk [vmem:[%s172 + $0x40] sm:$0xff] %vm1016, %v960
      %1026 = vst.msk [vmem:[%s172 + $0x48] sm:$0xff] %vm1016, %v961
      %1027 = vst.msk [vmem:[%s172 + $0x50] sm:$0xff] %vm1016, %v962
      %1028 = vst.msk [vmem:[%s172 + $0x58] sm:$0xff] %vm1016, %v963
      %1029 = vst.msk [vmem:[%s172 + $0x60] sm:$0xff] %vm1016, %v964
      %1030 = vst.msk [vmem:[%s172 + $0x68] sm:$0xff] %vm1016, %v965
      %1031 = vst.msk [vmem:[%s172 + $0x70] sm:$0xff] %vm1016, %v966
      %1032 = vst.msk [vmem:[%s172 + $0x78] sm:$0xff] %vm1016, %v967
      %1033 = vst.msk [vmem:[%s172 + $0x80] sm:$0xff] %vm1016, %v968
      %1034 = vst.msk [vmem:[%s172 + $0x88] sm:$0xff] %vm1016, %v969
      %1035 = vst.msk [vmem:[%s172 + $0x90] sm:$0xff] %vm1016, %v970
      %1036 = vst.msk [vmem:[%s172 + $0x98] sm:$0xff] %vm1016, %v971
      %1037 = vst.msk [vmem:[%s172 + $0xa0] sm:$0xff] %vm1016, %v972
      %1038 = vst.msk [vmem:[%s172 + $0xa8] sm:$0xff] %vm1016, %v973
      %1039 = vst.msk [vmem:[%s172 + $0xb0] sm:$0xff] %vm1016, %v974
      %1040 = vst.msk [vmem:[%s172 + $0xb8] sm:$0xff] %vm1016, %v975
      %1041 = vst.msk [vmem:[%s172 + $0xc0] sm:$0xff] %vm1016, %v976
      %1042 = vst.msk [vmem:[%s172 + $0xc8] sm:$0xff] %vm1016, %v977
      %1043 = vst.msk [vmem:[%s172 + $0xd0] sm:$0xff] %vm1016, %v978
      %1044 = vst.msk [vmem:[%s172 + $0xd8] sm:$0xff] %vm1016, %v979
      %1045 = vst.msk [vmem:[%s172 + $0xe0] sm:$0xff] %vm1016, %v980
      %1046 = vst.msk [vmem:[%s172 + $0xe8] sm:$0xff] %vm1016, %v981
      %1047 = vst.msk [vmem:[%s172 + $0xf0] sm:$0xff] %vm1016, %v982
      %1048 = vst.msk [vmem:[%s172 + $0xf8] sm:$0xff] %vm1016, %v983
      %1049 = vst.msk [vmem:[%s172 + $0x100] sm:$0xff] %vm1016, %v984
      %1050 = vst.msk [vmem:[%s172 + $0x108] sm:$0xff] %vm1016, %v985
      %1051 = vst.msk [vmem:[%s172 + $0x110] sm:$0xff] %vm1016, %v986
      %1052 = vst.msk [vmem:[%s172 + $0x118] sm:$0xff] %vm1016, %v987
      %1053 = vst.msk [vmem:[%s172 + $0x120] sm:$0xff] %vm1016, %v988
      %1054 = vst.msk [vmem:[%s172 + $0x128] sm:$0xff] %vm1016, %v989
      %1055 = vst.msk [vmem:[%s172 + $0x130] sm:$0xff] %vm1016, %v990
      %1056 = vst.msk [vmem:[%s172 + $0x138] sm:$0xff] %vm1016, %v991
      %1057 = vst.msk [vmem:[%s172 + $0x140] sm:$0xff] %vm1016, %v992
      %1058 = vst.msk [vmem:[%s172 + $0x148] sm:$0xff] %vm1016, %v993
      %1059 = vst.msk [vmem:[%s172 + $0x150] sm:$0xff] %vm1016, %v994
      %1060 = vst.msk [vmem:[%s172 + $0x158] sm:$0xff] %vm1016, %v995
      %1061 = vst.msk [vmem:[%s172 + $0x160] sm:$0xff] %vm1016, %v996
      %1062 = vst.msk [vmem:[%s172 + $0x168] sm:$0xff] %vm1016, %v997
      %1063 = vst.msk [vmem:[%s172 + $0x170] sm:$0xff] %vm1016, %v998
      %1064 = vst.msk [vmem:[%s172 + $0x178] sm:$0xff] %vm1016, %v999
      %1065 = vst.msk [vmem:[%s172 + $0x180] sm:$0xff] %vm1016, %v1000
      %1066 = vst.msk [vmem:[%s172 + $0x188] sm:$0xff] %vm1016, %v1001
      %1067 = vst.msk [vmem:[%s172 + $0x190] sm:$0xff] %vm1016, %v1002
      %1068 = vst.msk [vmem:[%s172 + $0x198] sm:$0xff] %vm1016, %v1003
      %1069 = vst.msk [vmem:[%s172 + $0x1a0] sm:$0xff] %vm1016, %v1004
      %1070 = vst.msk [vmem:[%s172 + $0x1a8] sm:$0xff] %vm1016, %v1005
      %1071 = vst.msk [vmem:[%s172 + $0x1b0] sm:$0xff] %vm1016, %v1006
      %1072 = vst.msk [vmem:[%s172 + $0x1b8] sm:$0xff] %vm1016, %v1007
      %1073 = vst.msk [vmem:[%s172 + $0x1c0] sm:$0xff] %vm1016, %v1008
      %1074 = vst.msk [vmem:[%s172 + $0x1c8] sm:$0xff] %vm1016, %v1009
      %1075 = vst.msk [vmem:[%s172 + $0x1d0] sm:$0xff] %vm1016, %v1010
      %1076 = vst.msk [vmem:[%s172 + $0x1d8] sm:$0xff] %vm1016, %v1011
      %1077 = vst.msk [vmem:[%s172 + $0x1e0] sm:$0xff] %vm1016, %v1012
      %1078 = vst.msk [vmem:[%s172 + $0x1e8] sm:$0xff] %vm1016, %v1013
      %1079 = vst.msk [vmem:[%s172 + $0x1f0] sm:$0xff] %vm1016, %v1014
      %1080 = vst.msk [vmem:[%s172 + $0x1f8] sm:$0xff] %vm1016, %v1015
      %s1081 = smul.u32 64, %s14
      %p1082 = scmp.lt.s32.totalorder %s1081, 127
      %s1083 = scalar_select %p1082, %s1081, 127
      %s1084 = smul.addr %s1083, 8
      %s1085 = scalar_lea.vmem %s3, %s1084
      // Predicated region
      $region33: #{vqvae_forward.20} parent=31 // pred_check
        %p1086 = pneg %p100
      $region34: #{vqvae_forward.20} parent=31 // pred_check_branch
        %1088 = sbr.rel (%p1086) target = $region36
      $region35: #{vqvae_forward.20} parent=31 // pred_region
        %s1089 = smul.u32 64, %s14
      $region36: #{vqvae_forward.20} parent=31 // pred_fallthru
        _
    $region32: #{vqvae_forward.20} parent=5 // pred_fallthru
      _
    %p1090 = scmp.le.s32.totalorder 2, %s9
    // Predicated region
    $region37: #{vqvae_forward.20} parent=5 // pred_check
      %p1091 = pneg %p1090
    $region38: #{vqvae_forward.20} parent=5 // pred_check_branch
      %1093 = sbr.rel (%p1091) target = $region40
    $region39: #{vqvae_forward.20} parent=5 // pred_region
      %s1094 = ssub.s32 %s9, 2
      // Predicated region
      $region41: #{vqvae_forward.20} parent=39 // pred_check
        %p1095 = pneg %p106
      $region42: #{vqvae_forward.20} parent=39 // pred_check_branch
        %1097 = sbr.rel (%p1095) target = $region44
      $region43: #{vqvae_forward.20} parent=39 // pred_region
        %s1098 = smul.u32 64, %s15
        %p1099 = scmp.lt.s32.totalorder %s1098, 127
        %s1100 = scalar_select %p1099, %s1098, 127
        %s1101 = smul.addr %s1100, 8
        %s1102 = scalar_lea.vmem %s3, %s1101
      $region44: #{vqvae_forward.20} parent=39 // pred_fallthru
        _
    $region40: #{vqvae_forward.20} parent=5 // pred_fallthru
      _
  $region6: #{vqvae_forward.20} parent=0 // loop_footer
    %s13 = sadd.s32 1, %s9
  $region7: #{vqvae_forward.20} parent=0 // loop_footer_branch
    %8 = sbr.rel target = $region3
  $region8: #{vqvae_forward.20} parent=0 // loop_exit
    _

// kernel: vqvae_forward.21
$region0: #{vqvae_forward.21}
  #allocation0 [shape = 'u32[]', space=smem, size = 0x4, offset = 0x4, fixed_abs, tag = 'smem constant byte address 0x4 - core index']
  #allocation1 [shape = 'u32[144,128]{1,0:T(1,128)}', space=vmem, size = 0x12000, scoped, tag = 'internal scratch']
  %s0 = inlined_call_operand.vmem [shape: bf16[128,2048], index: 0, kind: input, shape index: {}]
  %s1 = inlined_call_operand.vmem [shape: bf16[2048,64], index: 1, kind: input, shape index: {}]
  %s2 = inlined_call_operand.vmem [shape: f32[1,64], index: 2, kind: input, shape index: {}]
  %s3 = inlined_call_operand.vmem [shape: f32[128,64], index: 3, kind: output, shape index: {}]
  %s4 = sld [smem:[#allocation0]]
  $region22: #{vqvae_forward.21} parent=0
    _
  %s6 = ssub.s32 1, %s4
  %s7 = scalar_select 0, %s6, %s4
  // Predicated region
  $region2: #{vqvae_forward.21} parent=0 // pred_check
    _
  $region3: #{vqvae_forward.21} parent=0 // pred_check_branch
    %9 = sbr.rel (0) target = $region5
  $region4: #{vqvae_forward.21} parent=0 // pred_region
    _
  $region5: #{vqvae_forward.21} parent=0 // pred_fallthru
    _
  // Predicated region
  $region6: #{vqvae_forward.21} parent=0 // pred_check
    _
  $region7: #{vqvae_forward.21} parent=0 // pred_check_branch
    %11 = sbr.rel (0) target = $region9
  $region8: #{vqvae_forward.21} parent=0 // pred_region
    _
  $region9: #{vqvae_forward.21} parent=0 // pred_fallthru
    _
  // Predicated region
  $region10: #{vqvae_forward.21} parent=0 // pred_check
    _
  $region11: #{vqvae_forward.21} parent=0 // pred_check_branch
    %13 = sbr.rel (0) target = $region13
  $region12: #{vqvae_forward.21} parent=0 // pred_region
    _
  $region13: #{vqvae_forward.21} parent=0 // pred_fallthru
    _
  %v15 = vld [vmem:[%s0] sm:$0xff]
  %v16 = vld [vmem:[%s0 + $0x8] sm:$0xff]
  %v17 = vld [vmem:[%s0 + $0x10] sm:$0xff]
  %v18 = vld [vmem:[%s0 + $0x18] sm:$0xff]
  %v19 = vld [vmem:[%s0 + $0x20] sm:$0xff]
  %v20 = vld [vmem:[%s0 + $0x28] sm:$0xff]
  %v21 = vld [vmem:[%s0 + $0x30] sm:$0xff]
  %v22 = vld [vmem:[%s0 + $0x38] sm:$0xff]
  %v23 = vld [vmem:[%s0 + $0x40] sm:$0xff]
  %v24 = vld [vmem:[%s0 + $0x48] sm:$0xff]
  %v25 = vld [vmem:[%s0 + $0x50] sm:$0xff]
  %v26 = vld [vmem:[%s0 + $0x58] sm:$0xff]
  %v27 = vld [vmem:[%s0 + $0x60] sm:$0xff]
  %v28 = vld [vmem:[%s0 + $0x68] sm:$0xff]
  %v29 = vld [vmem:[%s0 + $0x70] sm:$0xff]
  %v30 = vld [vmem:[%s0 + $0x78] sm:$0xff]
  %v31 = vld [vmem:[%s0 + $0x80] sm:$0xff]
  %v32 = vld [vmem:[%s0 + $0x88] sm:$0xff]
  %v33 = vld [vmem:[%s0 + $0x90] sm:$0xff]
  %v34 = vld [vmem:[%s0 + $0x98] sm:$0xff]
  %v35 = vld [vmem:[%s0 + $0xa0] sm:$0xff]
  %v36 = vld [vmem:[%s0 + $0xa8] sm:$0xff]
  %v37 = vld [vmem:[%s0 + $0xb0] sm:$0xff]
  %v38 = vld [vmem:[%s0 + $0xb8] sm:$0xff]
  %v39 = vld [vmem:[%s0 + $0xc0] sm:$0xff]
  %v40 = vld [vmem:[%s0 + $0xc8] sm:$0xff]
  %v41 = vld [vmem:[%s0 + $0xd0] sm:$0xff]
  %v42 = vld [vmem:[%s0 + $0xd8] sm:$0xff]
  %v43 = vld [vmem:[%s0 + $0xe0] sm:$0xff]
  %v44 = vld [vmem:[%s0 + $0xe8] sm:$0xff]
  %v45 = vld [vmem:[%s0 + $0xf0] sm:$0xff]
  %v46 = vld [vmem:[%s0 + $0xf8] sm:$0xff]
  %v47 = vld [vmem:[%s0 + $0x100] sm:$0xff]
  %v48 = vld [vmem:[%s0 + $0x108] sm:$0xff]
  %v49 = vld [vmem:[%s0 + $0x110] sm:$0xff]
  %v50 = vld [vmem:[%s0 + $0x118] sm:$0xff]
  %v51 = vld [vmem:[%s0 + $0x120] sm:$0xff]
  %v52 = vld [vmem:[%s0 + $0x128] sm:$0xff]
  %v53 = vld [vmem:[%s0 + $0x130] sm:$0xff]
  %v54 = vld [vmem:[%s0 + $0x138] sm:$0xff]
  %v55 = vld [vmem:[%s0 + $0x140] sm:$0xff]
  %v56 = vld [vmem:[%s0 + $0x148] sm:$0xff]
  %v57 = vld [vmem:[%s0 + $0x150] sm:$0xff]
  %v58 = vld [vmem:[%s0 + $0x158] sm:$0xff]
  %v59 = vld [vmem:[%s0 + $0x160] sm:$0xff]
  %v60 = vld [vmem:[%s0 + $0x168] sm:$0xff]
  %v61 = vld [vmem:[%s0 + $0x170] sm:$0xff]
  %v62 = vld [vmem:[%s0 + $0x178] sm:$0xff]
  %v63 = vld [vmem:[%s0 + $0x180] sm:$0xff]
  %v64 = vld [vmem:[%s0 + $0x188] sm:$0xff]
  %v65 = vld [vmem:[%s0 + $0x190] sm:$0xff]
  %v66 = vld [vmem:[%s0 + $0x198] sm:$0xff]
  %v67 = vld [vmem:[%s0 + $0x1a0] sm:$0xff]
  %v68 = vld [vmem:[%s0 + $0x1a8] sm:$0xff]
  %v69 = vld [vmem:[%s0 + $0x1b0] sm:$0xff]
  %v70 = vld [vmem:[%s0 + $0x1b8] sm:$0xff]
  %v71 = vld [vmem:[%s0 + $0x1c0] sm:$0xff]
  %v72 = vld [vmem:[%s0 + $0x1c8] sm:$0xff]
  %v73 = vld [vmem:[%s0 + $0x1d0] sm:$0xff]
  %v74 = vld [vmem:[%s0 + $0x1d8] sm:$0xff]
  %v75 = vld [vmem:[%s0 + $0x1e0] sm:$0xff]
  %v76 = vld [vmem:[%s0 + $0x1e8] sm:$0xff]
  %v77 = vld [vmem:[%s0 + $0x1f0] sm:$0xff]
  %v78 = vld [vmem:[%s0 + $0x1f8] sm:$0xff]
  %v79 = vld [vmem:[%s0 + $0x200] sm:$0xff]
  %v80 = vld [vmem:[%s0 + $0x208] sm:$0xff]
  %v81 = vld [vmem:[%s0 + $0x210] sm:$0xff]
  %v82 = vld [vmem:[%s0 + $0x218] sm:$0xff]
  %v83 = vld [vmem:[%s0 + $0x220] sm:$0xff]
  %v84 = vld [vmem:[%s0 + $0x228] sm:$0xff]
  %v85 = vld [vmem:[%s0 + $0x230] sm:$0xff]
  %v86 = vld [vmem:[%s0 + $0x238] sm:$0xff]
  %v87 = vld [vmem:[%s0 + $0x240] sm:$0xff]
  %v88 = vld [vmem:[%s0 + $0x248] sm:$0xff]
  %v89 = vld [vmem:[%s0 + $0x250] sm:$0xff]
  %v90 = vld [vmem:[%s0 + $0x258] sm:$0xff]
  %v91 = vld [vmem:[%s0 + $0x260] sm:$0xff]
  %v92 = vld [vmem:[%s0 + $0x268] sm:$0xff]
  %v93 = vld [vmem:[%s0 + $0x270] sm:$0xff]
  %v94 = vld [vmem:[%s0 + $0x278] sm:$0xff]
  %v95 = vld [vmem:[%s0 + $0x280] sm:$0xff]
  %v96 = vld [vmem:[%s0 + $0x288] sm:$0xff]
  %v97 = vld [vmem:[%s0 + $0x290] sm:$0xff]
  %v98 = vld [vmem:[%s0 + $0x298] sm:$0xff]
  %v99 = vld [vmem:[%s0 + $0x2a0] sm:$0xff]
  %v100 = vld [vmem:[%s0 + $0x2a8] sm:$0xff]
  %v101 = vld [vmem:[%s0 + $0x2b0] sm:$0xff]
  %v102 = vld [vmem:[%s0 + $0x2b8] sm:$0xff]
  %v103 = vld [vmem:[%s0 + $0x2c0] sm:$0xff]
  %v104 = vld [vmem:[%s0 + $0x2c8] sm:$0xff]
  %v105 = vld [vmem:[%s0 + $0x2d0] sm:$0xff]
  %v106 = vld [vmem:[%s0 + $0x2d8] sm:$0xff]
  %v107 = vld [vmem:[%s0 + $0x2e0] sm:$0xff]
  %v108 = vld [vmem:[%s0 + $0x2e8] sm:$0xff]
  %v109 = vld [vmem:[%s0 + $0x2f0] sm:$0xff]
  %v110 = vld [vmem:[%s0 + $0x2f8] sm:$0xff]
  %v111 = vld [vmem:[%s0 + $0x300] sm:$0xff]
  %v112 = vld [vmem:[%s0 + $0x308] sm:$0xff]
  %v113 = vld [vmem:[%s0 + $0x310] sm:$0xff]
  %v114 = vld [vmem:[%s0 + $0x318] sm:$0xff]
  %v115 = vld [vmem:[%s0 + $0x320] sm:$0xff]
  %v116 = vld [vmem:[%s0 + $0x328] sm:$0xff]
  %v117 = vld [vmem:[%s0 + $0x330] sm:$0xff]
  %v118 = vld [vmem:[%s0 + $0x338] sm:$0xff]
  %v119 = vld [vmem:[%s0 + $0x340] sm:$0xff]
  %v120 = vld [vmem:[%s0 + $0x348] sm:$0xff]
  %v121 = vld [vmem:[%s0 + $0x350] sm:$0xff]
  %v122 = vld [vmem:[%s0 + $0x358] sm:$0xff]
  %v123 = vld [vmem:[%s0 + $0x360] sm:$0xff]
  %v124 = vld [vmem:[%s0 + $0x368] sm:$0xff]
  %v125 = vld [vmem:[%s0 + $0x370] sm:$0xff]
  %v126 = vld [vmem:[%s0 + $0x378] sm:$0xff]
  %v127 = vld [vmem:[%s0 + $0x380] sm:$0xff]
  %v128 = vld [vmem:[%s0 + $0x388] sm:$0xff]
  %v129 = vld [vmem:[%s0 + $0x390] sm:$0xff]
  %v130 = vld [vmem:[%s0 + $0x398] sm:$0xff]
  %v131 = vld [vmem:[%s0 + $0x3a0] sm:$0xff]
  %v132 = vld [vmem:[%s0 + $0x3a8] sm:$0xff]
  %v133 = vld [vmem:[%s0 + $0x3b0] sm:$0xff]
  %v134 = vld [vmem:[%s0 + $0x3b8] sm:$0xff]
  %v135 = vld [vmem:[%s0 + $0x3c0] sm:$0xff]
  %v136 = vld [vmem:[%s0 + $0x3c8] sm:$0xff]
  %v137 = vld [vmem:[%s0 + $0x3d0] sm:$0xff]
  %v138 = vld [vmem:[%s0 + $0x3d8] sm:$0xff]
  %v139 = vld [vmem:[%s0 + $0x3e0] sm:$0xff]
  %v140 = vld [vmem:[%s0 + $0x3e8] sm:$0xff]
  %v141 = vld [vmem:[%s0 + $0x3f0] sm:$0xff]
  %v142 = vld [vmem:[%s0 + $0x3f8] sm:$0xff]
  %v143 = vld [vmem:[%s1] sm:$0xf]
  %v144 = vld [vmem:[%s1 + $0x4] sm:$0xf]
  %v145 = vld [vmem:[%s1 + $0x8] sm:$0xf]
  %v146 = vld [vmem:[%s1 + $0xc] sm:$0xf]
  %v147 = vld [vmem:[%s1 + $0x10] sm:$0xf]
  %v148 = vld [vmem:[%s1 + $0x14] sm:$0xf]
  %v149 = vld [vmem:[%s1 + $0x18] sm:$0xf]
  %v150 = vld [vmem:[%s1 + $0x1c] sm:$0xf]
  %v151 = vld [vmem:[%s1 + $0x20] sm:$0xf]
  %v152 = vld [vmem:[%s1 + $0x24] sm:$0xf]
  %v153 = vld [vmem:[%s1 + $0x28] sm:$0xf]
  %v154 = vld [vmem:[%s1 + $0x2c] sm:$0xf]
  %v155 = vld [vmem:[%s1 + $0x30] sm:$0xf]
  %v156 = vld [vmem:[%s1 + $0x34] sm:$0xf]
  %v157 = vld [vmem:[%s1 + $0x38] sm:$0xf]
  %v158 = vld [vmem:[%s1 + $0x3c] sm:$0xf]
  %v159 = vld [vmem:[%s1 + $0x40] sm:$0xf]
  %v160 = vld [vmem:[%s1 + $0x44] sm:$0xf]
  %v161 = vld [vmem:[%s1 + $0x48] sm:$0xf]
  %v162 = vld [vmem:[%s1 + $0x4c] sm:$0xf]
  %v163 = vld [vmem:[%s1 + $0x50] sm:$0xf]
  %v164 = vld [vmem:[%s1 + $0x54] sm:$0xf]
  %v165 = vld [vmem:[%s1 + $0x58] sm:$0xf]
  %v166 = vld [vmem:[%s1 + $0x5c] sm:$0xf]
  %v167 = vld [vmem:[%s1 + $0x60] sm:$0xf]
  %v168 = vld [vmem:[%s1 + $0x64] sm:$0xf]
  %v169 = vld [vmem:[%s1 + $0x68] sm:$0xf]
  %v170 = vld [vmem:[%s1 + $0x6c] sm:$0xf]
  %v171 = vld [vmem:[%s1 + $0x70] sm:$0xf]
  %v172 = vld [vmem:[%s1 + $0x74] sm:$0xf]
  %v173 = vld [vmem:[%s1 + $0x78] sm:$0xf]
  %v174 = vld [vmem:[%s1 + $0x7c] sm:$0xf]
  %v175 = vld [vmem:[%s1 + $0x80] sm:$0xf]
  %v176 = vld [vmem:[%s1 + $0x84] sm:$0xf]
  %v177 = vld [vmem:[%s1 + $0x88] sm:$0xf]
  %v178 = vld [vmem:[%s1 + $0x8c] sm:$0xf]
  %v179 = vld [vmem:[%s1 + $0x90] sm:$0xf]
  %v180 = vld [vmem:[%s1 + $0x94] sm:$0xf]
  %v181 = vld [vmem:[%s1 + $0x98] sm:$0xf]
  %v182 = vld [vmem:[%s1 + $0x9c] sm:$0xf]
  %v183 = vld [vmem:[%s1 + $0xa0] sm:$0xf]
  %v184 = vld [vmem:[%s1 + $0xa4] sm:$0xf]
  %v185 = vld [vmem:[%s1 + $0xa8] sm:$0xf]
  %v186 = vld [vmem:[%s1 + $0xac] sm:$0xf]
  %v187 = vld [vmem:[%s1 + $0xb0] sm:$0xf]
  %v188 = vld [vmem:[%s1 + $0xb4] sm:$0xf]
  %v189 = vld [vmem:[%s1 + $0xb8] sm:$0xf]
  %v190 = vld [vmem:[%s1 + $0xbc] sm:$0xf]
  %v191 = vld [vmem:[%s1 + $0xc0] sm:$0xf]
  %v192 = vld [vmem:[%s1 + $0xc4] sm:$0xf]
  %v193 = vld [vmem:[%s1 + $0xc8] sm:$0xf]
  %v194 = vld [vmem:[%s1 + $0xcc] sm:$0xf]
  %v195 = vld [vmem:[%s1 + $0xd0] sm:$0xf]
  %v196 = vld [vmem:[%s1 + $0xd4] sm:$0xf]
  %v197 = vld [vmem:[%s1 + $0xd8] sm:$0xf]
  %v198 = vld [vmem:[%s1 + $0xdc] sm:$0xf]
  %v199 = vld [vmem:[%s1 + $0xe0] sm:$0xf]
  %v200 = vld [vmem:[%s1 + $0xe4] sm:$0xf]
  %v201 = vld [vmem:[%s1 + $0xe8] sm:$0xf]
  %v202 = vld [vmem:[%s1 + $0xec] sm:$0xf]
  %v203 = vld [vmem:[%s1 + $0xf0] sm:$0xf]
  %v204 = vld [vmem:[%s1 + $0xf4] sm:$0xf]
  %v205 = vld [vmem:[%s1 + $0xf8] sm:$0xf]
  %v206 = vld [vmem:[%s1 + $0xfc] sm:$0xf]
  %v207 = vld [vmem:[%s1 + $0x100] sm:$0xf]
  %v208 = vld [vmem:[%s1 + $0x104] sm:$0xf]
  %v209 = vld [vmem:[%s1 + $0x108] sm:$0xf]
  %v210 = vld [vmem:[%s1 + $0x10c] sm:$0xf]
  %v211 = vld [vmem:[%s1 + $0x110] sm:$0xf]
  %v212 = vld [vmem:[%s1 + $0x114] sm:$0xf]
  %v213 = vld [vmem:[%s1 + $0x118] sm:$0xf]
  %v214 = vld [vmem:[%s1 + $0x11c] sm:$0xf]
  %v215 = vld [vmem:[%s1 + $0x120] sm:$0xf]
  %v216 = vld [vmem:[%s1 + $0x124] sm:$0xf]
  %v217 = vld [vmem:[%s1 + $0x128] sm:$0xf]
  %v218 = vld [vmem:[%s1 + $0x12c] sm:$0xf]
  %v219 = vld [vmem:[%s1 + $0x130] sm:$0xf]
  %v220 = vld [vmem:[%s1 + $0x134] sm:$0xf]
  %v221 = vld [vmem:[%s1 + $0x138] sm:$0xf]
  %v222 = vld [vmem:[%s1 + $0x13c] sm:$0xf]
  %v223 = vld [vmem:[%s1 + $0x140] sm:$0xf]
  %v224 = vld [vmem:[%s1 + $0x144] sm:$0xf]
  %v225 = vld [vmem:[%s1 + $0x148] sm:$0xf]
  %v226 = vld [vmem:[%s1 + $0x14c] sm:$0xf]
  %v227 = vld [vmem:[%s1 + $0x150] sm:$0xf]
  %v228 = vld [vmem:[%s1 + $0x154] sm:$0xf]
  %v229 = vld [vmem:[%s1 + $0x158] sm:$0xf]
  %v230 = vld [vmem:[%s1 + $0x15c] sm:$0xf]
  %v231 = vld [vmem:[%s1 + $0x160] sm:$0xf]
  %v232 = vld [vmem:[%s1 + $0x164] sm:$0xf]
  %v233 = vld [vmem:[%s1 + $0x168] sm:$0xf]
  %v234 = vld [vmem:[%s1 + $0x16c] sm:$0xf]
  %v235 = vld [vmem:[%s1 + $0x170] sm:$0xf]
  %v236 = vld [vmem:[%s1 + $0x174] sm:$0xf]
  %v237 = vld [vmem:[%s1 + $0x178] sm:$0xf]
  %v238 = vld [vmem:[%s1 + $0x17c] sm:$0xf]
  %v239 = vld [vmem:[%s1 + $0x180] sm:$0xf]
  %v240 = vld [vmem:[%s1 + $0x184] sm:$0xf]
  %v241 = vld [vmem:[%s1 + $0x188] sm:$0xf]
  %v242 = vld [vmem:[%s1 + $0x18c] sm:$0xf]
  %v243 = vld [vmem:[%s1 + $0x190] sm:$0xf]
  %v244 = vld [vmem:[%s1 + $0x194] sm:$0xf]
  %v245 = vld [vmem:[%s1 + $0x198] sm:$0xf]
  %v246 = vld [vmem:[%s1 + $0x19c] sm:$0xf]
  %v247 = vld [vmem:[%s1 + $0x1a0] sm:$0xf]
  %v248 = vld [vmem:[%s1 + $0x1a4] sm:$0xf]
  %v249 = vld [vmem:[%s1 + $0x1a8] sm:$0xf]
  %v250 = vld [vmem:[%s1 + $0x1ac] sm:$0xf]
  %v251 = vld [vmem:[%s1 + $0x1b0] sm:$0xf]
  %v252 = vld [vmem:[%s1 + $0x1b4] sm:$0xf]
  %v253 = vld [vmem:[%s1 + $0x1b8] sm:$0xf]
  %v254 = vld [vmem:[%s1 + $0x1bc] sm:$0xf]
  %v255 = vld [vmem:[%s1 + $0x1c0] sm:$0xf]
  %v256 = vld [vmem:[%s1 + $0x1c4] sm:$0xf]
  %v257 = vld [vmem:[%s1 + $0x1c8] sm:$0xf]
  %v258 = vld [vmem:[%s1 + $0x1cc] sm:$0xf]
  %v259 = vld [vmem:[%s1 + $0x1d0] sm:$0xf]
  %v260 = vld [vmem:[%s1 + $0x1d4] sm:$0xf]
  %v261 = vld [vmem:[%s1 + $0x1d8] sm:$0xf]
  %v262 = vld [vmem:[%s1 + $0x1dc] sm:$0xf]
  %v263 = vld [vmem:[%s1 + $0x1e0] sm:$0xf]
  %v264 = vld [vmem:[%s1 + $0x1e4] sm:$0xf]
  %v265 = vld [vmem:[%s1 + $0x1e8] sm:$0xf]
  %v266 = vld [vmem:[%s1 + $0x1ec] sm:$0xf]
  %v267 = vld [vmem:[%s1 + $0x1f0] sm:$0xf]
  %v268 = vld [vmem:[%s1 + $0x1f4] sm:$0xf]
  %v269 = vld [vmem:[%s1 + $0x1f8] sm:$0xf]
  %v270 = vld [vmem:[%s1 + $0x1fc] sm:$0xf]
  %v271 = vld [vmem:[%s1 + $0x200] sm:$0xf]
  %v272 = vld [vmem:[%s1 + $0x204] sm:$0xf]
  %v273 = vld [vmem:[%s1 + $0x208] sm:$0xf]
  %v274 = vld [vmem:[%s1 + $0x20c] sm:$0xf]
  %v275 = vld [vmem:[%s1 + $0x210] sm:$0xf]
  %v276 = vld [vmem:[%s1 + $0x214] sm:$0xf]
  %v277 = vld [vmem:[%s1 + $0x218] sm:$0xf]
  %v278 = vld [vmem:[%s1 + $0x21c] sm:$0xf]
  %v279 = vld [vmem:[%s1 + $0x220] sm:$0xf]
  %v280 = vld [vmem:[%s1 + $0x224] sm:$0xf]
  %v281 = vld [vmem:[%s1 + $0x228] sm:$0xf]
  %v282 = vld [vmem:[%s1 + $0x22c] sm:$0xf]
  %v283 = vld [vmem:[%s1 + $0x230] sm:$0xf]
  %v284 = vld [vmem:[%s1 + $0x234] sm:$0xf]
  %v285 = vld [vmem:[%s1 + $0x238] sm:$0xf]
  %v286 = vld [vmem:[%s1 + $0x23c] sm:$0xf]
  %v287 = vld [vmem:[%s1 + $0x240] sm:$0xf]
  %v288 = vld [vmem:[%s1 + $0x244] sm:$0xf]
  %v289 = vld [vmem:[%s1 + $0x248] sm:$0xf]
  %v290 = vld [vmem:[%s1 + $0x24c] sm:$0xf]
  %v291 = vld [vmem:[%s1 + $0x250] sm:$0xf]
  %v292 = vld [vmem:[%s1 + $0x254] sm:$0xf]
  %v293 = vld [vmem:[%s1 + $0x258] sm:$0xf]
  %v294 = vld [vmem:[%s1 + $0x25c] sm:$0xf]
  %v295 = vld [vmem:[%s1 + $0x260] sm:$0xf]
  %v296 = vld [vmem:[%s1 + $0x264] sm:$0xf]
  %v297 = vld [vmem:[%s1 + $0x268] sm:$0xf]
  %v298 = vld [vmem:[%s1 + $0x26c] sm:$0xf]
  %v299 = vld [vmem:[%s1 + $0x270] sm:$0xf]
  %v300 = vld [vmem:[%s1 + $0x274] sm:$0xf]
  %v301 = vld [vmem:[%s1 + $0x278] sm:$0xf]
  %v302 = vld [vmem:[%s1 + $0x27c] sm:$0xf]
  %v303 = vld [vmem:[%s1 + $0x280] sm:$0xf]
  %v304 = vld [vmem:[%s1 + $0x284] sm:$0xf]
  %v305 = vld [vmem:[%s1 + $0x288] sm:$0xf]
  %v306 = vld [vmem:[%s1 + $0x28c] sm:$0xf]
  %v307 = vld [vmem:[%s1 + $0x290] sm:$0xf]
  %v308 = vld [vmem:[%s1 + $0x294] sm:$0xf]
  %v309 = vld [vmem:[%s1 + $0x298] sm:$0xf]
  %v310 = vld [vmem:[%s1 + $0x29c] sm:$0xf]
  %v311 = vld [vmem:[%s1 + $0x2a0] sm:$0xf]
  %v312 = vld [vmem:[%s1 + $0x2a4] sm:$0xf]
  %v313 = vld [vmem:[%s1 + $0x2a8] sm:$0xf]
  %v314 = vld [vmem:[%s1 + $0x2ac] sm:$0xf]
  %v315 = vld [vmem:[%s1 + $0x2b0] sm:$0xf]
  %v316 = vld [vmem:[%s1 + $0x2b4] sm:$0xf]
  %v317 = vld [vmem:[%s1 + $0x2b8] sm:$0xf]
  %v318 = vld [vmem:[%s1 + $0x2bc] sm:$0xf]
  %v319 = vld [vmem:[%s1 + $0x2c0] sm:$0xf]
  %v320 = vld [vmem:[%s1 + $0x2c4] sm:$0xf]
  %v321 = vld [vmem:[%s1 + $0x2c8] sm:$0xf]
  %v322 = vld [vmem:[%s1 + $0x2cc] sm:$0xf]
  %v323 = vld [vmem:[%s1 + $0x2d0] sm:$0xf]
  %v324 = vld [vmem:[%s1 + $0x2d4] sm:$0xf]
  %v325 = vld [vmem:[%s1 + $0x2d8] sm:$0xf]
  %v326 = vld [vmem:[%s1 + $0x2dc] sm:$0xf]
  %v327 = vld [vmem:[%s1 + $0x2e0] sm:$0xf]
  %v328 = vld [vmem:[%s1 + $0x2e4] sm:$0xf]
  %v329 = vld [vmem:[%s1 + $0x2e8] sm:$0xf]
  %v330 = vld [vmem:[%s1 + $0x2ec] sm:$0xf]
  %v331 = vld [vmem:[%s1 + $0x2f0] sm:$0xf]
  %v332 = vld [vmem:[%s1 + $0x2f4] sm:$0xf]
  %v333 = vld [vmem:[%s1 + $0x2f8] sm:$0xf]
  %v334 = vld [vmem:[%s1 + $0x2fc] sm:$0xf]
  %v335 = vld [vmem:[%s1 + $0x300] sm:$0xf]
  %v336 = vld [vmem:[%s1 + $0x304] sm:$0xf]
  %v337 = vld [vmem:[%s1 + $0x308] sm:$0xf]
  %v338 = vld [vmem:[%s1 + $0x30c] sm:$0xf]
  %v339 = vld [vmem:[%s1 + $0x310] sm:$0xf]
  %v340 = vld [vmem:[%s1 + $0x314] sm:$0xf]
  %v341 = vld [vmem:[%s1 + $0x318] sm:$0xf]
  %v342 = vld [vmem:[%s1 + $0x31c] sm:$0xf]
  %v343 = vld [vmem:[%s1 + $0x320] sm:$0xf]
  %v344 = vld [vmem:[%s1 + $0x324] sm:$0xf]
  %v345 = vld [vmem:[%s1 + $0x328] sm:$0xf]
  %v346 = vld [vmem:[%s1 + $0x32c] sm:$0xf]
  %v347 = vld [vmem:[%s1 + $0x330] sm:$0xf]
  %v348 = vld [vmem:[%s1 + $0x334] sm:$0xf]
  %v349 = vld [vmem:[%s1 + $0x338] sm:$0xf]
  %v350 = vld [vmem:[%s1 + $0x33c] sm:$0xf]
  %v351 = vld [vmem:[%s1 + $0x340] sm:$0xf]
  %v352 = vld [vmem:[%s1 + $0x344] sm:$0xf]
  %v353 = vld [vmem:[%s1 + $0x348] sm:$0xf]
  %v354 = vld [vmem:[%s1 + $0x34c] sm:$0xf]
  %v355 = vld [vmem:[%s1 + $0x350] sm:$0xf]
  %v356 = vld [vmem:[%s1 + $0x354] sm:$0xf]
  %v357 = vld [vmem:[%s1 + $0x358] sm:$0xf]
  %v358 = vld [vmem:[%s1 + $0x35c] sm:$0xf]
  %v359 = vld [vmem:[%s1 + $0x360] sm:$0xf]
  %v360 = vld [vmem:[%s1 + $0x364] sm:$0xf]
  %v361 = vld [vmem:[%s1 + $0x368] sm:$0xf]
  %v362 = vld [vmem:[%s1 + $0x36c] sm:$0xf]
  %v363 = vld [vmem:[%s1 + $0x370] sm:$0xf]
  %v364 = vld [vmem:[%s1 + $0x374] sm:$0xf]
  %v365 = vld [vmem:[%s1 + $0x378] sm:$0xf]
  %v366 = vld [vmem:[%s1 + $0x37c] sm:$0xf]
  %v367 = vld [vmem:[%s1 + $0x380] sm:$0xf]
  %v368 = vld [vmem:[%s1 + $0x384] sm:$0xf]
  %v369 = vld [vmem:[%s1 + $0x388] sm:$0xf]
  %v370 = vld [vmem:[%s1 + $0x38c] sm:$0xf]
  %v371 = vld [vmem:[%s1 + $0x390] sm:$0xf]
  %v372 = vld [vmem:[%s1 + $0x394] sm:$0xf]
  %v373 = vld [vmem:[%s1 + $0x398] sm:$0xf]
  %v374 = vld [vmem:[%s1 + $0x39c] sm:$0xf]
  %v375 = vld [vmem:[%s1 + $0x3a0] sm:$0xf]
  %v376 = vld [vmem:[%s1 + $0x3a4] sm:$0xf]
  %v377 = vld [vmem:[%s1 + $0x3a8] sm:$0xf]
  %v378 = vld [vmem:[%s1 + $0x3ac] sm:$0xf]
  %v379 = vld [vmem:[%s1 + $0x3b0] sm:$0xf]
  %v380 = vld [vmem:[%s1 + $0x3b4] sm:$0xf]
  %v381 = vld [vmem:[%s1 + $0x3b8] sm:$0xf]
  %v382 = vld [vmem:[%s1 + $0x3bc] sm:$0xf]
  %v383 = vld [vmem:[%s1 + $0x3c0] sm:$0xf]
  %v384 = vld [vmem:[%s1 + $0x3c4] sm:$0xf]
  %v385 = vld [vmem:[%s1 + $0x3c8] sm:$0xf]
  %v386 = vld [vmem:[%s1 + $0x3cc] sm:$0xf]
  %v387 = vld [vmem:[%s1 + $0x3d0] sm:$0xf]
  %v388 = vld [vmem:[%s1 + $0x3d4] sm:$0xf]
  %v389 = vld [vmem:[%s1 + $0x3d8] sm:$0xf]
  %v390 = vld [vmem:[%s1 + $0x3dc] sm:$0xf]
  %v391 = vld [vmem:[%s1 + $0x3e0] sm:$0xf]
  %v392 = vld [vmem:[%s1 + $0x3e4] sm:$0xf]
  %v393 = vld [vmem:[%s1 + $0x3e8] sm:$0xf]
  %v394 = vld [vmem:[%s1 + $0x3ec] sm:$0xf]
  %v395 = vld [vmem:[%s1 + $0x3f0] sm:$0xf]
  %v396 = vld [vmem:[%s1 + $0x3f4] sm:$0xf]
  %v397 = vld [vmem:[%s1 + $0x3f8] sm:$0xf]
  %v398 = vld [vmem:[%s1 + $0x3fc] sm:$0xf]
  %v399 = vld [vmem:[%s2] sm:$0x1]
  %v401 = vlaneseq
  %v402 = vshrl.u32 %v401, 7
  %v403 = vsub.s32 0, %v402
  %v404 = vrot.slane %v399, %v403
  %v534 = vunpack.c.l.b16 %v15
  %v535 = vunpack.c.h.b16 %v15
  %v536 = vunpack.c.l.b16 %v16
  %v537 = vunpack.c.h.b16 %v16
  %v538 = vunpack.c.l.b16 %v17
  %v539 = vunpack.c.h.b16 %v17
  %v540 = vunpack.c.l.b16 %v18
  %v541 = vunpack.c.h.b16 %v18
  %v542 = vunpack.c.l.b16 %v19
  %v543 = vunpack.c.h.b16 %v19
  %v544 = vunpack.c.l.b16 %v20
  %v545 = vunpack.c.h.b16 %v20
  %v546 = vunpack.c.l.b16 %v21
  %v547 = vunpack.c.h.b16 %v21
  %v548 = vunpack.c.l.b16 %v22
  %v549 = vunpack.c.h.b16 %v22
  %v550 = vunpack.c.l.b16 %v23
  %v551 = vunpack.c.h.b16 %v23
  %v552 = vunpack.c.l.b16 %v24
  %v553 = vunpack.c.h.b16 %v24
  %v554 = vunpack.c.l.b16 %v25
  %v555 = vunpack.c.h.b16 %v25
  %v556 = vunpack.c.l.b16 %v26
  %v557 = vunpack.c.h.b16 %v26
  %v558 = vunpack.c.l.b16 %v27
  %v559 = vunpack.c.h.b16 %v27
  %v560 = vunpack.c.l.b16 %v28
  %v561 = vunpack.c.h.b16 %v28
  %v562 = vunpack.c.l.b16 %v29
  %v563 = vunpack.c.h.b16 %v29
  %v564 = vunpack.c.l.b16 %v30
  %v565 = vunpack.c.h.b16 %v30
  %v566 = vunpack.c.l.b16 %v31
  %v567 = vunpack.c.h.b16 %v31
  %v568 = vunpack.c.l.b16 %v32
  %v569 = vunpack.c.h.b16 %v32
  %v570 = vunpack.c.l.b16 %v33
  %v571 = vunpack.c.h.b16 %v33
  %v572 = vunpack.c.l.b16 %v34
  %v573 = vunpack.c.h.b16 %v34
  %v574 = vunpack.c.l.b16 %v35
  %v575 = vunpack.c.h.b16 %v35
  %v576 = vunpack.c.l.b16 %v36
  %v577 = vunpack.c.h.b16 %v36
  %v578 = vunpack.c.l.b16 %v37
  %v579 = vunpack.c.h.b16 %v37
  %v580 = vunpack.c.l.b16 %v38
  %v581 = vunpack.c.h.b16 %v38
  %v582 = vunpack.c.l.b16 %v39
  %v583 = vunpack.c.h.b16 %v39
  %v584 = vunpack.c.l.b16 %v40
  %v585 = vunpack.c.h.b16 %v40
  %v586 = vunpack.c.l.b16 %v41
  %v587 = vunpack.c.h.b16 %v41
  %v588 = vunpack.c.l.b16 %v42
  %v589 = vunpack.c.h.b16 %v42
  %v590 = vunpack.c.l.b16 %v43
  %v591 = vunpack.c.h.b16 %v43
  %v592 = vunpack.c.l.b16 %v44
  %v593 = vunpack.c.h.b16 %v44
  %v594 = vunpack.c.l.b16 %v45
  %v595 = vunpack.c.h.b16 %v45
  %v596 = vunpack.c.l.b16 %v46
  %v597 = vunpack.c.h.b16 %v46
  %v598 = vunpack.c.l.b16 %v47
  %v599 = vunpack.c.h.b16 %v47
  %v600 = vunpack.c.l.b16 %v48
  %v601 = vunpack.c.h.b16 %v48
  %v602 = vunpack.c.l.b16 %v49
  %v603 = vunpack.c.h.b16 %v49
  %v604 = vunpack.c.l.b16 %v50
  %v605 = vunpack.c.h.b16 %v50
  %v606 = vunpack.c.l.b16 %v51
  %v607 = vunpack.c.h.b16 %v51
  %v608 = vunpack.c.l.b16 %v52
  %v609 = vunpack.c.h.b16 %v52
  %v610 = vunpack.c.l.b16 %v53
  %v611 = vunpack.c.h.b16 %v53
  %v612 = vunpack.c.l.b16 %v54
  %v613 = vunpack.c.h.b16 %v54
  %v614 = vunpack.c.l.b16 %v55
  %v615 = vunpack.c.h.b16 %v55
  %v616 = vunpack.c.l.b16 %v56
  %v617 = vunpack.c.h.b16 %v56
  %v618 = vunpack.c.l.b16 %v57
  %v619 = vunpack.c.h.b16 %v57
  %v620 = vunpack.c.l.b16 %v58
  %v621 = vunpack.c.h.b16 %v58
  %v622 = vunpack.c.l.b16 %v59
  %v623 = vunpack.c.h.b16 %v59
  %v624 = vunpack.c.l.b16 %v60
  %v625 = vunpack.c.h.b16 %v60
  %v626 = vunpack.c.l.b16 %v61
  %v627 = vunpack.c.h.b16 %v61
  %v628 = vunpack.c.l.b16 %v62
  %v629 = vunpack.c.h.b16 %v62
  %v630 = vunpack.c.l.b16 %v63
  %v631 = vunpack.c.h.b16 %v63
  %v632 = vunpack.c.l.b16 %v64
  %v633 = vunpack.c.h.b16 %v64
  %v634 = vunpack.c.l.b16 %v65
  %v635 = vunpack.c.h.b16 %v65
  %v636 = vunpack.c.l.b16 %v66
  %v637 = vunpack.c.h.b16 %v66
  %v638 = vunpack.c.l.b16 %v67
  %v639 = vunpack.c.h.b16 %v67
  %v640 = vunpack.c.l.b16 %v68
  %v641 = vunpack.c.h.b16 %v68
  %v642 = vunpack.c.l.b16 %v69
  %v643 = vunpack.c.h.b16 %v69
  %v644 = vunpack.c.l.b16 %v70
  %v645 = vunpack.c.h.b16 %v70
  %v646 = vunpack.c.l.b16 %v71
  %v647 = vunpack.c.h.b16 %v71
  %v648 = vunpack.c.l.b16 %v72
  %v649 = vunpack.c.h.b16 %v72
  %v650 = vunpack.c.l.b16 %v73
  %v651 = vunpack.c.h.b16 %v73
  %v652 = vunpack.c.l.b16 %v74
  %v653 = vunpack.c.h.b16 %v74
  %v654 = vunpack.c.l.b16 %v75
  %v655 = vunpack.c.h.b16 %v75
  %v656 = vunpack.c.l.b16 %v76
  %v657 = vunpack.c.h.b16 %v76
  %v658 = vunpack.c.l.b16 %v77
  %v659 = vunpack.c.h.b16 %v77
  %v660 = vunpack.c.l.b16 %v78
  %v661 = vunpack.c.h.b16 %v78
  %v662 = vunpack.c.l.b16 %v79
  %v663 = vunpack.c.h.b16 %v79
  %v664 = vunpack.c.l.b16 %v80
  %v665 = vunpack.c.h.b16 %v80
  %v666 = vunpack.c.l.b16 %v81
  %v667 = vunpack.c.h.b16 %v81
  %v668 = vunpack.c.l.b16 %v82
  %v669 = vunpack.c.h.b16 %v82
  %v670 = vunpack.c.l.b16 %v83
  %v671 = vunpack.c.h.b16 %v83
  %v672 = vunpack.c.l.b16 %v84
  %v673 = vunpack.c.h.b16 %v84
  %v674 = vunpack.c.l.b16 %v85
  %v675 = vunpack.c.h.b16 %v85
  %v676 = vunpack.c.l.b16 %v86
  %v677 = vunpack.c.h.b16 %v86
  %v678 = vunpack.c.l.b16 %v87
  %v679 = vunpack.c.h.b16 %v87
  %v680 = vunpack.c.l.b16 %v88
  %v681 = vunpack.c.h.b16 %v88
  %v682 = vunpack.c.l.b16 %v89
  %v683 = vunpack.c.h.b16 %v89
  %v684 = vunpack.c.l.b16 %v90
  %v685 = vunpack.c.h.b16 %v90
  %v686 = vunpack.c.l.b16 %v91
  %v687 = vunpack.c.h.b16 %v91
  %v688 = vunpack.c.l.b16 %v92
  %v689 = vunpack.c.h.b16 %v92
  %v690 = vunpack.c.l.b16 %v93
  %v691 = vunpack.c.h.b16 %v93
  %v692 = vunpack.c.l.b16 %v94
  %v693 = vunpack.c.h.b16 %v94
  %v694 = vunpack.c.l.b16 %v95
  %v695 = vunpack.c.h.b16 %v95
  %v696 = vunpack.c.l.b16 %v96
  %v697 = vunpack.c.h.b16 %v96
  %v698 = vunpack.c.l.b16 %v97
  %v699 = vunpack.c.h.b16 %v97
  %v700 = vunpack.c.l.b16 %v98
  %v701 = vunpack.c.h.b16 %v98
  %v702 = vunpack.c.l.b16 %v99
  %v703 = vunpack.c.h.b16 %v99
  %v704 = vunpack.c.l.b16 %v100
  %v705 = vunpack.c.h.b16 %v100
  %v706 = vunpack.c.l.b16 %v101
  %v707 = vunpack.c.h.b16 %v101
  %v708 = vunpack.c.l.b16 %v102
  %v709 = vunpack.c.h.b16 %v102
  %v710 = vunpack.c.l.b16 %v103
  %v711 = vunpack.c.h.b16 %v103
  %v712 = vunpack.c.l.b16 %v104
  %v713 = vunpack.c.h.b16 %v104
  %v714 = vunpack.c.l.b16 %v105
  %v715 = vunpack.c.h.b16 %v105
  %v716 = vunpack.c.l.b16 %v106
  %v717 = vunpack.c.h.b16 %v106
  %v718 = vunpack.c.l.b16 %v107
  %v719 = vunpack.c.h.b16 %v107
  %v720 = vunpack.c.l.b16 %v108
  %v721 = vunpack.c.h.b16 %v108
  %v722 = vunpack.c.l.b16 %v109
  %v723 = vunpack.c.h.b16 %v109
  %v724 = vunpack.c.l.b16 %v110
  %v725 = vunpack.c.h.b16 %v110
  %v726 = vunpack.c.l.b16 %v111
  %v727 = vunpack.c.h.b16 %v111
  %v728 = vunpack.c.l.b16 %v112
  %v729 = vunpack.c.h.b16 %v112
  %v730 = vunpack.c.l.b16 %v113
  %v731 = vunpack.c.h.b16 %v113
  %v732 = vunpack.c.l.b16 %v114
  %v733 = vunpack.c.h.b16 %v114
  %v734 = vunpack.c.l.b16 %v115
  %v735 = vunpack.c.h.b16 %v115
  %v736 = vunpack.c.l.b16 %v116
  %v737 = vunpack.c.h.b16 %v116
  %v738 = vunpack.c.l.b16 %v117
  %v739 = vunpack.c.h.b16 %v117
  %v740 = vunpack.c.l.b16 %v118
  %v741 = vunpack.c.h.b16 %v118
  %v742 = vunpack.c.l.b16 %v119
  %v743 = vunpack.c.h.b16 %v119
  %v744 = vunpack.c.l.b16 %v120
  %v745 = vunpack.c.h.b16 %v120
  %v746 = vunpack.c.l.b16 %v121
  %v747 = vunpack.c.h.b16 %v121
  %v748 = vunpack.c.l.b16 %v122
  %v749 = vunpack.c.h.b16 %v122
  %v750 = vunpack.c.l.b16 %v123
  %v751 = vunpack.c.h.b16 %v123
  %v752 = vunpack.c.l.b16 %v124
  %v753 = vunpack.c.h.b16 %v124
  %v754 = vunpack.c.l.b16 %v125
  %v755 = vunpack.c.h.b16 %v125
  %v756 = vunpack.c.l.b16 %v126
  %v757 = vunpack.c.h.b16 %v126
  %v758 = vunpack.c.l.b16 %v127
  %v759 = vunpack.c.h.b16 %v127
  %v760 = vunpack.c.l.b16 %v128
  %v761 = vunpack.c.h.b16 %v128
  %v762 = vunpack.c.l.b16 %v129
  %v763 = vunpack.c.h.b16 %v129
  %v764 = vunpack.c.l.b16 %v130
  %v765 = vunpack.c.h.b16 %v130
  %v766 = vunpack.c.l.b16 %v131
  %v767 = vunpack.c.h.b16 %v131
  %v768 = vunpack.c.l.b16 %v132
  %v769 = vunpack.c.h.b16 %v132
  %v770 = vunpack.c.l.b16 %v133
  %v771 = vunpack.c.h.b16 %v133
  %v772 = vunpack.c.l.b16 %v134
  %v773 = vunpack.c.h.b16 %v134
  %v774 = vunpack.c.l.b16 %v135
  %v775 = vunpack.c.h.b16 %v135
  %v776 = vunpack.c.l.b16 %v136
  %v777 = vunpack.c.h.b16 %v136
  %v778 = vunpack.c.l.b16 %v137
  %v779 = vunpack.c.h.b16 %v137
  %v780 = vunpack.c.l.b16 %v138
  %v781 = vunpack.c.h.b16 %v138
  %v782 = vunpack.c.l.b16 %v139
  %v783 = vunpack.c.h.b16 %v139
  %v784 = vunpack.c.l.b16 %v140
  %v785 = vunpack.c.h.b16 %v140
  %v786 = vunpack.c.l.b16 %v141
  %v787 = vunpack.c.h.b16 %v141
  %v788 = vunpack.c.l.b16 %v142
  %v789 = vunpack.c.h.b16 %v142
  %v790 = vpack.c.b16 %v550, %v534
  %v791 = vpack.c.b16 %v551, %v535
  %v792 = vpack.c.b16 %v552, %v536
  %v793 = vpack.c.b16 %v553, %v537
  %v794 = vpack.c.b16 %v554, %v538
  %v795 = vpack.c.b16 %v555, %v539
  %v796 = vpack.c.b16 %v556, %v540
  %v797 = vpack.c.b16 %v557, %v541
  %v798 = vpack.c.b16 %v558, %v542
  %v799 = vpack.c.b16 %v559, %v543
  %v800 = vpack.c.b16 %v560, %v544
  %v801 = vpack.c.b16 %v561, %v545
  %v802 = vpack.c.b16 %v562, %v546
  %v803 = vpack.c.b16 %v563, %v547
  %v804 = vpack.c.b16 %v564, %v548
  %v805 = vpack.c.b16 %v565, %v549
  %v806 = vpack.c.b16 %v582, %v566
  %v807 = vpack.c.b16 %v583, %v567
  %v808 = vpack.c.b16 %v584, %v568
  %v809 = vpack.c.b16 %v585, %v569
  %v810 = vpack.c.b16 %v586, %v570
  %v811 = vpack.c.b16 %v587, %v571
  %v812 = vpack.c.b16 %v588, %v572
  %v813 = vpack.c.b16 %v589, %v573
  %v814 = vpack.c.b16 %v590, %v574
  %v815 = vpack.c.b16 %v591, %v575
  %v816 = vpack.c.b16 %v592, %v576
  %v817 = vpack.c.b16 %v593, %v577
  %v818 = vpack.c.b16 %v594, %v578
  %v819 = vpack.c.b16 %v595, %v579
  %v820 = vpack.c.b16 %v596, %v580
  %v821 = vpack.c.b16 %v597, %v581
  %v822 = vpack.c.b16 %v614, %v598
  %v823 = vpack.c.b16 %v615, %v599
  %v824 = vpack.c.b16 %v616, %v600
  %v825 = vpack.c.b16 %v617, %v601
  %v826 = vpack.c.b16 %v618, %v602
  %v827 = vpack.c.b16 %v619, %v603
  %v828 = vpack.c.b16 %v620, %v604
  %v829 = vpack.c.b16 %v621, %v605
  %v830 = vpack.c.b16 %v622, %v606
  %v831 = vpack.c.b16 %v623, %v607
  %v832 = vpack.c.b16 %v624, %v608
  %v833 = vpack.c.b16 %v625, %v609
  %v834 = vpack.c.b16 %v626, %v610
  %v835 = vpack.c.b16 %v627, %v611
  %v836 = vpack.c.b16 %v628, %v612
  %v837 = vpack.c.b16 %v629, %v613
  %v838 = vpack.c.b16 %v646, %v630
  %v839 = vpack.c.b16 %v647, %v631
  %v840 = vpack.c.b16 %v648, %v632
  %v841 = vpack.c.b16 %v649, %v633
  %v842 = vpack.c.b16 %v650, %v634
  %v843 = vpack.c.b16 %v651, %v635
  %v844 = vpack.c.b16 %v652, %v636
  %v845 = vpack.c.b16 %v653, %v637
  %v846 = vpack.c.b16 %v654, %v638
  %v847 = vpack.c.b16 %v655, %v639
  %v848 = vpack.c.b16 %v656, %v640
  %v849 = vpack.c.b16 %v657, %v641
  %v850 = vpack.c.b16 %v658, %v642
  %v851 = vpack.c.b16 %v659, %v643
  %v852 = vpack.c.b16 %v660, %v644
  %v853 = vpack.c.b16 %v661, %v645
  %v854 = vpack.c.b16 %v678, %v662
  %v855 = vpack.c.b16 %v679, %v663
  %v856 = vpack.c.b16 %v680, %v664
  %v857 = vpack.c.b16 %v681, %v665
  %v858 = vpack.c.b16 %v682, %v666
  %v859 = vpack.c.b16 %v683, %v667
  %v860 = vpack.c.b16 %v684, %v668
  %v861 = vpack.c.b16 %v685, %v669
  %v862 = vpack.c.b16 %v686, %v670
  %v863 = vpack.c.b16 %v687, %v671
  %v864 = vpack.c.b16 %v688, %v672
  %v865 = vpack.c.b16 %v689, %v673
  %v866 = vpack.c.b16 %v690, %v674
  %v867 = vpack.c.b16 %v691, %v675
  %v868 = vpack.c.b16 %v692, %v676
  %v869 = vpack.c.b16 %v693, %v677
  %v870 = vpack.c.b16 %v710, %v694
  %v871 = vpack.c.b16 %v711, %v695
  %v872 = vpack.c.b16 %v712, %v696
  %v873 = vpack.c.b16 %v713, %v697
  %v874 = vpack.c.b16 %v714, %v698
  %v875 = vpack.c.b16 %v715, %v699
  %v876 = vpack.c.b16 %v716, %v700
  %v877 = vpack.c.b16 %v717, %v701
  %v878 = vpack.c.b16 %v718, %v702
  %v879 = vpack.c.b16 %v719, %v703
  %v880 = vpack.c.b16 %v720, %v704
  %v881 = vpack.c.b16 %v721, %v705
  %v882 = vpack.c.b16 %v722, %v706
  %v883 = vpack.c.b16 %v723, %v707
  %v884 = vpack.c.b16 %v724, %v708
  %v885 = vpack.c.b16 %v725, %v709
  %v886 = vpack.c.b16 %v742, %v726
  %v887 = vpack.c.b16 %v743, %v727
  %v888 = vpack.c.b16 %v744, %v728
  %v889 = vpack.c.b16 %v745, %v729
  %v890 = vpack.c.b16 %v746, %v730
  %v891 = vpack.c.b16 %v747, %v731
  %v892 = vpack.c.b16 %v748, %v732
  %v893 = vpack.c.b16 %v749, %v733
  %v894 = vpack.c.b16 %v750, %v734
  %v895 = vpack.c.b16 %v751, %v735
  %v896 = vpack.c.b16 %v752, %v736
  %v897 = vpack.c.b16 %v753, %v737
  %v898 = vpack.c.b16 %v754, %v738
  %v899 = vpack.c.b16 %v755, %v739
  %v900 = vpack.c.b16 %v756, %v740
  %v901 = vpack.c.b16 %v757, %v741
  %v902 = vpack.c.b16 %v774, %v758
  %v903 = vpack.c.b16 %v775, %v759
  %v904 = vpack.c.b16 %v776, %v760
  %v905 = vpack.c.b16 %v777, %v761
  %v906 = vpack.c.b16 %v778, %v762
  %v907 = vpack.c.b16 %v779, %v763
  %v908 = vpack.c.b16 %v780, %v764
  %v909 = vpack.c.b16 %v781, %v765
  %v910 = vpack.c.b16 %v782, %v766
  %v911 = vpack.c.b16 %v783, %v767
  %v912 = vpack.c.b16 %v784, %v768
  %v913 = vpack.c.b16 %v785, %v769
  %v914 = vpack.c.b16 %v786, %v770
  %v915 = vpack.c.b16 %v787, %v771
  %v916 = vpack.c.b16 %v788, %v772
  %v917 = vpack.c.b16 %v789, %v773
  %v1302 = vunpack.c.l.b16 %v143
  %v1303 = vunpack.c.l.b16 %v144
  %v1304 = vunpack.c.l.b16 %v145
  %v1305 = vunpack.c.l.b16 %v146
  %v1306 = vunpack.c.l.b16 %v147
  %v1307 = vunpack.c.l.b16 %v148
  %v1308 = vunpack.c.l.b16 %v149
  %v1309 = vunpack.c.l.b16 %v150
  %v1310 = vunpack.c.l.b16 %v151
  %v1311 = vunpack.c.l.b16 %v152
  %v1312 = vunpack.c.l.b16 %v153
  %v1313 = vunpack.c.l.b16 %v154
  %v1314 = vunpack.c.l.b16 %v155
  %v1315 = vunpack.c.l.b16 %v156
  %v1316 = vunpack.c.l.b16 %v157
  %v1317 = vunpack.c.l.b16 %v158
  %v1318 = vunpack.c.l.b16 %v159
  %v1319 = vunpack.c.l.b16 %v160
  %v1320 = vunpack.c.l.b16 %v161
  %v1321 = vunpack.c.l.b16 %v162
  %v1322 = vunpack.c.l.b16 %v163
  %v1323 = vunpack.c.l.b16 %v164
  %v1324 = vunpack.c.l.b16 %v165
  %v1325 = vunpack.c.l.b16 %v166
  %v1326 = vunpack.c.l.b16 %v167
  %v1327 = vunpack.c.l.b16 %v168
  %v1328 = vunpack.c.l.b16 %v169
  %v1329 = vunpack.c.l.b16 %v170
  %v1330 = vunpack.c.l.b16 %v171
  %v1331 = vunpack.c.l.b16 %v172
  %v1332 = vunpack.c.l.b16 %v173
  %v1333 = vunpack.c.l.b16 %v174
  %v1334 = vunpack.c.l.b16 %v175
  %v1335 = vunpack.c.l.b16 %v176
  %v1336 = vunpack.c.l.b16 %v177
  %v1337 = vunpack.c.l.b16 %v178
  %v1338 = vunpack.c.l.b16 %v179
  %v1339 = vunpack.c.l.b16 %v180
  %v1340 = vunpack.c.l.b16 %v181
  %v1341 = vunpack.c.l.b16 %v182
  %v1342 = vunpack.c.l.b16 %v183
  %v1343 = vunpack.c.l.b16 %v184
  %v1344 = vunpack.c.l.b16 %v185
  %v1345 = vunpack.c.l.b16 %v186
  %v1346 = vunpack.c.l.b16 %v187
  %v1347 = vunpack.c.l.b16 %v188
  %v1348 = vunpack.c.l.b16 %v189
  %v1349 = vunpack.c.l.b16 %v190
  %v1350 = vunpack.c.l.b16 %v191
  %v1351 = vunpack.c.l.b16 %v192
  %v1352 = vunpack.c.l.b16 %v193
  %v1353 = vunpack.c.l.b16 %v194
  %v1354 = vunpack.c.l.b16 %v195
  %v1355 = vunpack.c.l.b16 %v196
  %v1356 = vunpack.c.l.b16 %v197
  %v1357 = vunpack.c.l.b16 %v198
  %v1358 = vunpack.c.l.b16 %v199
  %v1359 = vunpack.c.l.b16 %v200
  %v1360 = vunpack.c.l.b16 %v201
  %v1361 = vunpack.c.l.b16 %v202
  %v1362 = vunpack.c.l.b16 %v203
  %v1363 = vunpack.c.l.b16 %v204
  %v1364 = vunpack.c.l.b16 %v205
  %v1365 = vunpack.c.l.b16 %v206
  %v1366 = vunpack.c.l.b16 %v207
  %v1367 = vunpack.c.l.b16 %v208
  %v1368 = vunpack.c.l.b16 %v209
  %v1369 = vunpack.c.l.b16 %v210
  %v1370 = vunpack.c.l.b16 %v211
  %v1371 = vunpack.c.l.b16 %v212
  %v1372 = vunpack.c.l.b16 %v213
  %v1373 = vunpack.c.l.b16 %v214
  %v1374 = vunpack.c.l.b16 %v215
  %v1375 = vunpack.c.l.b16 %v216
  %v1376 = vunpack.c.l.b16 %v217
  %v1377 = vunpack.c.l.b16 %v218
  %v1378 = vunpack.c.l.b16 %v219
  %v1379 = vunpack.c.l.b16 %v220
  %v1380 = vunpack.c.l.b16 %v221
  %v1381 = vunpack.c.l.b16 %v222
  %v1382 = vunpack.c.l.b16 %v223
  %v1383 = vunpack.c.l.b16 %v224
  %v1384 = vunpack.c.l.b16 %v225
  %v1385 = vunpack.c.l.b16 %v226
  %v1386 = vunpack.c.l.b16 %v227
  %v1387 = vunpack.c.l.b16 %v228
  %v1388 = vunpack.c.l.b16 %v229
  %v1389 = vunpack.c.l.b16 %v230
  %v1390 = vunpack.c.l.b16 %v231
  %v1391 = vunpack.c.l.b16 %v232
  %v1392 = vunpack.c.l.b16 %v233
  %v1393 = vunpack.c.l.b16 %v234
  %v1394 = vunpack.c.l.b16 %v235
  %v1395 = vunpack.c.l.b16 %v236
  %v1396 = vunpack.c.l.b16 %v237
  %v1397 = vunpack.c.l.b16 %v238
  %v1398 = vunpack.c.l.b16 %v239
  %v1399 = vunpack.c.l.b16 %v240
  %v1400 = vunpack.c.l.b16 %v241
  %v1401 = vunpack.c.l.b16 %v242
  %v1402 = vunpack.c.l.b16 %v243
  %v1403 = vunpack.c.l.b16 %v244
  %v1404 = vunpack.c.l.b16 %v245
  %v1405 = vunpack.c.l.b16 %v246
  %v1406 = vunpack.c.l.b16 %v247
  %v1407 = vunpack.c.l.b16 %v248
  %v1408 = vunpack.c.l.b16 %v249
  %v1409 = vunpack.c.l.b16 %v250
  %v1410 = vunpack.c.l.b16 %v251
  %v1411 = vunpack.c.l.b16 %v252
  %v1412 = vunpack.c.l.b16 %v253
  %v1413 = vunpack.c.l.b16 %v254
  %v1414 = vunpack.c.l.b16 %v255
  %v1415 = vunpack.c.l.b16 %v256
  %v1416 = vunpack.c.l.b16 %v257
  %v1417 = vunpack.c.l.b16 %v258
  %v1418 = vunpack.c.l.b16 %v259
  %v1419 = vunpack.c.l.b16 %v260
  %v1420 = vunpack.c.l.b16 %v261
  %v1421 = vunpack.c.l.b16 %v262
  %v1422 = vunpack.c.l.b16 %v263
  %v1423 = vunpack.c.l.b16 %v264
  %v1424 = vunpack.c.l.b16 %v265
  %v1425 = vunpack.c.l.b16 %v266
  %v1426 = vunpack.c.l.b16 %v267
  %v1427 = vunpack.c.l.b16 %v268
  %v1428 = vunpack.c.l.b16 %v269
  %v1429 = vunpack.c.l.b16 %v270
  %v1430 = vunpack.c.l.b16 %v271
  %v1431 = vunpack.c.l.b16 %v272
  %v1432 = vunpack.c.l.b16 %v273
  %v1433 = vunpack.c.l.b16 %v274
  %v1434 = vunpack.c.l.b16 %v275
  %v1435 = vunpack.c.l.b16 %v276
  %v1436 = vunpack.c.l.b16 %v277
  %v1437 = vunpack.c.l.b16 %v278
  %v1438 = vunpack.c.l.b16 %v279
  %v1439 = vunpack.c.l.b16 %v280
  %v1440 = vunpack.c.l.b16 %v281
  %v1441 = vunpack.c.l.b16 %v282
  %v1442 = vunpack.c.l.b16 %v283
  %v1443 = vunpack.c.l.b16 %v284
  %v1444 = vunpack.c.l.b16 %v285
  %v1445 = vunpack.c.l.b16 %v286
  %v1446 = vunpack.c.l.b16 %v287
  %v1447 = vunpack.c.l.b16 %v288
  %v1448 = vunpack.c.l.b16 %v289
  %v1449 = vunpack.c.l.b16 %v290
  %v1450 = vunpack.c.l.b16 %v291
  %v1451 = vunpack.c.l.b16 %v292
  %v1452 = vunpack.c.l.b16 %v293
  %v1453 = vunpack.c.l.b16 %v294
  %v1454 = vunpack.c.l.b16 %v295
  %v1455 = vunpack.c.l.b16 %v296
  %v1456 = vunpack.c.l.b16 %v297
  %v1457 = vunpack.c.l.b16 %v298
  %v1458 = vunpack.c.l.b16 %v299
  %v1459 = vunpack.c.l.b16 %v300
  %v1460 = vunpack.c.l.b16 %v301
  %v1461 = vunpack.c.l.b16 %v302
  %v1462 = vunpack.c.l.b16 %v303
  %v1463 = vunpack.c.l.b16 %v304
  %v1464 = vunpack.c.l.b16 %v305
  %v1465 = vunpack.c.l.b16 %v306
  %v1466 = vunpack.c.l.b16 %v307
  %v1467 = vunpack.c.l.b16 %v308
  %v1468 = vunpack.c.l.b16 %v309
  %v1469 = vunpack.c.l.b16 %v310
  %v1470 = vunpack.c.l.b16 %v311
  %v1471 = vunpack.c.l.b16 %v312
  %v1472 = vunpack.c.l.b16 %v313
  %v1473 = vunpack.c.l.b16 %v314
  %v1474 = vunpack.c.l.b16 %v315
  %v1475 = vunpack.c.l.b16 %v316
  %v1476 = vunpack.c.l.b16 %v317
  %v1477 = vunpack.c.l.b16 %v318
  %v1478 = vunpack.c.l.b16 %v319
  %v1479 = vunpack.c.l.b16 %v320
  %v1480 = vunpack.c.l.b16 %v321
  %v1481 = vunpack.c.l.b16 %v322
  %v1482 = vunpack.c.l.b16 %v323
  %v1483 = vunpack.c.l.b16 %v324
  %v1484 = vunpack.c.l.b16 %v325
  %v1485 = vunpack.c.l.b16 %v326
  %v1486 = vunpack.c.l.b16 %v327
  %v1487 = vunpack.c.l.b16 %v328
  %v1488 = vunpack.c.l.b16 %v329
  %v1489 = vunpack.c.l.b16 %v330
  %v1490 = vunpack.c.l.b16 %v331
  %v1491 = vunpack.c.l.b16 %v332
  %v1492 = vunpack.c.l.b16 %v333
  %v1493 = vunpack.c.l.b16 %v334
  %v1494 = vunpack.c.l.b16 %v335
  %v1495 = vunpack.c.l.b16 %v336
  %v1496 = vunpack.c.l.b16 %v337
  %v1497 = vunpack.c.l.b16 %v338
  %v1498 = vunpack.c.l.b16 %v339
  %v1499 = vunpack.c.l.b16 %v340
  %v1500 = vunpack.c.l.b16 %v341
  %v1501 = vunpack.c.l.b16 %v342
  %v1502 = vunpack.c.l.b16 %v343
  %v1503 = vunpack.c.l.b16 %v344
  %v1504 = vunpack.c.l.b16 %v345
  %v1505 = vunpack.c.l.b16 %v346
  %v1506 = vunpack.c.l.b16 %v347
  %v1507 = vunpack.c.l.b16 %v348
  %v1508 = vunpack.c.l.b16 %v349
  %v1509 = vunpack.c.l.b16 %v350
  %v1510 = vunpack.c.l.b16 %v351
  %v1511 = vunpack.c.l.b16 %v352
  %v1512 = vunpack.c.l.b16 %v353
  %v1513 = vunpack.c.l.b16 %v354
  %v1514 = vunpack.c.l.b16 %v355
  %v1515 = vunpack.c.l.b16 %v356
  %v1516 = vunpack.c.l.b16 %v357
  %v1517 = vunpack.c.l.b16 %v358
  %v1518 = vunpack.c.l.b16 %v359
  %v1519 = vunpack.c.l.b16 %v360
  %v1520 = vunpack.c.l.b16 %v361
  %v1521 = vunpack.c.l.b16 %v362
  %v1522 = vunpack.c.l.b16 %v363
  %v1523 = vunpack.c.l.b16 %v364
  %v1524 = vunpack.c.l.b16 %v365
  %v1525 = vunpack.c.l.b16 %v366
  %v1526 = vunpack.c.l.b16 %v367
  %v1527 = vunpack.c.l.b16 %v368
  %v1528 = vunpack.c.l.b16 %v369
  %v1529 = vunpack.c.l.b16 %v370
  %v1530 = vunpack.c.l.b16 %v371
  %v1531 = vunpack.c.l.b16 %v372
  %v1532 = vunpack.c.l.b16 %v373
  %v1533 = vunpack.c.l.b16 %v374
  %v1534 = vunpack.c.l.b16 %v375
  %v1535 = vunpack.c.l.b16 %v376
  %v1536 = vunpack.c.l.b16 %v377
  %v1537 = vunpack.c.l.b16 %v378
  %v1538 = vunpack.c.l.b16 %v379
  %v1539 = vunpack.c.l.b16 %v380
  %v1540 = vunpack.c.l.b16 %v381
  %v1541 = vunpack.c.l.b16 %v382
  %v1542 = vunpack.c.l.b16 %v383
  %v1543 = vunpack.c.l.b16 %v384
  %v1544 = vunpack.c.l.b16 %v385
  %v1545 = vunpack.c.l.b16 %v386
  %v1546 = vunpack.c.l.b16 %v387
  %v1547 = vunpack.c.l.b16 %v388
  %v1548 = vunpack.c.l.b16 %v389
  %v1549 = vunpack.c.l.b16 %v390
  %v1550 = vunpack.c.l.b16 %v391
  %v1551 = vunpack.c.l.b16 %v392
  %v1552 = vunpack.c.l.b16 %v393
  %v1553 = vunpack.c.l.b16 %v394
  %v1554 = vunpack.c.l.b16 %v395
  %v1555 = vunpack.c.l.b16 %v396
  %v1556 = vunpack.c.l.b16 %v397
  %v1557 = vunpack.c.l.b16 %v398
  %v1558 = vpack.c.b16 %v1303, %v1302
  %v1559 = vpack.c.b16 %v1305, %v1304
  %v1560 = vpack.c.b16 %v1307, %v1306
  %v1561 = vpack.c.b16 %v1309, %v1308
  %v1562 = vpack.c.b16 %v1311, %v1310
  %v1563 = vpack.c.b16 %v1313, %v1312
  %v1564 = vpack.c.b16 %v1315, %v1314
  %v1565 = vpack.c.b16 %v1317, %v1316
  %v1566 = vpack.c.b16 %v1319, %v1318
  %v1567 = vpack.c.b16 %v1321, %v1320
  %v1568 = vpack.c.b16 %v1323, %v1322
  %v1569 = vpack.c.b16 %v1325, %v1324
  %v1570 = vpack.c.b16 %v1327, %v1326
  %v1571 = vpack.c.b16 %v1329, %v1328
  %v1572 = vpack.c.b16 %v1331, %v1330
  %v1573 = vpack.c.b16 %v1333, %v1332
  %v1574 = vpack.c.b16 %v1335, %v1334
  %v1575 = vpack.c.b16 %v1337, %v1336
  %v1576 = vpack.c.b16 %v1339, %v1338
  %v1577 = vpack.c.b16 %v1341, %v1340
  %v1578 = vpack.c.b16 %v1343, %v1342
  %v1579 = vpack.c.b16 %v1345, %v1344
  %v1580 = vpack.c.b16 %v1347, %v1346
  %v1581 = vpack.c.b16 %v1349, %v1348
  %v1582 = vpack.c.b16 %v1351, %v1350
  %v1583 = vpack.c.b16 %v1353, %v1352
  %v1584 = vpack.c.b16 %v1355, %v1354
  %v1585 = vpack.c.b16 %v1357, %v1356
  %v1586 = vpack.c.b16 %v1359, %v1358
  %v1587 = vpack.c.b16 %v1361, %v1360
  %v1588 = vpack.c.b16 %v1363, %v1362
  %v1589 = vpack.c.b16 %v1365, %v1364
  %v1590 = vpack.c.b16 %v1367, %v1366
  %v1591 = vpack.c.b16 %v1369, %v1368
  %v1592 = vpack.c.b16 %v1371, %v1370
  %v1593 = vpack.c.b16 %v1373, %v1372
  %v1594 = vpack.c.b16 %v1375, %v1374
  %v1595 = vpack.c.b16 %v1377, %v1376
  %v1596 = vpack.c.b16 %v1379, %v1378
  %v1597 = vpack.c.b16 %v1381, %v1380
  %v1598 = vpack.c.b16 %v1383, %v1382
  %v1599 = vpack.c.b16 %v1385, %v1384
  %v1600 = vpack.c.b16 %v1387, %v1386
  %v1601 = vpack.c.b16 %v1389, %v1388
  %v1602 = vpack.c.b16 %v1391, %v1390
  %v1603 = vpack.c.b16 %v1393, %v1392
  %v1604 = vpack.c.b16 %v1395, %v1394
  %v1605 = vpack.c.b16 %v1397, %v1396
  %v1606 = vpack.c.b16 %v1399, %v1398
  %v1607 = vpack.c.b16 %v1401, %v1400
  %v1608 = vpack.c.b16 %v1403, %v1402
  %v1609 = vpack.c.b16 %v1405, %v1404
  %v1610 = vpack.c.b16 %v1407, %v1406
  %v1611 = vpack.c.b16 %v1409, %v1408
  %v1612 = vpack.c.b16 %v1411, %v1410
  %v1613 = vpack.c.b16 %v1413, %v1412
  %v1614 = vpack.c.b16 %v1415, %v1414
  %v1615 = vpack.c.b16 %v1417, %v1416
  %v1616 = vpack.c.b16 %v1419, %v1418
  %v1617 = vpack.c.b16 %v1421, %v1420
  %v1618 = vpack.c.b16 %v1423, %v1422
  %v1619 = vpack.c.b16 %v1425, %v1424
  %v1620 = vpack.c.b16 %v1427, %v1426
  %v1621 = vpack.c.b16 %v1429, %v1428
  %v1622 = vpack.c.b16 %v1431, %v1430
  %v1623 = vpack.c.b16 %v1433, %v1432
  %v1624 = vpack.c.b16 %v1435, %v1434
  %v1625 = vpack.c.b16 %v1437, %v1436
  %v1626 = vpack.c.b16 %v1439, %v1438
  %v1627 = vpack.c.b16 %v1441, %v1440
  %v1628 = vpack.c.b16 %v1443, %v1442
  %v1629 = vpack.c.b16 %v1445, %v1444
  %v1630 = vpack.c.b16 %v1447, %v1446
  %v1631 = vpack.c.b16 %v1449, %v1448
  %v1632 = vpack.c.b16 %v1451, %v1450
  %v1633 = vpack.c.b16 %v1453, %v1452
  %v1634 = vpack.c.b16 %v1455, %v1454
  %v1635 = vpack.c.b16 %v1457, %v1456
  %v1636 = vpack.c.b16 %v1459, %v1458
  %v1637 = vpack.c.b16 %v1461, %v1460
  %v1638 = vpack.c.b16 %v1463, %v1462
  %v1639 = vpack.c.b16 %v1465, %v1464
  %v1640 = vpack.c.b16 %v1467, %v1466
  %v1641 = vpack.c.b16 %v1469, %v1468
  %v1642 = vpack.c.b16 %v1471, %v1470
  %v1643 = vpack.c.b16 %v1473, %v1472
  %v1644 = vpack.c.b16 %v1475, %v1474
  %v1645 = vpack.c.b16 %v1477, %v1476
  %v1646 = vpack.c.b16 %v1479, %v1478
  %v1647 = vpack.c.b16 %v1481, %v1480
  %v1648 = vpack.c.b16 %v1483, %v1482
  %v1649 = vpack.c.b16 %v1485, %v1484
  %v1650 = vpack.c.b16 %v1487, %v1486
  %v1651 = vpack.c.b16 %v1489, %v1488
  %v1652 = vpack.c.b16 %v1491, %v1490
  %v1653 = vpack.c.b16 %v1493, %v1492
  %v1654 = vpack.c.b16 %v1495, %v1494
  %v1655 = vpack.c.b16 %v1497, %v1496
  %v1656 = vpack.c.b16 %v1499, %v1498
  %v1657 = vpack.c.b16 %v1501, %v1500
  %v1658 = vpack.c.b16 %v1503, %v1502
  %v1659 = vpack.c.b16 %v1505, %v1504
  %v1660 = vpack.c.b16 %v1507, %v1506
  %v1661 = vpack.c.b16 %v1509, %v1508
  %v1662 = vpack.c.b16 %v1511, %v1510
  %v1663 = vpack.c.b16 %v1513, %v1512
  %v1664 = vpack.c.b16 %v1515, %v1514
  %v1665 = vpack.c.b16 %v1517, %v1516
  %v1666 = vpack.c.b16 %v1519, %v1518
  %v1667 = vpack.c.b16 %v1521, %v1520
  %v1668 = vpack.c.b16 %v1523, %v1522
  %v1669 = vpack.c.b16 %v1525, %v1524
  %v1670 = vpack.c.b16 %v1527, %v1526
  %v1671 = vpack.c.b16 %v1529, %v1528
  %v1672 = vpack.c.b16 %v1531, %v1530
  %v1673 = vpack.c.b16 %v1533, %v1532
  %v1674 = vpack.c.b16 %v1535, %v1534
  %v1675 = vpack.c.b16 %v1537, %v1536
  %v1676 = vpack.c.b16 %v1539, %v1538
  %v1677 = vpack.c.b16 %v1541, %v1540
  %v1678 = vpack.c.b16 %v1543, %v1542
  %v1679 = vpack.c.b16 %v1545, %v1544
  %v1680 = vpack.c.b16 %v1547, %v1546
  %v1681 = vpack.c.b16 %v1549, %v1548
  %v1682 = vpack.c.b16 %v1551, %v1550
  %v1683 = vpack.c.b16 %v1553, %v1552
  %v1684 = vpack.c.b16 %v1555, %v1554
  %v1685 = vpack.c.b16 %v1557, %v1556
  %1814 = vmatprep.subr.bf16.mxu0 0
  %1815 = vmatpush1.bf16.msra.mxu0 %v1565
  %1816 = vmatprep.subr.bf16.mxu0 0
  %1817 = vmatpush1.bf16.msra.mxu0 %v1564
  %1818 = vmatprep.subr.bf16.mxu0 0
  %1819 = vmatpush1.bf16.msra.mxu0 %v1563
  %1820 = vmatprep.subr.bf16.mxu0 0
  %1821 = vmatpush1.bf16.msra.mxu0 %v1562
  %1822 = vmatprep.subr.bf16.mxu0 0
  %1823 = vmatpush1.bf16.msra.mxu0 %v1561
  %1824 = vmatprep.subr.bf16.mxu0 0
  %1825 = vmatpush1.bf16.msra.mxu0 %v1560
  %1826 = vmatprep.subr.bf16.mxu0 0
  %1827 = vmatpush1.bf16.msra.mxu0 %v1559
  %1828 = vmatprep.subr.bf16.mxu0 0
  %1829 = vmatpush1.bf16.msra.mxu0 %v1558
  %1830 = vmatprep.subr.bf16.mxu0 0
  %1831 = vmatpush2.bf16.msra.mxu0 %v1573
  %1832 = vmatprep.subr.bf16.mxu0 0
  %1833 = vmatpush2.bf16.msra.mxu0 %v1572
  %1834 = vmatprep.subr.bf16.mxu0 0
  %1835 = vmatpush2.bf16.msra.mxu0 %v1571
  %1836 = vmatprep.subr.bf16.mxu0 0
  %1837 = vmatpush2.bf16.msra.mxu0 %v1570
  %1838 = vmatprep.subr.bf16.mxu0 0
  %1839 = vmatpush2.bf16.msra.mxu0 %v1569
  %1840 = vmatprep.subr.bf16.mxu0 0
  %1841 = vmatpush2.bf16.msra.mxu0 %v1568
  %1842 = vmatprep.subr.bf16.mxu0 0
  %1843 = vmatpush2.bf16.msra.mxu0 %v1567
  %1844 = vmatprep.subr.bf16.mxu0 0
  %1845 = vmatpush2.bf16.msra.mxu0 %v1566
  %1846 = vmatprep.mubr.bf16.mxu0 %v791
  %1847 = vmatmul.mubr.bf16.gmra.mxu0 %v790
  %v1848 = vpop.f32.mrf.mxu0
  %v1849 = vadd.f32 %v404, %v1848
  %v1850 = vpop.f32.mrf.mxu0
  %v1851 = vpop.f32.mrf.mxu0
  %v1852 = vadd.f32 %v404, %v1851
  %v1853 = vpop.f32.mrf.mxu0
  %1854 = vmatprep.mubr.bf16.mxu0 %v807
  %1855 = vmatmul.mubr.bf16.gmra.mxu0 %v806
  %v1856 = vpop.f32.mrf.mxu0
  %v1857 = vadd.f32 %v404, %v1856
  %v1858 = vpop.f32.mrf.mxu0
  %v1859 = vpop.f32.mrf.mxu0
  %v1860 = vadd.f32 %v404, %v1859
  %v1861 = vpop.f32.mrf.mxu0
  %1862 = vmatprep.mubr.bf16.mxu0 %v823
  %1863 = vmatmul.mubr.bf16.gmra.mxu0 %v822
  %v1864 = vpop.f32.mrf.mxu0
  %v1865 = vadd.f32 %v404, %v1864
  %v1866 = vpop.f32.mrf.mxu0
  %v1867 = vpop.f32.mrf.mxu0
  %v1868 = vadd.f32 %v404, %v1867
  %v1869 = vpop.f32.mrf.mxu0
  %1870 = vmatprep.mubr.bf16.mxu0 %v839
  %1871 = vmatmul.mubr.bf16.gmra.mxu0 %v838
  %v1872 = vpop.f32.mrf.mxu0
  %v1873 = vadd.f32 %v404, %v1872
  %v1874 = vpop.f32.mrf.mxu0
  %v1875 = vpop.f32.mrf.mxu0
  %v1876 = vadd.f32 %v404, %v1875
  %v1877 = vpop.f32.mrf.mxu0
  %1878 = vmatprep.mubr.bf16.mxu0 %v855
  %1879 = vmatmul.mubr.bf16.gmra.mxu0 %v854
  %v1880 = vpop.f32.mrf.mxu0
  %v1881 = vadd.f32 %v404, %v1880
  %v1882 = vpop.f32.mrf.mxu0
  %v1883 = vpop.f32.mrf.mxu0
  %v1884 = vadd.f32 %v404, %v1883
  %v1885 = vpop.f32.mrf.mxu0
  %1886 = vmatprep.mubr.bf16.mxu0 %v871
  %1887 = vmatmul.mubr.bf16.gmra.mxu0 %v870
  %v1888 = vpop.f32.mrf.mxu0
  %v1889 = vadd.f32 %v404, %v1888
  %v1890 = vpop.f32.mrf.mxu0
  %v1891 = vpop.f32.mrf.mxu0
  %v1892 = vadd.f32 %v404, %v1891
  %v1893 = vpop.f32.mrf.mxu0
  %1894 = vmatprep.mubr.bf16.mxu0 %v887
  %1895 = vmatmul.mubr.bf16.gmra.mxu0 %v886
  %v1896 = vpop.f32.mrf.mxu0
  %v1897 = vadd.f32 %v404, %v1896
  %v1898 = vpop.f32.mrf.mxu0
  %v1899 = vpop.f32.mrf.mxu0
  %v1900 = vadd.f32 %v404, %v1899
  %v1901 = vpop.f32.mrf.mxu0
  %1902 = vmatprep.mubr.bf16.mxu0 %v903
  %1903 = vmatmul.mubr.bf16.gmra.mxu0 %v902
  %v1904 = vpop.f32.mrf.mxu0
  %v1905 = vadd.f32 %v404, %v1904
  %v1906 = vpop.f32.mrf.mxu0
  %v1907 = vpop.f32.mrf.mxu0
  %v1908 = vadd.f32 %v404, %v1907
  %v1909 = vpop.f32.mrf.mxu0
  %1910 = vdwg.mxu0
  %1911 = vmatprep.subr.bf16.mxu0 0
  %1912 = vmatpush1.bf16.msra.mxu0 %v1581
  %1913 = vmatprep.subr.bf16.mxu0 0
  %1914 = vmatpush1.bf16.msra.mxu0 %v1580
  %1915 = vmatprep.subr.bf16.mxu0 0
  %1916 = vmatpush1.bf16.msra.mxu0 %v1579
  %1917 = vmatprep.subr.bf16.mxu0 0
  %1918 = vmatpush1.bf16.msra.mxu0 %v1578
  %1919 = vmatprep.subr.bf16.mxu0 0
  %1920 = vmatpush1.bf16.msra.mxu0 %v1577
  %1921 = vmatprep.subr.bf16.mxu0 0
  %1922 = vmatpush1.bf16.msra.mxu0 %v1576
  %1923 = vmatprep.subr.bf16.mxu0 0
  %1924 = vmatpush1.bf16.msra.mxu0 %v1575
  %1925 = vmatprep.subr.bf16.mxu0 0
  %1926 = vmatpush1.bf16.msra.mxu0 %v1574
  %1927 = vmatprep.subr.bf16.mxu0 0
  %1928 = vmatpush2.bf16.msra.mxu0 %v1589
  %1929 = vmatprep.subr.bf16.mxu0 0
  %1930 = vmatpush2.bf16.msra.mxu0 %v1588
  %1931 = vmatprep.subr.bf16.mxu0 0
  %1932 = vmatpush2.bf16.msra.mxu0 %v1587
  %1933 = vmatprep.subr.bf16.mxu0 0
  %1934 = vmatpush2.bf16.msra.mxu0 %v1586
  %1935 = vmatprep.subr.bf16.mxu0 0
  %1936 = vmatpush2.bf16.msra.mxu0 %v1585
  %1937 = vmatprep.subr.bf16.mxu0 0
  %1938 = vmatpush2.bf16.msra.mxu0 %v1584
  %1939 = vmatprep.subr.bf16.mxu0 0
  %1940 = vmatpush2.bf16.msra.mxu0 %v1583
  %1941 = vmatprep.subr.bf16.mxu0 0
  %1942 = vmatpush2.bf16.msra.mxu0 %v1582
  %1943 = vmatprep.mubr.bf16.mxu0 %v793
  %1944 = vmatmul.mubr.bf16.gmra.mxu0 %v792
  %v1945 = vpop.f32.mrf.mxu0
  %v1946 = vadd.f32 %v1849, %v1945
  %v1947 = vpop.f32.mrf.mxu0
  %v1948 = vpop.f32.mrf.mxu0
  %v1949 = vadd.f32 %v1852, %v1948
  %v1950 = vpop.f32.mrf.mxu0
  %1951 = vmatprep.mubr.bf16.mxu0 %v809
  %1952 = vmatmul.mubr.bf16.gmra.mxu0 %v808
  %v1953 = vpop.f32.mrf.mxu0
  %v1954 = vadd.f32 %v1857, %v1953
  %v1955 = vpop.f32.mrf.mxu0
  %v1956 = vpop.f32.mrf.mxu0
  %v1957 = vadd.f32 %v1860, %v1956
  %v1958 = vpop.f32.mrf.mxu0
  %1959 = vmatprep.mubr.bf16.mxu0 %v825
  %1960 = vmatmul.mubr.bf16.gmra.mxu0 %v824
  %v1961 = vpop.f32.mrf.mxu0
  %v1962 = vadd.f32 %v1865, %v1961
  %v1963 = vpop.f32.mrf.mxu0
  %v1964 = vpop.f32.mrf.mxu0
  %v1965 = vadd.f32 %v1868, %v1964
  %v1966 = vpop.f32.mrf.mxu0
  %1967 = vmatprep.mubr.bf16.mxu0 %v841
  %1968 = vmatmul.mubr.bf16.gmra.mxu0 %v840
  %v1969 = vpop.f32.mrf.mxu0
  %v1970 = vadd.f32 %v1873, %v1969
  %v1971 = vpop.f32.mrf.mxu0
  %v1972 = vpop.f32.mrf.mxu0
  %v1973 = vadd.f32 %v1876, %v1972
  %v1974 = vpop.f32.mrf.mxu0
  %1975 = vmatprep.mubr.bf16.mxu0 %v857
  %1976 = vmatmul.mubr.bf16.gmra.mxu0 %v856
  %v1977 = vpop.f32.mrf.mxu0
  %v1978 = vadd.f32 %v1881, %v1977
  %v1979 = vpop.f32.mrf.mxu0
  %v1980 = vpop.f32.mrf.mxu0
  %v1981 = vadd.f32 %v1884, %v1980
  %v1982 = vpop.f32.mrf.mxu0
  %1983 = vmatprep.mubr.bf16.mxu0 %v873
  %1984 = vmatmul.mubr.bf16.gmra.mxu0 %v872
  %v1985 = vpop.f32.mrf.mxu0
  %v1986 = vadd.f32 %v1889, %v1985
  %v1987 = vpop.f32.mrf.mxu0
  %v1988 = vpop.f32.mrf.mxu0
  %v1989 = vadd.f32 %v1892, %v1988
  %v1990 = vpop.f32.mrf.mxu0
  %1991 = vmatprep.mubr.bf16.mxu0 %v889
  %1992 = vmatmul.mubr.bf16.gmra.mxu0 %v888
  %v1993 = vpop.f32.mrf.mxu0
  %v1994 = vadd.f32 %v1897, %v1993
  %v1995 = vpop.f32.mrf.mxu0
  %v1996 = vpop.f32.mrf.mxu0
  %v1997 = vadd.f32 %v1900, %v1996
  %v1998 = vpop.f32.mrf.mxu0
  %1999 = vmatprep.mubr.bf16.mxu0 %v905
  %2000 = vmatmul.mubr.bf16.gmra.mxu0 %v904
  %v2001 = vpop.f32.mrf.mxu0
  %v2002 = vadd.f32 %v1905, %v2001
  %v2003 = vpop.f32.mrf.mxu0
  %v2004 = vpop.f32.mrf.mxu0
  %v2005 = vadd.f32 %v1908, %v2004
  %v2006 = vpop.f32.mrf.mxu0
  %2007 = vdwg.mxu0
  %2008 = vmatprep.subr.bf16.mxu0 0
  %2009 = vmatpush1.bf16.msra.mxu0 %v1597
  %2010 = vmatprep.subr.bf16.mxu0 0
  %2011 = vmatpush1.bf16.msra.mxu0 %v1596
  %2012 = vmatprep.subr.bf16.mxu0 0
  %2013 = vmatpush1.bf16.msra.mxu0 %v1595
  %2014 = vmatprep.subr.bf16.mxu0 0
  %2015 = vmatpush1.bf16.msra.mxu0 %v1594
  %2016 = vmatprep.subr.bf16.mxu0 0
  %2017 = vmatpush1.bf16.msra.mxu0 %v1593
  %2018 = vmatprep.subr.bf16.mxu0 0
  %2019 = vmatpush1.bf16.msra.mxu0 %v1592
  %2020 = vmatprep.subr.bf16.mxu0 0
  %2021 = vmatpush1.bf16.msra.mxu0 %v1591
  %2022 = vmatprep.subr.bf16.mxu0 0
  %2023 = vmatpush1.bf16.msra.mxu0 %v1590
  %2024 = vmatprep.subr.bf16.mxu0 0
  %2025 = vmatpush2.bf16.msra.mxu0 %v1605
  %2026 = vmatprep.subr.bf16.mxu0 0
  %2027 = vmatpush2.bf16.msra.mxu0 %v1604
  %2028 = vmatprep.subr.bf16.mxu0 0
  %2029 = vmatpush2.bf16.msra.mxu0 %v1603
  %2030 = vmatprep.subr.bf16.mxu0 0
  %2031 = vmatpush2.bf16.msra.mxu0 %v1602
  %2032 = vmatprep.subr.bf16.mxu0 0
  %2033 = vmatpush2.bf16.msra.mxu0 %v1601
  %2034 = vmatprep.subr.bf16.mxu0 0
  %2035 = vmatpush2.bf16.msra.mxu0 %v1600
  %2036 = vmatprep.subr.bf16.mxu0 0
  %2037 = vmatpush2.bf16.msra.mxu0 %v1599
  %2038 = vmatprep.subr.bf16.mxu0 0
  %2039 = vmatpush2.bf16.msra.mxu0 %v1598
  %2040 = vmatprep.mubr.bf16.mxu0 %v795
  %2041 = vmatmul.mubr.bf16.gmra.mxu0 %v794
  %v2042 = vpop.f32.mrf.mxu0
  %v2043 = vadd.f32 %v1946, %v2042
  %v2044 = vpop.f32.mrf.mxu0
  %v2045 = vpop.f32.mrf.mxu0
  %v2046 = vadd.f32 %v1949, %v2045
  %v2047 = vpop.f32.mrf.mxu0
  %2048 = vmatprep.mubr.bf16.mxu0 %v811
  %2049 = vmatmul.mubr.bf16.gmra.mxu0 %v810
  %v2050 = vpop.f32.mrf.mxu0
  %v2051 = vadd.f32 %v1954, %v2050
  %v2052 = vpop.f32.mrf.mxu0
  %v2053 = vpop.f32.mrf.mxu0
  %v2054 = vadd.f32 %v1957, %v2053
  %v2055 = vpop.f32.mrf.mxu0
  %2056 = vmatprep.mubr.bf16.mxu0 %v827
  %2057 = vmatmul.mubr.bf16.gmra.mxu0 %v826
  %v2058 = vpop.f32.mrf.mxu0
  %v2059 = vadd.f32 %v1962, %v2058
  %v2060 = vpop.f32.mrf.mxu0
  %v2061 = vpop.f32.mrf.mxu0
  %v2062 = vadd.f32 %v1965, %v2061
  %v2063 = vpop.f32.mrf.mxu0
  %2064 = vmatprep.mubr.bf16.mxu0 %v843
  %2065 = vmatmul.mubr.bf16.gmra.mxu0 %v842
  %v2066 = vpop.f32.mrf.mxu0
  %v2067 = vadd.f32 %v1970, %v2066
  %v2068 = vpop.f32.mrf.mxu0
  %v2069 = vpop.f32.mrf.mxu0
  %v2070 = vadd.f32 %v1973, %v2069
  %v2071 = vpop.f32.mrf.mxu0
  %2072 = vmatprep.mubr.bf16.mxu0 %v859
  %2073 = vmatmul.mubr.bf16.gmra.mxu0 %v858
  %v2074 = vpop.f32.mrf.mxu0
  %v2075 = vadd.f32 %v1978, %v2074
  %v2076 = vpop.f32.mrf.mxu0
  %v2077 = vpop.f32.mrf.mxu0
  %v2078 = vadd.f32 %v1981, %v2077
  %v2079 = vpop.f32.mrf.mxu0
  %2080 = vmatprep.mubr.bf16.mxu0 %v875
  %2081 = vmatmul.mubr.bf16.gmra.mxu0 %v874
  %v2082 = vpop.f32.mrf.mxu0
  %v2083 = vadd.f32 %v1986, %v2082
  %v2084 = vpop.f32.mrf.mxu0
  %v2085 = vpop.f32.mrf.mxu0
  %v2086 = vadd.f32 %v1989, %v2085
  %v2087 = vpop.f32.mrf.mxu0
  %2088 = vmatprep.mubr.bf16.mxu0 %v891
  %2089 = vmatmul.mubr.bf16.gmra.mxu0 %v890
  %v2090 = vpop.f32.mrf.mxu0
  %v2091 = vadd.f32 %v1994, %v2090
  %v2092 = vpop.f32.mrf.mxu0
  %v2093 = vpop.f32.mrf.mxu0
  %v2094 = vadd.f32 %v1997, %v2093
  %v2095 = vpop.f32.mrf.mxu0
  %2096 = vmatprep.mubr.bf16.mxu0 %v907
  %2097 = vmatmul.mubr.bf16.gmra.mxu0 %v906
  %v2098 = vpop.f32.mrf.mxu0
  %v2099 = vadd.f32 %v2002, %v2098
  %v2100 = vpop.f32.mrf.mxu0
  %v2101 = vpop.f32.mrf.mxu0
  %v2102 = vadd.f32 %v2005, %v2101
  %v2103 = vpop.f32.mrf.mxu0
  %2104 = vdwg.mxu0
  %2105 = vmatprep.subr.bf16.mxu0 0
  %2106 = vmatpush1.bf16.msra.mxu0 %v1613
  %2107 = vmatprep.subr.bf16.mxu0 0
  %2108 = vmatpush1.bf16.msra.mxu0 %v1612
  %2109 = vmatprep.subr.bf16.mxu0 0
  %2110 = vmatpush1.bf16.msra.mxu0 %v1611
  %2111 = vmatprep.subr.bf16.mxu0 0
  %2112 = vmatpush1.bf16.msra.mxu0 %v1610
  %2113 = vmatprep.subr.bf16.mxu0 0
  %2114 = vmatpush1.bf16.msra.mxu0 %v1609
  %2115 = vmatprep.subr.bf16.mxu0 0
  %2116 = vmatpush1.bf16.msra.mxu0 %v1608
  %2117 = vmatprep.subr.bf16.mxu0 0
  %2118 = vmatpush1.bf16.msra.mxu0 %v1607
  %2119 = vmatprep.subr.bf16.mxu0 0
  %2120 = vmatpush1.bf16.msra.mxu0 %v1606
  %2121 = vmatprep.subr.bf16.mxu0 0
  %2122 = vmatpush2.bf16.msra.mxu0 %v1621
  %2123 = vmatprep.subr.bf16.mxu0 0
  %2124 = vmatpush2.bf16.msra.mxu0 %v1620
  %2125 = vmatprep.subr.bf16.mxu0 0
  %2126 = vmatpush2.bf16.msra.mxu0 %v1619
  %2127 = vmatprep.subr.bf16.mxu0 0
  %2128 = vmatpush2.bf16.msra.mxu0 %v1618
  %2129 = vmatprep.subr.bf16.mxu0 0
  %2130 = vmatpush2.bf16.msra.mxu0 %v1617
  %2131 = vmatprep.subr.bf16.mxu0 0
  %2132 = vmatpush2.bf16.msra.mxu0 %v1616
  %2133 = vmatprep.subr.bf16.mxu0 0
  %2134 = vmatpush2.bf16.msra.mxu0 %v1615
  %2135 = vmatprep.subr.bf16.mxu0 0
  %2136 = vmatpush2.bf16.msra.mxu0 %v1614
  %2137 = vmatprep.mubr.bf16.mxu0 %v797
  %2138 = vmatmul.mubr.bf16.gmra.mxu0 %v796
  %v2139 = vpop.f32.mrf.mxu0
  %v2140 = vadd.f32 %v2043, %v2139
  %v2141 = vpop.f32.mrf.mxu0
  %v2142 = vpop.f32.mrf.mxu0
  %v2143 = vadd.f32 %v2046, %v2142
  %v2144 = vpop.f32.mrf.mxu0
  %2145 = vmatprep.mubr.bf16.mxu0 %v813
  %2146 = vmatmul.mubr.bf16.gmra.mxu0 %v812
  %v2147 = vpop.f32.mrf.mxu0
  %v2148 = vadd.f32 %v2051, %v2147
  %v2149 = vpop.f32.mrf.mxu0
  %v2150 = vpop.f32.mrf.mxu0
  %v2151 = vadd.f32 %v2054, %v2150
  %v2152 = vpop.f32.mrf.mxu0
  %2153 = vmatprep.mubr.bf16.mxu0 %v829
  %2154 = vmatmul.mubr.bf16.gmra.mxu0 %v828
  %v2155 = vpop.f32.mrf.mxu0
  %v2156 = vadd.f32 %v2059, %v2155
  %v2157 = vpop.f32.mrf.mxu0
  %v2158 = vpop.f32.mrf.mxu0
  %v2159 = vadd.f32 %v2062, %v2158
  %v2160 = vpop.f32.mrf.mxu0
  %2161 = vmatprep.mubr.bf16.mxu0 %v845
  %2162 = vmatmul.mubr.bf16.gmra.mxu0 %v844
  %v2163 = vpop.f32.mrf.mxu0
  %v2164 = vadd.f32 %v2067, %v2163
  %v2165 = vpop.f32.mrf.mxu0
  %v2166 = vpop.f32.mrf.mxu0
  %v2167 = vadd.f32 %v2070, %v2166
  %v2168 = vpop.f32.mrf.mxu0
  %2169 = vmatprep.mubr.bf16.mxu0 %v861
  %2170 = vmatmul.mubr.bf16.gmra.mxu0 %v860
  %v2171 = vpop.f32.mrf.mxu0
  %v2172 = vadd.f32 %v2075, %v2171
  %v2173 = vpop.f32.mrf.mxu0
  %v2174 = vpop.f32.mrf.mxu0
  %v2175 = vadd.f32 %v2078, %v2174
  %v2176 = vpop.f32.mrf.mxu0
  %2177 = vmatprep.mubr.bf16.mxu0 %v877
  %2178 = vmatmul.mubr.bf16.gmra.mxu0 %v876
  %v2179 = vpop.f32.mrf.mxu0
  %v2180 = vadd.f32 %v2083, %v2179
  %v2181 = vpop.f32.mrf.mxu0
  %v2182 = vpop.f32.mrf.mxu0
  %v2183 = vadd.f32 %v2086, %v2182
  %v2184 = vpop.f32.mrf.mxu0
  %2185 = vmatprep.mubr.bf16.mxu0 %v893
  %2186 = vmatmul.mubr.bf16.gmra.mxu0 %v892
  %v2187 = vpop.f32.mrf.mxu0
  %v2188 = vadd.f32 %v2091, %v2187
  %v2189 = vpop.f32.mrf.mxu0
  %v2190 = vpop.f32.mrf.mxu0
  %v2191 = vadd.f32 %v2094, %v2190
  %v2192 = vpop.f32.mrf.mxu0
  %2193 = vmatprep.mubr.bf16.mxu0 %v909
  %2194 = vmatmul.mubr.bf16.gmra.mxu0 %v908
  %v2195 = vpop.f32.mrf.mxu0
  %v2196 = vadd.f32 %v2099, %v2195
  %v2197 = vpop.f32.mrf.mxu0
  %v2198 = vpop.f32.mrf.mxu0
  %v2199 = vadd.f32 %v2102, %v2198
  %v2200 = vpop.f32.mrf.mxu0
  %2201 = vdwg.mxu0
  %2202 = vmatprep.subr.bf16.mxu0 0
  %2203 = vmatpush1.bf16.msra.mxu0 %v1629
  %2204 = vmatprep.subr.bf16.mxu0 0
  %2205 = vmatpush1.bf16.msra.mxu0 %v1628
  %2206 = vmatprep.subr.bf16.mxu0 0
  %2207 = vmatpush1.bf16.msra.mxu0 %v1627
  %2208 = vmatprep.subr.bf16.mxu0 0
  %2209 = vmatpush1.bf16.msra.mxu0 %v1626
  %2210 = vmatprep.subr.bf16.mxu0 0
  %2211 = vmatpush1.bf16.msra.mxu0 %v1625
  %2212 = vmatprep.subr.bf16.mxu0 0
  %2213 = vmatpush1.bf16.msra.mxu0 %v1624
  %2214 = vmatprep.subr.bf16.mxu0 0
  %2215 = vmatpush1.bf16.msra.mxu0 %v1623
  %2216 = vmatprep.subr.bf16.mxu0 0
  %2217 = vmatpush1.bf16.msra.mxu0 %v1622
  %2218 = vmatprep.subr.bf16.mxu0 0
  %2219 = vmatpush2.bf16.msra.mxu0 %v1637
  %2220 = vmatprep.subr.bf16.mxu0 0
  %2221 = vmatpush2.bf16.msra.mxu0 %v1636
  %2222 = vmatprep.subr.bf16.mxu0 0
  %2223 = vmatpush2.bf16.msra.mxu0 %v1635
  %2224 = vmatprep.subr.bf16.mxu0 0
  %2225 = vmatpush2.bf16.msra.mxu0 %v1634
  %2226 = vmatprep.subr.bf16.mxu0 0
  %2227 = vmatpush2.bf16.msra.mxu0 %v1633
  %2228 = vmatprep.subr.bf16.mxu0 0
  %2229 = vmatpush2.bf16.msra.mxu0 %v1632
  %2230 = vmatprep.subr.bf16.mxu0 0
  %2231 = vmatpush2.bf16.msra.mxu0 %v1631
  %2232 = vmatprep.subr.bf16.mxu0 0
  %2233 = vmatpush2.bf16.msra.mxu0 %v1630
  %2234 = vmatprep.mubr.bf16.mxu0 %v799
  %2235 = vmatmul.mubr.bf16.gmra.mxu0 %v798
  %v2236 = vpop.f32.mrf.mxu0
  %v2237 = vadd.f32 %v2140, %v2236
  %v2238 = vpop.f32.mrf.mxu0
  %v2239 = vpop.f32.mrf.mxu0
  %v2240 = vadd.f32 %v2143, %v2239
  %v2241 = vpop.f32.mrf.mxu0
  %2242 = vmatprep.mubr.bf16.mxu0 %v815
  %2243 = vmatmul.mubr.bf16.gmra.mxu0 %v814
  %v2244 = vpop.f32.mrf.mxu0
  %v2245 = vadd.f32 %v2148, %v2244
  %v2246 = vpop.f32.mrf.mxu0
  %v2247 = vpop.f32.mrf.mxu0
  %v2248 = vadd.f32 %v2151, %v2247
  %v2249 = vpop.f32.mrf.mxu0
  %2250 = vmatprep.mubr.bf16.mxu0 %v831
  %2251 = vmatmul.mubr.bf16.gmra.mxu0 %v830
  %v2252 = vpop.f32.mrf.mxu0
  %v2253 = vadd.f32 %v2156, %v2252
  %v2254 = vpop.f32.mrf.mxu0
  %v2255 = vpop.f32.mrf.mxu0
  %v2256 = vadd.f32 %v2159, %v2255
  %v2257 = vpop.f32.mrf.mxu0
  %2258 = vmatprep.mubr.bf16.mxu0 %v847
  %2259 = vmatmul.mubr.bf16.gmra.mxu0 %v846
  %v2260 = vpop.f32.mrf.mxu0
  %v2261 = vadd.f32 %v2164, %v2260
  %v2262 = vpop.f32.mrf.mxu0
  %v2263 = vpop.f32.mrf.mxu0
  %v2264 = vadd.f32 %v2167, %v2263
  %v2265 = vpop.f32.mrf.mxu0
  %2266 = vmatprep.mubr.bf16.mxu0 %v863
  %2267 = vmatmul.mubr.bf16.gmra.mxu0 %v862
  %v2268 = vpop.f32.mrf.mxu0
  %v2269 = vadd.f32 %v2172, %v2268
  %v2270 = vpop.f32.mrf.mxu0
  %v2271 = vpop.f32.mrf.mxu0
  %v2272 = vadd.f32 %v2175, %v2271
  %v2273 = vpop.f32.mrf.mxu0
  %2274 = vmatprep.mubr.bf16.mxu0 %v879
  %2275 = vmatmul.mubr.bf16.gmra.mxu0 %v878
  %v2276 = vpop.f32.mrf.mxu0
  %v2277 = vadd.f32 %v2180, %v2276
  %v2278 = vpop.f32.mrf.mxu0
  %v2279 = vpop.f32.mrf.mxu0
  %v2280 = vadd.f32 %v2183, %v2279
  %v2281 = vpop.f32.mrf.mxu0
  %2282 = vmatprep.mubr.bf16.mxu0 %v895
  %2283 = vmatmul.mubr.bf16.gmra.mxu0 %v894
  %v2284 = vpop.f32.mrf.mxu0
  %v2285 = vadd.f32 %v2188, %v2284
  %v2286 = vpop.f32.mrf.mxu0
  %v2287 = vpop.f32.mrf.mxu0
  %v2288 = vadd.f32 %v2191, %v2287
  %v2289 = vpop.f32.mrf.mxu0
  %2290 = vmatprep.mubr.bf16.mxu0 %v911
  %2291 = vmatmul.mubr.bf16.gmra.mxu0 %v910
  %v2292 = vpop.f32.mrf.mxu0
  %v2293 = vadd.f32 %v2196, %v2292
  %v2294 = vpop.f32.mrf.mxu0
  %v2295 = vpop.f32.mrf.mxu0
  %v2296 = vadd.f32 %v2199, %v2295
  %v2297 = vpop.f32.mrf.mxu0
  %2298 = vdwg.mxu0
  %2299 = vmatprep.subr.bf16.mxu0 0
  %2300 = vmatpush1.bf16.msra.mxu0 %v1645
  %2301 = vmatprep.subr.bf16.mxu0 0
  %2302 = vmatpush1.bf16.msra.mxu0 %v1644
  %2303 = vmatprep.subr.bf16.mxu0 0
  %2304 = vmatpush1.bf16.msra.mxu0 %v1643
  %2305 = vmatprep.subr.bf16.mxu0 0
  %2306 = vmatpush1.bf16.msra.mxu0 %v1642
  %2307 = vmatprep.subr.bf16.mxu0 0
  %2308 = vmatpush1.bf16.msra.mxu0 %v1641
  %2309 = vmatprep.subr.bf16.mxu0 0
  %2310 = vmatpush1.bf16.msra.mxu0 %v1640
  %2311 = vmatprep.subr.bf16.mxu0 0
  %2312 = vmatpush1.bf16.msra.mxu0 %v1639
  %2313 = vmatprep.subr.bf16.mxu0 0
  %2314 = vmatpush1.bf16.msra.mxu0 %v1638
  %2315 = vmatprep.subr.bf16.mxu0 0
  %2316 = vmatpush2.bf16.msra.mxu0 %v1653
  %2317 = vmatprep.subr.bf16.mxu0 0
  %2318 = vmatpush2.bf16.msra.mxu0 %v1652
  %2319 = vmatprep.subr.bf16.mxu0 0
  %2320 = vmatpush2.bf16.msra.mxu0 %v1651
  %2321 = vmatprep.subr.bf16.mxu0 0
  %2322 = vmatpush2.bf16.msra.mxu0 %v1650
  %2323 = vmatprep.subr.bf16.mxu0 0
  %2324 = vmatpush2.bf16.msra.mxu0 %v1649
  %2325 = vmatprep.subr.bf16.mxu0 0
  %2326 = vmatpush2.bf16.msra.mxu0 %v1648
  %2327 = vmatprep.subr.bf16.mxu0 0
  %2328 = vmatpush2.bf16.msra.mxu0 %v1647
  %2329 = vmatprep.subr.bf16.mxu0 0
  %2330 = vmatpush2.bf16.msra.mxu0 %v1646
  %2331 = vmatprep.mubr.bf16.mxu0 %v801
  %2332 = vmatmul.mubr.bf16.gmra.mxu0 %v800
  %v2333 = vpop.f32.mrf.mxu0
  %v2334 = vadd.f32 %v2237, %v2333
  %v2335 = vpop.f32.mrf.mxu0
  %v2336 = vpop.f32.mrf.mxu0
  %v2337 = vadd.f32 %v2240, %v2336
  %v2338 = vpop.f32.mrf.mxu0
  %2339 = vmatprep.mubr.bf16.mxu0 %v817
  %2340 = vmatmul.mubr.bf16.gmra.mxu0 %v816
  %v2341 = vpop.f32.mrf.mxu0
  %v2342 = vadd.f32 %v2245, %v2341
  %v2343 = vpop.f32.mrf.mxu0
  %v2344 = vpop.f32.mrf.mxu0
  %v2345 = vadd.f32 %v2248, %v2344
  %v2346 = vpop.f32.mrf.mxu0
  %2347 = vmatprep.mubr.bf16.mxu0 %v833
  %2348 = vmatmul.mubr.bf16.gmra.mxu0 %v832
  %v2349 = vpop.f32.mrf.mxu0
  %v2350 = vadd.f32 %v2253, %v2349
  %v2351 = vpop.f32.mrf.mxu0
  %v2352 = vpop.f32.mrf.mxu0
  %v2353 = vadd.f32 %v2256, %v2352
  %v2354 = vpop.f32.mrf.mxu0
  %2355 = vmatprep.mubr.bf16.mxu0 %v849
  %2356 = vmatmul.mubr.bf16.gmra.mxu0 %v848
  %v2357 = vpop.f32.mrf.mxu0
  %v2358 = vadd.f32 %v2261, %v2357
  %v2359 = vpop.f32.mrf.mxu0
  %v2360 = vpop.f32.mrf.mxu0
  %v2361 = vadd.f32 %v2264, %v2360
  %v2362 = vpop.f32.mrf.mxu0
  %2363 = vmatprep.mubr.bf16.mxu0 %v865
  %2364 = vmatmul.mubr.bf16.gmra.mxu0 %v864
  %v2365 = vpop.f32.mrf.mxu0
  %v2366 = vadd.f32 %v2269, %v2365
  %v2367 = vpop.f32.mrf.mxu0
  %v2368 = vpop.f32.mrf.mxu0
  %v2369 = vadd.f32 %v2272, %v2368
  %v2370 = vpop.f32.mrf.mxu0
  %2371 = vmatprep.mubr.bf16.mxu0 %v881
  %2372 = vmatmul.mubr.bf16.gmra.mxu0 %v880
  %v2373 = vpop.f32.mrf.mxu0
  %v2374 = vadd.f32 %v2277, %v2373
  %v2375 = vpop.f32.mrf.mxu0
  %v2376 = vpop.f32.mrf.mxu0
  %v2377 = vadd.f32 %v2280, %v2376
  %v2378 = vpop.f32.mrf.mxu0
  %2379 = vmatprep.mubr.bf16.mxu0 %v897
  %2380 = vmatmul.mubr.bf16.gmra.mxu0 %v896
  %v2381 = vpop.f32.mrf.mxu0
  %v2382 = vadd.f32 %v2285, %v2381
  %v2383 = vpop.f32.mrf.mxu0
  %v2384 = vpop.f32.mrf.mxu0
  %v2385 = vadd.f32 %v2288, %v2384
  %v2386 = vpop.f32.mrf.mxu0
  %2387 = vmatprep.mubr.bf16.mxu0 %v913
  %2388 = vmatmul.mubr.bf16.gmra.mxu0 %v912
  %v2389 = vpop.f32.mrf.mxu0
  %v2390 = vadd.f32 %v2293, %v2389
  %v2391 = vpop.f32.mrf.mxu0
  %v2392 = vpop.f32.mrf.mxu0
  %v2393 = vadd.f32 %v2296, %v2392
  %v2394 = vpop.f32.mrf.mxu0
  %2395 = vdwg.mxu0
  %2396 = vmatprep.subr.bf16.mxu0 0
  %2397 = vmatpush1.bf16.msra.mxu0 %v1661
  %2398 = vmatprep.subr.bf16.mxu0 0
  %2399 = vmatpush1.bf16.msra.mxu0 %v1660
  %2400 = vmatprep.subr.bf16.mxu0 0
  %2401 = vmatpush1.bf16.msra.mxu0 %v1659
  %2402 = vmatprep.subr.bf16.mxu0 0
  %2403 = vmatpush1.bf16.msra.mxu0 %v1658
  %2404 = vmatprep.subr.bf16.mxu0 0
  %2405 = vmatpush1.bf16.msra.mxu0 %v1657
  %2406 = vmatprep.subr.bf16.mxu0 0
  %2407 = vmatpush1.bf16.msra.mxu0 %v1656
  %2408 = vmatprep.subr.bf16.mxu0 0
  %2409 = vmatpush1.bf16.msra.mxu0 %v1655
  %2410 = vmatprep.subr.bf16.mxu0 0
  %2411 = vmatpush1.bf16.msra.mxu0 %v1654
  %2412 = vmatprep.subr.bf16.mxu0 0
  %2413 = vmatpush2.bf16.msra.mxu0 %v1669
  %2414 = vmatprep.subr.bf16.mxu0 0
  %2415 = vmatpush2.bf16.msra.mxu0 %v1668
  %2416 = vmatprep.subr.bf16.mxu0 0
  %2417 = vmatpush2.bf16.msra.mxu0 %v1667
  %2418 = vmatprep.subr.bf16.mxu0 0
  %2419 = vmatpush2.bf16.msra.mxu0 %v1666
  %2420 = vmatprep.subr.bf16.mxu0 0
  %2421 = vmatpush2.bf16.msra.mxu0 %v1665
  %2422 = vmatprep.subr.bf16.mxu0 0
  %2423 = vmatpush2.bf16.msra.mxu0 %v1664
  %2424 = vmatprep.subr.bf16.mxu0 0
  %2425 = vmatpush2.bf16.msra.mxu0 %v1663
  %2426 = vmatprep.subr.bf16.mxu0 0
  %2427 = vmatpush2.bf16.msra.mxu0 %v1662
  %2428 = vmatprep.mubr.bf16.mxu0 %v803
  %2429 = vmatmul.mubr.bf16.gmra.mxu0 %v802
  %v2430 = vpop.f32.mrf.mxu0
  %v2431 = vadd.f32 %v2334, %v2430
  %v2432 = vpop.f32.mrf.mxu0
  %v2433 = vpop.f32.mrf.mxu0
  %v2434 = vadd.f32 %v2337, %v2433
  %v2435 = vpop.f32.mrf.mxu0
  %2436 = vmatprep.mubr.bf16.mxu0 %v819
  %2437 = vmatmul.mubr.bf16.gmra.mxu0 %v818
  %v2438 = vpop.f32.mrf.mxu0
  %v2439 = vadd.f32 %v2342, %v2438
  %v2440 = vpop.f32.mrf.mxu0
  %v2441 = vpop.f32.mrf.mxu0
  %v2442 = vadd.f32 %v2345, %v2441
  %v2443 = vpop.f32.mrf.mxu0
  %2444 = vmatprep.mubr.bf16.mxu0 %v835
  %2445 = vmatmul.mubr.bf16.gmra.mxu0 %v834
  %v2446 = vpop.f32.mrf.mxu0
  %v2447 = vadd.f32 %v2350, %v2446
  %v2448 = vpop.f32.mrf.mxu0
  %v2449 = vpop.f32.mrf.mxu0
  %v2450 = vadd.f32 %v2353, %v2449
  %v2451 = vpop.f32.mrf.mxu0
  %2452 = vmatprep.mubr.bf16.mxu0 %v851
  %2453 = vmatmul.mubr.bf16.gmra.mxu0 %v850
  %v2454 = vpop.f32.mrf.mxu0
  %v2455 = vadd.f32 %v2358, %v2454
  %v2456 = vpop.f32.mrf.mxu0
  %v2457 = vpop.f32.mrf.mxu0
  %v2458 = vadd.f32 %v2361, %v2457
  %v2459 = vpop.f32.mrf.mxu0
  %2460 = vmatprep.mubr.bf16.mxu0 %v867
  %2461 = vmatmul.mubr.bf16.gmra.mxu0 %v866
  %v2462 = vpop.f32.mrf.mxu0
  %v2463 = vadd.f32 %v2366, %v2462
  %v2464 = vpop.f32.mrf.mxu0
  %v2465 = vpop.f32.mrf.mxu0
  %v2466 = vadd.f32 %v2369, %v2465
  %v2467 = vpop.f32.mrf.mxu0
  %2468 = vmatprep.mubr.bf16.mxu0 %v883
  %2469 = vmatmul.mubr.bf16.gmra.mxu0 %v882
  %v2470 = vpop.f32.mrf.mxu0
  %v2471 = vadd.f32 %v2374, %v2470
  %v2472 = vpop.f32.mrf.mxu0
  %v2473 = vpop.f32.mrf.mxu0
  %v2474 = vadd.f32 %v2377, %v2473
  %v2475 = vpop.f32.mrf.mxu0
  %2476 = vmatprep.mubr.bf16.mxu0 %v899
  %2477 = vmatmul.mubr.bf16.gmra.mxu0 %v898
  %v2478 = vpop.f32.mrf.mxu0
  %v2479 = vadd.f32 %v2382, %v2478
  %v2480 = vpop.f32.mrf.mxu0
  %v2481 = vpop.f32.mrf.mxu0
  %v2482 = vadd.f32 %v2385, %v2481
  %v2483 = vpop.f32.mrf.mxu0
  %2484 = vmatprep.mubr.bf16.mxu0 %v915
  %2485 = vmatmul.mubr.bf16.gmra.mxu0 %v914
  %v2486 = vpop.f32.mrf.mxu0
  %v2487 = vadd.f32 %v2390, %v2486
  %v2488 = vpop.f32.mrf.mxu0
  %v2489 = vpop.f32.mrf.mxu0
  %v2490 = vadd.f32 %v2393, %v2489
  %v2491 = vpop.f32.mrf.mxu0
  %2492 = vdwg.mxu0
  %2493 = vmatprep.subr.bf16.mxu0 0
  %2494 = vmatpush1.bf16.msra.mxu0 %v1677
  %2495 = vmatprep.subr.bf16.mxu0 0
  %2496 = vmatpush1.bf16.msra.mxu0 %v1676
  %2497 = vmatprep.subr.bf16.mxu0 0
  %2498 = vmatpush1.bf16.msra.mxu0 %v1675
  %2499 = vmatprep.subr.bf16.mxu0 0
  %2500 = vmatpush1.bf16.msra.mxu0 %v1674
  %2501 = vmatprep.subr.bf16.mxu0 0
  %2502 = vmatpush1.bf16.msra.mxu0 %v1673
  %2503 = vmatprep.subr.bf16.mxu0 0
  %2504 = vmatpush1.bf16.msra.mxu0 %v1672
  %2505 = vmatprep.subr.bf16.mxu0 0
  %2506 = vmatpush1.bf16.msra.mxu0 %v1671
  %2507 = vmatprep.subr.bf16.mxu0 0
  %2508 = vmatpush1.bf16.msra.mxu0 %v1670
  %2509 = vmatprep.subr.bf16.mxu0 0
  %2510 = vmatpush2.bf16.msra.mxu0 %v1685
  %2511 = vmatprep.subr.bf16.mxu0 0
  %2512 = vmatpush2.bf16.msra.mxu0 %v1684
  %2513 = vmatprep.subr.bf16.mxu0 0
  %2514 = vmatpush2.bf16.msra.mxu0 %v1683
  %2515 = vmatprep.subr.bf16.mxu0 0
  %2516 = vmatpush2.bf16.msra.mxu0 %v1682
  %2517 = vmatprep.subr.bf16.mxu0 0
  %2518 = vmatpush2.bf16.msra.mxu0 %v1681
  %2519 = vmatprep.subr.bf16.mxu0 0
  %2520 = vmatpush2.bf16.msra.mxu0 %v1680
  %2521 = vmatprep.subr.bf16.mxu0 0
  %2522 = vmatpush2.bf16.msra.mxu0 %v1679
  %2523 = vmatprep.subr.bf16.mxu0 0
  %2524 = vmatpush2.bf16.msra.mxu0 %v1678
  %2525 = vmatprep.mubr.bf16.mxu0 %v805
  %2526 = vmatmul.mubr.bf16.gmra.mxu0 %v804
  %v2527 = vpop.f32.mrf.mxu0
  %v2528 = vadd.f32 %v2431, %v2527
  %v2529 = vpop.f32.mrf.mxu0
  %v2530 = vpop.f32.mrf.mxu0
  %v2531 = vadd.f32 %v2434, %v2530
  %v2532 = vpop.f32.mrf.mxu0
  %2533 = vmatprep.mubr.bf16.mxu0 %v821
  %2534 = vmatmul.mubr.bf16.gmra.mxu0 %v820
  %v2535 = vpop.f32.mrf.mxu0
  %v2536 = vadd.f32 %v2439, %v2535
  %v2537 = vpop.f32.mrf.mxu0
  %v2538 = vpop.f32.mrf.mxu0
  %v2539 = vadd.f32 %v2442, %v2538
  %v2540 = vpop.f32.mrf.mxu0
  %2541 = vmatprep.mubr.bf16.mxu0 %v837
  %2542 = vmatmul.mubr.bf16.gmra.mxu0 %v836
  %v2543 = vpop.f32.mrf.mxu0
  %v2544 = vadd.f32 %v2447, %v2543
  %v2545 = vpop.f32.mrf.mxu0
  %v2546 = vpop.f32.mrf.mxu0
  %v2547 = vadd.f32 %v2450, %v2546
  %v2548 = vpop.f32.mrf.mxu0
  %2549 = vmatprep.mubr.bf16.mxu0 %v853
  %2550 = vmatmul.mubr.bf16.gmra.mxu0 %v852
  %v2551 = vpop.f32.mrf.mxu0
  %v2552 = vadd.f32 %v2455, %v2551
  %v2553 = vpop.f32.mrf.mxu0
  %v2554 = vpop.f32.mrf.mxu0
  %v2555 = vadd.f32 %v2458, %v2554
  %v2556 = vpop.f32.mrf.mxu0
  %2557 = vmatprep.mubr.bf16.mxu0 %v869
  %2558 = vmatmul.mubr.bf16.gmra.mxu0 %v868
  %v2559 = vpop.f32.mrf.mxu0
  %v2560 = vadd.f32 %v2463, %v2559
  %v2561 = vpop.f32.mrf.mxu0
  %v2562 = vpop.f32.mrf.mxu0
  %v2563 = vadd.f32 %v2466, %v2562
  %v2564 = vpop.f32.mrf.mxu0
  %2565 = vmatprep.mubr.bf16.mxu0 %v885
  %2566 = vmatmul.mubr.bf16.gmra.mxu0 %v884
  %v2567 = vpop.f32.mrf.mxu0
  %v2568 = vadd.f32 %v2471, %v2567
  %v2569 = vpop.f32.mrf.mxu0
  %v2570 = vpop.f32.mrf.mxu0
  %v2571 = vadd.f32 %v2474, %v2570
  %v2572 = vpop.f32.mrf.mxu0
  %2573 = vmatprep.mubr.bf16.mxu0 %v901
  %2574 = vmatmul.mubr.bf16.gmra.mxu0 %v900
  %v2575 = vpop.f32.mrf.mxu0
  %v2576 = vadd.f32 %v2479, %v2575
  %v2577 = vpop.f32.mrf.mxu0
  %v2578 = vpop.f32.mrf.mxu0
  %v2579 = vadd.f32 %v2482, %v2578
  %v2580 = vpop.f32.mrf.mxu0
  %2581 = vmatprep.mubr.bf16.mxu0 %v917
  %2582 = vmatmul.mubr.bf16.gmra.mxu0 %v916
  %v2583 = vpop.f32.mrf.mxu0
  %v2584 = vadd.f32 %v2487, %v2583
  %v2585 = vpop.f32.mrf.mxu0
  %v2586 = vpop.f32.mrf.mxu0
  %v2587 = vadd.f32 %v2490, %v2586
  %v2588 = vpop.f32.mrf.mxu0
  %2589 = vdwg.mxu0
  %vm2590 = vcmp.gt.f32.partialorder %v2528, 0.0
  %vm2591 = vcmp.gt.f32.partialorder %v2531, 0.0
  %vm2592 = vcmp.gt.f32.partialorder %v2536, 0.0
  %vm2593 = vcmp.gt.f32.partialorder %v2539, 0.0
  %vm2594 = vcmp.gt.f32.partialorder %v2544, 0.0
  %vm2595 = vcmp.gt.f32.partialorder %v2547, 0.0
  %vm2596 = vcmp.gt.f32.partialorder %v2552, 0.0
  %vm2597 = vcmp.gt.f32.partialorder %v2555, 0.0
  %vm2598 = vcmp.gt.f32.partialorder %v2560, 0.0
  %vm2599 = vcmp.gt.f32.partialorder %v2563, 0.0
  %vm2600 = vcmp.gt.f32.partialorder %v2568, 0.0
  %vm2601 = vcmp.gt.f32.partialorder %v2571, 0.0
  %vm2602 = vcmp.gt.f32.partialorder %v2576, 0.0
  %vm2603 = vcmp.gt.f32.partialorder %v2579, 0.0
  %vm2604 = vcmp.gt.f32.partialorder %v2584, 0.0
  %vm2605 = vcmp.gt.f32.partialorder %v2587, 0.0
  %v2606 = vmul.f32 %v2528, 0.01
  %v2607 = vmul.f32 %v2531, 0.01
  %v2608 = vmul.f32 %v2536, 0.01
  %v2609 = vmul.f32 %v2539, 0.01
  %v2610 = vmul.f32 %v2544, 0.01
  %v2611 = vmul.f32 %v2547, 0.01
  %v2612 = vmul.f32 %v2552, 0.01
  %v2613 = vmul.f32 %v2555, 0.01
  %v2614 = vmul.f32 %v2560, 0.01
  %v2615 = vmul.f32 %v2563, 0.01
  %v2616 = vmul.f32 %v2568, 0.01
  %v2617 = vmul.f32 %v2571, 0.01
  %v2618 = vmul.f32 %v2576, 0.01
  %v2619 = vmul.f32 %v2579, 0.01
  %v2620 = vmul.f32 %v2584, 0.01
  %v2621 = vmul.f32 %v2587, 0.01
  %v2622 = vsel %vm2590, %v2528, %v2606
  %v2623 = vsel %vm2591, %v2531, %v2607
  %v2624 = vsel %vm2592, %v2536, %v2608
  %v2625 = vsel %vm2593, %v2539, %v2609
  %v2626 = vsel %vm2594, %v2544, %v2610
  %v2627 = vsel %vm2595, %v2547, %v2611
  %v2628 = vsel %vm2596, %v2552, %v2612
  %v2629 = vsel %vm2597, %v2555, %v2613
  %v2630 = vsel %vm2598, %v2560, %v2614
  %v2631 = vsel %vm2599, %v2563, %v2615
  %v2632 = vsel %vm2600, %v2568, %v2616
  %v2633 = vsel %vm2601, %v2571, %v2617
  %v2634 = vsel %vm2602, %v2576, %v2618
  %v2635 = vsel %vm2603, %v2579, %v2619
  %v2636 = vsel %vm2604, %v2584, %v2620
  %v2637 = vsel %vm2605, %v2587, %v2621
  %vm2638 = vcmask 523264
  %2639 = vst.msk [vmem:[%s3] sm:$0xff] %vm2638, %v2622
  %2640 = vst.msk [vmem:[%s3 + $0x8] sm:$0xff] %vm2638, %v2623
  %2641 = vst.msk [vmem:[%s3 + $0x10] sm:$0xff] %vm2638, %v2624
  %2642 = vst.msk [vmem:[%s3 + $0x18] sm:$0xff] %vm2638, %v2625
  %2643 = vst.msk [vmem:[%s3 + $0x20] sm:$0xff] %vm2638, %v2626
  %2644 = vst.msk [vmem:[%s3 + $0x28] sm:$0xff] %vm2638, %v2627
  %2645 = vst.msk [vmem:[%s3 + $0x30] sm:$0xff] %vm2638, %v2628
  %2646 = vst.msk [vmem:[%s3 + $0x38] sm:$0xff] %vm2638, %v2629
  %2647 = vst.msk [vmem:[%s3 + $0x40] sm:$0xff] %vm2638, %v2630
  %2648 = vst.msk [vmem:[%s3 + $0x48] sm:$0xff] %vm2638, %v2631
  %2649 = vst.msk [vmem:[%s3 + $0x50] sm:$0xff] %vm2638, %v2632
  %2650 = vst.msk [vmem:[%s3 + $0x58] sm:$0xff] %vm2638, %v2633
  %2651 = vst.msk [vmem:[%s3 + $0x60] sm:$0xff] %vm2638, %v2634
  %2652 = vst.msk [vmem:[%s3 + $0x68] sm:$0xff] %vm2638, %v2635
  %2653 = vst.msk [vmem:[%s3 + $0x70] sm:$0xff] %vm2638, %v2636
  %2654 = vst.msk [vmem:[%s3 + $0x78] sm:$0xff] %vm2638, %v2637
  // Predicated region
  $region14: #{vqvae_forward.21} parent=0 // pred_check
    _
  $region15: #{vqvae_forward.21} parent=0 // pred_check_branch
    %2656 = sbr.rel (0) target = $region17
  $region16: #{vqvae_forward.21} parent=0 // pred_region
    _
  $region17: #{vqvae_forward.21} parent=0 // pred_fallthru
    _
  // Predicated region
  $region18: #{vqvae_forward.21} parent=0 // pred_check
    _
  $region19: #{vqvae_forward.21} parent=0 // pred_check_branch
    %2658 = sbr.rel (0) target = $region21
  $region20: #{vqvae_forward.21} parent=0 // pred_region
    _
  $region21: #{vqvae_forward.21} parent=0 // pred_fallthru
    _

// kernel: vqvae_forward.22
$region0: #{vqvae_forward.22}
  #allocation0 [shape = 'u32[]', space=smem, size = 0x4, offset = 0x4, fixed_abs, tag = 'smem constant byte address 0x4 - core index']
  #allocation1 [shape = 'u32[144,128]{1,0:T(1,128)}', space=vmem, size = 0x12000, scoped, tag = 'internal scratch']
  %s0 = inlined_call_operand.vmem [shape: bf16[128,1728], index: 0, kind: input, shape index: {}]
  %s1 = inlined_call_operand.vmem [shape: bf16[1728,64], index: 1, kind: input, shape index: {}]
  %s2 = inlined_call_operand.vmem [shape: f32[1,64], index: 2, kind: input, shape index: {}]
  %s3 = inlined_call_operand.vmem [shape: f32[128,64], index: 3, kind: output, shape index: {}]
  %s4 = sld [smem:[#allocation0]]
  $region22: #{vqvae_forward.22} parent=0
    _
  %s6 = ssub.s32 1, %s4
  %s7 = scalar_select 0, %s6, %s4
  // Predicated region
  $region2: #{vqvae_forward.22} parent=0 // pred_check
    _
  $region3: #{vqvae_forward.22} parent=0 // pred_check_branch
    %9 = sbr.rel (0) target = $region5
  $region4: #{vqvae_forward.22} parent=0 // pred_region
    _
  $region5: #{vqvae_forward.22} parent=0 // pred_fallthru
    _
  // Predicated region
  $region6: #{vqvae_forward.22} parent=0 // pred_check
    _
  $region7: #{vqvae_forward.22} parent=0 // pred_check_branch
    %11 = sbr.rel (0) target = $region9
  $region8: #{vqvae_forward.22} parent=0 // pred_region
    _
  $region9: #{vqvae_forward.22} parent=0 // pred_fallthru
    _
  // Predicated region
  $region10: #{vqvae_forward.22} parent=0 // pred_check
    _
  $region11: #{vqvae_forward.22} parent=0 // pred_check_branch
    %13 = sbr.rel (0) target = $region13
  $region12: #{vqvae_forward.22} parent=0 // pred_region
    _
  $region13: #{vqvae_forward.22} parent=0 // pred_fallthru
    _
  %v15 = vld [vmem:[%s0] sm:$0xff]
  %v16 = vld [vmem:[%s0 + $0x8] sm:$0xff]
  %v17 = vld [vmem:[%s0 + $0x10] sm:$0xff]
  %v18 = vld [vmem:[%s0 + $0x18] sm:$0xff]
  %v19 = vld [vmem:[%s0 + $0x20] sm:$0xff]
  %v20 = vld [vmem:[%s0 + $0x28] sm:$0xff]
  %v21 = vld [vmem:[%s0 + $0x30] sm:$0xff]
  %v22 = vld [vmem:[%s0 + $0x38] sm:$0xff]
  %v23 = vld [vmem:[%s0 + $0x40] sm:$0xff]
  %v24 = vld [vmem:[%s0 + $0x48] sm:$0xff]
  %v25 = vld [vmem:[%s0 + $0x50] sm:$0xff]
  %v26 = vld [vmem:[%s0 + $0x58] sm:$0xff]
  %v27 = vld [vmem:[%s0 + $0x60] sm:$0xff]
  %v28 = vld [vmem:[%s0 + $0x68] sm:$0xff]
  %v29 = vld [vmem:[%s0 + $0x70] sm:$0xff]
  %v30 = vld [vmem:[%s0 + $0x78] sm:$0xff]
  %v31 = vld [vmem:[%s0 + $0x80] sm:$0xff]
  %v32 = vld [vmem:[%s0 + $0x88] sm:$0xff]
  %v33 = vld [vmem:[%s0 + $0x90] sm:$0xff]
  %v34 = vld [vmem:[%s0 + $0x98] sm:$0xff]
  %v35 = vld [vmem:[%s0 + $0xa0] sm:$0xff]
  %v36 = vld [vmem:[%s0 + $0xa8] sm:$0xff]
  %v37 = vld [vmem:[%s0 + $0xb0] sm:$0xff]
  %v38 = vld [vmem:[%s0 + $0xb8] sm:$0xff]
  %v39 = vld [vmem:[%s0 + $0xc0] sm:$0xff]
  %v40 = vld [vmem:[%s0 + $0xc8] sm:$0xff]
  %v41 = vld [vmem:[%s0 + $0xd0] sm:$0xff]
  %v42 = vld [vmem:[%s0 + $0xd8] sm:$0xff]
  %v43 = vld [vmem:[%s0 + $0xe0] sm:$0xff]
  %v44 = vld [vmem:[%s0 + $0xe8] sm:$0xff]
  %v45 = vld [vmem:[%s0 + $0xf0] sm:$0xff]
  %v46 = vld [vmem:[%s0 + $0xf8] sm:$0xff]
  %v47 = vld [vmem:[%s0 + $0x100] sm:$0xff]
  %v48 = vld [vmem:[%s0 + $0x108] sm:$0xff]
  %v49 = vld [vmem:[%s0 + $0x110] sm:$0xff]
  %v50 = vld [vmem:[%s0 + $0x118] sm:$0xff]
  %v51 = vld [vmem:[%s0 + $0x120] sm:$0xff]
  %v52 = vld [vmem:[%s0 + $0x128] sm:$0xff]
  %v53 = vld [vmem:[%s0 + $0x130] sm:$0xff]
  %v54 = vld [vmem:[%s0 + $0x138] sm:$0xff]
  %v55 = vld [vmem:[%s0 + $0x140] sm:$0xff]
  %v56 = vld [vmem:[%s0 + $0x148] sm:$0xff]
  %v57 = vld [vmem:[%s0 + $0x150] sm:$0xff]
  %v58 = vld [vmem:[%s0 + $0x158] sm:$0xff]
  %v59 = vld [vmem:[%s0 + $0x160] sm:$0xff]
  %v60 = vld [vmem:[%s0 + $0x168] sm:$0xff]
  %v61 = vld [vmem:[%s0 + $0x170] sm:$0xff]
  %v62 = vld [vmem:[%s0 + $0x178] sm:$0xff]
  %v63 = vld [vmem:[%s0 + $0x180] sm:$0xff]
  %v64 = vld [vmem:[%s0 + $0x188] sm:$0xff]
  %v65 = vld [vmem:[%s0 + $0x190] sm:$0xff]
  %v66 = vld [vmem:[%s0 + $0x198] sm:$0xff]
  %v67 = vld [vmem:[%s0 + $0x1a0] sm:$0xff]
  %v68 = vld [vmem:[%s0 + $0x1a8] sm:$0xff]
  %v69 = vld [vmem:[%s0 + $0x1b0] sm:$0xff]
  %v70 = vld [vmem:[%s0 + $0x1b8] sm:$0xff]
  %v71 = vld [vmem:[%s0 + $0x1c0] sm:$0xff]
  %v72 = vld [vmem:[%s0 + $0x1c8] sm:$0xff]
  %v73 = vld [vmem:[%s0 + $0x1d0] sm:$0xff]
  %v74 = vld [vmem:[%s0 + $0x1d8] sm:$0xff]
  %v75 = vld [vmem:[%s0 + $0x1e0] sm:$0xff]
  %v76 = vld [vmem:[%s0 + $0x1e8] sm:$0xff]
  %v77 = vld [vmem:[%s0 + $0x1f0] sm:$0xff]
  %v78 = vld [vmem:[%s0 + $0x1f8] sm:$0xff]
  %v79 = vld [vmem:[%s0 + $0x200] sm:$0xff]
  %v80 = vld [vmem:[%s0 + $0x208] sm:$0xff]
  %v81 = vld [vmem:[%s0 + $0x210] sm:$0xff]
  %v82 = vld [vmem:[%s0 + $0x218] sm:$0xff]
  %v83 = vld [vmem:[%s0 + $0x220] sm:$0xff]
  %v84 = vld [vmem:[%s0 + $0x228] sm:$0xff]
  %v85 = vld [vmem:[%s0 + $0x230] sm:$0xff]
  %v86 = vld [vmem:[%s0 + $0x238] sm:$0xff]
  %v87 = vld [vmem:[%s0 + $0x240] sm:$0xff]
  %v88 = vld [vmem:[%s0 + $0x248] sm:$0xff]
  %v89 = vld [vmem:[%s0 + $0x250] sm:$0xff]
  %v90 = vld [vmem:[%s0 + $0x258] sm:$0xff]
  %v91 = vld [vmem:[%s0 + $0x260] sm:$0xff]
  %v92 = vld [vmem:[%s0 + $0x268] sm:$0xff]
  %v93 = vld [vmem:[%s0 + $0x270] sm:$0xff]
  %v94 = vld [vmem:[%s0 + $0x278] sm:$0xff]
  %v95 = vld [vmem:[%s0 + $0x280] sm:$0xff]
  %v96 = vld [vmem:[%s0 + $0x288] sm:$0xff]
  %v97 = vld [vmem:[%s0 + $0x290] sm:$0xff]
  %v98 = vld [vmem:[%s0 + $0x298] sm:$0xff]
  %v99 = vld [vmem:[%s0 + $0x2a0] sm:$0xff]
  %v100 = vld [vmem:[%s0 + $0x2a8] sm:$0xff]
  %v101 = vld [vmem:[%s0 + $0x2b0] sm:$0xff]
  %v102 = vld [vmem:[%s0 + $0x2b8] sm:$0xff]
  %v103 = vld [vmem:[%s0 + $0x2c0] sm:$0xff]
  %v104 = vld [vmem:[%s0 + $0x2c8] sm:$0xff]
  %v105 = vld [vmem:[%s0 + $0x2d0] sm:$0xff]
  %v106 = vld [vmem:[%s0 + $0x2d8] sm:$0xff]
  %v107 = vld [vmem:[%s0 + $0x2e0] sm:$0xff]
  %v108 = vld [vmem:[%s0 + $0x2e8] sm:$0xff]
  %v109 = vld [vmem:[%s0 + $0x2f0] sm:$0xff]
  %v110 = vld [vmem:[%s0 + $0x2f8] sm:$0xff]
  %v111 = vld [vmem:[%s0 + $0x300] sm:$0xff]
  %v112 = vld [vmem:[%s0 + $0x308] sm:$0xff]
  %v113 = vld [vmem:[%s0 + $0x310] sm:$0xff]
  %v114 = vld [vmem:[%s0 + $0x318] sm:$0xff]
  %v115 = vld [vmem:[%s0 + $0x320] sm:$0xff]
  %v116 = vld [vmem:[%s0 + $0x328] sm:$0xff]
  %v117 = vld [vmem:[%s0 + $0x330] sm:$0xff]
  %v118 = vld [vmem:[%s0 + $0x338] sm:$0xff]
  %v119 = vld [vmem:[%s0 + $0x340] sm:$0xff]
  %v120 = vld [vmem:[%s0 + $0x348] sm:$0xff]
  %v121 = vld [vmem:[%s0 + $0x350] sm:$0xff]
  %v122 = vld [vmem:[%s0 + $0x358] sm:$0xff]
  %v123 = vld [vmem:[%s0 + $0x360] sm:$0xff]
  %v124 = vld [vmem:[%s0 + $0x368] sm:$0xff]
  %v125 = vld [vmem:[%s0 + $0x370] sm:$0xff]
  %v126 = vld [vmem:[%s0 + $0x378] sm:$0xff]
  %v127 = vld [vmem:[%s1] sm:$0xf]
  %v128 = vld [vmem:[%s1 + $0x4] sm:$0xf]
  %v129 = vld [vmem:[%s1 + $0x8] sm:$0xf]
  %v130 = vld [vmem:[%s1 + $0xc] sm:$0xf]
  %v131 = vld [vmem:[%s1 + $0x10] sm:$0xf]
  %v132 = vld [vmem:[%s1 + $0x14] sm:$0xf]
  %v133 = vld [vmem:[%s1 + $0x18] sm:$0xf]
  %v134 = vld [vmem:[%s1 + $0x1c] sm:$0xf]
  %v135 = vld [vmem:[%s1 + $0x20] sm:$0xf]
  %v136 = vld [vmem:[%s1 + $0x24] sm:$0xf]
  %v137 = vld [vmem:[%s1 + $0x28] sm:$0xf]
  %v138 = vld [vmem:[%s1 + $0x2c] sm:$0xf]
  %v139 = vld [vmem:[%s1 + $0x30] sm:$0xf]
  %v140 = vld [vmem:[%s1 + $0x34] sm:$0xf]
  %v141 = vld [vmem:[%s1 + $0x38] sm:$0xf]
  %v142 = vld [vmem:[%s1 + $0x3c] sm:$0xf]
  %v143 = vld [vmem:[%s1 + $0x40] sm:$0xf]
  %v144 = vld [vmem:[%s1 + $0x44] sm:$0xf]
  %v145 = vld [vmem:[%s1 + $0x48] sm:$0xf]
  %v146 = vld [vmem:[%s1 + $0x4c] sm:$0xf]
  %v147 = vld [vmem:[%s1 + $0x50] sm:$0xf]
  %v148 = vld [vmem:[%s1 + $0x54] sm:$0xf]
  %v149 = vld [vmem:[%s1 + $0x58] sm:$0xf]
  %v150 = vld [vmem:[%s1 + $0x5c] sm:$0xf]
  %v151 = vld [vmem:[%s1 + $0x60] sm:$0xf]
  %v152 = vld [vmem:[%s1 + $0x64] sm:$0xf]
  %v153 = vld [vmem:[%s1 + $0x68] sm:$0xf]
  %v154 = vld [vmem:[%s1 + $0x6c] sm:$0xf]
  %v155 = vld [vmem:[%s1 + $0x70] sm:$0xf]
  %v156 = vld [vmem:[%s1 + $0x74] sm:$0xf]
  %v157 = vld [vmem:[%s1 + $0x78] sm:$0xf]
  %v158 = vld [vmem:[%s1 + $0x7c] sm:$0xf]
  %v159 = vld [vmem:[%s1 + $0x80] sm:$0xf]
  %v160 = vld [vmem:[%s1 + $0x84] sm:$0xf]
  %v161 = vld [vmem:[%s1 + $0x88] sm:$0xf]
  %v162 = vld [vmem:[%s1 + $0x8c] sm:$0xf]
  %v163 = vld [vmem:[%s1 + $0x90] sm:$0xf]
  %v164 = vld [vmem:[%s1 + $0x94] sm:$0xf]
  %v165 = vld [vmem:[%s1 + $0x98] sm:$0xf]
  %v166 = vld [vmem:[%s1 + $0x9c] sm:$0xf]
  %v167 = vld [vmem:[%s1 + $0xa0] sm:$0xf]
  %v168 = vld [vmem:[%s1 + $0xa4] sm:$0xf]
  %v169 = vld [vmem:[%s1 + $0xa8] sm:$0xf]
  %v170 = vld [vmem:[%s1 + $0xac] sm:$0xf]
  %v171 = vld [vmem:[%s1 + $0xb0] sm:$0xf]
  %v172 = vld [vmem:[%s1 + $0xb4] sm:$0xf]
  %v173 = vld [vmem:[%s1 + $0xb8] sm:$0xf]
  %v174 = vld [vmem:[%s1 + $0xbc] sm:$0xf]
  %v175 = vld [vmem:[%s1 + $0xc0] sm:$0xf]
  %v176 = vld [vmem:[%s1 + $0xc4] sm:$0xf]
  %v177 = vld [vmem:[%s1 + $0xc8] sm:$0xf]
  %v178 = vld [vmem:[%s1 + $0xcc] sm:$0xf]
  %v179 = vld [vmem:[%s1 + $0xd0] sm:$0xf]
  %v180 = vld [vmem:[%s1 + $0xd4] sm:$0xf]
  %v181 = vld [vmem:[%s1 + $0xd8] sm:$0xf]
  %v182 = vld [vmem:[%s1 + $0xdc] sm:$0xf]
  %v183 = vld [vmem:[%s1 + $0xe0] sm:$0xf]
  %v184 = vld [vmem:[%s1 + $0xe4] sm:$0xf]
  %v185 = vld [vmem:[%s1 + $0xe8] sm:$0xf]
  %v186 = vld [vmem:[%s1 + $0xec] sm:$0xf]
  %v187 = vld [vmem:[%s1 + $0xf0] sm:$0xf]
  %v188 = vld [vmem:[%s1 + $0xf4] sm:$0xf]
  %v189 = vld [vmem:[%s1 + $0xf8] sm:$0xf]
  %v190 = vld [vmem:[%s1 + $0xfc] sm:$0xf]
  %v191 = vld [vmem:[%s1 + $0x100] sm:$0xf]
  %v192 = vld [vmem:[%s1 + $0x104] sm:$0xf]
  %v193 = vld [vmem:[%s1 + $0x108] sm:$0xf]
  %v194 = vld [vmem:[%s1 + $0x10c] sm:$0xf]
  %v195 = vld [vmem:[%s1 + $0x110] sm:$0xf]
  %v196 = vld [vmem:[%s1 + $0x114] sm:$0xf]
  %v197 = vld [vmem:[%s1 + $0x118] sm:$0xf]
  %v198 = vld [vmem:[%s1 + $0x11c] sm:$0xf]
  %v199 = vld [vmem:[%s1 + $0x120] sm:$0xf]
  %v200 = vld [vmem:[%s1 + $0x124] sm:$0xf]
  %v201 = vld [vmem:[%s1 + $0x128] sm:$0xf]
  %v202 = vld [vmem:[%s1 + $0x12c] sm:$0xf]
  %v203 = vld [vmem:[%s1 + $0x130] sm:$0xf]
  %v204 = vld [vmem:[%s1 + $0x134] sm:$0xf]
  %v205 = vld [vmem:[%s1 + $0x138] sm:$0xf]
  %v206 = vld [vmem:[%s1 + $0x13c] sm:$0xf]
  %v207 = vld [vmem:[%s1 + $0x140] sm:$0xf]
  %v208 = vld [vmem:[%s1 + $0x144] sm:$0xf]
  %v209 = vld [vmem:[%s1 + $0x148] sm:$0xf]
  %v210 = vld [vmem:[%s1 + $0x14c] sm:$0xf]
  %v211 = vld [vmem:[%s1 + $0x150] sm:$0xf]
  %v212 = vld [vmem:[%s1 + $0x154] sm:$0xf]
  %v213 = vld [vmem:[%s1 + $0x158] sm:$0xf]
  %v214 = vld [vmem:[%s1 + $0x15c] sm:$0xf]
  %v215 = vld [vmem:[%s1 + $0x160] sm:$0xf]
  %v216 = vld [vmem:[%s1 + $0x164] sm:$0xf]
  %v217 = vld [vmem:[%s1 + $0x168] sm:$0xf]
  %v218 = vld [vmem:[%s1 + $0x16c] sm:$0xf]
  %v219 = vld [vmem:[%s1 + $0x170] sm:$0xf]
  %v220 = vld [vmem:[%s1 + $0x174] sm:$0xf]
  %v221 = vld [vmem:[%s1 + $0x178] sm:$0xf]
  %v222 = vld [vmem:[%s1 + $0x17c] sm:$0xf]
  %v223 = vld [vmem:[%s1 + $0x180] sm:$0xf]
  %v224 = vld [vmem:[%s1 + $0x184] sm:$0xf]
  %v225 = vld [vmem:[%s1 + $0x188] sm:$0xf]
  %v226 = vld [vmem:[%s1 + $0x18c] sm:$0xf]
  %v227 = vld [vmem:[%s1 + $0x190] sm:$0xf]
  %v228 = vld [vmem:[%s1 + $0x194] sm:$0xf]
  %v229 = vld [vmem:[%s1 + $0x198] sm:$0xf]
  %v230 = vld [vmem:[%s1 + $0x19c] sm:$0xf]
  %v231 = vld [vmem:[%s1 + $0x1a0] sm:$0xf]
  %v232 = vld [vmem:[%s1 + $0x1a4] sm:$0xf]
  %v233 = vld [vmem:[%s1 + $0x1a8] sm:$0xf]
  %v234 = vld [vmem:[%s1 + $0x1ac] sm:$0xf]
  %v235 = vld [vmem:[%s1 + $0x1b0] sm:$0xf]
  %v236 = vld [vmem:[%s1 + $0x1b4] sm:$0xf]
  %v237 = vld [vmem:[%s1 + $0x1b8] sm:$0xf]
  %v238 = vld [vmem:[%s1 + $0x1bc] sm:$0xf]
  %v239 = vld [vmem:[%s1 + $0x1c0] sm:$0xf]
  %v240 = vld [vmem:[%s1 + $0x1c4] sm:$0xf]
  %v241 = vld [vmem:[%s1 + $0x1c8] sm:$0xf]
  %v242 = vld [vmem:[%s1 + $0x1cc] sm:$0xf]
  %v243 = vld [vmem:[%s1 + $0x1d0] sm:$0xf]
  %v244 = vld [vmem:[%s1 + $0x1d4] sm:$0xf]
  %v245 = vld [vmem:[%s1 + $0x1d8] sm:$0xf]
  %v246 = vld [vmem:[%s1 + $0x1dc] sm:$0xf]
  %v247 = vld [vmem:[%s1 + $0x1e0] sm:$0xf]
  %v248 = vld [vmem:[%s1 + $0x1e4] sm:$0xf]
  %v249 = vld [vmem:[%s1 + $0x1e8] sm:$0xf]
  %v250 = vld [vmem:[%s1 + $0x1ec] sm:$0xf]
  %v251 = vld [vmem:[%s1 + $0x1f0] sm:$0xf]
  %v252 = vld [vmem:[%s1 + $0x1f4] sm:$0xf]
  %v253 = vld [vmem:[%s1 + $0x1f8] sm:$0xf]
  %v254 = vld [vmem:[%s1 + $0x1fc] sm:$0xf]
  %v255 = vld [vmem:[%s1 + $0x200] sm:$0xf]
  %v256 = vld [vmem:[%s1 + $0x204] sm:$0xf]
  %v257 = vld [vmem:[%s1 + $0x208] sm:$0xf]
  %v258 = vld [vmem:[%s1 + $0x20c] sm:$0xf]
  %v259 = vld [vmem:[%s1 + $0x210] sm:$0xf]
  %v260 = vld [vmem:[%s1 + $0x214] sm:$0xf]
  %v261 = vld [vmem:[%s1 + $0x218] sm:$0xf]
  %v262 = vld [vmem:[%s1 + $0x21c] sm:$0xf]
  %v263 = vld [vmem:[%s1 + $0x220] sm:$0xf]
  %v264 = vld [vmem:[%s1 + $0x224] sm:$0xf]
  %v265 = vld [vmem:[%s1 + $0x228] sm:$0xf]
  %v266 = vld [vmem:[%s1 + $0x22c] sm:$0xf]
  %v267 = vld [vmem:[%s1 + $0x230] sm:$0xf]
  %v268 = vld [vmem:[%s1 + $0x234] sm:$0xf]
  %v269 = vld [vmem:[%s1 + $0x238] sm:$0xf]
  %v270 = vld [vmem:[%s1 + $0x23c] sm:$0xf]
  %v271 = vld [vmem:[%s1 + $0x240] sm:$0xf]
  %v272 = vld [vmem:[%s1 + $0x244] sm:$0xf]
  %v273 = vld [vmem:[%s1 + $0x248] sm:$0xf]
  %v274 = vld [vmem:[%s1 + $0x24c] sm:$0xf]
  %v275 = vld [vmem:[%s1 + $0x250] sm:$0xf]
  %v276 = vld [vmem:[%s1 + $0x254] sm:$0xf]
  %v277 = vld [vmem:[%s1 + $0x258] sm:$0xf]
  %v278 = vld [vmem:[%s1 + $0x25c] sm:$0xf]
  %v279 = vld [vmem:[%s1 + $0x260] sm:$0xf]
  %v280 = vld [vmem:[%s1 + $0x264] sm:$0xf]
  %v281 = vld [vmem:[%s1 + $0x268] sm:$0xf]
  %v282 = vld [vmem:[%s1 + $0x26c] sm:$0xf]
  %v283 = vld [vmem:[%s1 + $0x270] sm:$0xf]
  %v284 = vld [vmem:[%s1 + $0x274] sm:$0xf]
  %v285 = vld [vmem:[%s1 + $0x278] sm:$0xf]
  %v286 = vld [vmem:[%s1 + $0x27c] sm:$0xf]
  %v287 = vld [vmem:[%s1 + $0x280] sm:$0xf]
  %v288 = vld [vmem:[%s1 + $0x284] sm:$0xf]
  %v289 = vld [vmem:[%s1 + $0x288] sm:$0xf]
  %v290 = vld [vmem:[%s1 + $0x28c] sm:$0xf]
  %v291 = vld [vmem:[%s1 + $0x290] sm:$0xf]
  %v292 = vld [vmem:[%s1 + $0x294] sm:$0xf]
  %v293 = vld [vmem:[%s1 + $0x298] sm:$0xf]
  %v294 = vld [vmem:[%s1 + $0x29c] sm:$0xf]
  %v295 = vld [vmem:[%s1 + $0x2a0] sm:$0xf]
  %v296 = vld [vmem:[%s1 + $0x2a4] sm:$0xf]
  %v297 = vld [vmem:[%s1 + $0x2a8] sm:$0xf]
  %v298 = vld [vmem:[%s1 + $0x2ac] sm:$0xf]
  %v299 = vld [vmem:[%s1 + $0x2b0] sm:$0xf]
  %v300 = vld [vmem:[%s1 + $0x2b4] sm:$0xf]
  %v301 = vld [vmem:[%s1 + $0x2b8] sm:$0xf]
  %v302 = vld [vmem:[%s1 + $0x2bc] sm:$0xf]
  %v303 = vld [vmem:[%s1 + $0x2c0] sm:$0xf]
  %v304 = vld [vmem:[%s1 + $0x2c4] sm:$0xf]
  %v305 = vld [vmem:[%s1 + $0x2c8] sm:$0xf]
  %v306 = vld [vmem:[%s1 + $0x2cc] sm:$0xf]
  %v307 = vld [vmem:[%s1 + $0x2d0] sm:$0xf]
  %v308 = vld [vmem:[%s1 + $0x2d4] sm:$0xf]
  %v309 = vld [vmem:[%s1 + $0x2d8] sm:$0xf]
  %v310 = vld [vmem:[%s1 + $0x2dc] sm:$0xf]
  %v311 = vld [vmem:[%s1 + $0x2e0] sm:$0xf]
  %v312 = vld [vmem:[%s1 + $0x2e4] sm:$0xf]
  %v313 = vld [vmem:[%s1 + $0x2e8] sm:$0xf]
  %v314 = vld [vmem:[%s1 + $0x2ec] sm:$0xf]
  %v315 = vld [vmem:[%s1 + $0x2f0] sm:$0xf]
  %v316 = vld [vmem:[%s1 + $0x2f4] sm:$0xf]
  %v317 = vld [vmem:[%s1 + $0x2f8] sm:$0xf]
  %v318 = vld [vmem:[%s1 + $0x2fc] sm:$0xf]
  %v319 = vld [vmem:[%s1 + $0x300] sm:$0xf]
  %v320 = vld [vmem:[%s1 + $0x304] sm:$0xf]
  %v321 = vld [vmem:[%s1 + $0x308] sm:$0xf]
  %v322 = vld [vmem:[%s1 + $0x30c] sm:$0xf]
  %v323 = vld [vmem:[%s1 + $0x310] sm:$0xf]
  %v324 = vld [vmem:[%s1 + $0x314] sm:$0xf]
  %v325 = vld [vmem:[%s1 + $0x318] sm:$0xf]
  %v326 = vld [vmem:[%s1 + $0x31c] sm:$0xf]
  %v327 = vld [vmem:[%s1 + $0x320] sm:$0xf]
  %v328 = vld [vmem:[%s1 + $0x324] sm:$0xf]
  %v329 = vld [vmem:[%s1 + $0x328] sm:$0xf]
  %v330 = vld [vmem:[%s1 + $0x32c] sm:$0xf]
  %v331 = vld [vmem:[%s1 + $0x330] sm:$0xf]
  %v332 = vld [vmem:[%s1 + $0x334] sm:$0xf]
  %v333 = vld [vmem:[%s1 + $0x338] sm:$0xf]
  %v334 = vld [vmem:[%s1 + $0x33c] sm:$0xf]
  %v335 = vld [vmem:[%s1 + $0x340] sm:$0xf]
  %v336 = vld [vmem:[%s1 + $0x344] sm:$0xf]
  %v337 = vld [vmem:[%s1 + $0x348] sm:$0xf]
  %v338 = vld [vmem:[%s1 + $0x34c] sm:$0xf]
  %v339 = vld [vmem:[%s1 + $0x350] sm:$0xf]
  %v340 = vld [vmem:[%s1 + $0x354] sm:$0xf]
  %v341 = vld [vmem:[%s1 + $0x358] sm:$0xf]
  %v342 = vld [vmem:[%s1 + $0x35c] sm:$0xf]
  %v343 = vld [vmem:[%s2] sm:$0x1]
  %v345 = vlaneseq
  %v346 = vshrl.u32 %v345, 7
  %v347 = vsub.s32 0, %v346
  %v348 = vrot.slane %v343, %v347
  %v462 = vunpack.c.l.b16 %v15
  %v463 = vunpack.c.h.b16 %v15
  %v464 = vunpack.c.l.b16 %v16
  %v465 = vunpack.c.h.b16 %v16
  %v466 = vunpack.c.l.b16 %v17
  %v467 = vunpack.c.h.b16 %v17
  %v468 = vunpack.c.l.b16 %v18
  %v469 = vunpack.c.h.b16 %v18
  %v470 = vunpack.c.l.b16 %v19
  %v471 = vunpack.c.h.b16 %v19
  %v472 = vunpack.c.l.b16 %v20
  %v473 = vunpack.c.h.b16 %v20
  %v474 = vunpack.c.l.b16 %v21
  %v475 = vunpack.c.h.b16 %v21
  %v476 = vunpack.c.l.b16 %v22
  %v477 = vunpack.c.h.b16 %v22
  %v478 = vunpack.c.l.b16 %v23
  %v479 = vunpack.c.h.b16 %v23
  %v480 = vunpack.c.l.b16 %v24
  %v481 = vunpack.c.h.b16 %v24
  %v482 = vunpack.c.l.b16 %v25
  %v483 = vunpack.c.h.b16 %v25
  %v484 = vunpack.c.l.b16 %v26
  %v485 = vunpack.c.h.b16 %v26
  %v486 = vunpack.c.l.b16 %v27
  %v487 = vunpack.c.h.b16 %v27
  %v488 = vunpack.c.l.b16 %v28
  %v489 = vunpack.c.h.b16 %v28
  %v490 = vunpack.c.l.b16 %v29
  %v491 = vunpack.c.h.b16 %v29
  %v492 = vunpack.c.l.b16 %v30
  %v493 = vunpack.c.h.b16 %v30
  %v494 = vunpack.c.l.b16 %v31
  %v495 = vunpack.c.h.b16 %v31
  %v496 = vunpack.c.l.b16 %v32
  %v497 = vunpack.c.h.b16 %v32
  %v498 = vunpack.c.l.b16 %v33
  %v499 = vunpack.c.h.b16 %v33
  %v500 = vunpack.c.l.b16 %v34
  %v501 = vunpack.c.h.b16 %v34
  %v502 = vunpack.c.l.b16 %v35
  %v503 = vunpack.c.h.b16 %v35
  %v504 = vunpack.c.l.b16 %v36
  %v505 = vunpack.c.h.b16 %v36
  %v506 = vunpack.c.l.b16 %v37
  %v507 = vunpack.c.h.b16 %v37
  %v508 = vunpack.c.l.b16 %v38
  %v509 = vunpack.c.h.b16 %v38
  %v510 = vunpack.c.l.b16 %v39
  %v511 = vunpack.c.h.b16 %v39
  %v512 = vunpack.c.l.b16 %v40
  %v513 = vunpack.c.h.b16 %v40
  %v514 = vunpack.c.l.b16 %v41
  %v515 = vunpack.c.h.b16 %v41
  %v516 = vunpack.c.l.b16 %v42
  %v517 = vunpack.c.h.b16 %v42
  %v518 = vunpack.c.l.b16 %v43
  %v519 = vunpack.c.h.b16 %v43
  %v520 = vunpack.c.l.b16 %v44
  %v521 = vunpack.c.h.b16 %v44
  %v522 = vunpack.c.l.b16 %v45
  %v523 = vunpack.c.h.b16 %v45
  %v524 = vunpack.c.l.b16 %v46
  %v525 = vunpack.c.h.b16 %v46
  %v526 = vunpack.c.l.b16 %v47
  %v527 = vunpack.c.h.b16 %v47
  %v528 = vunpack.c.l.b16 %v48
  %v529 = vunpack.c.h.b16 %v48
  %v530 = vunpack.c.l.b16 %v49
  %v531 = vunpack.c.h.b16 %v49
  %v532 = vunpack.c.l.b16 %v50
  %v533 = vunpack.c.h.b16 %v50
  %v534 = vunpack.c.l.b16 %v51
  %v535 = vunpack.c.h.b16 %v51
  %v536 = vunpack.c.l.b16 %v52
  %v537 = vunpack.c.h.b16 %v52
  %v538 = vunpack.c.l.b16 %v53
  %v539 = vunpack.c.h.b16 %v53
  %v540 = vunpack.c.l.b16 %v54
  %v541 = vunpack.c.h.b16 %v54
  %v542 = vunpack.c.l.b16 %v55
  %v543 = vunpack.c.h.b16 %v55
  %v544 = vunpack.c.l.b16 %v56
  %v545 = vunpack.c.h.b16 %v56
  %v546 = vunpack.c.l.b16 %v57
  %v547 = vunpack.c.h.b16 %v57
  %v548 = vunpack.c.l.b16 %v58
  %v549 = vunpack.c.h.b16 %v58
  %v550 = vunpack.c.l.b16 %v59
  %v551 = vunpack.c.h.b16 %v59
  %v552 = vunpack.c.l.b16 %v60
  %v553 = vunpack.c.h.b16 %v60
  %v554 = vunpack.c.l.b16 %v61
  %v555 = vunpack.c.h.b16 %v61
  %v556 = vunpack.c.l.b16 %v62
  %v557 = vunpack.c.h.b16 %v62
  %v558 = vunpack.c.l.b16 %v63
  %v559 = vunpack.c.h.b16 %v63
  %v560 = vunpack.c.l.b16 %v64
  %v561 = vunpack.c.h.b16 %v64
  %v562 = vunpack.c.l.b16 %v65
  %v563 = vunpack.c.h.b16 %v65
  %v564 = vunpack.c.l.b16 %v66
  %v565 = vunpack.c.h.b16 %v66
  %v566 = vunpack.c.l.b16 %v67
  %v567 = vunpack.c.h.b16 %v67
  %v568 = vunpack.c.l.b16 %v68
  %v569 = vunpack.c.h.b16 %v68
  %v570 = vunpack.c.l.b16 %v69
  %v571 = vunpack.c.h.b16 %v69
  %v572 = vunpack.c.l.b16 %v70
  %v573 = vunpack.c.h.b16 %v70
  %v574 = vunpack.c.l.b16 %v71
  %v575 = vunpack.c.h.b16 %v71
  %v576 = vunpack.c.l.b16 %v72
  %v577 = vunpack.c.h.b16 %v72
  %v578 = vunpack.c.l.b16 %v73
  %v579 = vunpack.c.h.b16 %v73
  %v580 = vunpack.c.l.b16 %v74
  %v581 = vunpack.c.h.b16 %v74
  %v582 = vunpack.c.l.b16 %v75
  %v583 = vunpack.c.h.b16 %v75
  %v584 = vunpack.c.l.b16 %v76
  %v585 = vunpack.c.h.b16 %v76
  %v586 = vunpack.c.l.b16 %v77
  %v587 = vunpack.c.h.b16 %v77
  %v588 = vunpack.c.l.b16 %v78
  %v589 = vunpack.c.h.b16 %v78
  %v590 = vunpack.c.l.b16 %v79
  %v591 = vunpack.c.h.b16 %v79
  %v592 = vunpack.c.l.b16 %v80
  %v593 = vunpack.c.h.b16 %v80
  %v594 = vunpack.c.l.b16 %v81
  %v595 = vunpack.c.h.b16 %v81
  %v596 = vunpack.c.l.b16 %v82
  %v597 = vunpack.c.h.b16 %v82
  %v598 = vunpack.c.l.b16 %v83
  %v599 = vunpack.c.h.b16 %v83
  %v600 = vunpack.c.l.b16 %v84
  %v601 = vunpack.c.h.b16 %v84
  %v602 = vunpack.c.l.b16 %v85
  %v603 = vunpack.c.h.b16 %v85
  %v604 = vunpack.c.l.b16 %v86
  %v605 = vunpack.c.h.b16 %v86
  %v606 = vunpack.c.l.b16 %v87
  %v607 = vunpack.c.h.b16 %v87
  %v608 = vunpack.c.l.b16 %v88
  %v609 = vunpack.c.h.b16 %v88
  %v610 = vunpack.c.l.b16 %v89
  %v611 = vunpack.c.h.b16 %v89
  %v612 = vunpack.c.l.b16 %v90
  %v613 = vunpack.c.h.b16 %v90
  %v614 = vunpack.c.l.b16 %v91
  %v615 = vunpack.c.h.b16 %v91
  %v616 = vunpack.c.l.b16 %v92
  %v617 = vunpack.c.h.b16 %v92
  %v618 = vunpack.c.l.b16 %v93
  %v619 = vunpack.c.h.b16 %v93
  %v620 = vunpack.c.l.b16 %v94
  %v621 = vunpack.c.h.b16 %v94
  %v622 = vunpack.c.l.b16 %v95
  %v623 = vunpack.c.h.b16 %v95
  %v624 = vunpack.c.l.b16 %v96
  %v625 = vunpack.c.h.b16 %v96
  %v626 = vunpack.c.l.b16 %v97
  %v627 = vunpack.c.h.b16 %v97
  %v628 = vunpack.c.l.b16 %v98
  %v629 = vunpack.c.h.b16 %v98
  %v630 = vunpack.c.l.b16 %v99
  %v631 = vunpack.c.h.b16 %v99
  %v632 = vunpack.c.l.b16 %v100
  %v633 = vunpack.c.h.b16 %v100
  %v634 = vunpack.c.l.b16 %v101
  %v635 = vunpack.c.h.b16 %v101
  %v636 = vunpack.c.l.b16 %v102
  %v637 = vunpack.c.h.b16 %v102
  %v638 = vunpack.c.l.b16 %v103
  %v639 = vunpack.c.h.b16 %v103
  %v640 = vunpack.c.l.b16 %v104
  %v641 = vunpack.c.h.b16 %v104
  %v642 = vunpack.c.l.b16 %v105
  %v643 = vunpack.c.h.b16 %v105
  %v644 = vunpack.c.l.b16 %v106
  %v645 = vunpack.c.h.b16 %v106
  %v646 = vunpack.c.l.b16 %v107
  %v647 = vunpack.c.h.b16 %v107
  %v648 = vunpack.c.l.b16 %v108
  %v649 = vunpack.c.h.b16 %v108
  %v650 = vunpack.c.l.b16 %v109
  %v651 = vunpack.c.h.b16 %v109
  %v652 = vunpack.c.l.b16 %v110
  %v653 = vunpack.c.h.b16 %v110
  %v654 = vunpack.c.l.b16 %v111
  %v655 = vunpack.c.h.b16 %v111
  %v656 = vunpack.c.l.b16 %v112
  %v657 = vunpack.c.h.b16 %v112
  %v658 = vunpack.c.l.b16 %v113
  %v659 = vunpack.c.h.b16 %v113
  %v660 = vunpack.c.l.b16 %v114
  %v661 = vunpack.c.h.b16 %v114
  %v662 = vunpack.c.l.b16 %v115
  %v663 = vunpack.c.h.b16 %v115
  %v664 = vunpack.c.l.b16 %v116
  %v665 = vunpack.c.h.b16 %v116
  %v666 = vunpack.c.l.b16 %v117
  %v667 = vunpack.c.h.b16 %v117
  %v668 = vunpack.c.l.b16 %v118
  %v669 = vunpack.c.h.b16 %v118
  %v670 = vunpack.c.l.b16 %v119
  %v671 = vunpack.c.h.b16 %v119
  %v672 = vunpack.c.l.b16 %v120
  %v673 = vunpack.c.h.b16 %v120
  %v674 = vunpack.c.l.b16 %v121
  %v675 = vunpack.c.h.b16 %v121
  %v676 = vunpack.c.l.b16 %v122
  %v677 = vunpack.c.h.b16 %v122
  %v678 = vunpack.c.l.b16 %v123
  %v679 = vunpack.c.h.b16 %v123
  %v680 = vunpack.c.l.b16 %v124
  %v681 = vunpack.c.h.b16 %v124
  %v682 = vunpack.c.l.b16 %v125
  %v683 = vunpack.c.h.b16 %v125
  %v684 = vunpack.c.l.b16 %v126
  %v685 = vunpack.c.h.b16 %v126
  %v686 = vpack.c.b16 %v476, %v462
  %v687 = vpack.c.b16 %v477, %v463
  %v688 = vpack.c.b16 %v478, %v464
  %v689 = vpack.c.b16 %v479, %v465
  %v690 = vpack.c.b16 %v480, %v466
  %v691 = vpack.c.b16 %v481, %v467
  %v692 = vpack.c.b16 %v482, %v468
  %v693 = vpack.c.b16 %v483, %v469
  %v694 = vpack.c.b16 %v484, %v470
  %v695 = vpack.c.b16 %v485, %v471
  %v696 = vpack.c.b16 %v486, %v472
  %v697 = vpack.c.b16 %v487, %v473
  %v698 = vpack.c.b16 %v488, %v474
  %v699 = vpack.c.b16 %v489, %v475
  %v700 = vpack.c.b16 %v504, %v490
  %v701 = vpack.c.b16 %v505, %v491
  %v702 = vpack.c.b16 %v506, %v492
  %v703 = vpack.c.b16 %v507, %v493
  %v704 = vpack.c.b16 %v508, %v494
  %v705 = vpack.c.b16 %v509, %v495
  %v706 = vpack.c.b16 %v510, %v496
  %v707 = vpack.c.b16 %v511, %v497
  %v708 = vpack.c.b16 %v512, %v498
  %v709 = vpack.c.b16 %v513, %v499
  %v710 = vpack.c.b16 %v514, %v500
  %v711 = vpack.c.b16 %v515, %v501
  %v712 = vpack.c.b16 %v516, %v502
  %v713 = vpack.c.b16 %v517, %v503
  %v714 = vpack.c.b16 %v532, %v518
  %v715 = vpack.c.b16 %v533, %v519
  %v716 = vpack.c.b16 %v534, %v520
  %v717 = vpack.c.b16 %v535, %v521
  %v718 = vpack.c.b16 %v536, %v522
  %v719 = vpack.c.b16 %v537, %v523
  %v720 = vpack.c.b16 %v538, %v524
  %v721 = vpack.c.b16 %v539, %v525
  %v722 = vpack.c.b16 %v540, %v526
  %v723 = vpack.c.b16 %v541, %v527
  %v724 = vpack.c.b16 %v542, %v528
  %v725 = vpack.c.b16 %v543, %v529
  %v726 = vpack.c.b16 %v544, %v530
  %v727 = vpack.c.b16 %v545, %v531
  %v728 = vpack.c.b16 %v560, %v546
  %v729 = vpack.c.b16 %v561, %v547
  %v730 = vpack.c.b16 %v562, %v548
  %v731 = vpack.c.b16 %v563, %v549
  %v732 = vpack.c.b16 %v564, %v550
  %v733 = vpack.c.b16 %v565, %v551
  %v734 = vpack.c.b16 %v566, %v552
  %v735 = vpack.c.b16 %v567, %v553
  %v736 = vpack.c.b16 %v568, %v554
  %v737 = vpack.c.b16 %v569, %v555
  %v738 = vpack.c.b16 %v570, %v556
  %v739 = vpack.c.b16 %v571, %v557
  %v740 = vpack.c.b16 %v572, %v558
  %v741 = vpack.c.b16 %v573, %v559
  %v742 = vpack.c.b16 %v588, %v574
  %v743 = vpack.c.b16 %v589, %v575
  %v744 = vpack.c.b16 %v590, %v576
  %v745 = vpack.c.b16 %v591, %v577
  %v746 = vpack.c.b16 %v592, %v578
  %v747 = vpack.c.b16 %v593, %v579
  %v748 = vpack.c.b16 %v594, %v580
  %v749 = vpack.c.b16 %v595, %v581
  %v750 = vpack.c.b16 %v596, %v582
  %v751 = vpack.c.b16 %v597, %v583
  %v752 = vpack.c.b16 %v598, %v584
  %v753 = vpack.c.b16 %v599, %v585
  %v754 = vpack.c.b16 %v600, %v586
  %v755 = vpack.c.b16 %v601, %v587
  %v756 = vpack.c.b16 %v616, %v602
  %v757 = vpack.c.b16 %v617, %v603
  %v758 = vpack.c.b16 %v618, %v604
  %v759 = vpack.c.b16 %v619, %v605
  %v760 = vpack.c.b16 %v620, %v606
  %v761 = vpack.c.b16 %v621, %v607
  %v762 = vpack.c.b16 %v622, %v608
  %v763 = vpack.c.b16 %v623, %v609
  %v764 = vpack.c.b16 %v624, %v610
  %v765 = vpack.c.b16 %v625, %v611
  %v766 = vpack.c.b16 %v626, %v612
  %v767 = vpack.c.b16 %v627, %v613
  %v768 = vpack.c.b16 %v628, %v614
  %v769 = vpack.c.b16 %v629, %v615
  %v770 = vpack.c.b16 %v644, %v630
  %v771 = vpack.c.b16 %v645, %v631
  %v772 = vpack.c.b16 %v646, %v632
  %v773 = vpack.c.b16 %v647, %v633
  %v774 = vpack.c.b16 %v648, %v634
  %v775 = vpack.c.b16 %v649, %v635
  %v776 = vpack.c.b16 %v650, %v636
  %v777 = vpack.c.b16 %v651, %v637
  %v778 = vpack.c.b16 %v652, %v638
  %v779 = vpack.c.b16 %v653, %v639
  %v780 = vpack.c.b16 %v654, %v640
  %v781 = vpack.c.b16 %v655, %v641
  %v782 = vpack.c.b16 %v656, %v642
  %v783 = vpack.c.b16 %v657, %v643
  %v784 = vpack.c.b16 %v672, %v658
  %v785 = vpack.c.b16 %v673, %v659
  %v786 = vpack.c.b16 %v674, %v660
  %v787 = vpack.c.b16 %v675, %v661
  %v788 = vpack.c.b16 %v676, %v662
  %v789 = vpack.c.b16 %v677, %v663
  %v790 = vpack.c.b16 %v678, %v664
  %v791 = vpack.c.b16 %v679, %v665
  %v792 = vpack.c.b16 %v680, %v666
  %v793 = vpack.c.b16 %v681, %v667
  %v794 = vpack.c.b16 %v682, %v668
  %v795 = vpack.c.b16 %v683, %v669
  %v796 = vpack.c.b16 %v684, %v670
  %v797 = vpack.c.b16 %v685, %v671
  %v1118 = vunpack.c.l.b16 %v127
  %v1119 = vunpack.c.l.b16 %v128
  %v1120 = vunpack.c.l.b16 %v129
  %v1121 = vunpack.c.l.b16 %v130
  %v1122 = vunpack.c.l.b16 %v131
  %v1123 = vunpack.c.l.b16 %v132
  %v1124 = vunpack.c.l.b16 %v133
  %v1125 = vunpack.c.l.b16 %v134
  %v1126 = vunpack.c.l.b16 %v135
  %v1127 = vunpack.c.l.b16 %v136
  %v1128 = vunpack.c.l.b16 %v137
  %v1129 = vunpack.c.l.b16 %v138
  %v1130 = vunpack.c.l.b16 %v139
  %v1131 = vunpack.c.l.b16 %v140
  %v1132 = vunpack.c.l.b16 %v141
  %v1133 = vunpack.c.l.b16 %v142
  %v1134 = vunpack.c.l.b16 %v143
  %v1135 = vunpack.c.l.b16 %v144
  %v1136 = vunpack.c.l.b16 %v145
  %v1137 = vunpack.c.l.b16 %v146
  %v1138 = vunpack.c.l.b16 %v147
  %v1139 = vunpack.c.l.b16 %v148
  %v1140 = vunpack.c.l.b16 %v149
  %v1141 = vunpack.c.l.b16 %v150
  %v1142 = vunpack.c.l.b16 %v151
  %v1143 = vunpack.c.l.b16 %v152
  %v1144 = vunpack.c.l.b16 %v153
  %v1145 = vunpack.c.l.b16 %v154
  %v1146 = vunpack.c.l.b16 %v155
  %v1147 = vunpack.c.l.b16 %v156
  %v1148 = vunpack.c.l.b16 %v157
  %v1149 = vunpack.c.l.b16 %v158
  %v1150 = vunpack.c.l.b16 %v159
  %v1151 = vunpack.c.l.b16 %v160
  %v1152 = vunpack.c.l.b16 %v161
  %v1153 = vunpack.c.l.b16 %v162
  %v1154 = vunpack.c.l.b16 %v163
  %v1155 = vunpack.c.l.b16 %v164
  %v1156 = vunpack.c.l.b16 %v165
  %v1157 = vunpack.c.l.b16 %v166
  %v1158 = vunpack.c.l.b16 %v167
  %v1159 = vunpack.c.l.b16 %v168
  %v1160 = vunpack.c.l.b16 %v169
  %v1161 = vunpack.c.l.b16 %v170
  %v1162 = vunpack.c.l.b16 %v171
  %v1163 = vunpack.c.l.b16 %v172
  %v1164 = vunpack.c.l.b16 %v173
  %v1165 = vunpack.c.l.b16 %v174
  %v1166 = vunpack.c.l.b16 %v175
  %v1167 = vunpack.c.l.b16 %v176
  %v1168 = vunpack.c.l.b16 %v177
  %v1169 = vunpack.c.l.b16 %v178
  %v1170 = vunpack.c.l.b16 %v179
  %v1171 = vunpack.c.l.b16 %v180
  %v1172 = vunpack.c.l.b16 %v181
  %v1173 = vunpack.c.l.b16 %v182
  %v1174 = vunpack.c.l.b16 %v183
  %v1175 = vunpack.c.l.b16 %v184
  %v1176 = vunpack.c.l.b16 %v185
  %v1177 = vunpack.c.l.b16 %v186
  %v1178 = vunpack.c.l.b16 %v187
  %v1179 = vunpack.c.l.b16 %v188
  %v1180 = vunpack.c.l.b16 %v189
  %v1181 = vunpack.c.l.b16 %v190
  %v1182 = vunpack.c.l.b16 %v191
  %v1183 = vunpack.c.l.b16 %v192
  %v1184 = vunpack.c.l.b16 %v193
  %v1185 = vunpack.c.l.b16 %v194
  %v1186 = vunpack.c.l.b16 %v195
  %v1187 = vunpack.c.l.b16 %v196
  %v1188 = vunpack.c.l.b16 %v197
  %v1189 = vunpack.c.l.b16 %v198
  %v1190 = vunpack.c.l.b16 %v199
  %v1191 = vunpack.c.l.b16 %v200
  %v1192 = vunpack.c.l.b16 %v201
  %v1193 = vunpack.c.l.b16 %v202
  %v1194 = vunpack.c.l.b16 %v203
  %v1195 = vunpack.c.l.b16 %v204
  %v1196 = vunpack.c.l.b16 %v205
  %v1197 = vunpack.c.l.b16 %v206
  %v1198 = vunpack.c.l.b16 %v207
  %v1199 = vunpack.c.l.b16 %v208
  %v1200 = vunpack.c.l.b16 %v209
  %v1201 = vunpack.c.l.b16 %v210
  %v1202 = vunpack.c.l.b16 %v211
  %v1203 = vunpack.c.l.b16 %v212
  %v1204 = vunpack.c.l.b16 %v213
  %v1205 = vunpack.c.l.b16 %v214
  %v1206 = vunpack.c.l.b16 %v215
  %v1207 = vunpack.c.l.b16 %v216
  %v1208 = vunpack.c.l.b16 %v217
  %v1209 = vunpack.c.l.b16 %v218
  %v1210 = vunpack.c.l.b16 %v219
  %v1211 = vunpack.c.l.b16 %v220
  %v1212 = vunpack.c.l.b16 %v221
  %v1213 = vunpack.c.l.b16 %v222
  %v1214 = vunpack.c.l.b16 %v223
  %v1215 = vunpack.c.l.b16 %v224
  %v1216 = vunpack.c.l.b16 %v225
  %v1217 = vunpack.c.l.b16 %v226
  %v1218 = vunpack.c.l.b16 %v227
  %v1219 = vunpack.c.l.b16 %v228
  %v1220 = vunpack.c.l.b16 %v229
  %v1221 = vunpack.c.l.b16 %v230
  %v1222 = vunpack.c.l.b16 %v231
  %v1223 = vunpack.c.l.b16 %v232
  %v1224 = vunpack.c.l.b16 %v233
  %v1225 = vunpack.c.l.b16 %v234
  %v1226 = vunpack.c.l.b16 %v235
  %v1227 = vunpack.c.l.b16 %v236
  %v1228 = vunpack.c.l.b16 %v237
  %v1229 = vunpack.c.l.b16 %v238
  %v1230 = vunpack.c.l.b16 %v239
  %v1231 = vunpack.c.l.b16 %v240
  %v1232 = vunpack.c.l.b16 %v241
  %v1233 = vunpack.c.l.b16 %v242
  %v1234 = vunpack.c.l.b16 %v243
  %v1235 = vunpack.c.l.b16 %v244
  %v1236 = vunpack.c.l.b16 %v245
  %v1237 = vunpack.c.l.b16 %v246
  %v1238 = vunpack.c.l.b16 %v247
  %v1239 = vunpack.c.l.b16 %v248
  %v1240 = vunpack.c.l.b16 %v249
  %v1241 = vunpack.c.l.b16 %v250
  %v1242 = vunpack.c.l.b16 %v251
  %v1243 = vunpack.c.l.b16 %v252
  %v1244 = vunpack.c.l.b16 %v253
  %v1245 = vunpack.c.l.b16 %v254
  %v1246 = vunpack.c.l.b16 %v255
  %v1247 = vunpack.c.l.b16 %v256
  %v1248 = vunpack.c.l.b16 %v257
  %v1249 = vunpack.c.l.b16 %v258
  %v1250 = vunpack.c.l.b16 %v259
  %v1251 = vunpack.c.l.b16 %v260
  %v1252 = vunpack.c.l.b16 %v261
  %v1253 = vunpack.c.l.b16 %v262
  %v1254 = vunpack.c.l.b16 %v263
  %v1255 = vunpack.c.l.b16 %v264
  %v1256 = vunpack.c.l.b16 %v265
  %v1257 = vunpack.c.l.b16 %v266
  %v1258 = vunpack.c.l.b16 %v267
  %v1259 = vunpack.c.l.b16 %v268
  %v1260 = vunpack.c.l.b16 %v269
  %v1261 = vunpack.c.l.b16 %v270
  %v1262 = vunpack.c.l.b16 %v271
  %v1263 = vunpack.c.l.b16 %v272
  %v1264 = vunpack.c.l.b16 %v273
  %v1265 = vunpack.c.l.b16 %v274
  %v1266 = vunpack.c.l.b16 %v275
  %v1267 = vunpack.c.l.b16 %v276
  %v1268 = vunpack.c.l.b16 %v277
  %v1269 = vunpack.c.l.b16 %v278
  %v1270 = vunpack.c.l.b16 %v279
  %v1271 = vunpack.c.l.b16 %v280
  %v1272 = vunpack.c.l.b16 %v281
  %v1273 = vunpack.c.l.b16 %v282
  %v1274 = vunpack.c.l.b16 %v283
  %v1275 = vunpack.c.l.b16 %v284
  %v1276 = vunpack.c.l.b16 %v285
  %v1277 = vunpack.c.l.b16 %v286
  %v1278 = vunpack.c.l.b16 %v287
  %v1279 = vunpack.c.l.b16 %v288
  %v1280 = vunpack.c.l.b16 %v289
  %v1281 = vunpack.c.l.b16 %v290
  %v1282 = vunpack.c.l.b16 %v291
  %v1283 = vunpack.c.l.b16 %v292
  %v1284 = vunpack.c.l.b16 %v293
  %v1285 = vunpack.c.l.b16 %v294
  %v1286 = vunpack.c.l.b16 %v295
  %v1287 = vunpack.c.l.b16 %v296
  %v1288 = vunpack.c.l.b16 %v297
  %v1289 = vunpack.c.l.b16 %v298
  %v1290 = vunpack.c.l.b16 %v299
  %v1291 = vunpack.c.l.b16 %v300
  %v1292 = vunpack.c.l.b16 %v301
  %v1293 = vunpack.c.l.b16 %v302
  %v1294 = vunpack.c.l.b16 %v303
  %v1295 = vunpack.c.l.b16 %v304
  %v1296 = vunpack.c.l.b16 %v305
  %v1297 = vunpack.c.l.b16 %v306
  %v1298 = vunpack.c.l.b16 %v307
  %v1299 = vunpack.c.l.b16 %v308
  %v1300 = vunpack.c.l.b16 %v309
  %v1301 = vunpack.c.l.b16 %v310
  %v1302 = vunpack.c.l.b16 %v311
  %v1303 = vunpack.c.l.b16 %v312
  %v1304 = vunpack.c.l.b16 %v313
  %v1305 = vunpack.c.l.b16 %v314
  %v1306 = vunpack.c.l.b16 %v315
  %v1307 = vunpack.c.l.b16 %v316
  %v1308 = vunpack.c.l.b16 %v317
  %v1309 = vunpack.c.l.b16 %v318
  %v1310 = vunpack.c.l.b16 %v319
  %v1311 = vunpack.c.l.b16 %v320
  %v1312 = vunpack.c.l.b16 %v321
  %v1313 = vunpack.c.l.b16 %v322
  %v1314 = vunpack.c.l.b16 %v323
  %v1315 = vunpack.c.l.b16 %v324
  %v1316 = vunpack.c.l.b16 %v325
  %v1317 = vunpack.c.l.b16 %v326
  %v1318 = vunpack.c.l.b16 %v327
  %v1319 = vunpack.c.l.b16 %v328
  %v1320 = vunpack.c.l.b16 %v329
  %v1321 = vunpack.c.l.b16 %v330
  %v1322 = vunpack.c.l.b16 %v331
  %v1323 = vunpack.c.l.b16 %v332
  %v1324 = vunpack.c.l.b16 %v333
  %v1325 = vunpack.c.l.b16 %v334
  %v1326 = vunpack.c.l.b16 %v335
  %v1327 = vunpack.c.l.b16 %v336
  %v1328 = vunpack.c.l.b16 %v337
  %v1329 = vunpack.c.l.b16 %v338
  %v1330 = vunpack.c.l.b16 %v339
  %v1331 = vunpack.c.l.b16 %v340
  %v1332 = vunpack.c.l.b16 %v341
  %v1333 = vunpack.c.l.b16 %v342
  %v1334 = vpack.c.b16 %v1119, %v1118
  %v1335 = vpack.c.b16 %v1121, %v1120
  %v1336 = vpack.c.b16 %v1123, %v1122
  %v1337 = vpack.c.b16 %v1125, %v1124
  %v1338 = vpack.c.b16 %v1127, %v1126
  %v1339 = vpack.c.b16 %v1129, %v1128
  %v1340 = vpack.c.b16 %v1131, %v1130
  %v1341 = vpack.c.b16 %v1133, %v1132
  %v1342 = vpack.c.b16 %v1135, %v1134
  %v1343 = vpack.c.b16 %v1137, %v1136
  %v1344 = vpack.c.b16 %v1139, %v1138
  %v1345 = vpack.c.b16 %v1141, %v1140
  %v1346 = vpack.c.b16 %v1143, %v1142
  %v1347 = vpack.c.b16 %v1145, %v1144
  %v1348 = vpack.c.b16 %v1147, %v1146
  %v1349 = vpack.c.b16 %v1149, %v1148
  %v1350 = vpack.c.b16 %v1151, %v1150
  %v1351 = vpack.c.b16 %v1153, %v1152
  %v1352 = vpack.c.b16 %v1155, %v1154
  %v1353 = vpack.c.b16 %v1157, %v1156
  %v1354 = vpack.c.b16 %v1159, %v1158
  %v1355 = vpack.c.b16 %v1161, %v1160
  %v1356 = vpack.c.b16 %v1163, %v1162
  %v1357 = vpack.c.b16 %v1165, %v1164
  %v1358 = vpack.c.b16 %v1167, %v1166
  %v1359 = vpack.c.b16 %v1169, %v1168
  %v1360 = vpack.c.b16 %v1171, %v1170
  %v1361 = vpack.c.b16 %v1173, %v1172
  %v1362 = vpack.c.b16 %v1175, %v1174
  %v1363 = vpack.c.b16 %v1177, %v1176
  %v1364 = vpack.c.b16 %v1179, %v1178
  %v1365 = vpack.c.b16 %v1181, %v1180
  %v1366 = vpack.c.b16 %v1183, %v1182
  %v1367 = vpack.c.b16 %v1185, %v1184
  %v1368 = vpack.c.b16 %v1187, %v1186
  %v1369 = vpack.c.b16 %v1189, %v1188
  %v1370 = vpack.c.b16 %v1191, %v1190
  %v1371 = vpack.c.b16 %v1193, %v1192
  %v1372 = vpack.c.b16 %v1195, %v1194
  %v1373 = vpack.c.b16 %v1197, %v1196
  %v1374 = vpack.c.b16 %v1199, %v1198
  %v1375 = vpack.c.b16 %v1201, %v1200
  %v1376 = vpack.c.b16 %v1203, %v1202
  %v1377 = vpack.c.b16 %v1205, %v1204
  %v1378 = vpack.c.b16 %v1207, %v1206
  %v1379 = vpack.c.b16 %v1209, %v1208
  %v1380 = vpack.c.b16 %v1211, %v1210
  %v1381 = vpack.c.b16 %v1213, %v1212
  %v1382 = vpack.c.b16 %v1215, %v1214
  %v1383 = vpack.c.b16 %v1217, %v1216
  %v1384 = vpack.c.b16 %v1219, %v1218
  %v1385 = vpack.c.b16 %v1221, %v1220
  %v1386 = vpack.c.b16 %v1223, %v1222
  %v1387 = vpack.c.b16 %v1225, %v1224
  %v1388 = vpack.c.b16 %v1227, %v1226
  %v1389 = vpack.c.b16 %v1229, %v1228
  %v1390 = vpack.c.b16 %v1231, %v1230
  %v1391 = vpack.c.b16 %v1233, %v1232
  %v1392 = vpack.c.b16 %v1235, %v1234
  %v1393 = vpack.c.b16 %v1237, %v1236
  %v1394 = vpack.c.b16 %v1239, %v1238
  %v1395 = vpack.c.b16 %v1241, %v1240
  %v1396 = vpack.c.b16 %v1243, %v1242
  %v1397 = vpack.c.b16 %v1245, %v1244
  %v1398 = vpack.c.b16 %v1247, %v1246
  %v1399 = vpack.c.b16 %v1249, %v1248
  %v1400 = vpack.c.b16 %v1251, %v1250
  %v1401 = vpack.c.b16 %v1253, %v1252
  %v1402 = vpack.c.b16 %v1255, %v1254
  %v1403 = vpack.c.b16 %v1257, %v1256
  %v1404 = vpack.c.b16 %v1259, %v1258
  %v1405 = vpack.c.b16 %v1261, %v1260
  %v1406 = vpack.c.b16 %v1263, %v1262
  %v1407 = vpack.c.b16 %v1265, %v1264
  %v1408 = vpack.c.b16 %v1267, %v1266
  %v1409 = vpack.c.b16 %v1269, %v1268
  %v1410 = vpack.c.b16 %v1271, %v1270
  %v1411 = vpack.c.b16 %v1273, %v1272
  %v1412 = vpack.c.b16 %v1275, %v1274
  %v1413 = vpack.c.b16 %v1277, %v1276
  %v1414 = vpack.c.b16 %v1279, %v1278
  %v1415 = vpack.c.b16 %v1281, %v1280
  %v1416 = vpack.c.b16 %v1283, %v1282
  %v1417 = vpack.c.b16 %v1285, %v1284
  %v1418 = vpack.c.b16 %v1287, %v1286
  %v1419 = vpack.c.b16 %v1289, %v1288
  %v1420 = vpack.c.b16 %v1291, %v1290
  %v1421 = vpack.c.b16 %v1293, %v1292
  %v1422 = vpack.c.b16 %v1295, %v1294
  %v1423 = vpack.c.b16 %v1297, %v1296
  %v1424 = vpack.c.b16 %v1299, %v1298
  %v1425 = vpack.c.b16 %v1301, %v1300
  %v1426 = vpack.c.b16 %v1303, %v1302
  %v1427 = vpack.c.b16 %v1305, %v1304
  %v1428 = vpack.c.b16 %v1307, %v1306
  %v1429 = vpack.c.b16 %v1309, %v1308
  %v1430 = vpack.c.b16 %v1311, %v1310
  %v1431 = vpack.c.b16 %v1313, %v1312
  %v1432 = vpack.c.b16 %v1315, %v1314
  %v1433 = vpack.c.b16 %v1317, %v1316
  %v1434 = vpack.c.b16 %v1319, %v1318
  %v1435 = vpack.c.b16 %v1321, %v1320
  %v1436 = vpack.c.b16 %v1323, %v1322
  %v1437 = vpack.c.b16 %v1325, %v1324
  %v1438 = vpack.c.b16 %v1327, %v1326
  %v1439 = vpack.c.b16 %v1329, %v1328
  %v1440 = vpack.c.b16 %v1331, %v1330
  %v1441 = vpack.c.b16 %v1333, %v1332
  %vm1550 = vcmask 523264
  %v1552 = vsel %vm1550, %v699, 0
  %v1555 = vsel %vm1550, %v713, 0
  %v1558 = vsel %vm1550, %v727, 0
  %v1561 = vsel %vm1550, %v741, 0
  %v1564 = vsel %vm1550, %v755, 0
  %v1567 = vsel %vm1550, %v769, 0
  %v1570 = vsel %vm1550, %v783, 0
  %v1573 = vsel %vm1550, %v797, 0
  %1575 = vmatprep.subr.bf16.mxu0 0
  %1576 = vmatpush1.bf16.msra.mxu0 %v1341
  %1577 = vmatprep.subr.bf16.mxu0 0
  %1578 = vmatpush1.bf16.msra.mxu0 %v1340
  %1579 = vmatprep.subr.bf16.mxu0 0
  %1580 = vmatpush1.bf16.msra.mxu0 %v1339
  %1581 = vmatprep.subr.bf16.mxu0 0
  %1582 = vmatpush1.bf16.msra.mxu0 %v1338
  %1583 = vmatprep.subr.bf16.mxu0 0
  %1584 = vmatpush1.bf16.msra.mxu0 %v1337
  %1585 = vmatprep.subr.bf16.mxu0 0
  %1586 = vmatpush1.bf16.msra.mxu0 %v1336
  %1587 = vmatprep.subr.bf16.mxu0 0
  %1588 = vmatpush1.bf16.msra.mxu0 %v1335
  %1589 = vmatprep.subr.bf16.mxu0 0
  %1590 = vmatpush1.bf16.msra.mxu0 %v1334
  %1591 = vmatprep.subr.bf16.mxu0 0
  %1592 = vmatpush2.bf16.msra.mxu0 %v1349
  %1593 = vmatprep.subr.bf16.mxu0 0
  %1594 = vmatpush2.bf16.msra.mxu0 %v1348
  %1595 = vmatprep.subr.bf16.mxu0 0
  %1596 = vmatpush2.bf16.msra.mxu0 %v1347
  %1597 = vmatprep.subr.bf16.mxu0 0
  %1598 = vmatpush2.bf16.msra.mxu0 %v1346
  %1599 = vmatprep.subr.bf16.mxu0 0
  %1600 = vmatpush2.bf16.msra.mxu0 %v1345
  %1601 = vmatprep.subr.bf16.mxu0 0
  %1602 = vmatpush2.bf16.msra.mxu0 %v1344
  %1603 = vmatprep.subr.bf16.mxu0 0
  %1604 = vmatpush2.bf16.msra.mxu0 %v1343
  %1605 = vmatprep.subr.bf16.mxu0 0
  %1606 = vmatpush2.bf16.msra.mxu0 %v1342
  %1607 = vmatprep.mubr.bf16.mxu0 %v687
  %1608 = vmatmul.mubr.bf16.gmra.mxu0 %v686
  %v1609 = vpop.f32.mrf.mxu0
  %v1610 = vadd.f32 %v348, %v1609
  %v1611 = vpop.f32.mrf.mxu0
  %v1612 = vpop.f32.mrf.mxu0
  %v1613 = vadd.f32 %v348, %v1612
  %v1614 = vpop.f32.mrf.mxu0
  %1615 = vmatprep.mubr.bf16.mxu0 %v701
  %1616 = vmatmul.mubr.bf16.gmra.mxu0 %v700
  %v1617 = vpop.f32.mrf.mxu0
  %v1618 = vadd.f32 %v348, %v1617
  %v1619 = vpop.f32.mrf.mxu0
  %v1620 = vpop.f32.mrf.mxu0
  %v1621 = vadd.f32 %v348, %v1620
  %v1622 = vpop.f32.mrf.mxu0
  %1623 = vmatprep.mubr.bf16.mxu0 %v715
  %1624 = vmatmul.mubr.bf16.gmra.mxu0 %v714
  %v1625 = vpop.f32.mrf.mxu0
  %v1626 = vadd.f32 %v348, %v1625
  %v1627 = vpop.f32.mrf.mxu0
  %v1628 = vpop.f32.mrf.mxu0
  %v1629 = vadd.f32 %v348, %v1628
  %v1630 = vpop.f32.mrf.mxu0
  %1631 = vmatprep.mubr.bf16.mxu0 %v729
  %1632 = vmatmul.mubr.bf16.gmra.mxu0 %v728
  %v1633 = vpop.f32.mrf.mxu0
  %v1634 = vadd.f32 %v348, %v1633
  %v1635 = vpop.f32.mrf.mxu0
  %v1636 = vpop.f32.mrf.mxu0
  %v1637 = vadd.f32 %v348, %v1636
  %v1638 = vpop.f32.mrf.mxu0
  %1639 = vmatprep.mubr.bf16.mxu0 %v743
  %1640 = vmatmul.mubr.bf16.gmra.mxu0 %v742
  %v1641 = vpop.f32.mrf.mxu0
  %v1642 = vadd.f32 %v348, %v1641
  %v1643 = vpop.f32.mrf.mxu0
  %v1644 = vpop.f32.mrf.mxu0
  %v1645 = vadd.f32 %v348, %v1644
  %v1646 = vpop.f32.mrf.mxu0
  %1647 = vmatprep.mubr.bf16.mxu0 %v757
  %1648 = vmatmul.mubr.bf16.gmra.mxu0 %v756
  %v1649 = vpop.f32.mrf.mxu0
  %v1650 = vadd.f32 %v348, %v1649
  %v1651 = vpop.f32.mrf.mxu0
  %v1652 = vpop.f32.mrf.mxu0
  %v1653 = vadd.f32 %v348, %v1652
  %v1654 = vpop.f32.mrf.mxu0
  %1655 = vmatprep.mubr.bf16.mxu0 %v771
  %1656 = vmatmul.mubr.bf16.gmra.mxu0 %v770
  %v1657 = vpop.f32.mrf.mxu0
  %v1658 = vadd.f32 %v348, %v1657
  %v1659 = vpop.f32.mrf.mxu0
  %v1660 = vpop.f32.mrf.mxu0
  %v1661 = vadd.f32 %v348, %v1660
  %v1662 = vpop.f32.mrf.mxu0
  %1663 = vmatprep.mubr.bf16.mxu0 %v785
  %1664 = vmatmul.mubr.bf16.gmra.mxu0 %v784
  %v1665 = vpop.f32.mrf.mxu0
  %v1666 = vadd.f32 %v348, %v1665
  %v1667 = vpop.f32.mrf.mxu0
  %v1668 = vpop.f32.mrf.mxu0
  %v1669 = vadd.f32 %v348, %v1668
  %v1670 = vpop.f32.mrf.mxu0
  %1671 = vdwg.mxu0
  %1672 = vmatprep.subr.bf16.mxu0 0
  %1673 = vmatpush1.bf16.msra.mxu0 %v1357
  %1674 = vmatprep.subr.bf16.mxu0 0
  %1675 = vmatpush1.bf16.msra.mxu0 %v1356
  %1676 = vmatprep.subr.bf16.mxu0 0
  %1677 = vmatpush1.bf16.msra.mxu0 %v1355
  %1678 = vmatprep.subr.bf16.mxu0 0
  %1679 = vmatpush1.bf16.msra.mxu0 %v1354
  %1680 = vmatprep.subr.bf16.mxu0 0
  %1681 = vmatpush1.bf16.msra.mxu0 %v1353
  %1682 = vmatprep.subr.bf16.mxu0 0
  %1683 = vmatpush1.bf16.msra.mxu0 %v1352
  %1684 = vmatprep.subr.bf16.mxu0 0
  %1685 = vmatpush1.bf16.msra.mxu0 %v1351
  %1686 = vmatprep.subr.bf16.mxu0 0
  %1687 = vmatpush1.bf16.msra.mxu0 %v1350
  %1688 = vmatprep.subr.bf16.mxu0 0
  %1689 = vmatpush2.bf16.msra.mxu0 %v1365
  %1690 = vmatprep.subr.bf16.mxu0 0
  %1691 = vmatpush2.bf16.msra.mxu0 %v1364
  %1692 = vmatprep.subr.bf16.mxu0 0
  %1693 = vmatpush2.bf16.msra.mxu0 %v1363
  %1694 = vmatprep.subr.bf16.mxu0 0
  %1695 = vmatpush2.bf16.msra.mxu0 %v1362
  %1696 = vmatprep.subr.bf16.mxu0 0
  %1697 = vmatpush2.bf16.msra.mxu0 %v1361
  %1698 = vmatprep.subr.bf16.mxu0 0
  %1699 = vmatpush2.bf16.msra.mxu0 %v1360
  %1700 = vmatprep.subr.bf16.mxu0 0
  %1701 = vmatpush2.bf16.msra.mxu0 %v1359
  %1702 = vmatprep.subr.bf16.mxu0 0
  %1703 = vmatpush2.bf16.msra.mxu0 %v1358
  %1704 = vmatprep.mubr.bf16.mxu0 %v689
  %1705 = vmatmul.mubr.bf16.gmra.mxu0 %v688
  %v1706 = vpop.f32.mrf.mxu0
  %v1707 = vadd.f32 %v1610, %v1706
  %v1708 = vpop.f32.mrf.mxu0
  %v1709 = vpop.f32.mrf.mxu0
  %v1710 = vadd.f32 %v1613, %v1709
  %v1711 = vpop.f32.mrf.mxu0
  %1712 = vmatprep.mubr.bf16.mxu0 %v703
  %1713 = vmatmul.mubr.bf16.gmra.mxu0 %v702
  %v1714 = vpop.f32.mrf.mxu0
  %v1715 = vadd.f32 %v1618, %v1714
  %v1716 = vpop.f32.mrf.mxu0
  %v1717 = vpop.f32.mrf.mxu0
  %v1718 = vadd.f32 %v1621, %v1717
  %v1719 = vpop.f32.mrf.mxu0
  %1720 = vmatprep.mubr.bf16.mxu0 %v717
  %1721 = vmatmul.mubr.bf16.gmra.mxu0 %v716
  %v1722 = vpop.f32.mrf.mxu0
  %v1723 = vadd.f32 %v1626, %v1722
  %v1724 = vpop.f32.mrf.mxu0
  %v1725 = vpop.f32.mrf.mxu0
  %v1726 = vadd.f32 %v1629, %v1725
  %v1727 = vpop.f32.mrf.mxu0
  %1728 = vmatprep.mubr.bf16.mxu0 %v731
  %1729 = vmatmul.mubr.bf16.gmra.mxu0 %v730
  %v1730 = vpop.f32.mrf.mxu0
  %v1731 = vadd.f32 %v1634, %v1730
  %v1732 = vpop.f32.mrf.mxu0
  %v1733 = vpop.f32.mrf.mxu0
  %v1734 = vadd.f32 %v1637, %v1733
  %v1735 = vpop.f32.mrf.mxu0
  %1736 = vmatprep.mubr.bf16.mxu0 %v745
  %1737 = vmatmul.mubr.bf16.gmra.mxu0 %v744
  %v1738 = vpop.f32.mrf.mxu0
  %v1739 = vadd.f32 %v1642, %v1738
  %v1740 = vpop.f32.mrf.mxu0
  %v1741 = vpop.f32.mrf.mxu0
  %v1742 = vadd.f32 %v1645, %v1741
  %v1743 = vpop.f32.mrf.mxu0
  %1744 = vmatprep.mubr.bf16.mxu0 %v759
  %1745 = vmatmul.mubr.bf16.gmra.mxu0 %v758
  %v1746 = vpop.f32.mrf.mxu0
  %v1747 = vadd.f32 %v1650, %v1746
  %v1748 = vpop.f32.mrf.mxu0
  %v1749 = vpop.f32.mrf.mxu0
  %v1750 = vadd.f32 %v1653, %v1749
  %v1751 = vpop.f32.mrf.mxu0
  %1752 = vmatprep.mubr.bf16.mxu0 %v773
  %1753 = vmatmul.mubr.bf16.gmra.mxu0 %v772
  %v1754 = vpop.f32.mrf.mxu0
  %v1755 = vadd.f32 %v1658, %v1754
  %v1756 = vpop.f32.mrf.mxu0
  %v1757 = vpop.f32.mrf.mxu0
  %v1758 = vadd.f32 %v1661, %v1757
  %v1759 = vpop.f32.mrf.mxu0
  %1760 = vmatprep.mubr.bf16.mxu0 %v787
  %1761 = vmatmul.mubr.bf16.gmra.mxu0 %v786
  %v1762 = vpop.f32.mrf.mxu0
  %v1763 = vadd.f32 %v1666, %v1762
  %v1764 = vpop.f32.mrf.mxu0
  %v1765 = vpop.f32.mrf.mxu0
  %v1766 = vadd.f32 %v1669, %v1765
  %v1767 = vpop.f32.mrf.mxu0
  %1768 = vdwg.mxu0
  %1769 = vmatprep.subr.bf16.mxu0 0
  %1770 = vmatpush1.bf16.msra.mxu0 %v1373
  %1771 = vmatprep.subr.bf16.mxu0 0
  %1772 = vmatpush1.bf16.msra.mxu0 %v1372
  %1773 = vmatprep.subr.bf16.mxu0 0
  %1774 = vmatpush1.bf16.msra.mxu0 %v1371
  %1775 = vmatprep.subr.bf16.mxu0 0
  %1776 = vmatpush1.bf16.msra.mxu0 %v1370
  %1777 = vmatprep.subr.bf16.mxu0 0
  %1778 = vmatpush1.bf16.msra.mxu0 %v1369
  %1779 = vmatprep.subr.bf16.mxu0 0
  %1780 = vmatpush1.bf16.msra.mxu0 %v1368
  %1781 = vmatprep.subr.bf16.mxu0 0
  %1782 = vmatpush1.bf16.msra.mxu0 %v1367
  %1783 = vmatprep.subr.bf16.mxu0 0
  %1784 = vmatpush1.bf16.msra.mxu0 %v1366
  %1785 = vmatprep.subr.bf16.mxu0 0
  %1786 = vmatpush2.bf16.msra.mxu0 %v1381
  %1787 = vmatprep.subr.bf16.mxu0 0
  %1788 = vmatpush2.bf16.msra.mxu0 %v1380
  %1789 = vmatprep.subr.bf16.mxu0 0
  %1790 = vmatpush2.bf16.msra.mxu0 %v1379
  %1791 = vmatprep.subr.bf16.mxu0 0
  %1792 = vmatpush2.bf16.msra.mxu0 %v1378
  %1793 = vmatprep.subr.bf16.mxu0 0
  %1794 = vmatpush2.bf16.msra.mxu0 %v1377
  %1795 = vmatprep.subr.bf16.mxu0 0
  %1796 = vmatpush2.bf16.msra.mxu0 %v1376
  %1797 = vmatprep.subr.bf16.mxu0 0
  %1798 = vmatpush2.bf16.msra.mxu0 %v1375
  %1799 = vmatprep.subr.bf16.mxu0 0
  %1800 = vmatpush2.bf16.msra.mxu0 %v1374
  %1801 = vmatprep.mubr.bf16.mxu0 %v691
  %1802 = vmatmul.mubr.bf16.gmra.mxu0 %v690
  %v1803 = vpop.f32.mrf.mxu0
  %v1804 = vadd.f32 %v1707, %v1803
  %v1805 = vpop.f32.mrf.mxu0
  %v1806 = vpop.f32.mrf.mxu0
  %v1807 = vadd.f32 %v1710, %v1806
  %v1808 = vpop.f32.mrf.mxu0
  %1809 = vmatprep.mubr.bf16.mxu0 %v705
  %1810 = vmatmul.mubr.bf16.gmra.mxu0 %v704
  %v1811 = vpop.f32.mrf.mxu0
  %v1812 = vadd.f32 %v1715, %v1811
  %v1813 = vpop.f32.mrf.mxu0
  %v1814 = vpop.f32.mrf.mxu0
  %v1815 = vadd.f32 %v1718, %v1814
  %v1816 = vpop.f32.mrf.mxu0
  %1817 = vmatprep.mubr.bf16.mxu0 %v719
  %1818 = vmatmul.mubr.bf16.gmra.mxu0 %v718
  %v1819 = vpop.f32.mrf.mxu0
  %v1820 = vadd.f32 %v1723, %v1819
  %v1821 = vpop.f32.mrf.mxu0
  %v1822 = vpop.f32.mrf.mxu0
  %v1823 = vadd.f32 %v1726, %v1822
  %v1824 = vpop.f32.mrf.mxu0
  %1825 = vmatprep.mubr.bf16.mxu0 %v733
  %1826 = vmatmul.mubr.bf16.gmra.mxu0 %v732
  %v1827 = vpop.f32.mrf.mxu0
  %v1828 = vadd.f32 %v1731, %v1827
  %v1829 = vpop.f32.mrf.mxu0
  %v1830 = vpop.f32.mrf.mxu0
  %v1831 = vadd.f32 %v1734, %v1830
  %v1832 = vpop.f32.mrf.mxu0
  %1833 = vmatprep.mubr.bf16.mxu0 %v747
  %1834 = vmatmul.mubr.bf16.gmra.mxu0 %v746
  %v1835 = vpop.f32.mrf.mxu0
  %v1836 = vadd.f32 %v1739, %v1835
  %v1837 = vpop.f32.mrf.mxu0
  %v1838 = vpop.f32.mrf.mxu0
  %v1839 = vadd.f32 %v1742, %v1838
  %v1840 = vpop.f32.mrf.mxu0
  %1841 = vmatprep.mubr.bf16.mxu0 %v761
  %1842 = vmatmul.mubr.bf16.gmra.mxu0 %v760
  %v1843 = vpop.f32.mrf.mxu0
  %v1844 = vadd.f32 %v1747, %v1843
  %v1845 = vpop.f32.mrf.mxu0
  %v1846 = vpop.f32.mrf.mxu0
  %v1847 = vadd.f32 %v1750, %v1846
  %v1848 = vpop.f32.mrf.mxu0
  %1849 = vmatprep.mubr.bf16.mxu0 %v775
  %1850 = vmatmul.mubr.bf16.gmra.mxu0 %v774
  %v1851 = vpop.f32.mrf.mxu0
  %v1852 = vadd.f32 %v1755, %v1851
  %v1853 = vpop.f32.mrf.mxu0
  %v1854 = vpop.f32.mrf.mxu0
  %v1855 = vadd.f32 %v1758, %v1854
  %v1856 = vpop.f32.mrf.mxu0
  %1857 = vmatprep.mubr.bf16.mxu0 %v789
  %1858 = vmatmul.mubr.bf16.gmra.mxu0 %v788
  %v1859 = vpop.f32.mrf.mxu0
  %v1860 = vadd.f32 %v1763, %v1859
  %v1861 = vpop.f32.mrf.mxu0
  %v1862 = vpop.f32.mrf.mxu0
  %v1863 = vadd.f32 %v1766, %v1862
  %v1864 = vpop.f32.mrf.mxu0
  %1865 = vdwg.mxu0
  %1866 = vmatprep.subr.bf16.mxu0 0
  %1867 = vmatpush1.bf16.msra.mxu0 %v1389
  %1868 = vmatprep.subr.bf16.mxu0 0
  %1869 = vmatpush1.bf16.msra.mxu0 %v1388
  %1870 = vmatprep.subr.bf16.mxu0 0
  %1871 = vmatpush1.bf16.msra.mxu0 %v1387
  %1872 = vmatprep.subr.bf16.mxu0 0
  %1873 = vmatpush1.bf16.msra.mxu0 %v1386
  %1874 = vmatprep.subr.bf16.mxu0 0
  %1875 = vmatpush1.bf16.msra.mxu0 %v1385
  %1876 = vmatprep.subr.bf16.mxu0 0
  %1877 = vmatpush1.bf16.msra.mxu0 %v1384
  %1878 = vmatprep.subr.bf16.mxu0 0
  %1879 = vmatpush1.bf16.msra.mxu0 %v1383
  %1880 = vmatprep.subr.bf16.mxu0 0
  %1881 = vmatpush1.bf16.msra.mxu0 %v1382
  %1882 = vmatprep.subr.bf16.mxu0 0
  %1883 = vmatpush2.bf16.msra.mxu0 %v1397
  %1884 = vmatprep.subr.bf16.mxu0 0
  %1885 = vmatpush2.bf16.msra.mxu0 %v1396
  %1886 = vmatprep.subr.bf16.mxu0 0
  %1887 = vmatpush2.bf16.msra.mxu0 %v1395
  %1888 = vmatprep.subr.bf16.mxu0 0
  %1889 = vmatpush2.bf16.msra.mxu0 %v1394
  %1890 = vmatprep.subr.bf16.mxu0 0
  %1891 = vmatpush2.bf16.msra.mxu0 %v1393
  %1892 = vmatprep.subr.bf16.mxu0 0
  %1893 = vmatpush2.bf16.msra.mxu0 %v1392
  %1894 = vmatprep.subr.bf16.mxu0 0
  %1895 = vmatpush2.bf16.msra.mxu0 %v1391
  %1896 = vmatprep.subr.bf16.mxu0 0
  %1897 = vmatpush2.bf16.msra.mxu0 %v1390
  %1898 = vmatprep.mubr.bf16.mxu0 %v693
  %1899 = vmatmul.mubr.bf16.gmra.mxu0 %v692
  %v1900 = vpop.f32.mrf.mxu0
  %v1901 = vadd.f32 %v1804, %v1900
  %v1902 = vpop.f32.mrf.mxu0
  %v1903 = vpop.f32.mrf.mxu0
  %v1904 = vadd.f32 %v1807, %v1903
  %v1905 = vpop.f32.mrf.mxu0
  %1906 = vmatprep.mubr.bf16.mxu0 %v707
  %1907 = vmatmul.mubr.bf16.gmra.mxu0 %v706
  %v1908 = vpop.f32.mrf.mxu0
  %v1909 = vadd.f32 %v1812, %v1908
  %v1910 = vpop.f32.mrf.mxu0
  %v1911 = vpop.f32.mrf.mxu0
  %v1912 = vadd.f32 %v1815, %v1911
  %v1913 = vpop.f32.mrf.mxu0
  %1914 = vmatprep.mubr.bf16.mxu0 %v721
  %1915 = vmatmul.mubr.bf16.gmra.mxu0 %v720
  %v1916 = vpop.f32.mrf.mxu0
  %v1917 = vadd.f32 %v1820, %v1916
  %v1918 = vpop.f32.mrf.mxu0
  %v1919 = vpop.f32.mrf.mxu0
  %v1920 = vadd.f32 %v1823, %v1919
  %v1921 = vpop.f32.mrf.mxu0
  %1922 = vmatprep.mubr.bf16.mxu0 %v735
  %1923 = vmatmul.mubr.bf16.gmra.mxu0 %v734
  %v1924 = vpop.f32.mrf.mxu0
  %v1925 = vadd.f32 %v1828, %v1924
  %v1926 = vpop.f32.mrf.mxu0
  %v1927 = vpop.f32.mrf.mxu0
  %v1928 = vadd.f32 %v1831, %v1927
  %v1929 = vpop.f32.mrf.mxu0
  %1930 = vmatprep.mubr.bf16.mxu0 %v749
  %1931 = vmatmul.mubr.bf16.gmra.mxu0 %v748
  %v1932 = vpop.f32.mrf.mxu0
  %v1933 = vadd.f32 %v1836, %v1932
  %v1934 = vpop.f32.mrf.mxu0
  %v1935 = vpop.f32.mrf.mxu0
  %v1936 = vadd.f32 %v1839, %v1935
  %v1937 = vpop.f32.mrf.mxu0
  %1938 = vmatprep.mubr.bf16.mxu0 %v763
  %1939 = vmatmul.mubr.bf16.gmra.mxu0 %v762
  %v1940 = vpop.f32.mrf.mxu0
  %v1941 = vadd.f32 %v1844, %v1940
  %v1942 = vpop.f32.mrf.mxu0
  %v1943 = vpop.f32.mrf.mxu0
  %v1944 = vadd.f32 %v1847, %v1943
  %v1945 = vpop.f32.mrf.mxu0
  %1946 = vmatprep.mubr.bf16.mxu0 %v777
  %1947 = vmatmul.mubr.bf16.gmra.mxu0 %v776
  %v1948 = vpop.f32.mrf.mxu0
  %v1949 = vadd.f32 %v1852, %v1948
  %v1950 = vpop.f32.mrf.mxu0
  %v1951 = vpop.f32.mrf.mxu0
  %v1952 = vadd.f32 %v1855, %v1951
  %v1953 = vpop.f32.mrf.mxu0
  %1954 = vmatprep.mubr.bf16.mxu0 %v791
  %1955 = vmatmul.mubr.bf16.gmra.mxu0 %v790
  %v1956 = vpop.f32.mrf.mxu0
  %v1957 = vadd.f32 %v1860, %v1956
  %v1958 = vpop.f32.mrf.mxu0
  %v1959 = vpop.f32.mrf.mxu0
  %v1960 = vadd.f32 %v1863, %v1959
  %v1961 = vpop.f32.mrf.mxu0
  %1962 = vdwg.mxu0
  %1963 = vmatprep.subr.bf16.mxu0 0
  %1964 = vmatpush1.bf16.msra.mxu0 %v1405
  %1965 = vmatprep.subr.bf16.mxu0 0
  %1966 = vmatpush1.bf16.msra.mxu0 %v1404
  %1967 = vmatprep.subr.bf16.mxu0 0
  %1968 = vmatpush1.bf16.msra.mxu0 %v1403
  %1969 = vmatprep.subr.bf16.mxu0 0
  %1970 = vmatpush1.bf16.msra.mxu0 %v1402
  %1971 = vmatprep.subr.bf16.mxu0 0
  %1972 = vmatpush1.bf16.msra.mxu0 %v1401
  %1973 = vmatprep.subr.bf16.mxu0 0
  %1974 = vmatpush1.bf16.msra.mxu0 %v1400
  %1975 = vmatprep.subr.bf16.mxu0 0
  %1976 = vmatpush1.bf16.msra.mxu0 %v1399
  %1977 = vmatprep.subr.bf16.mxu0 0
  %1978 = vmatpush1.bf16.msra.mxu0 %v1398
  %1979 = vmatprep.subr.bf16.mxu0 0
  %1980 = vmatpush2.bf16.msra.mxu0 %v1413
  %1981 = vmatprep.subr.bf16.mxu0 0
  %1982 = vmatpush2.bf16.msra.mxu0 %v1412
  %1983 = vmatprep.subr.bf16.mxu0 0
  %1984 = vmatpush2.bf16.msra.mxu0 %v1411
  %1985 = vmatprep.subr.bf16.mxu0 0
  %1986 = vmatpush2.bf16.msra.mxu0 %v1410
  %1987 = vmatprep.subr.bf16.mxu0 0
  %1988 = vmatpush2.bf16.msra.mxu0 %v1409
  %1989 = vmatprep.subr.bf16.mxu0 0
  %1990 = vmatpush2.bf16.msra.mxu0 %v1408
  %1991 = vmatprep.subr.bf16.mxu0 0
  %1992 = vmatpush2.bf16.msra.mxu0 %v1407
  %1993 = vmatprep.subr.bf16.mxu0 0
  %1994 = vmatpush2.bf16.msra.mxu0 %v1406
  %1995 = vmatprep.mubr.bf16.mxu0 %v695
  %1996 = vmatmul.mubr.bf16.gmra.mxu0 %v694
  %v1997 = vpop.f32.mrf.mxu0
  %v1998 = vadd.f32 %v1901, %v1997
  %v1999 = vpop.f32.mrf.mxu0
  %v2000 = vpop.f32.mrf.mxu0
  %v2001 = vadd.f32 %v1904, %v2000
  %v2002 = vpop.f32.mrf.mxu0
  %2003 = vmatprep.mubr.bf16.mxu0 %v709
  %2004 = vmatmul.mubr.bf16.gmra.mxu0 %v708
  %v2005 = vpop.f32.mrf.mxu0
  %v2006 = vadd.f32 %v1909, %v2005
  %v2007 = vpop.f32.mrf.mxu0
  %v2008 = vpop.f32.mrf.mxu0
  %v2009 = vadd.f32 %v1912, %v2008
  %v2010 = vpop.f32.mrf.mxu0
  %2011 = vmatprep.mubr.bf16.mxu0 %v723
  %2012 = vmatmul.mubr.bf16.gmra.mxu0 %v722
  %v2013 = vpop.f32.mrf.mxu0
  %v2014 = vadd.f32 %v1917, %v2013
  %v2015 = vpop.f32.mrf.mxu0
  %v2016 = vpop.f32.mrf.mxu0
  %v2017 = vadd.f32 %v1920, %v2016
  %v2018 = vpop.f32.mrf.mxu0
  %2019 = vmatprep.mubr.bf16.mxu0 %v737
  %2020 = vmatmul.mubr.bf16.gmra.mxu0 %v736
  %v2021 = vpop.f32.mrf.mxu0
  %v2022 = vadd.f32 %v1925, %v2021
  %v2023 = vpop.f32.mrf.mxu0
  %v2024 = vpop.f32.mrf.mxu0
  %v2025 = vadd.f32 %v1928, %v2024
  %v2026 = vpop.f32.mrf.mxu0
  %2027 = vmatprep.mubr.bf16.mxu0 %v751
  %2028 = vmatmul.mubr.bf16.gmra.mxu0 %v750
  %v2029 = vpop.f32.mrf.mxu0
  %v2030 = vadd.f32 %v1933, %v2029
  %v2031 = vpop.f32.mrf.mxu0
  %v2032 = vpop.f32.mrf.mxu0
  %v2033 = vadd.f32 %v1936, %v2032
  %v2034 = vpop.f32.mrf.mxu0
  %2035 = vmatprep.mubr.bf16.mxu0 %v765
  %2036 = vmatmul.mubr.bf16.gmra.mxu0 %v764
  %v2037 = vpop.f32.mrf.mxu0
  %v2038 = vadd.f32 %v1941, %v2037
  %v2039 = vpop.f32.mrf.mxu0
  %v2040 = vpop.f32.mrf.mxu0
  %v2041 = vadd.f32 %v1944, %v2040
  %v2042 = vpop.f32.mrf.mxu0
  %2043 = vmatprep.mubr.bf16.mxu0 %v779
  %2044 = vmatmul.mubr.bf16.gmra.mxu0 %v778
  %v2045 = vpop.f32.mrf.mxu0
  %v2046 = vadd.f32 %v1949, %v2045
  %v2047 = vpop.f32.mrf.mxu0
  %v2048 = vpop.f32.mrf.mxu0
  %v2049 = vadd.f32 %v1952, %v2048
  %v2050 = vpop.f32.mrf.mxu0
  %2051 = vmatprep.mubr.bf16.mxu0 %v793
  %2052 = vmatmul.mubr.bf16.gmra.mxu0 %v792
  %v2053 = vpop.f32.mrf.mxu0
  %v2054 = vadd.f32 %v1957, %v2053
  %v2055 = vpop.f32.mrf.mxu0
  %v2056 = vpop.f32.mrf.mxu0
  %v2057 = vadd.f32 %v1960, %v2056
  %v2058 = vpop.f32.mrf.mxu0
  %2059 = vdwg.mxu0
  %2060 = vmatprep.subr.bf16.mxu0 0
  %2061 = vmatpush1.bf16.msra.mxu0 %v1421
  %2062 = vmatprep.subr.bf16.mxu0 0
  %2063 = vmatpush1.bf16.msra.mxu0 %v1420
  %2064 = vmatprep.subr.bf16.mxu0 0
  %2065 = vmatpush1.bf16.msra.mxu0 %v1419
  %2066 = vmatprep.subr.bf16.mxu0 0
  %2067 = vmatpush1.bf16.msra.mxu0 %v1418
  %2068 = vmatprep.subr.bf16.mxu0 0
  %2069 = vmatpush1.bf16.msra.mxu0 %v1417
  %2070 = vmatprep.subr.bf16.mxu0 0
  %2071 = vmatpush1.bf16.msra.mxu0 %v1416
  %2072 = vmatprep.subr.bf16.mxu0 0
  %2073 = vmatpush1.bf16.msra.mxu0 %v1415
  %2074 = vmatprep.subr.bf16.mxu0 0
  %2075 = vmatpush1.bf16.msra.mxu0 %v1414
  %2076 = vmatprep.subr.bf16.mxu0 0
  %2077 = vmatpush2.bf16.msra.mxu0 %v1429
  %2078 = vmatprep.subr.bf16.mxu0 0
  %2079 = vmatpush2.bf16.msra.mxu0 %v1428
  %2080 = vmatprep.subr.bf16.mxu0 0
  %2081 = vmatpush2.bf16.msra.mxu0 %v1427
  %2082 = vmatprep.subr.bf16.mxu0 0
  %2083 = vmatpush2.bf16.msra.mxu0 %v1426
  %2084 = vmatprep.subr.bf16.mxu0 0
  %2085 = vmatpush2.bf16.msra.mxu0 %v1425
  %2086 = vmatprep.subr.bf16.mxu0 0
  %2087 = vmatpush2.bf16.msra.mxu0 %v1424
  %2088 = vmatprep.subr.bf16.mxu0 0
  %2089 = vmatpush2.bf16.msra.mxu0 %v1423
  %2090 = vmatprep.subr.bf16.mxu0 0
  %2091 = vmatpush2.bf16.msra.mxu0 %v1422
  %2092 = vmatprep.mubr.bf16.mxu0 %v697
  %2093 = vmatmul.mubr.bf16.gmra.mxu0 %v696
  %v2094 = vpop.f32.mrf.mxu0
  %v2095 = vadd.f32 %v1998, %v2094
  %v2096 = vpop.f32.mrf.mxu0
  %v2097 = vpop.f32.mrf.mxu0
  %v2098 = vadd.f32 %v2001, %v2097
  %v2099 = vpop.f32.mrf.mxu0
  %2100 = vmatprep.mubr.bf16.mxu0 %v711
  %2101 = vmatmul.mubr.bf16.gmra.mxu0 %v710
  %v2102 = vpop.f32.mrf.mxu0
  %v2103 = vadd.f32 %v2006, %v2102
  %v2104 = vpop.f32.mrf.mxu0
  %v2105 = vpop.f32.mrf.mxu0
  %v2106 = vadd.f32 %v2009, %v2105
  %v2107 = vpop.f32.mrf.mxu0
  %2108 = vmatprep.mubr.bf16.mxu0 %v725
  %2109 = vmatmul.mubr.bf16.gmra.mxu0 %v724
  %v2110 = vpop.f32.mrf.mxu0
  %v2111 = vadd.f32 %v2014, %v2110
  %v2112 = vpop.f32.mrf.mxu0
  %v2113 = vpop.f32.mrf.mxu0
  %v2114 = vadd.f32 %v2017, %v2113
  %v2115 = vpop.f32.mrf.mxu0
  %2116 = vmatprep.mubr.bf16.mxu0 %v739
  %2117 = vmatmul.mubr.bf16.gmra.mxu0 %v738
  %v2118 = vpop.f32.mrf.mxu0
  %v2119 = vadd.f32 %v2022, %v2118
  %v2120 = vpop.f32.mrf.mxu0
  %v2121 = vpop.f32.mrf.mxu0
  %v2122 = vadd.f32 %v2025, %v2121
  %v2123 = vpop.f32.mrf.mxu0
  %2124 = vmatprep.mubr.bf16.mxu0 %v753
  %2125 = vmatmul.mubr.bf16.gmra.mxu0 %v752
  %v2126 = vpop.f32.mrf.mxu0
  %v2127 = vadd.f32 %v2030, %v2126
  %v2128 = vpop.f32.mrf.mxu0
  %v2129 = vpop.f32.mrf.mxu0
  %v2130 = vadd.f32 %v2033, %v2129
  %v2131 = vpop.f32.mrf.mxu0
  %2132 = vmatprep.mubr.bf16.mxu0 %v767
  %2133 = vmatmul.mubr.bf16.gmra.mxu0 %v766
  %v2134 = vpop.f32.mrf.mxu0
  %v2135 = vadd.f32 %v2038, %v2134
  %v2136 = vpop.f32.mrf.mxu0
  %v2137 = vpop.f32.mrf.mxu0
  %v2138 = vadd.f32 %v2041, %v2137
  %v2139 = vpop.f32.mrf.mxu0
  %2140 = vmatprep.mubr.bf16.mxu0 %v781
  %2141 = vmatmul.mubr.bf16.gmra.mxu0 %v780
  %v2142 = vpop.f32.mrf.mxu0
  %v2143 = vadd.f32 %v2046, %v2142
  %v2144 = vpop.f32.mrf.mxu0
  %v2145 = vpop.f32.mrf.mxu0
  %v2146 = vadd.f32 %v2049, %v2145
  %v2147 = vpop.f32.mrf.mxu0
  %2148 = vmatprep.mubr.bf16.mxu0 %v795
  %2149 = vmatmul.mubr.bf16.gmra.mxu0 %v794
  %v2150 = vpop.f32.mrf.mxu0
  %v2151 = vadd.f32 %v2054, %v2150
  %v2152 = vpop.f32.mrf.mxu0
  %v2153 = vpop.f32.mrf.mxu0
  %v2154 = vadd.f32 %v2057, %v2153
  %v2155 = vpop.f32.mrf.mxu0
  %2156 = vdwg.mxu0
  %2157 = vmatprep.subr.bf16.mxu0 0
  %2158 = vmatpush1.bf16.msra.mxu0 %v1437
  %2159 = vmatprep.subr.bf16.mxu0 0
  %2160 = vmatpush1.bf16.msra.mxu0 %v1436
  %2161 = vmatprep.subr.bf16.mxu0 0
  %2162 = vmatpush1.bf16.msra.mxu0 %v1435
  %2163 = vmatprep.subr.bf16.mxu0 0
  %2164 = vmatpush1.bf16.msra.mxu0 %v1434
  %2165 = vmatprep.subr.bf16.mxu0 0
  %2166 = vmatpush1.bf16.msra.mxu0 %v1433
  %2167 = vmatprep.subr.bf16.mxu0 0
  %2168 = vmatpush1.bf16.msra.mxu0 %v1432
  %2169 = vmatprep.subr.bf16.mxu0 0
  %2170 = vmatpush1.bf16.msra.mxu0 %v1431
  %2171 = vmatprep.subr.bf16.mxu0 0
  %2172 = vmatpush1.bf16.msra.mxu0 %v1430
  %2173 = vmatprep.subr.bf16.mxu0 0
  %2174 = vmatpush2.bf16.msra.mxu0 0
  %2175 = vmatprep.subr.bf16.mxu0 0
  %2176 = vmatpush2.bf16.msra.mxu0 0
  %2177 = vmatprep.subr.bf16.mxu0 0
  %2178 = vmatpush2.bf16.msra.mxu0 0
  %2179 = vmatprep.subr.bf16.mxu0 0
  %2180 = vmatpush2.bf16.msra.mxu0 0
  %2181 = vmatprep.subr.bf16.mxu0 0
  %2182 = vmatpush2.bf16.msra.mxu0 %v1441
  %2183 = vmatprep.subr.bf16.mxu0 0
  %2184 = vmatpush2.bf16.msra.mxu0 %v1440
  %2185 = vmatprep.subr.bf16.mxu0 0
  %2186 = vmatpush2.bf16.msra.mxu0 %v1439
  %2187 = vmatprep.subr.bf16.mxu0 0
  %2188 = vmatpush2.bf16.msra.mxu0 %v1438
  %2189 = vmatprep.mubr.bf16.mxu0 %v1552
  %2190 = vmatmul.mubr.bf16.gmra.mxu0 %v698
  %v2191 = vpop.f32.mrf.mxu0
  %v2192 = vadd.f32 %v2095, %v2191
  %v2193 = vpop.f32.mrf.mxu0
  %v2194 = vpop.f32.mrf.mxu0
  %v2195 = vadd.f32 %v2098, %v2194
  %v2196 = vpop.f32.mrf.mxu0
  %2197 = vmatprep.mubr.bf16.mxu0 %v1555
  %2198 = vmatmul.mubr.bf16.gmra.mxu0 %v712
  %v2199 = vpop.f32.mrf.mxu0
  %v2200 = vadd.f32 %v2103, %v2199
  %v2201 = vpop.f32.mrf.mxu0
  %v2202 = vpop.f32.mrf.mxu0
  %v2203 = vadd.f32 %v2106, %v2202
  %v2204 = vpop.f32.mrf.mxu0
  %2205 = vmatprep.mubr.bf16.mxu0 %v1558
  %2206 = vmatmul.mubr.bf16.gmra.mxu0 %v726
  %v2207 = vpop.f32.mrf.mxu0
  %v2208 = vadd.f32 %v2111, %v2207
  %v2209 = vpop.f32.mrf.mxu0
  %v2210 = vpop.f32.mrf.mxu0
  %v2211 = vadd.f32 %v2114, %v2210
  %v2212 = vpop.f32.mrf.mxu0
  %2213 = vmatprep.mubr.bf16.mxu0 %v1561
  %2214 = vmatmul.mubr.bf16.gmra.mxu0 %v740
  %v2215 = vpop.f32.mrf.mxu0
  %v2216 = vadd.f32 %v2119, %v2215
  %v2217 = vpop.f32.mrf.mxu0
  %v2218 = vpop.f32.mrf.mxu0
  %v2219 = vadd.f32 %v2122, %v2218
  %v2220 = vpop.f32.mrf.mxu0
  %2221 = vmatprep.mubr.bf16.mxu0 %v1564
  %2222 = vmatmul.mubr.bf16.gmra.mxu0 %v754
  %v2223 = vpop.f32.mrf.mxu0
  %v2224 = vadd.f32 %v2127, %v2223
  %v2225 = vpop.f32.mrf.mxu0
  %v2226 = vpop.f32.mrf.mxu0
  %v2227 = vadd.f32 %v2130, %v2226
  %v2228 = vpop.f32.mrf.mxu0
  %2229 = vmatprep.mubr.bf16.mxu0 %v1567
  %2230 = vmatmul.mubr.bf16.gmra.mxu0 %v768
  %v2231 = vpop.f32.mrf.mxu0
  %v2232 = vadd.f32 %v2135, %v2231
  %v2233 = vpop.f32.mrf.mxu0
  %v2234 = vpop.f32.mrf.mxu0
  %v2235 = vadd.f32 %v2138, %v2234
  %v2236 = vpop.f32.mrf.mxu0
  %2237 = vmatprep.mubr.bf16.mxu0 %v1570
  %2238 = vmatmul.mubr.bf16.gmra.mxu0 %v782
  %v2239 = vpop.f32.mrf.mxu0
  %v2240 = vadd.f32 %v2143, %v2239
  %v2241 = vpop.f32.mrf.mxu0
  %v2242 = vpop.f32.mrf.mxu0
  %v2243 = vadd.f32 %v2146, %v2242
  %v2244 = vpop.f32.mrf.mxu0
  %2245 = vmatprep.mubr.bf16.mxu0 %v1573
  %2246 = vmatmul.mubr.bf16.gmra.mxu0 %v796
  %v2247 = vpop.f32.mrf.mxu0
  %v2248 = vadd.f32 %v2151, %v2247
  %v2249 = vpop.f32.mrf.mxu0
  %v2250 = vpop.f32.mrf.mxu0
  %v2251 = vadd.f32 %v2154, %v2250
  %v2252 = vpop.f32.mrf.mxu0
  %2253 = vdwg.mxu0
  %vm2254 = vcmp.gt.f32.partialorder %v2192, 0.0
  %vm2255 = vcmp.gt.f32.partialorder %v2195, 0.0
  %vm2256 = vcmp.gt.f32.partialorder %v2200, 0.0
  %vm2257 = vcmp.gt.f32.partialorder %v2203, 0.0
  %vm2258 = vcmp.gt.f32.partialorder %v2208, 0.0
  %vm2259 = vcmp.gt.f32.partialorder %v2211, 0.0
  %vm2260 = vcmp.gt.f32.partialorder %v2216, 0.0
  %vm2261 = vcmp.gt.f32.partialorder %v2219, 0.0
  %vm2262 = vcmp.gt.f32.partialorder %v2224, 0.0
  %vm2263 = vcmp.gt.f32.partialorder %v2227, 0.0
  %vm2264 = vcmp.gt.f32.partialorder %v2232, 0.0
  %vm2265 = vcmp.gt.f32.partialorder %v2235, 0.0
  %vm2266 = vcmp.gt.f32.partialorder %v2240, 0.0
  %vm2267 = vcmp.gt.f32.partialorder %v2243, 0.0
  %vm2268 = vcmp.gt.f32.partialorder %v2248, 0.0
  %vm2269 = vcmp.gt.f32.partialorder %v2251, 0.0
  %v2270 = vmul.f32 %v2192, 0.01
  %v2271 = vmul.f32 %v2195, 0.01
  %v2272 = vmul.f32 %v2200, 0.01
  %v2273 = vmul.f32 %v2203, 0.01
  %v2274 = vmul.f32 %v2208, 0.01
  %v2275 = vmul.f32 %v2211, 0.01
  %v2276 = vmul.f32 %v2216, 0.01
  %v2277 = vmul.f32 %v2219, 0.01
  %v2278 = vmul.f32 %v2224, 0.01
  %v2279 = vmul.f32 %v2227, 0.01
  %v2280 = vmul.f32 %v2232, 0.01
  %v2281 = vmul.f32 %v2235, 0.01
  %v2282 = vmul.f32 %v2240, 0.01
  %v2283 = vmul.f32 %v2243, 0.01
  %v2284 = vmul.f32 %v2248, 0.01
  %v2285 = vmul.f32 %v2251, 0.01
  %v2286 = vsel %vm2254, %v2192, %v2270
  %v2287 = vsel %vm2255, %v2195, %v2271
  %v2288 = vsel %vm2256, %v2200, %v2272
  %v2289 = vsel %vm2257, %v2203, %v2273
  %v2290 = vsel %vm2258, %v2208, %v2274
  %v2291 = vsel %vm2259, %v2211, %v2275
  %v2292 = vsel %vm2260, %v2216, %v2276
  %v2293 = vsel %vm2261, %v2219, %v2277
  %v2294 = vsel %vm2262, %v2224, %v2278
  %v2295 = vsel %vm2263, %v2227, %v2279
  %v2296 = vsel %vm2264, %v2232, %v2280
  %v2297 = vsel %vm2265, %v2235, %v2281
  %v2298 = vsel %vm2266, %v2240, %v2282
  %v2299 = vsel %vm2267, %v2243, %v2283
  %v2300 = vsel %vm2268, %v2248, %v2284
  %v2301 = vsel %vm2269, %v2251, %v2285
  %2302 = vst.msk [vmem:[%s3] sm:$0xff] %vm1550, %v2286
  %2303 = vst.msk [vmem:[%s3 + $0x8] sm:$0xff] %vm1550, %v2287
  %2304 = vst.msk [vmem:[%s3 + $0x10] sm:$0xff] %vm1550, %v2288
  %2305 = vst.msk [vmem:[%s3 + $0x18] sm:$0xff] %vm1550, %v2289
  %2306 = vst.msk [vmem:[%s3 + $0x20] sm:$0xff] %vm1550, %v2290
  %2307 = vst.msk [vmem:[%s3 + $0x28] sm:$0xff] %vm1550, %v2291
  %2308 = vst.msk [vmem:[%s3 + $0x30] sm:$0xff] %vm1550, %v2292
  %2309 = vst.msk [vmem:[%s3 + $0x38] sm:$0xff] %vm1550, %v2293
  %2310 = vst.msk [vmem:[%s3 + $0x40] sm:$0xff] %vm1550, %v2294
  %2311 = vst.msk [vmem:[%s3 + $0x48] sm:$0xff] %vm1550, %v2295
  %2312 = vst.msk [vmem:[%s3 + $0x50] sm:$0xff] %vm1550, %v2296
  %2313 = vst.msk [vmem:[%s3 + $0x58] sm:$0xff] %vm1550, %v2297
  %2314 = vst.msk [vmem:[%s3 + $0x60] sm:$0xff] %vm1550, %v2298
  %2315 = vst.msk [vmem:[%s3 + $0x68] sm:$0xff] %vm1550, %v2299
  %2316 = vst.msk [vmem:[%s3 + $0x70] sm:$0xff] %vm1550, %v2300
  %2317 = vst.msk [vmem:[%s3 + $0x78] sm:$0xff] %vm1550, %v2301
  // Predicated region
  $region14: #{vqvae_forward.22} parent=0 // pred_check
    _
  $region15: #{vqvae_forward.22} parent=0 // pred_check_branch
    %2319 = sbr.rel (0) target = $region17
  $region16: #{vqvae_forward.22} parent=0 // pred_region
    _
  $region17: #{vqvae_forward.22} parent=0 // pred_fallthru
    _
  // Predicated region
  $region18: #{vqvae_forward.22} parent=0 // pred_check
    _
  $region19: #{vqvae_forward.22} parent=0 // pred_check_branch
    %2321 = sbr.rel (0) target = $region21
  $region20: #{vqvae_forward.22} parent=0 // pred_region
    _
  $region21: #{vqvae_forward.22} parent=0 // pred_fallthru
    _

// kernel: vqvae_forward.29
$region0: #{vqvae_forward.29}
  #allocation0 [shape = 'u32[]', space=smem, size = 0x4, offset = 0x4, fixed_abs, tag = 'smem constant byte address 0x4 - core index']
  #allocation1 [shape = 'u32[144,128]{1,0:T(1,128)}', space=vmem, size = 0x12000, scoped, tag = 'internal scratch']
  %s0 = inlined_call_operand.vmem [shape: bf16[128,64], index: 0, kind: input, shape index: {}]
  %s1 = inlined_call_operand.vmem [shape: bf16[64,64], index: 1, kind: input, shape index: {}]
  %s2 = inlined_call_operand.vmem [shape: f32[1,64], index: 2, kind: input, shape index: {}]
  %s3 = inlined_call_operand.vmem [shape: f32[128,64], index: 3, kind: output, shape index: {}]
  %s4 = sld [smem:[#allocation0]]
  $region22: #{vqvae_forward.29} parent=0
    _
  %s6 = ssub.s32 1, %s4
  %s7 = scalar_select 0, %s6, %s4
  // Predicated region
  $region2: #{vqvae_forward.29} parent=0 // pred_check
    _
  $region3: #{vqvae_forward.29} parent=0 // pred_check_branch
    %9 = sbr.rel (0) target = $region5
  $region4: #{vqvae_forward.29} parent=0 // pred_region
    _
  $region5: #{vqvae_forward.29} parent=0 // pred_fallthru
    _
  // Predicated region
  $region6: #{vqvae_forward.29} parent=0 // pred_check
    _
  $region7: #{vqvae_forward.29} parent=0 // pred_check_branch
    %11 = sbr.rel (0) target = $region9
  $region8: #{vqvae_forward.29} parent=0 // pred_region
    _
  $region9: #{vqvae_forward.29} parent=0 // pred_fallthru
    _
  // Predicated region
  $region10: #{vqvae_forward.29} parent=0 // pred_check
    _
  $region11: #{vqvae_forward.29} parent=0 // pred_check_branch
    %13 = sbr.rel (0) target = $region13
  $region12: #{vqvae_forward.29} parent=0 // pred_region
    _
  $region13: #{vqvae_forward.29} parent=0 // pred_fallthru
    _
  %v15 = vld [vmem:[%s0] sm:$0xf]
  %v16 = vld [vmem:[%s0 + $0x4] sm:$0xf]
  %v17 = vld [vmem:[%s0 + $0x8] sm:$0xf]
  %v18 = vld [vmem:[%s0 + $0xc] sm:$0xf]
  %v19 = vld [vmem:[%s0 + $0x10] sm:$0xf]
  %v20 = vld [vmem:[%s0 + $0x14] sm:$0xf]
  %v21 = vld [vmem:[%s0 + $0x18] sm:$0xf]
  %v22 = vld [vmem:[%s0 + $0x1c] sm:$0xf]
  %v23 = vld [vmem:[%s0 + $0x20] sm:$0xf]
  %v24 = vld [vmem:[%s0 + $0x24] sm:$0xf]
  %v25 = vld [vmem:[%s0 + $0x28] sm:$0xf]
  %v26 = vld [vmem:[%s0 + $0x2c] sm:$0xf]
  %v27 = vld [vmem:[%s0 + $0x30] sm:$0xf]
  %v28 = vld [vmem:[%s0 + $0x34] sm:$0xf]
  %v29 = vld [vmem:[%s0 + $0x38] sm:$0xf]
  %v30 = vld [vmem:[%s0 + $0x3c] sm:$0xf]
  %v31 = vld [vmem:[%s1] sm:$0xf]
  %v32 = vld [vmem:[%s1 + $0x4] sm:$0xf]
  %v33 = vld [vmem:[%s1 + $0x8] sm:$0xf]
  %v34 = vld [vmem:[%s1 + $0xc] sm:$0xf]
  %v35 = vld [vmem:[%s1 + $0x10] sm:$0xf]
  %v36 = vld [vmem:[%s1 + $0x14] sm:$0xf]
  %v37 = vld [vmem:[%s1 + $0x18] sm:$0xf]
  %v38 = vld [vmem:[%s1 + $0x1c] sm:$0xf]
  %v39 = vld [vmem:[%s2] sm:$0x1]
  %v41 = vlaneseq
  %v42 = vshrl.u32 %v41, 7
  %v43 = vsub.s32 0, %v42
  %v44 = vrot.slane %v39, %v43
  %v62 = vunpack.c.l.b16 %v15
  %v63 = vunpack.c.l.b16 %v16
  %v64 = vunpack.c.l.b16 %v17
  %v65 = vunpack.c.l.b16 %v18
  %v66 = vunpack.c.l.b16 %v19
  %v67 = vunpack.c.l.b16 %v20
  %v68 = vunpack.c.l.b16 %v21
  %v69 = vunpack.c.l.b16 %v22
  %v70 = vunpack.c.l.b16 %v23
  %v71 = vunpack.c.l.b16 %v24
  %v72 = vunpack.c.l.b16 %v25
  %v73 = vunpack.c.l.b16 %v26
  %v74 = vunpack.c.l.b16 %v27
  %v75 = vunpack.c.l.b16 %v28
  %v76 = vunpack.c.l.b16 %v29
  %v77 = vunpack.c.l.b16 %v30
  %v78 = vpack.c.b16 %v63, %v62
  %v79 = vpack.c.b16 %v65, %v64
  %v80 = vpack.c.b16 %v67, %v66
  %v81 = vpack.c.b16 %v69, %v68
  %v82 = vpack.c.b16 %v71, %v70
  %v83 = vpack.c.b16 %v73, %v72
  %v84 = vpack.c.b16 %v75, %v74
  %v85 = vpack.c.b16 %v77, %v76
  %v94 = vunpack.c.l.b16 %v31
  %v95 = vunpack.c.l.b16 %v32
  %v96 = vunpack.c.l.b16 %v33
  %v97 = vunpack.c.l.b16 %v34
  %v98 = vunpack.c.l.b16 %v35
  %v99 = vunpack.c.l.b16 %v36
  %v100 = vunpack.c.l.b16 %v37
  %v101 = vunpack.c.l.b16 %v38
  %v102 = vpack.c.b16 %v95, %v94
  %v103 = vpack.c.b16 %v97, %v96
  %v104 = vpack.c.b16 %v99, %v98
  %v105 = vpack.c.b16 %v101, %v100
  %vm110 = vcmask 523264
  %v112 = vsel %vm110, %v78, 0
  %v115 = vsel %vm110, %v79, 0
  %v118 = vsel %vm110, %v80, 0
  %v121 = vsel %vm110, %v81, 0
  %v124 = vsel %vm110, %v82, 0
  %v127 = vsel %vm110, %v83, 0
  %v130 = vsel %vm110, %v84, 0
  %v133 = vsel %vm110, %v85, 0
  %135 = vmatprep.subr.bf16.mxu0 0
  %136 = vmatpush1.bf16.msra.mxu0 0
  %137 = vmatprep.subr.bf16.mxu0 0
  %138 = vmatpush1.bf16.msra.mxu0 0
  %139 = vmatprep.subr.bf16.mxu0 0
  %140 = vmatpush1.bf16.msra.mxu0 0
  %141 = vmatprep.subr.bf16.mxu0 0
  %142 = vmatpush1.bf16.msra.mxu0 0
  %143 = vmatprep.subr.bf16.mxu0 0
  %144 = vmatpush1.bf16.msra.mxu0 %v105
  %145 = vmatprep.subr.bf16.mxu0 0
  %146 = vmatpush1.bf16.msra.mxu0 %v104
  %147 = vmatprep.subr.bf16.mxu0 0
  %148 = vmatpush1.bf16.msra.mxu0 %v103
  %149 = vmatprep.subr.bf16.mxu0 0
  %150 = vmatpush1.bf16.msra.mxu0 %v102
  %151 = vmatprep.subr.bf16.mxu0 0
  %152 = vmatpush2.bf16.msra.mxu0 0
  %153 = vmatprep.subr.bf16.mxu0 0
  %154 = vmatpush2.bf16.msra.mxu0 0
  %155 = vmatprep.subr.bf16.mxu0 0
  %156 = vmatpush2.bf16.msra.mxu0 0
  %157 = vmatprep.subr.bf16.mxu0 0
  %158 = vmatpush2.bf16.msra.mxu0 0
  %159 = vmatprep.subr.bf16.mxu0 0
  %160 = vmatpush2.bf16.msra.mxu0 0
  %161 = vmatprep.subr.bf16.mxu0 0
  %162 = vmatpush2.bf16.msra.mxu0 0
  %163 = vmatprep.subr.bf16.mxu0 0
  %164 = vmatpush2.bf16.msra.mxu0 0
  %165 = vmatprep.subr.bf16.mxu0 0
  %166 = vmatpush2.bf16.msra.mxu0 0
  %167 = vmatprep.mubr.bf16.mxu0 0
  %168 = vmatmul.mubr.bf16.gmra.mxu0 %v112
  %v169 = vpop.f32.mrf.mxu0
  %v170 = vadd.f32 %v44, %v169
  %v171 = vpop.f32.mrf.mxu0
  %v172 = vpop.f32.mrf.mxu0
  %v173 = vadd.f32 %v44, %v172
  %v174 = vpop.f32.mrf.mxu0
  %175 = vmatprep.mubr.bf16.mxu0 0
  %176 = vmatmul.mubr.bf16.gmra.mxu0 %v115
  %v177 = vpop.f32.mrf.mxu0
  %v178 = vadd.f32 %v44, %v177
  %v179 = vpop.f32.mrf.mxu0
  %v180 = vpop.f32.mrf.mxu0
  %v181 = vadd.f32 %v44, %v180
  %v182 = vpop.f32.mrf.mxu0
  %183 = vmatprep.mubr.bf16.mxu0 0
  %184 = vmatmul.mubr.bf16.gmra.mxu0 %v118
  %v185 = vpop.f32.mrf.mxu0
  %v186 = vadd.f32 %v44, %v185
  %v187 = vpop.f32.mrf.mxu0
  %v188 = vpop.f32.mrf.mxu0
  %v189 = vadd.f32 %v44, %v188
  %v190 = vpop.f32.mrf.mxu0
  %191 = vmatprep.mubr.bf16.mxu0 0
  %192 = vmatmul.mubr.bf16.gmra.mxu0 %v121
  %v193 = vpop.f32.mrf.mxu0
  %v194 = vadd.f32 %v44, %v193
  %v195 = vpop.f32.mrf.mxu0
  %v196 = vpop.f32.mrf.mxu0
  %v197 = vadd.f32 %v44, %v196
  %v198 = vpop.f32.mrf.mxu0
  %199 = vmatprep.mubr.bf16.mxu0 0
  %200 = vmatmul.mubr.bf16.gmra.mxu0 %v124
  %v201 = vpop.f32.mrf.mxu0
  %v202 = vadd.f32 %v44, %v201
  %v203 = vpop.f32.mrf.mxu0
  %v204 = vpop.f32.mrf.mxu0
  %v205 = vadd.f32 %v44, %v204
  %v206 = vpop.f32.mrf.mxu0
  %207 = vmatprep.mubr.bf16.mxu0 0
  %208 = vmatmul.mubr.bf16.gmra.mxu0 %v127
  %v209 = vpop.f32.mrf.mxu0
  %v210 = vadd.f32 %v44, %v209
  %v211 = vpop.f32.mrf.mxu0
  %v212 = vpop.f32.mrf.mxu0
  %v213 = vadd.f32 %v44, %v212
  %v214 = vpop.f32.mrf.mxu0
  %215 = vmatprep.mubr.bf16.mxu0 0
  %216 = vmatmul.mubr.bf16.gmra.mxu0 %v130
  %v217 = vpop.f32.mrf.mxu0
  %v218 = vadd.f32 %v44, %v217
  %v219 = vpop.f32.mrf.mxu0
  %v220 = vpop.f32.mrf.mxu0
  %v221 = vadd.f32 %v44, %v220
  %v222 = vpop.f32.mrf.mxu0
  %223 = vmatprep.mubr.bf16.mxu0 0
  %224 = vmatmul.mubr.bf16.gmra.mxu0 %v133
  %v225 = vpop.f32.mrf.mxu0
  %v226 = vadd.f32 %v44, %v225
  %v227 = vpop.f32.mrf.mxu0
  %v228 = vpop.f32.mrf.mxu0
  %v229 = vadd.f32 %v44, %v228
  %v230 = vpop.f32.mrf.mxu0
  %231 = vdwg.mxu0
  %vm232 = vcmp.gt.f32.partialorder %v170, 0.0
  %vm233 = vcmp.gt.f32.partialorder %v173, 0.0
  %vm234 = vcmp.gt.f32.partialorder %v178, 0.0
  %vm235 = vcmp.gt.f32.partialorder %v181, 0.0
  %vm236 = vcmp.gt.f32.partialorder %v186, 0.0
  %vm237 = vcmp.gt.f32.partialorder %v189, 0.0
  %vm238 = vcmp.gt.f32.partialorder %v194, 0.0
  %vm239 = vcmp.gt.f32.partialorder %v197, 0.0
  %vm240 = vcmp.gt.f32.partialorder %v202, 0.0
  %vm241 = vcmp.gt.f32.partialorder %v205, 0.0
  %vm242 = vcmp.gt.f32.partialorder %v210, 0.0
  %vm243 = vcmp.gt.f32.partialorder %v213, 0.0
  %vm244 = vcmp.gt.f32.partialorder %v218, 0.0
  %vm245 = vcmp.gt.f32.partialorder %v221, 0.0
  %vm246 = vcmp.gt.f32.partialorder %v226, 0.0
  %vm247 = vcmp.gt.f32.partialorder %v229, 0.0
  %v248 = vmul.f32 %v170, 0.01
  %v249 = vmul.f32 %v173, 0.01
  %v250 = vmul.f32 %v178, 0.01
  %v251 = vmul.f32 %v181, 0.01
  %v252 = vmul.f32 %v186, 0.01
  %v253 = vmul.f32 %v189, 0.01
  %v254 = vmul.f32 %v194, 0.01
  %v255 = vmul.f32 %v197, 0.01
  %v256 = vmul.f32 %v202, 0.01
  %v257 = vmul.f32 %v205, 0.01
  %v258 = vmul.f32 %v210, 0.01
  %v259 = vmul.f32 %v213, 0.01
  %v260 = vmul.f32 %v218, 0.01
  %v261 = vmul.f32 %v221, 0.01
  %v262 = vmul.f32 %v226, 0.01
  %v263 = vmul.f32 %v229, 0.01
  %v264 = vsel %vm232, %v170, %v248
  %v265 = vsel %vm233, %v173, %v249
  %v266 = vsel %vm234, %v178, %v250
  %v267 = vsel %vm235, %v181, %v251
  %v268 = vsel %vm236, %v186, %v252
  %v269 = vsel %vm237, %v189, %v253
  %v270 = vsel %vm238, %v194, %v254
  %v271 = vsel %vm239, %v197, %v255
  %v272 = vsel %vm240, %v202, %v256
  %v273 = vsel %vm241, %v205, %v257
  %v274 = vsel %vm242, %v210, %v258
  %v275 = vsel %vm243, %v213, %v259
  %v276 = vsel %vm244, %v218, %v260
  %v277 = vsel %vm245, %v221, %v261
  %v278 = vsel %vm246, %v226, %v262
  %v279 = vsel %vm247, %v229, %v263
  %280 = vst.msk [vmem:[%s3] sm:$0xff] %vm110, %v264
  %281 = vst.msk [vmem:[%s3 + $0x8] sm:$0xff] %vm110, %v265
  %282 = vst.msk [vmem:[%s3 + $0x10] sm:$0xff] %vm110, %v266
  %283 = vst.msk [vmem:[%s3 + $0x18] sm:$0xff] %vm110, %v267
  %284 = vst.msk [vmem:[%s3 + $0x20] sm:$0xff] %vm110, %v268
  %285 = vst.msk [vmem:[%s3 + $0x28] sm:$0xff] %vm110, %v269
  %286 = vst.msk [vmem:[%s3 + $0x30] sm:$0xff] %vm110, %v270
  %287 = vst.msk [vmem:[%s3 + $0x38] sm:$0xff] %vm110, %v271
  %288 = vst.msk [vmem:[%s3 + $0x40] sm:$0xff] %vm110, %v272
  %289 = vst.msk [vmem:[%s3 + $0x48] sm:$0xff] %vm110, %v273
  %290 = vst.msk [vmem:[%s3 + $0x50] sm:$0xff] %vm110, %v274
  %291 = vst.msk [vmem:[%s3 + $0x58] sm:$0xff] %vm110, %v275
  %292 = vst.msk [vmem:[%s3 + $0x60] sm:$0xff] %vm110, %v276
  %293 = vst.msk [vmem:[%s3 + $0x68] sm:$0xff] %vm110, %v277
  %294 = vst.msk [vmem:[%s3 + $0x70] sm:$0xff] %vm110, %v278
  %295 = vst.msk [vmem:[%s3 + $0x78] sm:$0xff] %vm110, %v279
  // Predicated region
  $region14: #{vqvae_forward.29} parent=0 // pred_check
    _
  $region15: #{vqvae_forward.29} parent=0 // pred_check_branch
    %297 = sbr.rel (0) target = $region17
  $region16: #{vqvae_forward.29} parent=0 // pred_region
    _
  $region17: #{vqvae_forward.29} parent=0 // pred_fallthru
    _
  // Predicated region
  $region18: #{vqvae_forward.29} parent=0 // pred_check
    _
  $region19: #{vqvae_forward.29} parent=0 // pred_check_branch
    %299 = sbr.rel (0) target = $region21
  $region20: #{vqvae_forward.29} parent=0 // pred_region
    _
  $region21: #{vqvae_forward.29} parent=0 // pred_fallthru
    _

// kernel: vqvae_forward.23
$region0: #{vqvae_forward.23}
  #allocation0 [shape = 'u32[]', space=smem, size = 0x4, offset = 0x4, fixed_abs, tag = 'smem constant byte address 0x4 - core index']
  #allocation1 [shape = 'u32[144,128]{1,0:T(1,128)}', space=vmem, size = 0x12000, scoped, tag = 'internal scratch']
  %s0 = inlined_call_operand.vmem [shape: f32[128,64], index: 0, kind: input, shape index: {}]
  %s1 = inlined_call_operand.vmem [shape: bf16[128,1728], index: 1, kind: input, shape index: {}]
  %s2 = inlined_call_operand.vmem [shape: bf16[1728,64], index: 2, kind: input, shape index: {}]
  %s3 = inlined_call_operand.vmem [shape: bf16[64,64], index: 3, kind: input, shape index: {}]
  %s4 = inlined_call_operand.vmem [shape: f32[128,64], index: 4, kind: output, shape index: {}]
  %s5 = sld [smem:[#allocation0]]
  $region26: #{vqvae_forward.23} parent=0
    _
  %s7 = ssub.s32 1, %s5
  %s8 = scalar_select 0, %s7, %s5
  // Predicated region
  $region2: #{vqvae_forward.23} parent=0 // pred_check
    _
  $region3: #{vqvae_forward.23} parent=0 // pred_check_branch
    %10 = sbr.rel (0) target = $region5
  $region4: #{vqvae_forward.23} parent=0 // pred_region
    _
  $region5: #{vqvae_forward.23} parent=0 // pred_fallthru
    _
  // Predicated region
  $region6: #{vqvae_forward.23} parent=0 // pred_check
    _
  $region7: #{vqvae_forward.23} parent=0 // pred_check_branch
    %12 = sbr.rel (0) target = $region9
  $region8: #{vqvae_forward.23} parent=0 // pred_region
    _
  $region9: #{vqvae_forward.23} parent=0 // pred_fallthru
    _
  // Predicated region
  $region10: #{vqvae_forward.23} parent=0 // pred_check
    _
  $region11: #{vqvae_forward.23} parent=0 // pred_check_branch
    %14 = sbr.rel (0) target = $region13
  $region12: #{vqvae_forward.23} parent=0 // pred_region
    _
  $region13: #{vqvae_forward.23} parent=0 // pred_fallthru
    _
  // Predicated region
  $region14: #{vqvae_forward.23} parent=0 // pred_check
    _
  $region15: #{vqvae_forward.23} parent=0 // pred_check_branch
    %16 = sbr.rel (0) target = $region17
  $region16: #{vqvae_forward.23} parent=0 // pred_region
    _
  $region17: #{vqvae_forward.23} parent=0 // pred_fallthru
    _
  %v18 = vld [vmem:[%s1] sm:$0xff]
  %v19 = vld [vmem:[%s1 + $0x8] sm:$0xff]
  %v20 = vld [vmem:[%s1 + $0x10] sm:$0xff]
  %v21 = vld [vmem:[%s1 + $0x18] sm:$0xff]
  %v22 = vld [vmem:[%s1 + $0x20] sm:$0xff]
  %v23 = vld [vmem:[%s1 + $0x28] sm:$0xff]
  %v24 = vld [vmem:[%s1 + $0x30] sm:$0xff]
  %v25 = vld [vmem:[%s1 + $0x38] sm:$0xff]
  %v26 = vld [vmem:[%s1 + $0x40] sm:$0xff]
  %v27 = vld [vmem:[%s1 + $0x48] sm:$0xff]
  %v28 = vld [vmem:[%s1 + $0x50] sm:$0xff]
  %v29 = vld [vmem:[%s1 + $0x58] sm:$0xff]
  %v30 = vld [vmem:[%s1 + $0x60] sm:$0xff]
  %v31 = vld [vmem:[%s1 + $0x68] sm:$0xff]
  %v32 = vld [vmem:[%s1 + $0x70] sm:$0xff]
  %v33 = vld [vmem:[%s1 + $0x78] sm:$0xff]
  %v34 = vld [vmem:[%s1 + $0x80] sm:$0xff]
  %v35 = vld [vmem:[%s1 + $0x88] sm:$0xff]
  %v36 = vld [vmem:[%s1 + $0x90] sm:$0xff]
  %v37 = vld [vmem:[%s1 + $0x98] sm:$0xff]
  %v38 = vld [vmem:[%s1 + $0xa0] sm:$0xff]
  %v39 = vld [vmem:[%s1 + $0xa8] sm:$0xff]
  %v40 = vld [vmem:[%s1 + $0xb0] sm:$0xff]
  %v41 = vld [vmem:[%s1 + $0xb8] sm:$0xff]
  %v42 = vld [vmem:[%s1 + $0xc0] sm:$0xff]
  %v43 = vld [vmem:[%s1 + $0xc8] sm:$0xff]
  %v44 = vld [vmem:[%s1 + $0xd0] sm:$0xff]
  %v45 = vld [vmem:[%s1 + $0xd8] sm:$0xff]
  %v46 = vld [vmem:[%s1 + $0xe0] sm:$0xff]
  %v47 = vld [vmem:[%s1 + $0xe8] sm:$0xff]
  %v48 = vld [vmem:[%s1 + $0xf0] sm:$0xff]
  %v49 = vld [vmem:[%s1 + $0xf8] sm:$0xff]
  %v50 = vld [vmem:[%s1 + $0x100] sm:$0xff]
  %v51 = vld [vmem:[%s1 + $0x108] sm:$0xff]
  %v52 = vld [vmem:[%s1 + $0x110] sm:$0xff]
  %v53 = vld [vmem:[%s1 + $0x118] sm:$0xff]
  %v54 = vld [vmem:[%s1 + $0x120] sm:$0xff]
  %v55 = vld [vmem:[%s1 + $0x128] sm:$0xff]
  %v56 = vld [vmem:[%s1 + $0x130] sm:$0xff]
  %v57 = vld [vmem:[%s1 + $0x138] sm:$0xff]
  %v58 = vld [vmem:[%s1 + $0x140] sm:$0xff]
  %v59 = vld [vmem:[%s1 + $0x148] sm:$0xff]
  %v60 = vld [vmem:[%s1 + $0x150] sm:$0xff]
  %v61 = vld [vmem:[%s1 + $0x158] sm:$0xff]
  %v62 = vld [vmem:[%s1 + $0x160] sm:$0xff]
  %v63 = vld [vmem:[%s1 + $0x168] sm:$0xff]
  %v64 = vld [vmem:[%s1 + $0x170] sm:$0xff]
  %v65 = vld [vmem:[%s1 + $0x178] sm:$0xff]
  %v66 = vld [vmem:[%s1 + $0x180] sm:$0xff]
  %v67 = vld [vmem:[%s1 + $0x188] sm:$0xff]
  %v68 = vld [vmem:[%s1 + $0x190] sm:$0xff]
  %v69 = vld [vmem:[%s1 + $0x198] sm:$0xff]
  %v70 = vld [vmem:[%s1 + $0x1a0] sm:$0xff]
  %v71 = vld [vmem:[%s1 + $0x1a8] sm:$0xff]
  %v72 = vld [vmem:[%s1 + $0x1b0] sm:$0xff]
  %v73 = vld [vmem:[%s1 + $0x1b8] sm:$0xff]
  %v74 = vld [vmem:[%s1 + $0x1c0] sm:$0xff]
  %v75 = vld [vmem:[%s1 + $0x1c8] sm:$0xff]
  %v76 = vld [vmem:[%s1 + $0x1d0] sm:$0xff]
  %v77 = vld [vmem:[%s1 + $0x1d8] sm:$0xff]
  %v78 = vld [vmem:[%s1 + $0x1e0] sm:$0xff]
  %v79 = vld [vmem:[%s1 + $0x1e8] sm:$0xff]
  %v80 = vld [vmem:[%s1 + $0x1f0] sm:$0xff]
  %v81 = vld [vmem:[%s1 + $0x1f8] sm:$0xff]
  %v82 = vld [vmem:[%s1 + $0x200] sm:$0xff]
  %v83 = vld [vmem:[%s1 + $0x208] sm:$0xff]
  %v84 = vld [vmem:[%s1 + $0x210] sm:$0xff]
  %v85 = vld [vmem:[%s1 + $0x218] sm:$0xff]
  %v86 = vld [vmem:[%s1 + $0x220] sm:$0xff]
  %v87 = vld [vmem:[%s1 + $0x228] sm:$0xff]
  %v88 = vld [vmem:[%s1 + $0x230] sm:$0xff]
  %v89 = vld [vmem:[%s1 + $0x238] sm:$0xff]
  %v90 = vld [vmem:[%s1 + $0x240] sm:$0xff]
  %v91 = vld [vmem:[%s1 + $0x248] sm:$0xff]
  %v92 = vld [vmem:[%s1 + $0x250] sm:$0xff]
  %v93 = vld [vmem:[%s1 + $0x258] sm:$0xff]
  %v94 = vld [vmem:[%s1 + $0x260] sm:$0xff]
  %v95 = vld [vmem:[%s1 + $0x268] sm:$0xff]
  %v96 = vld [vmem:[%s1 + $0x270] sm:$0xff]
  %v97 = vld [vmem:[%s1 + $0x278] sm:$0xff]
  %v98 = vld [vmem:[%s1 + $0x280] sm:$0xff]
  %v99 = vld [vmem:[%s1 + $0x288] sm:$0xff]
  %v100 = vld [vmem:[%s1 + $0x290] sm:$0xff]
  %v101 = vld [vmem:[%s1 + $0x298] sm:$0xff]
  %v102 = vld [vmem:[%s1 + $0x2a0] sm:$0xff]
  %v103 = vld [vmem:[%s1 + $0x2a8] sm:$0xff]
  %v104 = vld [vmem:[%s1 + $0x2b0] sm:$0xff]
  %v105 = vld [vmem:[%s1 + $0x2b8] sm:$0xff]
  %v106 = vld [vmem:[%s1 + $0x2c0] sm:$0xff]
  %v107 = vld [vmem:[%s1 + $0x2c8] sm:$0xff]
  %v108 = vld [vmem:[%s1 + $0x2d0] sm:$0xff]
  %v109 = vld [vmem:[%s1 + $0x2d8] sm:$0xff]
  %v110 = vld [vmem:[%s1 + $0x2e0] sm:$0xff]
  %v111 = vld [vmem:[%s1 + $0x2e8] sm:$0xff]
  %v112 = vld [vmem:[%s1 + $0x2f0] sm:$0xff]
  %v113 = vld [vmem:[%s1 + $0x2f8] sm:$0xff]
  %v114 = vld [vmem:[%s1 + $0x300] sm:$0xff]
  %v115 = vld [vmem:[%s1 + $0x308] sm:$0xff]
  %v116 = vld [vmem:[%s1 + $0x310] sm:$0xff]
  %v117 = vld [vmem:[%s1 + $0x318] sm:$0xff]
  %v118 = vld [vmem:[%s1 + $0x320] sm:$0xff]
  %v119 = vld [vmem:[%s1 + $0x328] sm:$0xff]
  %v120 = vld [vmem:[%s1 + $0x330] sm:$0xff]
  %v121 = vld [vmem:[%s1 + $0x338] sm:$0xff]
  %v122 = vld [vmem:[%s1 + $0x340] sm:$0xff]
  %v123 = vld [vmem:[%s1 + $0x348] sm:$0xff]
  %v124 = vld [vmem:[%s1 + $0x350] sm:$0xff]
  %v125 = vld [vmem:[%s1 + $0x358] sm:$0xff]
  %v126 = vld [vmem:[%s1 + $0x360] sm:$0xff]
  %v127 = vld [vmem:[%s1 + $0x368] sm:$0xff]
  %v128 = vld [vmem:[%s1 + $0x370] sm:$0xff]
  %v129 = vld [vmem:[%s1 + $0x378] sm:$0xff]
  %v130 = vld [vmem:[%s2] sm:$0xf]
  %v131 = vld [vmem:[%s2 + $0x4] sm:$0xf]
  %v132 = vld [vmem:[%s2 + $0x8] sm:$0xf]
  %v133 = vld [vmem:[%s2 + $0xc] sm:$0xf]
  %v134 = vld [vmem:[%s2 + $0x10] sm:$0xf]
  %v135 = vld [vmem:[%s2 + $0x14] sm:$0xf]
  %v136 = vld [vmem:[%s2 + $0x18] sm:$0xf]
  %v137 = vld [vmem:[%s2 + $0x1c] sm:$0xf]
  %v138 = vld [vmem:[%s2 + $0x20] sm:$0xf]
  %v139 = vld [vmem:[%s2 + $0x24] sm:$0xf]
  %v140 = vld [vmem:[%s2 + $0x28] sm:$0xf]
  %v141 = vld [vmem:[%s2 + $0x2c] sm:$0xf]
  %v142 = vld [vmem:[%s2 + $0x30] sm:$0xf]
  %v143 = vld [vmem:[%s2 + $0x34] sm:$0xf]
  %v144 = vld [vmem:[%s2 + $0x38] sm:$0xf]
  %v145 = vld [vmem:[%s2 + $0x3c] sm:$0xf]
  %v146 = vld [vmem:[%s2 + $0x40] sm:$0xf]
  %v147 = vld [vmem:[%s2 + $0x44] sm:$0xf]
  %v148 = vld [vmem:[%s2 + $0x48] sm:$0xf]
  %v149 = vld [vmem:[%s2 + $0x4c] sm:$0xf]
  %v150 = vld [vmem:[%s2 + $0x50] sm:$0xf]
  %v151 = vld [vmem:[%s2 + $0x54] sm:$0xf]
  %v152 = vld [vmem:[%s2 + $0x58] sm:$0xf]
  %v153 = vld [vmem:[%s2 + $0x5c] sm:$0xf]
  %v154 = vld [vmem:[%s2 + $0x60] sm:$0xf]
  %v155 = vld [vmem:[%s2 + $0x64] sm:$0xf]
  %v156 = vld [vmem:[%s2 + $0x68] sm:$0xf]
  %v157 = vld [vmem:[%s2 + $0x6c] sm:$0xf]
  %v158 = vld [vmem:[%s2 + $0x70] sm:$0xf]
  %v159 = vld [vmem:[%s2 + $0x74] sm:$0xf]
  %v160 = vld [vmem:[%s2 + $0x78] sm:$0xf]
  %v161 = vld [vmem:[%s2 + $0x7c] sm:$0xf]
  %v162 = vld [vmem:[%s2 + $0x80] sm:$0xf]
  %v163 = vld [vmem:[%s2 + $0x84] sm:$0xf]
  %v164 = vld [vmem:[%s2 + $0x88] sm:$0xf]
  %v165 = vld [vmem:[%s2 + $0x8c] sm:$0xf]
  %v166 = vld [vmem:[%s2 + $0x90] sm:$0xf]
  %v167 = vld [vmem:[%s2 + $0x94] sm:$0xf]
  %v168 = vld [vmem:[%s2 + $0x98] sm:$0xf]
  %v169 = vld [vmem:[%s2 + $0x9c] sm:$0xf]
  %v170 = vld [vmem:[%s2 + $0xa0] sm:$0xf]
  %v171 = vld [vmem:[%s2 + $0xa4] sm:$0xf]
  %v172 = vld [vmem:[%s2 + $0xa8] sm:$0xf]
  %v173 = vld [vmem:[%s2 + $0xac] sm:$0xf]
  %v174 = vld [vmem:[%s2 + $0xb0] sm:$0xf]
  %v175 = vld [vmem:[%s2 + $0xb4] sm:$0xf]
  %v176 = vld [vmem:[%s2 + $0xb8] sm:$0xf]
  %v177 = vld [vmem:[%s2 + $0xbc] sm:$0xf]
  %v178 = vld [vmem:[%s2 + $0xc0] sm:$0xf]
  %v179 = vld [vmem:[%s2 + $0xc4] sm:$0xf]
  %v180 = vld [vmem:[%s2 + $0xc8] sm:$0xf]
  %v181 = vld [vmem:[%s2 + $0xcc] sm:$0xf]
  %v182 = vld [vmem:[%s2 + $0xd0] sm:$0xf]
  %v183 = vld [vmem:[%s2 + $0xd4] sm:$0xf]
  %v184 = vld [vmem:[%s2 + $0xd8] sm:$0xf]
  %v185 = vld [vmem:[%s2 + $0xdc] sm:$0xf]
  %v186 = vld [vmem:[%s2 + $0xe0] sm:$0xf]
  %v187 = vld [vmem:[%s2 + $0xe4] sm:$0xf]
  %v188 = vld [vmem:[%s2 + $0xe8] sm:$0xf]
  %v189 = vld [vmem:[%s2 + $0xec] sm:$0xf]
  %v190 = vld [vmem:[%s2 + $0xf0] sm:$0xf]
  %v191 = vld [vmem:[%s2 + $0xf4] sm:$0xf]
  %v192 = vld [vmem:[%s2 + $0xf8] sm:$0xf]
  %v193 = vld [vmem:[%s2 + $0xfc] sm:$0xf]
  %v194 = vld [vmem:[%s2 + $0x100] sm:$0xf]
  %v195 = vld [vmem:[%s2 + $0x104] sm:$0xf]
  %v196 = vld [vmem:[%s2 + $0x108] sm:$0xf]
  %v197 = vld [vmem:[%s2 + $0x10c] sm:$0xf]
  %v198 = vld [vmem:[%s2 + $0x110] sm:$0xf]
  %v199 = vld [vmem:[%s2 + $0x114] sm:$0xf]
  %v200 = vld [vmem:[%s2 + $0x118] sm:$0xf]
  %v201 = vld [vmem:[%s2 + $0x11c] sm:$0xf]
  %v202 = vld [vmem:[%s2 + $0x120] sm:$0xf]
  %v203 = vld [vmem:[%s2 + $0x124] sm:$0xf]
  %v204 = vld [vmem:[%s2 + $0x128] sm:$0xf]
  %v205 = vld [vmem:[%s2 + $0x12c] sm:$0xf]
  %v206 = vld [vmem:[%s2 + $0x130] sm:$0xf]
  %v207 = vld [vmem:[%s2 + $0x134] sm:$0xf]
  %v208 = vld [vmem:[%s2 + $0x138] sm:$0xf]
  %v209 = vld [vmem:[%s2 + $0x13c] sm:$0xf]
  %v210 = vld [vmem:[%s2 + $0x140] sm:$0xf]
  %v211 = vld [vmem:[%s2 + $0x144] sm:$0xf]
  %v212 = vld [vmem:[%s2 + $0x148] sm:$0xf]
  %v213 = vld [vmem:[%s2 + $0x14c] sm:$0xf]
  %v214 = vld [vmem:[%s2 + $0x150] sm:$0xf]
  %v215 = vld [vmem:[%s2 + $0x154] sm:$0xf]
  %v216 = vld [vmem:[%s2 + $0x158] sm:$0xf]
  %v217 = vld [vmem:[%s2 + $0x15c] sm:$0xf]
  %v218 = vld [vmem:[%s2 + $0x160] sm:$0xf]
  %v219 = vld [vmem:[%s2 + $0x164] sm:$0xf]
  %v220 = vld [vmem:[%s2 + $0x168] sm:$0xf]
  %v221 = vld [vmem:[%s2 + $0x16c] sm:$0xf]
  %v222 = vld [vmem:[%s2 + $0x170] sm:$0xf]
  %v223 = vld [vmem:[%s2 + $0x174] sm:$0xf]
  %v224 = vld [vmem:[%s2 + $0x178] sm:$0xf]
  %v225 = vld [vmem:[%s2 + $0x17c] sm:$0xf]
  %v226 = vld [vmem:[%s2 + $0x180] sm:$0xf]
  %v227 = vld [vmem:[%s2 + $0x184] sm:$0xf]
  %v228 = vld [vmem:[%s2 + $0x188] sm:$0xf]
  %v229 = vld [vmem:[%s2 + $0x18c] sm:$0xf]
  %v230 = vld [vmem:[%s2 + $0x190] sm:$0xf]
  %v231 = vld [vmem:[%s2 + $0x194] sm:$0xf]
  %v232 = vld [vmem:[%s2 + $0x198] sm:$0xf]
  %v233 = vld [vmem:[%s2 + $0x19c] sm:$0xf]
  %v234 = vld [vmem:[%s2 + $0x1a0] sm:$0xf]
  %v235 = vld [vmem:[%s2 + $0x1a4] sm:$0xf]
  %v236 = vld [vmem:[%s2 + $0x1a8] sm:$0xf]
  %v237 = vld [vmem:[%s2 + $0x1ac] sm:$0xf]
  %v238 = vld [vmem:[%s2 + $0x1b0] sm:$0xf]
  %v239 = vld [vmem:[%s2 + $0x1b4] sm:$0xf]
  %v240 = vld [vmem:[%s2 + $0x1b8] sm:$0xf]
  %v241 = vld [vmem:[%s2 + $0x1bc] sm:$0xf]
  %v242 = vld [vmem:[%s2 + $0x1c0] sm:$0xf]
  %v243 = vld [vmem:[%s2 + $0x1c4] sm:$0xf]
  %v244 = vld [vmem:[%s2 + $0x1c8] sm:$0xf]
  %v245 = vld [vmem:[%s2 + $0x1cc] sm:$0xf]
  %v246 = vld [vmem:[%s2 + $0x1d0] sm:$0xf]
  %v247 = vld [vmem:[%s2 + $0x1d4] sm:$0xf]
  %v248 = vld [vmem:[%s2 + $0x1d8] sm:$0xf]
  %v249 = vld [vmem:[%s2 + $0x1dc] sm:$0xf]
  %v250 = vld [vmem:[%s2 + $0x1e0] sm:$0xf]
  %v251 = vld [vmem:[%s2 + $0x1e4] sm:$0xf]
  %v252 = vld [vmem:[%s2 + $0x1e8] sm:$0xf]
  %v253 = vld [vmem:[%s2 + $0x1ec] sm:$0xf]
  %v254 = vld [vmem:[%s2 + $0x1f0] sm:$0xf]
  %v255 = vld [vmem:[%s2 + $0x1f4] sm:$0xf]
  %v256 = vld [vmem:[%s2 + $0x1f8] sm:$0xf]
  %v257 = vld [vmem:[%s2 + $0x1fc] sm:$0xf]
  %v258 = vld [vmem:[%s2 + $0x200] sm:$0xf]
  %v259 = vld [vmem:[%s2 + $0x204] sm:$0xf]
  %v260 = vld [vmem:[%s2 + $0x208] sm:$0xf]
  %v261 = vld [vmem:[%s2 + $0x20c] sm:$0xf]
  %v262 = vld [vmem:[%s2 + $0x210] sm:$0xf]
  %v263 = vld [vmem:[%s2 + $0x214] sm:$0xf]
  %v264 = vld [vmem:[%s2 + $0x218] sm:$0xf]
  %v265 = vld [vmem:[%s2 + $0x21c] sm:$0xf]
  %v266 = vld [vmem:[%s2 + $0x220] sm:$0xf]
  %v267 = vld [vmem:[%s2 + $0x224] sm:$0xf]
  %v268 = vld [vmem:[%s2 + $0x228] sm:$0xf]
  %v269 = vld [vmem:[%s2 + $0x22c] sm:$0xf]
  %v270 = vld [vmem:[%s2 + $0x230] sm:$0xf]
  %v271 = vld [vmem:[%s2 + $0x234] sm:$0xf]
  %v272 = vld [vmem:[%s2 + $0x238] sm:$0xf]
  %v273 = vld [vmem:[%s2 + $0x23c] sm:$0xf]
  %v274 = vld [vmem:[%s2 + $0x240] sm:$0xf]
  %v275 = vld [vmem:[%s2 + $0x244] sm:$0xf]
  %v276 = vld [vmem:[%s2 + $0x248] sm:$0xf]
  %v277 = vld [vmem:[%s2 + $0x24c] sm:$0xf]
  %v278 = vld [vmem:[%s2 + $0x250] sm:$0xf]
  %v279 = vld [vmem:[%s2 + $0x254] sm:$0xf]
  %v280 = vld [vmem:[%s2 + $0x258] sm:$0xf]
  %v281 = vld [vmem:[%s2 + $0x25c] sm:$0xf]
  %v282 = vld [vmem:[%s2 + $0x260] sm:$0xf]
  %v283 = vld [vmem:[%s2 + $0x264] sm:$0xf]
  %v284 = vld [vmem:[%s2 + $0x268] sm:$0xf]
  %v285 = vld [vmem:[%s2 + $0x26c] sm:$0xf]
  %v286 = vld [vmem:[%s2 + $0x270] sm:$0xf]
  %v287 = vld [vmem:[%s2 + $0x274] sm:$0xf]
  %v288 = vld [vmem:[%s2 + $0x278] sm:$0xf]
  %v289 = vld [vmem:[%s2 + $0x27c] sm:$0xf]
  %v290 = vld [vmem:[%s2 + $0x280] sm:$0xf]
  %v291 = vld [vmem:[%s2 + $0x284] sm:$0xf]
  %v292 = vld [vmem:[%s2 + $0x288] sm:$0xf]
  %v293 = vld [vmem:[%s2 + $0x28c] sm:$0xf]
  %v294 = vld [vmem:[%s2 + $0x290] sm:$0xf]
  %v295 = vld [vmem:[%s2 + $0x294] sm:$0xf]
  %v296 = vld [vmem:[%s2 + $0x298] sm:$0xf]
  %v297 = vld [vmem:[%s2 + $0x29c] sm:$0xf]
  %v298 = vld [vmem:[%s2 + $0x2a0] sm:$0xf]
  %v299 = vld [vmem:[%s2 + $0x2a4] sm:$0xf]
  %v300 = vld [vmem:[%s2 + $0x2a8] sm:$0xf]
  %v301 = vld [vmem:[%s2 + $0x2ac] sm:$0xf]
  %v302 = vld [vmem:[%s2 + $0x2b0] sm:$0xf]
  %v303 = vld [vmem:[%s2 + $0x2b4] sm:$0xf]
  %v304 = vld [vmem:[%s2 + $0x2b8] sm:$0xf]
  %v305 = vld [vmem:[%s2 + $0x2bc] sm:$0xf]
  %v306 = vld [vmem:[%s2 + $0x2c0] sm:$0xf]
  %v307 = vld [vmem:[%s2 + $0x2c4] sm:$0xf]
  %v308 = vld [vmem:[%s2 + $0x2c8] sm:$0xf]
  %v309 = vld [vmem:[%s2 + $0x2cc] sm:$0xf]
  %v310 = vld [vmem:[%s2 + $0x2d0] sm:$0xf]
  %v311 = vld [vmem:[%s2 + $0x2d4] sm:$0xf]
  %v312 = vld [vmem:[%s2 + $0x2d8] sm:$0xf]
  %v313 = vld [vmem:[%s2 + $0x2dc] sm:$0xf]
  %v314 = vld [vmem:[%s2 + $0x2e0] sm:$0xf]
  %v315 = vld [vmem:[%s2 + $0x2e4] sm:$0xf]
  %v316 = vld [vmem:[%s2 + $0x2e8] sm:$0xf]
  %v317 = vld [vmem:[%s2 + $0x2ec] sm:$0xf]
  %v318 = vld [vmem:[%s2 + $0x2f0] sm:$0xf]
  %v319 = vld [vmem:[%s2 + $0x2f4] sm:$0xf]
  %v320 = vld [vmem:[%s2 + $0x2f8] sm:$0xf]
  %v321 = vld [vmem:[%s2 + $0x2fc] sm:$0xf]
  %v322 = vld [vmem:[%s2 + $0x300] sm:$0xf]
  %v323 = vld [vmem:[%s2 + $0x304] sm:$0xf]
  %v324 = vld [vmem:[%s2 + $0x308] sm:$0xf]
  %v325 = vld [vmem:[%s2 + $0x30c] sm:$0xf]
  %v326 = vld [vmem:[%s2 + $0x310] sm:$0xf]
  %v327 = vld [vmem:[%s2 + $0x314] sm:$0xf]
  %v328 = vld [vmem:[%s2 + $0x318] sm:$0xf]
  %v329 = vld [vmem:[%s2 + $0x31c] sm:$0xf]
  %v330 = vld [vmem:[%s2 + $0x320] sm:$0xf]
  %v331 = vld [vmem:[%s2 + $0x324] sm:$0xf]
  %v332 = vld [vmem:[%s2 + $0x328] sm:$0xf]
  %v333 = vld [vmem:[%s2 + $0x32c] sm:$0xf]
  %v334 = vld [vmem:[%s2 + $0x330] sm:$0xf]
  %v335 = vld [vmem:[%s2 + $0x334] sm:$0xf]
  %v336 = vld [vmem:[%s2 + $0x338] sm:$0xf]
  %v337 = vld [vmem:[%s2 + $0x33c] sm:$0xf]
  %v338 = vld [vmem:[%s2 + $0x340] sm:$0xf]
  %v339 = vld [vmem:[%s2 + $0x344] sm:$0xf]
  %v340 = vld [vmem:[%s2 + $0x348] sm:$0xf]
  %v341 = vld [vmem:[%s2 + $0x34c] sm:$0xf]
  %v342 = vld [vmem:[%s2 + $0x350] sm:$0xf]
  %v343 = vld [vmem:[%s2 + $0x354] sm:$0xf]
  %v344 = vld [vmem:[%s2 + $0x358] sm:$0xf]
  %v345 = vld [vmem:[%s2 + $0x35c] sm:$0xf]
  %v458 = vunpack.c.l.b16 %v18
  %v459 = vunpack.c.h.b16 %v18
  %v460 = vunpack.c.l.b16 %v19
  %v461 = vunpack.c.h.b16 %v19
  %v462 = vunpack.c.l.b16 %v20
  %v463 = vunpack.c.h.b16 %v20
  %v464 = vunpack.c.l.b16 %v21
  %v465 = vunpack.c.h.b16 %v21
  %v466 = vunpack.c.l.b16 %v22
  %v467 = vunpack.c.h.b16 %v22
  %v468 = vunpack.c.l.b16 %v23
  %v469 = vunpack.c.h.b16 %v23
  %v470 = vunpack.c.l.b16 %v24
  %v471 = vunpack.c.h.b16 %v24
  %v472 = vunpack.c.l.b16 %v25
  %v473 = vunpack.c.h.b16 %v25
  %v474 = vunpack.c.l.b16 %v26
  %v475 = vunpack.c.h.b16 %v26
  %v476 = vunpack.c.l.b16 %v27
  %v477 = vunpack.c.h.b16 %v27
  %v478 = vunpack.c.l.b16 %v28
  %v479 = vunpack.c.h.b16 %v28
  %v480 = vunpack.c.l.b16 %v29
  %v481 = vunpack.c.h.b16 %v29
  %v482 = vunpack.c.l.b16 %v30
  %v483 = vunpack.c.h.b16 %v30
  %v484 = vunpack.c.l.b16 %v31
  %v485 = vunpack.c.h.b16 %v31
  %v486 = vunpack.c.l.b16 %v32
  %v487 = vunpack.c.h.b16 %v32
  %v488 = vunpack.c.l.b16 %v33
  %v489 = vunpack.c.h.b16 %v33
  %v490 = vunpack.c.l.b16 %v34
  %v491 = vunpack.c.h.b16 %v34
  %v492 = vunpack.c.l.b16 %v35
  %v493 = vunpack.c.h.b16 %v35
  %v494 = vunpack.c.l.b16 %v36
  %v495 = vunpack.c.h.b16 %v36
  %v496 = vunpack.c.l.b16 %v37
  %v497 = vunpack.c.h.b16 %v37
  %v498 = vunpack.c.l.b16 %v38
  %v499 = vunpack.c.h.b16 %v38
  %v500 = vunpack.c.l.b16 %v39
  %v501 = vunpack.c.h.b16 %v39
  %v502 = vunpack.c.l.b16 %v40
  %v503 = vunpack.c.h.b16 %v40
  %v504 = vunpack.c.l.b16 %v41
  %v505 = vunpack.c.h.b16 %v41
  %v506 = vunpack.c.l.b16 %v42
  %v507 = vunpack.c.h.b16 %v42
  %v508 = vunpack.c.l.b16 %v43
  %v509 = vunpack.c.h.b16 %v43
  %v510 = vunpack.c.l.b16 %v44
  %v511 = vunpack.c.h.b16 %v44
  %v512 = vunpack.c.l.b16 %v45
  %v513 = vunpack.c.h.b16 %v45
  %v514 = vunpack.c.l.b16 %v46
  %v515 = vunpack.c.h.b16 %v46
  %v516 = vunpack.c.l.b16 %v47
  %v517 = vunpack.c.h.b16 %v47
  %v518 = vunpack.c.l.b16 %v48
  %v519 = vunpack.c.h.b16 %v48
  %v520 = vunpack.c.l.b16 %v49
  %v521 = vunpack.c.h.b16 %v49
  %v522 = vunpack.c.l.b16 %v50
  %v523 = vunpack.c.h.b16 %v50
  %v524 = vunpack.c.l.b16 %v51
  %v525 = vunpack.c.h.b16 %v51
  %v526 = vunpack.c.l.b16 %v52
  %v527 = vunpack.c.h.b16 %v52
  %v528 = vunpack.c.l.b16 %v53
  %v529 = vunpack.c.h.b16 %v53
  %v530 = vunpack.c.l.b16 %v54
  %v531 = vunpack.c.h.b16 %v54
  %v532 = vunpack.c.l.b16 %v55
  %v533 = vunpack.c.h.b16 %v55
  %v534 = vunpack.c.l.b16 %v56
  %v535 = vunpack.c.h.b16 %v56
  %v536 = vunpack.c.l.b16 %v57
  %v537 = vunpack.c.h.b16 %v57
  %v538 = vunpack.c.l.b16 %v58
  %v539 = vunpack.c.h.b16 %v58
  %v540 = vunpack.c.l.b16 %v59
  %v541 = vunpack.c.h.b16 %v59
  %v542 = vunpack.c.l.b16 %v60
  %v543 = vunpack.c.h.b16 %v60
  %v544 = vunpack.c.l.b16 %v61
  %v545 = vunpack.c.h.b16 %v61
  %v546 = vunpack.c.l.b16 %v62
  %v547 = vunpack.c.h.b16 %v62
  %v548 = vunpack.c.l.b16 %v63
  %v549 = vunpack.c.h.b16 %v63
  %v550 = vunpack.c.l.b16 %v64
  %v551 = vunpack.c.h.b16 %v64
  %v552 = vunpack.c.l.b16 %v65
  %v553 = vunpack.c.h.b16 %v65
  %v554 = vunpack.c.l.b16 %v66
  %v555 = vunpack.c.h.b16 %v66
  %v556 = vunpack.c.l.b16 %v67
  %v557 = vunpack.c.h.b16 %v67
  %v558 = vunpack.c.l.b16 %v68
  %v559 = vunpack.c.h.b16 %v68
  %v560 = vunpack.c.l.b16 %v69
  %v561 = vunpack.c.h.b16 %v69
  %v562 = vunpack.c.l.b16 %v70
  %v563 = vunpack.c.h.b16 %v70
  %v564 = vunpack.c.l.b16 %v71
  %v565 = vunpack.c.h.b16 %v71
  %v566 = vunpack.c.l.b16 %v72
  %v567 = vunpack.c.h.b16 %v72
  %v568 = vunpack.c.l.b16 %v73
  %v569 = vunpack.c.h.b16 %v73
  %v570 = vunpack.c.l.b16 %v74
  %v571 = vunpack.c.h.b16 %v74
  %v572 = vunpack.c.l.b16 %v75
  %v573 = vunpack.c.h.b16 %v75
  %v574 = vunpack.c.l.b16 %v76
  %v575 = vunpack.c.h.b16 %v76
  %v576 = vunpack.c.l.b16 %v77
  %v577 = vunpack.c.h.b16 %v77
  %v578 = vunpack.c.l.b16 %v78
  %v579 = vunpack.c.h.b16 %v78
  %v580 = vunpack.c.l.b16 %v79
  %v581 = vunpack.c.h.b16 %v79
  %v582 = vunpack.c.l.b16 %v80
  %v583 = vunpack.c.h.b16 %v80
  %v584 = vunpack.c.l.b16 %v81
  %v585 = vunpack.c.h.b16 %v81
  %v586 = vunpack.c.l.b16 %v82
  %v587 = vunpack.c.h.b16 %v82
  %v588 = vunpack.c.l.b16 %v83
  %v589 = vunpack.c.h.b16 %v83
  %v590 = vunpack.c.l.b16 %v84
  %v591 = vunpack.c.h.b16 %v84
  %v592 = vunpack.c.l.b16 %v85
  %v593 = vunpack.c.h.b16 %v85
  %v594 = vunpack.c.l.b16 %v86
  %v595 = vunpack.c.h.b16 %v86
  %v596 = vunpack.c.l.b16 %v87
  %v597 = vunpack.c.h.b16 %v87
  %v598 = vunpack.c.l.b16 %v88
  %v599 = vunpack.c.h.b16 %v88
  %v600 = vunpack.c.l.b16 %v89
  %v601 = vunpack.c.h.b16 %v89
  %v602 = vunpack.c.l.b16 %v90
  %v603 = vunpack.c.h.b16 %v90
  %v604 = vunpack.c.l.b16 %v91
  %v605 = vunpack.c.h.b16 %v91
  %v606 = vunpack.c.l.b16 %v92
  %v607 = vunpack.c.h.b16 %v92
  %v608 = vunpack.c.l.b16 %v93
  %v609 = vunpack.c.h.b16 %v93
  %v610 = vunpack.c.l.b16 %v94
  %v611 = vunpack.c.h.b16 %v94
  %v612 = vunpack.c.l.b16 %v95
  %v613 = vunpack.c.h.b16 %v95
  %v614 = vunpack.c.l.b16 %v96
  %v615 = vunpack.c.h.b16 %v96
  %v616 = vunpack.c.l.b16 %v97
  %v617 = vunpack.c.h.b16 %v97
  %v618 = vunpack.c.l.b16 %v98
  %v619 = vunpack.c.h.b16 %v98
  %v620 = vunpack.c.l.b16 %v99
  %v621 = vunpack.c.h.b16 %v99
  %v622 = vunpack.c.l.b16 %v100
  %v623 = vunpack.c.h.b16 %v100
  %v624 = vunpack.c.l.b16 %v101
  %v625 = vunpack.c.h.b16 %v101
  %v626 = vunpack.c.l.b16 %v102
  %v627 = vunpack.c.h.b16 %v102
  %v628 = vunpack.c.l.b16 %v103
  %v629 = vunpack.c.h.b16 %v103
  %v630 = vunpack.c.l.b16 %v104
  %v631 = vunpack.c.h.b16 %v104
  %v632 = vunpack.c.l.b16 %v105
  %v633 = vunpack.c.h.b16 %v105
  %v634 = vunpack.c.l.b16 %v106
  %v635 = vunpack.c.h.b16 %v106
  %v636 = vunpack.c.l.b16 %v107
  %v637 = vunpack.c.h.b16 %v107
  %v638 = vunpack.c.l.b16 %v108
  %v639 = vunpack.c.h.b16 %v108
  %v640 = vunpack.c.l.b16 %v109
  %v641 = vunpack.c.h.b16 %v109
  %v642 = vunpack.c.l.b16 %v110
  %v643 = vunpack.c.h.b16 %v110
  %v644 = vunpack.c.l.b16 %v111
  %v645 = vunpack.c.h.b16 %v111
  %v646 = vunpack.c.l.b16 %v112
  %v647 = vunpack.c.h.b16 %v112
  %v648 = vunpack.c.l.b16 %v113
  %v649 = vunpack.c.h.b16 %v113
  %v650 = vunpack.c.l.b16 %v114
  %v651 = vunpack.c.h.b16 %v114
  %v652 = vunpack.c.l.b16 %v115
  %v653 = vunpack.c.h.b16 %v115
  %v654 = vunpack.c.l.b16 %v116
  %v655 = vunpack.c.h.b16 %v116
  %v656 = vunpack.c.l.b16 %v117
  %v657 = vunpack.c.h.b16 %v117
  %v658 = vunpack.c.l.b16 %v118
  %v659 = vunpack.c.h.b16 %v118
  %v660 = vunpack.c.l.b16 %v119
  %v661 = vunpack.c.h.b16 %v119
  %v662 = vunpack.c.l.b16 %v120
  %v663 = vunpack.c.h.b16 %v120
  %v664 = vunpack.c.l.b16 %v121
  %v665 = vunpack.c.h.b16 %v121
  %v666 = vunpack.c.l.b16 %v122
  %v667 = vunpack.c.h.b16 %v122
  %v668 = vunpack.c.l.b16 %v123
  %v669 = vunpack.c.h.b16 %v123
  %v670 = vunpack.c.l.b16 %v124
  %v671 = vunpack.c.h.b16 %v124
  %v672 = vunpack.c.l.b16 %v125
  %v673 = vunpack.c.h.b16 %v125
  %v674 = vunpack.c.l.b16 %v126
  %v675 = vunpack.c.h.b16 %v126
  %v676 = vunpack.c.l.b16 %v127
  %v677 = vunpack.c.h.b16 %v127
  %v678 = vunpack.c.l.b16 %v128
  %v679 = vunpack.c.h.b16 %v128
  %v680 = vunpack.c.l.b16 %v129
  %v681 = vunpack.c.h.b16 %v129
  %v682 = vpack.c.b16 %v472, %v458
  %v683 = vpack.c.b16 %v473, %v459
  %v684 = vpack.c.b16 %v474, %v460
  %v685 = vpack.c.b16 %v475, %v461
  %v686 = vpack.c.b16 %v476, %v462
  %v687 = vpack.c.b16 %v477, %v463
  %v688 = vpack.c.b16 %v478, %v464
  %v689 = vpack.c.b16 %v479, %v465
  %v690 = vpack.c.b16 %v480, %v466
  %v691 = vpack.c.b16 %v481, %v467
  %v692 = vpack.c.b16 %v482, %v468
  %v693 = vpack.c.b16 %v483, %v469
  %v694 = vpack.c.b16 %v484, %v470
  %v695 = vpack.c.b16 %v485, %v471
  %v696 = vpack.c.b16 %v500, %v486
  %v697 = vpack.c.b16 %v501, %v487
  %v698 = vpack.c.b16 %v502, %v488
  %v699 = vpack.c.b16 %v503, %v489
  %v700 = vpack.c.b16 %v504, %v490
  %v701 = vpack.c.b16 %v505, %v491
  %v702 = vpack.c.b16 %v506, %v492
  %v703 = vpack.c.b16 %v507, %v493
  %v704 = vpack.c.b16 %v508, %v494
  %v705 = vpack.c.b16 %v509, %v495
  %v706 = vpack.c.b16 %v510, %v496
  %v707 = vpack.c.b16 %v511, %v497
  %v708 = vpack.c.b16 %v512, %v498
  %v709 = vpack.c.b16 %v513, %v499
  %v710 = vpack.c.b16 %v528, %v514
  %v711 = vpack.c.b16 %v529, %v515
  %v712 = vpack.c.b16 %v530, %v516
  %v713 = vpack.c.b16 %v531, %v517
  %v714 = vpack.c.b16 %v532, %v518
  %v715 = vpack.c.b16 %v533, %v519
  %v716 = vpack.c.b16 %v534, %v520
  %v717 = vpack.c.b16 %v535, %v521
  %v718 = vpack.c.b16 %v536, %v522
  %v719 = vpack.c.b16 %v537, %v523
  %v720 = vpack.c.b16 %v538, %v524
  %v721 = vpack.c.b16 %v539, %v525
  %v722 = vpack.c.b16 %v540, %v526
  %v723 = vpack.c.b16 %v541, %v527
  %v724 = vpack.c.b16 %v556, %v542
  %v725 = vpack.c.b16 %v557, %v543
  %v726 = vpack.c.b16 %v558, %v544
  %v727 = vpack.c.b16 %v559, %v545
  %v728 = vpack.c.b16 %v560, %v546
  %v729 = vpack.c.b16 %v561, %v547
  %v730 = vpack.c.b16 %v562, %v548
  %v731 = vpack.c.b16 %v563, %v549
  %v732 = vpack.c.b16 %v564, %v550
  %v733 = vpack.c.b16 %v565, %v551
  %v734 = vpack.c.b16 %v566, %v552
  %v735 = vpack.c.b16 %v567, %v553
  %v736 = vpack.c.b16 %v568, %v554
  %v737 = vpack.c.b16 %v569, %v555
  %v738 = vpack.c.b16 %v584, %v570
  %v739 = vpack.c.b16 %v585, %v571
  %v740 = vpack.c.b16 %v586, %v572
  %v741 = vpack.c.b16 %v587, %v573
  %v742 = vpack.c.b16 %v588, %v574
  %v743 = vpack.c.b16 %v589, %v575
  %v744 = vpack.c.b16 %v590, %v576
  %v745 = vpack.c.b16 %v591, %v577
  %v746 = vpack.c.b16 %v592, %v578
  %v747 = vpack.c.b16 %v593, %v579
  %v748 = vpack.c.b16 %v594, %v580
  %v749 = vpack.c.b16 %v595, %v581
  %v750 = vpack.c.b16 %v596, %v582
  %v751 = vpack.c.b16 %v597, %v583
  %v752 = vpack.c.b16 %v612, %v598
  %v753 = vpack.c.b16 %v613, %v599
  %v754 = vpack.c.b16 %v614, %v600
  %v755 = vpack.c.b16 %v615, %v601
  %v756 = vpack.c.b16 %v616, %v602
  %v757 = vpack.c.b16 %v617, %v603
  %v758 = vpack.c.b16 %v618, %v604
  %v759 = vpack.c.b16 %v619, %v605
  %v760 = vpack.c.b16 %v620, %v606
  %v761 = vpack.c.b16 %v621, %v607
  %v762 = vpack.c.b16 %v622, %v608
  %v763 = vpack.c.b16 %v623, %v609
  %v764 = vpack.c.b16 %v624, %v610
  %v765 = vpack.c.b16 %v625, %v611
  %v766 = vpack.c.b16 %v640, %v626
  %v767 = vpack.c.b16 %v641, %v627
  %v768 = vpack.c.b16 %v642, %v628
  %v769 = vpack.c.b16 %v643, %v629
  %v770 = vpack.c.b16 %v644, %v630
  %v771 = vpack.c.b16 %v645, %v631
  %v772 = vpack.c.b16 %v646, %v632
  %v773 = vpack.c.b16 %v647, %v633
  %v774 = vpack.c.b16 %v648, %v634
  %v775 = vpack.c.b16 %v649, %v635
  %v776 = vpack.c.b16 %v650, %v636
  %v777 = vpack.c.b16 %v651, %v637
  %v778 = vpack.c.b16 %v652, %v638
  %v779 = vpack.c.b16 %v653, %v639
  %v780 = vpack.c.b16 %v668, %v654
  %v781 = vpack.c.b16 %v669, %v655
  %v782 = vpack.c.b16 %v670, %v656
  %v783 = vpack.c.b16 %v671, %v657
  %v784 = vpack.c.b16 %v672, %v658
  %v785 = vpack.c.b16 %v673, %v659
  %v786 = vpack.c.b16 %v674, %v660
  %v787 = vpack.c.b16 %v675, %v661
  %v788 = vpack.c.b16 %v676, %v662
  %v789 = vpack.c.b16 %v677, %v663
  %v790 = vpack.c.b16 %v678, %v664
  %v791 = vpack.c.b16 %v679, %v665
  %v792 = vpack.c.b16 %v680, %v666
  %v793 = vpack.c.b16 %v681, %v667
  %v1114 = vunpack.c.l.b16 %v130
  %v1115 = vunpack.c.l.b16 %v131
  %v1116 = vunpack.c.l.b16 %v132
  %v1117 = vunpack.c.l.b16 %v133
  %v1118 = vunpack.c.l.b16 %v134
  %v1119 = vunpack.c.l.b16 %v135
  %v1120 = vunpack.c.l.b16 %v136
  %v1121 = vunpack.c.l.b16 %v137
  %v1122 = vunpack.c.l.b16 %v138
  %v1123 = vunpack.c.l.b16 %v139
  %v1124 = vunpack.c.l.b16 %v140
  %v1125 = vunpack.c.l.b16 %v141
  %v1126 = vunpack.c.l.b16 %v142
  %v1127 = vunpack.c.l.b16 %v143
  %v1128 = vunpack.c.l.b16 %v144
  %v1129 = vunpack.c.l.b16 %v145
  %v1130 = vunpack.c.l.b16 %v146
  %v1131 = vunpack.c.l.b16 %v147
  %v1132 = vunpack.c.l.b16 %v148
  %v1133 = vunpack.c.l.b16 %v149
  %v1134 = vunpack.c.l.b16 %v150
  %v1135 = vunpack.c.l.b16 %v151
  %v1136 = vunpack.c.l.b16 %v152
  %v1137 = vunpack.c.l.b16 %v153
  %v1138 = vunpack.c.l.b16 %v154
  %v1139 = vunpack.c.l.b16 %v155
  %v1140 = vunpack.c.l.b16 %v156
  %v1141 = vunpack.c.l.b16 %v157
  %v1142 = vunpack.c.l.b16 %v158
  %v1143 = vunpack.c.l.b16 %v159
  %v1144 = vunpack.c.l.b16 %v160
  %v1145 = vunpack.c.l.b16 %v161
  %v1146 = vunpack.c.l.b16 %v162
  %v1147 = vunpack.c.l.b16 %v163
  %v1148 = vunpack.c.l.b16 %v164
  %v1149 = vunpack.c.l.b16 %v165
  %v1150 = vunpack.c.l.b16 %v166
  %v1151 = vunpack.c.l.b16 %v167
  %v1152 = vunpack.c.l.b16 %v168
  %v1153 = vunpack.c.l.b16 %v169
  %v1154 = vunpack.c.l.b16 %v170
  %v1155 = vunpack.c.l.b16 %v171
  %v1156 = vunpack.c.l.b16 %v172
  %v1157 = vunpack.c.l.b16 %v173
  %v1158 = vunpack.c.l.b16 %v174
  %v1159 = vunpack.c.l.b16 %v175
  %v1160 = vunpack.c.l.b16 %v176
  %v1161 = vunpack.c.l.b16 %v177
  %v1162 = vunpack.c.l.b16 %v178
  %v1163 = vunpack.c.l.b16 %v179
  %v1164 = vunpack.c.l.b16 %v180
  %v1165 = vunpack.c.l.b16 %v181
  %v1166 = vunpack.c.l.b16 %v182
  %v1167 = vunpack.c.l.b16 %v183
  %v1168 = vunpack.c.l.b16 %v184
  %v1169 = vunpack.c.l.b16 %v185
  %v1170 = vunpack.c.l.b16 %v186
  %v1171 = vunpack.c.l.b16 %v187
  %v1172 = vunpack.c.l.b16 %v188
  %v1173 = vunpack.c.l.b16 %v189
  %v1174 = vunpack.c.l.b16 %v190
  %v1175 = vunpack.c.l.b16 %v191
  %v1176 = vunpack.c.l.b16 %v192
  %v1177 = vunpack.c.l.b16 %v193
  %v1178 = vunpack.c.l.b16 %v194
  %v1179 = vunpack.c.l.b16 %v195
  %v1180 = vunpack.c.l.b16 %v196
  %v1181 = vunpack.c.l.b16 %v197
  %v1182 = vunpack.c.l.b16 %v198
  %v1183 = vunpack.c.l.b16 %v199
  %v1184 = vunpack.c.l.b16 %v200
  %v1185 = vunpack.c.l.b16 %v201
  %v1186 = vunpack.c.l.b16 %v202
  %v1187 = vunpack.c.l.b16 %v203
  %v1188 = vunpack.c.l.b16 %v204
  %v1189 = vunpack.c.l.b16 %v205
  %v1190 = vunpack.c.l.b16 %v206
  %v1191 = vunpack.c.l.b16 %v207
  %v1192 = vunpack.c.l.b16 %v208
  %v1193 = vunpack.c.l.b16 %v209
  %v1194 = vunpack.c.l.b16 %v210
  %v1195 = vunpack.c.l.b16 %v211
  %v1196 = vunpack.c.l.b16 %v212
  %v1197 = vunpack.c.l.b16 %v213
  %v1198 = vunpack.c.l.b16 %v214
  %v1199 = vunpack.c.l.b16 %v215
  %v1200 = vunpack.c.l.b16 %v216
  %v1201 = vunpack.c.l.b16 %v217
  %v1202 = vunpack.c.l.b16 %v218
  %v1203 = vunpack.c.l.b16 %v219
  %v1204 = vunpack.c.l.b16 %v220
  %v1205 = vunpack.c.l.b16 %v221
  %v1206 = vunpack.c.l.b16 %v222
  %v1207 = vunpack.c.l.b16 %v223
  %v1208 = vunpack.c.l.b16 %v224
  %v1209 = vunpack.c.l.b16 %v225
  %v1210 = vunpack.c.l.b16 %v226
  %v1211 = vunpack.c.l.b16 %v227
  %v1212 = vunpack.c.l.b16 %v228
  %v1213 = vunpack.c.l.b16 %v229
  %v1214 = vunpack.c.l.b16 %v230
  %v1215 = vunpack.c.l.b16 %v231
  %v1216 = vunpack.c.l.b16 %v232
  %v1217 = vunpack.c.l.b16 %v233
  %v1218 = vunpack.c.l.b16 %v234
  %v1219 = vunpack.c.l.b16 %v235
  %v1220 = vunpack.c.l.b16 %v236
  %v1221 = vunpack.c.l.b16 %v237
  %v1222 = vunpack.c.l.b16 %v238
  %v1223 = vunpack.c.l.b16 %v239
  %v1224 = vunpack.c.l.b16 %v240
  %v1225 = vunpack.c.l.b16 %v241
  %v1226 = vunpack.c.l.b16 %v242
  %v1227 = vunpack.c.l.b16 %v243
  %v1228 = vunpack.c.l.b16 %v244
  %v1229 = vunpack.c.l.b16 %v245
  %v1230 = vunpack.c.l.b16 %v246
  %v1231 = vunpack.c.l.b16 %v247
  %v1232 = vunpack.c.l.b16 %v248
  %v1233 = vunpack.c.l.b16 %v249
  %v1234 = vunpack.c.l.b16 %v250
  %v1235 = vunpack.c.l.b16 %v251
  %v1236 = vunpack.c.l.b16 %v252
  %v1237 = vunpack.c.l.b16 %v253
  %v1238 = vunpack.c.l.b16 %v254
  %v1239 = vunpack.c.l.b16 %v255
  %v1240 = vunpack.c.l.b16 %v256
  %v1241 = vunpack.c.l.b16 %v257
  %v1242 = vunpack.c.l.b16 %v258
  %v1243 = vunpack.c.l.b16 %v259
  %v1244 = vunpack.c.l.b16 %v260
  %v1245 = vunpack.c.l.b16 %v261
  %v1246 = vunpack.c.l.b16 %v262
  %v1247 = vunpack.c.l.b16 %v263
  %v1248 = vunpack.c.l.b16 %v264
  %v1249 = vunpack.c.l.b16 %v265
  %v1250 = vunpack.c.l.b16 %v266
  %v1251 = vunpack.c.l.b16 %v267
  %v1252 = vunpack.c.l.b16 %v268
  %v1253 = vunpack.c.l.b16 %v269
  %v1254 = vunpack.c.l.b16 %v270
  %v1255 = vunpack.c.l.b16 %v271
  %v1256 = vunpack.c.l.b16 %v272
  %v1257 = vunpack.c.l.b16 %v273
  %v1258 = vunpack.c.l.b16 %v274
  %v1259 = vunpack.c.l.b16 %v275
  %v1260 = vunpack.c.l.b16 %v276
  %v1261 = vunpack.c.l.b16 %v277
  %v1262 = vunpack.c.l.b16 %v278
  %v1263 = vunpack.c.l.b16 %v279
  %v1264 = vunpack.c.l.b16 %v280
  %v1265 = vunpack.c.l.b16 %v281
  %v1266 = vunpack.c.l.b16 %v282
  %v1267 = vunpack.c.l.b16 %v283
  %v1268 = vunpack.c.l.b16 %v284
  %v1269 = vunpack.c.l.b16 %v285
  %v1270 = vunpack.c.l.b16 %v286
  %v1271 = vunpack.c.l.b16 %v287
  %v1272 = vunpack.c.l.b16 %v288
  %v1273 = vunpack.c.l.b16 %v289
  %v1274 = vunpack.c.l.b16 %v290
  %v1275 = vunpack.c.l.b16 %v291
  %v1276 = vunpack.c.l.b16 %v292
  %v1277 = vunpack.c.l.b16 %v293
  %v1278 = vunpack.c.l.b16 %v294
  %v1279 = vunpack.c.l.b16 %v295
  %v1280 = vunpack.c.l.b16 %v296
  %v1281 = vunpack.c.l.b16 %v297
  %v1282 = vunpack.c.l.b16 %v298
  %v1283 = vunpack.c.l.b16 %v299
  %v1284 = vunpack.c.l.b16 %v300
  %v1285 = vunpack.c.l.b16 %v301
  %v1286 = vunpack.c.l.b16 %v302
  %v1287 = vunpack.c.l.b16 %v303
  %v1288 = vunpack.c.l.b16 %v304
  %v1289 = vunpack.c.l.b16 %v305
  %v1290 = vunpack.c.l.b16 %v306
  %v1291 = vunpack.c.l.b16 %v307
  %v1292 = vunpack.c.l.b16 %v308
  %v1293 = vunpack.c.l.b16 %v309
  %v1294 = vunpack.c.l.b16 %v310
  %v1295 = vunpack.c.l.b16 %v311
  %v1296 = vunpack.c.l.b16 %v312
  %v1297 = vunpack.c.l.b16 %v313
  %v1298 = vunpack.c.l.b16 %v314
  %v1299 = vunpack.c.l.b16 %v315
  %v1300 = vunpack.c.l.b16 %v316
  %v1301 = vunpack.c.l.b16 %v317
  %v1302 = vunpack.c.l.b16 %v318
  %v1303 = vunpack.c.l.b16 %v319
  %v1304 = vunpack.c.l.b16 %v320
  %v1305 = vunpack.c.l.b16 %v321
  %v1306 = vunpack.c.l.b16 %v322
  %v1307 = vunpack.c.l.b16 %v323
  %v1308 = vunpack.c.l.b16 %v324
  %v1309 = vunpack.c.l.b16 %v325
  %v1310 = vunpack.c.l.b16 %v326
  %v1311 = vunpack.c.l.b16 %v327
  %v1312 = vunpack.c.l.b16 %v328
  %v1313 = vunpack.c.l.b16 %v329
  %v1314 = vunpack.c.l.b16 %v330
  %v1315 = vunpack.c.l.b16 %v331
  %v1316 = vunpack.c.l.b16 %v332
  %v1317 = vunpack.c.l.b16 %v333
  %v1318 = vunpack.c.l.b16 %v334
  %v1319 = vunpack.c.l.b16 %v335
  %v1320 = vunpack.c.l.b16 %v336
  %v1321 = vunpack.c.l.b16 %v337
  %v1322 = vunpack.c.l.b16 %v338
  %v1323 = vunpack.c.l.b16 %v339
  %v1324 = vunpack.c.l.b16 %v340
  %v1325 = vunpack.c.l.b16 %v341
  %v1326 = vunpack.c.l.b16 %v342
  %v1327 = vunpack.c.l.b16 %v343
  %v1328 = vunpack.c.l.b16 %v344
  %v1329 = vunpack.c.l.b16 %v345
  %v1330 = vpack.c.b16 %v1115, %v1114
  %v1331 = vpack.c.b16 %v1117, %v1116
  %v1332 = vpack.c.b16 %v1119, %v1118
  %v1333 = vpack.c.b16 %v1121, %v1120
  %v1334 = vpack.c.b16 %v1123, %v1122
  %v1335 = vpack.c.b16 %v1125, %v1124
  %v1336 = vpack.c.b16 %v1127, %v1126
  %v1337 = vpack.c.b16 %v1129, %v1128
  %v1338 = vpack.c.b16 %v1131, %v1130
  %v1339 = vpack.c.b16 %v1133, %v1132
  %v1340 = vpack.c.b16 %v1135, %v1134
  %v1341 = vpack.c.b16 %v1137, %v1136
  %v1342 = vpack.c.b16 %v1139, %v1138
  %v1343 = vpack.c.b16 %v1141, %v1140
  %v1344 = vpack.c.b16 %v1143, %v1142
  %v1345 = vpack.c.b16 %v1145, %v1144
  %v1346 = vpack.c.b16 %v1147, %v1146
  %v1347 = vpack.c.b16 %v1149, %v1148
  %v1348 = vpack.c.b16 %v1151, %v1150
  %v1349 = vpack.c.b16 %v1153, %v1152
  %v1350 = vpack.c.b16 %v1155, %v1154
  %v1351 = vpack.c.b16 %v1157, %v1156
  %v1352 = vpack.c.b16 %v1159, %v1158
  %v1353 = vpack.c.b16 %v1161, %v1160
  %v1354 = vpack.c.b16 %v1163, %v1162
  %v1355 = vpack.c.b16 %v1165, %v1164
  %v1356 = vpack.c.b16 %v1167, %v1166
  %v1357 = vpack.c.b16 %v1169, %v1168
  %v1358 = vpack.c.b16 %v1171, %v1170
  %v1359 = vpack.c.b16 %v1173, %v1172
  %v1360 = vpack.c.b16 %v1175, %v1174
  %v1361 = vpack.c.b16 %v1177, %v1176
  %v1362 = vpack.c.b16 %v1179, %v1178
  %v1363 = vpack.c.b16 %v1181, %v1180
  %v1364 = vpack.c.b16 %v1183, %v1182
  %v1365 = vpack.c.b16 %v1185, %v1184
  %v1366 = vpack.c.b16 %v1187, %v1186
  %v1367 = vpack.c.b16 %v1189, %v1188
  %v1368 = vpack.c.b16 %v1191, %v1190
  %v1369 = vpack.c.b16 %v1193, %v1192
  %v1370 = vpack.c.b16 %v1195, %v1194
  %v1371 = vpack.c.b16 %v1197, %v1196
  %v1372 = vpack.c.b16 %v1199, %v1198
  %v1373 = vpack.c.b16 %v1201, %v1200
  %v1374 = vpack.c.b16 %v1203, %v1202
  %v1375 = vpack.c.b16 %v1205, %v1204
  %v1376 = vpack.c.b16 %v1207, %v1206
  %v1377 = vpack.c.b16 %v1209, %v1208
  %v1378 = vpack.c.b16 %v1211, %v1210
  %v1379 = vpack.c.b16 %v1213, %v1212
  %v1380 = vpack.c.b16 %v1215, %v1214
  %v1381 = vpack.c.b16 %v1217, %v1216
  %v1382 = vpack.c.b16 %v1219, %v1218
  %v1383 = vpack.c.b16 %v1221, %v1220
  %v1384 = vpack.c.b16 %v1223, %v1222
  %v1385 = vpack.c.b16 %v1225, %v1224
  %v1386 = vpack.c.b16 %v1227, %v1226
  %v1387 = vpack.c.b16 %v1229, %v1228
  %v1388 = vpack.c.b16 %v1231, %v1230
  %v1389 = vpack.c.b16 %v1233, %v1232
  %v1390 = vpack.c.b16 %v1235, %v1234
  %v1391 = vpack.c.b16 %v1237, %v1236
  %v1392 = vpack.c.b16 %v1239, %v1238
  %v1393 = vpack.c.b16 %v1241, %v1240
  %v1394 = vpack.c.b16 %v1243, %v1242
  %v1395 = vpack.c.b16 %v1245, %v1244
  %v1396 = vpack.c.b16 %v1247, %v1246
  %v1397 = vpack.c.b16 %v1249, %v1248
  %v1398 = vpack.c.b16 %v1251, %v1250
  %v1399 = vpack.c.b16 %v1253, %v1252
  %v1400 = vpack.c.b16 %v1255, %v1254
  %v1401 = vpack.c.b16 %v1257, %v1256
  %v1402 = vpack.c.b16 %v1259, %v1258
  %v1403 = vpack.c.b16 %v1261, %v1260
  %v1404 = vpack.c.b16 %v1263, %v1262
  %v1405 = vpack.c.b16 %v1265, %v1264
  %v1406 = vpack.c.b16 %v1267, %v1266
  %v1407 = vpack.c.b16 %v1269, %v1268
  %v1408 = vpack.c.b16 %v1271, %v1270
  %v1409 = vpack.c.b16 %v1273, %v1272
  %v1410 = vpack.c.b16 %v1275, %v1274
  %v1411 = vpack.c.b16 %v1277, %v1276
  %v1412 = vpack.c.b16 %v1279, %v1278
  %v1413 = vpack.c.b16 %v1281, %v1280
  %v1414 = vpack.c.b16 %v1283, %v1282
  %v1415 = vpack.c.b16 %v1285, %v1284
  %v1416 = vpack.c.b16 %v1287, %v1286
  %v1417 = vpack.c.b16 %v1289, %v1288
  %v1418 = vpack.c.b16 %v1291, %v1290
  %v1419 = vpack.c.b16 %v1293, %v1292
  %v1420 = vpack.c.b16 %v1295, %v1294
  %v1421 = vpack.c.b16 %v1297, %v1296
  %v1422 = vpack.c.b16 %v1299, %v1298
  %v1423 = vpack.c.b16 %v1301, %v1300
  %v1424 = vpack.c.b16 %v1303, %v1302
  %v1425 = vpack.c.b16 %v1305, %v1304
  %v1426 = vpack.c.b16 %v1307, %v1306
  %v1427 = vpack.c.b16 %v1309, %v1308
  %v1428 = vpack.c.b16 %v1311, %v1310
  %v1429 = vpack.c.b16 %v1313, %v1312
  %v1430 = vpack.c.b16 %v1315, %v1314
  %v1431 = vpack.c.b16 %v1317, %v1316
  %v1432 = vpack.c.b16 %v1319, %v1318
  %v1433 = vpack.c.b16 %v1321, %v1320
  %v1434 = vpack.c.b16 %v1323, %v1322
  %v1435 = vpack.c.b16 %v1325, %v1324
  %v1436 = vpack.c.b16 %v1327, %v1326
  %v1437 = vpack.c.b16 %v1329, %v1328
  %vm1546 = vcmask 523264
  %v1548 = vsel %vm1546, %v695, 0
  %v1551 = vsel %vm1546, %v709, 0
  %v1554 = vsel %vm1546, %v723, 0
  %v1557 = vsel %vm1546, %v737, 0
  %v1560 = vsel %vm1546, %v751, 0
  %v1563 = vsel %vm1546, %v765, 0
  %v1566 = vsel %vm1546, %v779, 0
  %v1569 = vsel %vm1546, %v793, 0
  %1571 = vmatprep.subr.bf16.mxu0 0
  %1572 = vmatpush1.bf16.msra.mxu0 %v1337
  %1573 = vmatprep.subr.bf16.mxu0 0
  %1574 = vmatpush1.bf16.msra.mxu0 %v1336
  %1575 = vmatprep.subr.bf16.mxu0 0
  %1576 = vmatpush1.bf16.msra.mxu0 %v1335
  %1577 = vmatprep.subr.bf16.mxu0 0
  %1578 = vmatpush1.bf16.msra.mxu0 %v1334
  %1579 = vmatprep.subr.bf16.mxu0 0
  %1580 = vmatpush1.bf16.msra.mxu0 %v1333
  %1581 = vmatprep.subr.bf16.mxu0 0
  %1582 = vmatpush1.bf16.msra.mxu0 %v1332
  %1583 = vmatprep.subr.bf16.mxu0 0
  %1584 = vmatpush1.bf16.msra.mxu0 %v1331
  %1585 = vmatprep.subr.bf16.mxu0 0
  %1586 = vmatpush1.bf16.msra.mxu0 %v1330
  %1587 = vmatprep.subr.bf16.mxu0 0
  %1588 = vmatpush2.bf16.msra.mxu0 %v1345
  %1589 = vmatprep.subr.bf16.mxu0 0
  %1590 = vmatpush2.bf16.msra.mxu0 %v1344
  %1591 = vmatprep.subr.bf16.mxu0 0
  %1592 = vmatpush2.bf16.msra.mxu0 %v1343
  %1593 = vmatprep.subr.bf16.mxu0 0
  %1594 = vmatpush2.bf16.msra.mxu0 %v1342
  %1595 = vmatprep.subr.bf16.mxu0 0
  %1596 = vmatpush2.bf16.msra.mxu0 %v1341
  %1597 = vmatprep.subr.bf16.mxu0 0
  %1598 = vmatpush2.bf16.msra.mxu0 %v1340
  %1599 = vmatprep.subr.bf16.mxu0 0
  %1600 = vmatpush2.bf16.msra.mxu0 %v1339
  %1601 = vmatprep.subr.bf16.mxu0 0
  %1602 = vmatpush2.bf16.msra.mxu0 %v1338
  %1603 = vmatprep.mubr.bf16.mxu0 %v683
  %1604 = vmatmul.mubr.bf16.gmra.mxu0 %v682
  %v1605 = vpop.f32.mrf.mxu0
  %v1606 = vadd.f32 0.0, %v1605
  %v1607 = vpop.f32.mrf.mxu0
  %v1608 = vpop.f32.mrf.mxu0
  %v1609 = vadd.f32 0.0, %v1608
  %v1610 = vpop.f32.mrf.mxu0
  %1611 = vmatprep.mubr.bf16.mxu0 %v697
  %1612 = vmatmul.mubr.bf16.gmra.mxu0 %v696
  %v1613 = vpop.f32.mrf.mxu0
  %v1614 = vadd.f32 0.0, %v1613
  %v1615 = vpop.f32.mrf.mxu0
  %v1616 = vpop.f32.mrf.mxu0
  %v1617 = vadd.f32 0.0, %v1616
  %v1618 = vpop.f32.mrf.mxu0
  %1619 = vmatprep.mubr.bf16.mxu0 %v711
  %1620 = vmatmul.mubr.bf16.gmra.mxu0 %v710
  %v1621 = vpop.f32.mrf.mxu0
  %v1622 = vadd.f32 0.0, %v1621
  %v1623 = vpop.f32.mrf.mxu0
  %v1624 = vpop.f32.mrf.mxu0
  %v1625 = vadd.f32 0.0, %v1624
  %v1626 = vpop.f32.mrf.mxu0
  %1627 = vmatprep.mubr.bf16.mxu0 %v725
  %1628 = vmatmul.mubr.bf16.gmra.mxu0 %v724
  %v1629 = vpop.f32.mrf.mxu0
  %v1630 = vadd.f32 0.0, %v1629
  %v1631 = vpop.f32.mrf.mxu0
  %v1632 = vpop.f32.mrf.mxu0
  %v1633 = vadd.f32 0.0, %v1632
  %v1634 = vpop.f32.mrf.mxu0
  %1635 = vmatprep.mubr.bf16.mxu0 %v739
  %1636 = vmatmul.mubr.bf16.gmra.mxu0 %v738
  %v1637 = vpop.f32.mrf.mxu0
  %v1638 = vadd.f32 0.0, %v1637
  %v1639 = vpop.f32.mrf.mxu0
  %v1640 = vpop.f32.mrf.mxu0
  %v1641 = vadd.f32 0.0, %v1640
  %v1642 = vpop.f32.mrf.mxu0
  %1643 = vmatprep.mubr.bf16.mxu0 %v753
  %1644 = vmatmul.mubr.bf16.gmra.mxu0 %v752
  %v1645 = vpop.f32.mrf.mxu0
  %v1646 = vadd.f32 0.0, %v1645
  %v1647 = vpop.f32.mrf.mxu0
  %v1648 = vpop.f32.mrf.mxu0
  %v1649 = vadd.f32 0.0, %v1648
  %v1650 = vpop.f32.mrf.mxu0
  %1651 = vmatprep.mubr.bf16.mxu0 %v767
  %1652 = vmatmul.mubr.bf16.gmra.mxu0 %v766
  %v1653 = vpop.f32.mrf.mxu0
  %v1654 = vadd.f32 0.0, %v1653
  %v1655 = vpop.f32.mrf.mxu0
  %v1656 = vpop.f32.mrf.mxu0
  %v1657 = vadd.f32 0.0, %v1656
  %v1658 = vpop.f32.mrf.mxu0
  %1659 = vmatprep.mubr.bf16.mxu0 %v781
  %1660 = vmatmul.mubr.bf16.gmra.mxu0 %v780
  %v1661 = vpop.f32.mrf.mxu0
  %v1662 = vadd.f32 0.0, %v1661
  %v1663 = vpop.f32.mrf.mxu0
  %v1664 = vpop.f32.mrf.mxu0
  %v1665 = vadd.f32 0.0, %v1664
  %v1666 = vpop.f32.mrf.mxu0
  %1667 = vdwg.mxu0
  %1668 = vmatprep.subr.bf16.mxu0 0
  %1669 = vmatpush1.bf16.msra.mxu0 %v1353
  %1670 = vmatprep.subr.bf16.mxu0 0
  %1671 = vmatpush1.bf16.msra.mxu0 %v1352
  %1672 = vmatprep.subr.bf16.mxu0 0
  %1673 = vmatpush1.bf16.msra.mxu0 %v1351
  %1674 = vmatprep.subr.bf16.mxu0 0
  %1675 = vmatpush1.bf16.msra.mxu0 %v1350
  %1676 = vmatprep.subr.bf16.mxu0 0
  %1677 = vmatpush1.bf16.msra.mxu0 %v1349
  %1678 = vmatprep.subr.bf16.mxu0 0
  %1679 = vmatpush1.bf16.msra.mxu0 %v1348
  %1680 = vmatprep.subr.bf16.mxu0 0
  %1681 = vmatpush1.bf16.msra.mxu0 %v1347
  %1682 = vmatprep.subr.bf16.mxu0 0
  %1683 = vmatpush1.bf16.msra.mxu0 %v1346
  %1684 = vmatprep.subr.bf16.mxu0 0
  %1685 = vmatpush2.bf16.msra.mxu0 %v1361
  %1686 = vmatprep.subr.bf16.mxu0 0
  %1687 = vmatpush2.bf16.msra.mxu0 %v1360
  %1688 = vmatprep.subr.bf16.mxu0 0
  %1689 = vmatpush2.bf16.msra.mxu0 %v1359
  %1690 = vmatprep.subr.bf16.mxu0 0
  %1691 = vmatpush2.bf16.msra.mxu0 %v1358
  %1692 = vmatprep.subr.bf16.mxu0 0
  %1693 = vmatpush2.bf16.msra.mxu0 %v1357
  %1694 = vmatprep.subr.bf16.mxu0 0
  %1695 = vmatpush2.bf16.msra.mxu0 %v1356
  %1696 = vmatprep.subr.bf16.mxu0 0
  %1697 = vmatpush2.bf16.msra.mxu0 %v1355
  %1698 = vmatprep.subr.bf16.mxu0 0
  %1699 = vmatpush2.bf16.msra.mxu0 %v1354
  %1700 = vmatprep.mubr.bf16.mxu0 %v685
  %1701 = vmatmul.mubr.bf16.gmra.mxu0 %v684
  %v1702 = vpop.f32.mrf.mxu0
  %v1703 = vadd.f32 %v1606, %v1702
  %v1704 = vpop.f32.mrf.mxu0
  %v1705 = vpop.f32.mrf.mxu0
  %v1706 = vadd.f32 %v1609, %v1705
  %v1707 = vpop.f32.mrf.mxu0
  %1708 = vmatprep.mubr.bf16.mxu0 %v699
  %1709 = vmatmul.mubr.bf16.gmra.mxu0 %v698
  %v1710 = vpop.f32.mrf.mxu0
  %v1711 = vadd.f32 %v1614, %v1710
  %v1712 = vpop.f32.mrf.mxu0
  %v1713 = vpop.f32.mrf.mxu0
  %v1714 = vadd.f32 %v1617, %v1713
  %v1715 = vpop.f32.mrf.mxu0
  %1716 = vmatprep.mubr.bf16.mxu0 %v713
  %1717 = vmatmul.mubr.bf16.gmra.mxu0 %v712
  %v1718 = vpop.f32.mrf.mxu0
  %v1719 = vadd.f32 %v1622, %v1718
  %v1720 = vpop.f32.mrf.mxu0
  %v1721 = vpop.f32.mrf.mxu0
  %v1722 = vadd.f32 %v1625, %v1721
  %v1723 = vpop.f32.mrf.mxu0
  %1724 = vmatprep.mubr.bf16.mxu0 %v727
  %1725 = vmatmul.mubr.bf16.gmra.mxu0 %v726
  %v1726 = vpop.f32.mrf.mxu0
  %v1727 = vadd.f32 %v1630, %v1726
  %v1728 = vpop.f32.mrf.mxu0
  %v1729 = vpop.f32.mrf.mxu0
  %v1730 = vadd.f32 %v1633, %v1729
  %v1731 = vpop.f32.mrf.mxu0
  %1732 = vmatprep.mubr.bf16.mxu0 %v741
  %1733 = vmatmul.mubr.bf16.gmra.mxu0 %v740
  %v1734 = vpop.f32.mrf.mxu0
  %v1735 = vadd.f32 %v1638, %v1734
  %v1736 = vpop.f32.mrf.mxu0
  %v1737 = vpop.f32.mrf.mxu0
  %v1738 = vadd.f32 %v1641, %v1737
  %v1739 = vpop.f32.mrf.mxu0
  %1740 = vmatprep.mubr.bf16.mxu0 %v755
  %1741 = vmatmul.mubr.bf16.gmra.mxu0 %v754
  %v1742 = vpop.f32.mrf.mxu0
  %v1743 = vadd.f32 %v1646, %v1742
  %v1744 = vpop.f32.mrf.mxu0
  %v1745 = vpop.f32.mrf.mxu0
  %v1746 = vadd.f32 %v1649, %v1745
  %v1747 = vpop.f32.mrf.mxu0
  %1748 = vmatprep.mubr.bf16.mxu0 %v769
  %1749 = vmatmul.mubr.bf16.gmra.mxu0 %v768
  %v1750 = vpop.f32.mrf.mxu0
  %v1751 = vadd.f32 %v1654, %v1750
  %v1752 = vpop.f32.mrf.mxu0
  %v1753 = vpop.f32.mrf.mxu0
  %v1754 = vadd.f32 %v1657, %v1753
  %v1755 = vpop.f32.mrf.mxu0
  %1756 = vmatprep.mubr.bf16.mxu0 %v783
  %1757 = vmatmul.mubr.bf16.gmra.mxu0 %v782
  %v1758 = vpop.f32.mrf.mxu0
  %v1759 = vadd.f32 %v1662, %v1758
  %v1760 = vpop.f32.mrf.mxu0
  %v1761 = vpop.f32.mrf.mxu0
  %v1762 = vadd.f32 %v1665, %v1761
  %v1763 = vpop.f32.mrf.mxu0
  %1764 = vdwg.mxu0
  %1765 = vmatprep.subr.bf16.mxu0 0
  %1766 = vmatpush1.bf16.msra.mxu0 %v1369
  %1767 = vmatprep.subr.bf16.mxu0 0
  %1768 = vmatpush1.bf16.msra.mxu0 %v1368
  %1769 = vmatprep.subr.bf16.mxu0 0
  %1770 = vmatpush1.bf16.msra.mxu0 %v1367
  %1771 = vmatprep.subr.bf16.mxu0 0
  %1772 = vmatpush1.bf16.msra.mxu0 %v1366
  %1773 = vmatprep.subr.bf16.mxu0 0
  %1774 = vmatpush1.bf16.msra.mxu0 %v1365
  %1775 = vmatprep.subr.bf16.mxu0 0
  %1776 = vmatpush1.bf16.msra.mxu0 %v1364
  %1777 = vmatprep.subr.bf16.mxu0 0
  %1778 = vmatpush1.bf16.msra.mxu0 %v1363
  %1779 = vmatprep.subr.bf16.mxu0 0
  %1780 = vmatpush1.bf16.msra.mxu0 %v1362
  %1781 = vmatprep.subr.bf16.mxu0 0
  %1782 = vmatpush2.bf16.msra.mxu0 %v1377
  %1783 = vmatprep.subr.bf16.mxu0 0
  %1784 = vmatpush2.bf16.msra.mxu0 %v1376
  %1785 = vmatprep.subr.bf16.mxu0 0
  %1786 = vmatpush2.bf16.msra.mxu0 %v1375
  %1787 = vmatprep.subr.bf16.mxu0 0
  %1788 = vmatpush2.bf16.msra.mxu0 %v1374
  %1789 = vmatprep.subr.bf16.mxu0 0
  %1790 = vmatpush2.bf16.msra.mxu0 %v1373
  %1791 = vmatprep.subr.bf16.mxu0 0
  %1792 = vmatpush2.bf16.msra.mxu0 %v1372
  %1793 = vmatprep.subr.bf16.mxu0 0
  %1794 = vmatpush2.bf16.msra.mxu0 %v1371
  %1795 = vmatprep.subr.bf16.mxu0 0
  %1796 = vmatpush2.bf16.msra.mxu0 %v1370
  %1797 = vmatprep.mubr.bf16.mxu0 %v687
  %1798 = vmatmul.mubr.bf16.gmra.mxu0 %v686
  %v1799 = vpop.f32.mrf.mxu0
  %v1800 = vadd.f32 %v1703, %v1799
  %v1801 = vpop.f32.mrf.mxu0
  %v1802 = vpop.f32.mrf.mxu0
  %v1803 = vadd.f32 %v1706, %v1802
  %v1804 = vpop.f32.mrf.mxu0
  %1805 = vmatprep.mubr.bf16.mxu0 %v701
  %1806 = vmatmul.mubr.bf16.gmra.mxu0 %v700
  %v1807 = vpop.f32.mrf.mxu0
  %v1808 = vadd.f32 %v1711, %v1807
  %v1809 = vpop.f32.mrf.mxu0
  %v1810 = vpop.f32.mrf.mxu0
  %v1811 = vadd.f32 %v1714, %v1810
  %v1812 = vpop.f32.mrf.mxu0
  %1813 = vmatprep.mubr.bf16.mxu0 %v715
  %1814 = vmatmul.mubr.bf16.gmra.mxu0 %v714
  %v1815 = vpop.f32.mrf.mxu0
  %v1816 = vadd.f32 %v1719, %v1815
  %v1817 = vpop.f32.mrf.mxu0
  %v1818 = vpop.f32.mrf.mxu0
  %v1819 = vadd.f32 %v1722, %v1818
  %v1820 = vpop.f32.mrf.mxu0
  %1821 = vmatprep.mubr.bf16.mxu0 %v729
  %1822 = vmatmul.mubr.bf16.gmra.mxu0 %v728
  %v1823 = vpop.f32.mrf.mxu0
  %v1824 = vadd.f32 %v1727, %v1823
  %v1825 = vpop.f32.mrf.mxu0
  %v1826 = vpop.f32.mrf.mxu0
  %v1827 = vadd.f32 %v1730, %v1826
  %v1828 = vpop.f32.mrf.mxu0
  %1829 = vmatprep.mubr.bf16.mxu0 %v743
  %1830 = vmatmul.mubr.bf16.gmra.mxu0 %v742
  %v1831 = vpop.f32.mrf.mxu0
  %v1832 = vadd.f32 %v1735, %v1831
  %v1833 = vpop.f32.mrf.mxu0
  %v1834 = vpop.f32.mrf.mxu0
  %v1835 = vadd.f32 %v1738, %v1834
  %v1836 = vpop.f32.mrf.mxu0
  %1837 = vmatprep.mubr.bf16.mxu0 %v757
  %1838 = vmatmul.mubr.bf16.gmra.mxu0 %v756
  %v1839 = vpop.f32.mrf.mxu0
  %v1840 = vadd.f32 %v1743, %v1839
  %v1841 = vpop.f32.mrf.mxu0
  %v1842 = vpop.f32.mrf.mxu0
  %v1843 = vadd.f32 %v1746, %v1842
  %v1844 = vpop.f32.mrf.mxu0
  %1845 = vmatprep.mubr.bf16.mxu0 %v771
  %1846 = vmatmul.mubr.bf16.gmra.mxu0 %v770
  %v1847 = vpop.f32.mrf.mxu0
  %v1848 = vadd.f32 %v1751, %v1847
  %v1849 = vpop.f32.mrf.mxu0
  %v1850 = vpop.f32.mrf.mxu0
  %v1851 = vadd.f32 %v1754, %v1850
  %v1852 = vpop.f32.mrf.mxu0
  %1853 = vmatprep.mubr.bf16.mxu0 %v785
  %1854 = vmatmul.mubr.bf16.gmra.mxu0 %v784
  %v1855 = vpop.f32.mrf.mxu0
  %v1856 = vadd.f32 %v1759, %v1855
  %v1857 = vpop.f32.mrf.mxu0
  %v1858 = vpop.f32.mrf.mxu0
  %v1859 = vadd.f32 %v1762, %v1858
  %v1860 = vpop.f32.mrf.mxu0
  %1861 = vdwg.mxu0
  %1862 = vmatprep.subr.bf16.mxu0 0
  %1863 = vmatpush1.bf16.msra.mxu0 %v1385
  %1864 = vmatprep.subr.bf16.mxu0 0
  %1865 = vmatpush1.bf16.msra.mxu0 %v1384
  %1866 = vmatprep.subr.bf16.mxu0 0
  %1867 = vmatpush1.bf16.msra.mxu0 %v1383
  %1868 = vmatprep.subr.bf16.mxu0 0
  %1869 = vmatpush1.bf16.msra.mxu0 %v1382
  %1870 = vmatprep.subr.bf16.mxu0 0
  %1871 = vmatpush1.bf16.msra.mxu0 %v1381
  %1872 = vmatprep.subr.bf16.mxu0 0
  %1873 = vmatpush1.bf16.msra.mxu0 %v1380
  %1874 = vmatprep.subr.bf16.mxu0 0
  %1875 = vmatpush1.bf16.msra.mxu0 %v1379
  %1876 = vmatprep.subr.bf16.mxu0 0
  %1877 = vmatpush1.bf16.msra.mxu0 %v1378
  %1878 = vmatprep.subr.bf16.mxu0 0
  %1879 = vmatpush2.bf16.msra.mxu0 %v1393
  %1880 = vmatprep.subr.bf16.mxu0 0
  %1881 = vmatpush2.bf16.msra.mxu0 %v1392
  %1882 = vmatprep.subr.bf16.mxu0 0
  %1883 = vmatpush2.bf16.msra.mxu0 %v1391
  %1884 = vmatprep.subr.bf16.mxu0 0
  %1885 = vmatpush2.bf16.msra.mxu0 %v1390
  %1886 = vmatprep.subr.bf16.mxu0 0
  %1887 = vmatpush2.bf16.msra.mxu0 %v1389
  %1888 = vmatprep.subr.bf16.mxu0 0
  %1889 = vmatpush2.bf16.msra.mxu0 %v1388
  %1890 = vmatprep.subr.bf16.mxu0 0
  %1891 = vmatpush2.bf16.msra.mxu0 %v1387
  %1892 = vmatprep.subr.bf16.mxu0 0
  %1893 = vmatpush2.bf16.msra.mxu0 %v1386
  %1894 = vmatprep.mubr.bf16.mxu0 %v689
  %1895 = vmatmul.mubr.bf16.gmra.mxu0 %v688
  %v1896 = vpop.f32.mrf.mxu0
  %v1897 = vadd.f32 %v1800, %v1896
  %v1898 = vpop.f32.mrf.mxu0
  %v1899 = vpop.f32.mrf.mxu0
  %v1900 = vadd.f32 %v1803, %v1899
  %v1901 = vpop.f32.mrf.mxu0
  %1902 = vmatprep.mubr.bf16.mxu0 %v703
  %1903 = vmatmul.mubr.bf16.gmra.mxu0 %v702
  %v1904 = vpop.f32.mrf.mxu0
  %v1905 = vadd.f32 %v1808, %v1904
  %v1906 = vpop.f32.mrf.mxu0
  %v1907 = vpop.f32.mrf.mxu0
  %v1908 = vadd.f32 %v1811, %v1907
  %v1909 = vpop.f32.mrf.mxu0
  %1910 = vmatprep.mubr.bf16.mxu0 %v717
  %1911 = vmatmul.mubr.bf16.gmra.mxu0 %v716
  %v1912 = vpop.f32.mrf.mxu0
  %v1913 = vadd.f32 %v1816, %v1912
  %v1914 = vpop.f32.mrf.mxu0
  %v1915 = vpop.f32.mrf.mxu0
  %v1916 = vadd.f32 %v1819, %v1915
  %v1917 = vpop.f32.mrf.mxu0
  %1918 = vmatprep.mubr.bf16.mxu0 %v731
  %1919 = vmatmul.mubr.bf16.gmra.mxu0 %v730
  %v1920 = vpop.f32.mrf.mxu0
  %v1921 = vadd.f32 %v1824, %v1920
  %v1922 = vpop.f32.mrf.mxu0
  %v1923 = vpop.f32.mrf.mxu0
  %v1924 = vadd.f32 %v1827, %v1923
  %v1925 = vpop.f32.mrf.mxu0
  %1926 = vmatprep.mubr.bf16.mxu0 %v745
  %1927 = vmatmul.mubr.bf16.gmra.mxu0 %v744
  %v1928 = vpop.f32.mrf.mxu0
  %v1929 = vadd.f32 %v1832, %v1928
  %v1930 = vpop.f32.mrf.mxu0
  %v1931 = vpop.f32.mrf.mxu0
  %v1932 = vadd.f32 %v1835, %v1931
  %v1933 = vpop.f32.mrf.mxu0
  %1934 = vmatprep.mubr.bf16.mxu0 %v759
  %1935 = vmatmul.mubr.bf16.gmra.mxu0 %v758
  %v1936 = vpop.f32.mrf.mxu0
  %v1937 = vadd.f32 %v1840, %v1936
  %v1938 = vpop.f32.mrf.mxu0
  %v1939 = vpop.f32.mrf.mxu0
  %v1940 = vadd.f32 %v1843, %v1939
  %v1941 = vpop.f32.mrf.mxu0
  %1942 = vmatprep.mubr.bf16.mxu0 %v773
  %1943 = vmatmul.mubr.bf16.gmra.mxu0 %v772
  %v1944 = vpop.f32.mrf.mxu0
  %v1945 = vadd.f32 %v1848, %v1944
  %v1946 = vpop.f32.mrf.mxu0
  %v1947 = vpop.f32.mrf.mxu0
  %v1948 = vadd.f32 %v1851, %v1947
  %v1949 = vpop.f32.mrf.mxu0
  %1950 = vmatprep.mubr.bf16.mxu0 %v787
  %1951 = vmatmul.mubr.bf16.gmra.mxu0 %v786
  %v1952 = vpop.f32.mrf.mxu0
  %v1953 = vadd.f32 %v1856, %v1952
  %v1954 = vpop.f32.mrf.mxu0
  %v1955 = vpop.f32.mrf.mxu0
  %v1956 = vadd.f32 %v1859, %v1955
  %v1957 = vpop.f32.mrf.mxu0
  %1958 = vdwg.mxu0
  %1959 = vmatprep.subr.bf16.mxu0 0
  %1960 = vmatpush1.bf16.msra.mxu0 %v1401
  %1961 = vmatprep.subr.bf16.mxu0 0
  %1962 = vmatpush1.bf16.msra.mxu0 %v1400
  %1963 = vmatprep.subr.bf16.mxu0 0
  %1964 = vmatpush1.bf16.msra.mxu0 %v1399
  %1965 = vmatprep.subr.bf16.mxu0 0
  %1966 = vmatpush1.bf16.msra.mxu0 %v1398
  %1967 = vmatprep.subr.bf16.mxu0 0
  %1968 = vmatpush1.bf16.msra.mxu0 %v1397
  %1969 = vmatprep.subr.bf16.mxu0 0
  %1970 = vmatpush1.bf16.msra.mxu0 %v1396
  %1971 = vmatprep.subr.bf16.mxu0 0
  %1972 = vmatpush1.bf16.msra.mxu0 %v1395
  %1973 = vmatprep.subr.bf16.mxu0 0
  %1974 = vmatpush1.bf16.msra.mxu0 %v1394
  %1975 = vmatprep.subr.bf16.mxu0 0
  %1976 = vmatpush2.bf16.msra.mxu0 %v1409
  %1977 = vmatprep.subr.bf16.mxu0 0
  %1978 = vmatpush2.bf16.msra.mxu0 %v1408
  %1979 = vmatprep.subr.bf16.mxu0 0
  %1980 = vmatpush2.bf16.msra.mxu0 %v1407
  %1981 = vmatprep.subr.bf16.mxu0 0
  %1982 = vmatpush2.bf16.msra.mxu0 %v1406
  %1983 = vmatprep.subr.bf16.mxu0 0
  %1984 = vmatpush2.bf16.msra.mxu0 %v1405
  %1985 = vmatprep.subr.bf16.mxu0 0
  %1986 = vmatpush2.bf16.msra.mxu0 %v1404
  %1987 = vmatprep.subr.bf16.mxu0 0
  %1988 = vmatpush2.bf16.msra.mxu0 %v1403
  %1989 = vmatprep.subr.bf16.mxu0 0
  %1990 = vmatpush2.bf16.msra.mxu0 %v1402
  %1991 = vmatprep.mubr.bf16.mxu0 %v691
  %1992 = vmatmul.mubr.bf16.gmra.mxu0 %v690
  %v1993 = vpop.f32.mrf.mxu0
  %v1994 = vadd.f32 %v1897, %v1993
  %v1995 = vpop.f32.mrf.mxu0
  %v1996 = vpop.f32.mrf.mxu0
  %v1997 = vadd.f32 %v1900, %v1996
  %v1998 = vpop.f32.mrf.mxu0
  %1999 = vmatprep.mubr.bf16.mxu0 %v705
  %2000 = vmatmul.mubr.bf16.gmra.mxu0 %v704
  %v2001 = vpop.f32.mrf.mxu0
  %v2002 = vadd.f32 %v1905, %v2001
  %v2003 = vpop.f32.mrf.mxu0
  %v2004 = vpop.f32.mrf.mxu0
  %v2005 = vadd.f32 %v1908, %v2004
  %v2006 = vpop.f32.mrf.mxu0
  %2007 = vmatprep.mubr.bf16.mxu0 %v719
  %2008 = vmatmul.mubr.bf16.gmra.mxu0 %v718
  %v2009 = vpop.f32.mrf.mxu0
  %v2010 = vadd.f32 %v1913, %v2009
  %v2011 = vpop.f32.mrf.mxu0
  %v2012 = vpop.f32.mrf.mxu0
  %v2013 = vadd.f32 %v1916, %v2012
  %v2014 = vpop.f32.mrf.mxu0
  %2015 = vmatprep.mubr.bf16.mxu0 %v733
  %2016 = vmatmul.mubr.bf16.gmra.mxu0 %v732
  %v2017 = vpop.f32.mrf.mxu0
  %v2018 = vadd.f32 %v1921, %v2017
  %v2019 = vpop.f32.mrf.mxu0
  %v2020 = vpop.f32.mrf.mxu0
  %v2021 = vadd.f32 %v1924, %v2020
  %v2022 = vpop.f32.mrf.mxu0
  %2023 = vmatprep.mubr.bf16.mxu0 %v747
  %2024 = vmatmul.mubr.bf16.gmra.mxu0 %v746
  %v2025 = vpop.f32.mrf.mxu0
  %v2026 = vadd.f32 %v1929, %v2025
  %v2027 = vpop.f32.mrf.mxu0
  %v2028 = vpop.f32.mrf.mxu0
  %v2029 = vadd.f32 %v1932, %v2028
  %v2030 = vpop.f32.mrf.mxu0
  %2031 = vmatprep.mubr.bf16.mxu0 %v761
  %2032 = vmatmul.mubr.bf16.gmra.mxu0 %v760
  %v2033 = vpop.f32.mrf.mxu0
  %v2034 = vadd.f32 %v1937, %v2033
  %v2035 = vpop.f32.mrf.mxu0
  %v2036 = vpop.f32.mrf.mxu0
  %v2037 = vadd.f32 %v1940, %v2036
  %v2038 = vpop.f32.mrf.mxu0
  %2039 = vmatprep.mubr.bf16.mxu0 %v775
  %2040 = vmatmul.mubr.bf16.gmra.mxu0 %v774
  %v2041 = vpop.f32.mrf.mxu0
  %v2042 = vadd.f32 %v1945, %v2041
  %v2043 = vpop.f32.mrf.mxu0
  %v2044 = vpop.f32.mrf.mxu0
  %v2045 = vadd.f32 %v1948, %v2044
  %v2046 = vpop.f32.mrf.mxu0
  %2047 = vmatprep.mubr.bf16.mxu0 %v789
  %2048 = vmatmul.mubr.bf16.gmra.mxu0 %v788
  %v2049 = vpop.f32.mrf.mxu0
  %v2050 = vadd.f32 %v1953, %v2049
  %v2051 = vpop.f32.mrf.mxu0
  %v2052 = vpop.f32.mrf.mxu0
  %v2053 = vadd.f32 %v1956, %v2052
  %v2054 = vpop.f32.mrf.mxu0
  %2055 = vdwg.mxu0
  %2056 = vmatprep.subr.bf16.mxu0 0
  %2057 = vmatpush1.bf16.msra.mxu0 %v1417
  %2058 = vmatprep.subr.bf16.mxu0 0
  %2059 = vmatpush1.bf16.msra.mxu0 %v1416
  %2060 = vmatprep.subr.bf16.mxu0 0
  %2061 = vmatpush1.bf16.msra.mxu0 %v1415
  %2062 = vmatprep.subr.bf16.mxu0 0
  %2063 = vmatpush1.bf16.msra.mxu0 %v1414
  %2064 = vmatprep.subr.bf16.mxu0 0
  %2065 = vmatpush1.bf16.msra.mxu0 %v1413
  %2066 = vmatprep.subr.bf16.mxu0 0
  %2067 = vmatpush1.bf16.msra.mxu0 %v1412
  %2068 = vmatprep.subr.bf16.mxu0 0
  %2069 = vmatpush1.bf16.msra.mxu0 %v1411
  %2070 = vmatprep.subr.bf16.mxu0 0
  %2071 = vmatpush1.bf16.msra.mxu0 %v1410
  %2072 = vmatprep.subr.bf16.mxu0 0
  %2073 = vmatpush2.bf16.msra.mxu0 %v1425
  %2074 = vmatprep.subr.bf16.mxu0 0
  %2075 = vmatpush2.bf16.msra.mxu0 %v1424
  %2076 = vmatprep.subr.bf16.mxu0 0
  %2077 = vmatpush2.bf16.msra.mxu0 %v1423
  %2078 = vmatprep.subr.bf16.mxu0 0
  %2079 = vmatpush2.bf16.msra.mxu0 %v1422
  %2080 = vmatprep.subr.bf16.mxu0 0
  %2081 = vmatpush2.bf16.msra.mxu0 %v1421
  %2082 = vmatprep.subr.bf16.mxu0 0
  %2083 = vmatpush2.bf16.msra.mxu0 %v1420
  %2084 = vmatprep.subr.bf16.mxu0 0
  %2085 = vmatpush2.bf16.msra.mxu0 %v1419
  %2086 = vmatprep.subr.bf16.mxu0 0
  %2087 = vmatpush2.bf16.msra.mxu0 %v1418
  %2088 = vmatprep.mubr.bf16.mxu0 %v693
  %2089 = vmatmul.mubr.bf16.gmra.mxu0 %v692
  %v2090 = vpop.f32.mrf.mxu0
  %v2091 = vadd.f32 %v1994, %v2090
  %v2092 = vpop.f32.mrf.mxu0
  %v2093 = vpop.f32.mrf.mxu0
  %v2094 = vadd.f32 %v1997, %v2093
  %v2095 = vpop.f32.mrf.mxu0
  %2096 = vmatprep.mubr.bf16.mxu0 %v707
  %2097 = vmatmul.mubr.bf16.gmra.mxu0 %v706
  %v2098 = vpop.f32.mrf.mxu0
  %v2099 = vadd.f32 %v2002, %v2098
  %v2100 = vpop.f32.mrf.mxu0
  %v2101 = vpop.f32.mrf.mxu0
  %v2102 = vadd.f32 %v2005, %v2101
  %v2103 = vpop.f32.mrf.mxu0
  %2104 = vmatprep.mubr.bf16.mxu0 %v721
  %2105 = vmatmul.mubr.bf16.gmra.mxu0 %v720
  %v2106 = vpop.f32.mrf.mxu0
  %v2107 = vadd.f32 %v2010, %v2106
  %v2108 = vpop.f32.mrf.mxu0
  %v2109 = vpop.f32.mrf.mxu0
  %v2110 = vadd.f32 %v2013, %v2109
  %v2111 = vpop.f32.mrf.mxu0
  %2112 = vmatprep.mubr.bf16.mxu0 %v735
  %2113 = vmatmul.mubr.bf16.gmra.mxu0 %v734
  %v2114 = vpop.f32.mrf.mxu0
  %v2115 = vadd.f32 %v2018, %v2114
  %v2116 = vpop.f32.mrf.mxu0
  %v2117 = vpop.f32.mrf.mxu0
  %v2118 = vadd.f32 %v2021, %v2117
  %v2119 = vpop.f32.mrf.mxu0
  %2120 = vmatprep.mubr.bf16.mxu0 %v749
  %2121 = vmatmul.mubr.bf16.gmra.mxu0 %v748
  %v2122 = vpop.f32.mrf.mxu0
  %v2123 = vadd.f32 %v2026, %v2122
  %v2124 = vpop.f32.mrf.mxu0
  %v2125 = vpop.f32.mrf.mxu0
  %v2126 = vadd.f32 %v2029, %v2125
  %v2127 = vpop.f32.mrf.mxu0
  %2128 = vmatprep.mubr.bf16.mxu0 %v763
  %2129 = vmatmul.mubr.bf16.gmra.mxu0 %v762
  %v2130 = vpop.f32.mrf.mxu0
  %v2131 = vadd.f32 %v2034, %v2130
  %v2132 = vpop.f32.mrf.mxu0
  %v2133 = vpop.f32.mrf.mxu0
  %v2134 = vadd.f32 %v2037, %v2133
  %v2135 = vpop.f32.mrf.mxu0
  %2136 = vmatprep.mubr.bf16.mxu0 %v777
  %2137 = vmatmul.mubr.bf16.gmra.mxu0 %v776
  %v2138 = vpop.f32.mrf.mxu0
  %v2139 = vadd.f32 %v2042, %v2138
  %v2140 = vpop.f32.mrf.mxu0
  %v2141 = vpop.f32.mrf.mxu0
  %v2142 = vadd.f32 %v2045, %v2141
  %v2143 = vpop.f32.mrf.mxu0
  %2144 = vmatprep.mubr.bf16.mxu0 %v791
  %2145 = vmatmul.mubr.bf16.gmra.mxu0 %v790
  %v2146 = vpop.f32.mrf.mxu0
  %v2147 = vadd.f32 %v2050, %v2146
  %v2148 = vpop.f32.mrf.mxu0
  %v2149 = vpop.f32.mrf.mxu0
  %v2150 = vadd.f32 %v2053, %v2149
  %v2151 = vpop.f32.mrf.mxu0
  %2152 = vdwg.mxu0
  %2153 = vmatprep.subr.bf16.mxu0 0
  %2154 = vmatpush1.bf16.msra.mxu0 %v1433
  %2155 = vmatprep.subr.bf16.mxu0 0
  %2156 = vmatpush1.bf16.msra.mxu0 %v1432
  %2157 = vmatprep.subr.bf16.mxu0 0
  %2158 = vmatpush1.bf16.msra.mxu0 %v1431
  %2159 = vmatprep.subr.bf16.mxu0 0
  %2160 = vmatpush1.bf16.msra.mxu0 %v1430
  %2161 = vmatprep.subr.bf16.mxu0 0
  %2162 = vmatpush1.bf16.msra.mxu0 %v1429
  %2163 = vmatprep.subr.bf16.mxu0 0
  %2164 = vmatpush1.bf16.msra.mxu0 %v1428
  %2165 = vmatprep.subr.bf16.mxu0 0
  %2166 = vmatpush1.bf16.msra.mxu0 %v1427
  %2167 = vmatprep.subr.bf16.mxu0 0
  %2168 = vmatpush1.bf16.msra.mxu0 %v1426
  %2169 = vmatprep.subr.bf16.mxu0 0
  %2170 = vmatpush2.bf16.msra.mxu0 0
  %2171 = vmatprep.subr.bf16.mxu0 0
  %2172 = vmatpush2.bf16.msra.mxu0 0
  %2173 = vmatprep.subr.bf16.mxu0 0
  %2174 = vmatpush2.bf16.msra.mxu0 0
  %2175 = vmatprep.subr.bf16.mxu0 0
  %2176 = vmatpush2.bf16.msra.mxu0 0
  %2177 = vmatprep.subr.bf16.mxu0 0
  %2178 = vmatpush2.bf16.msra.mxu0 %v1437
  %2179 = vmatprep.subr.bf16.mxu0 0
  %2180 = vmatpush2.bf16.msra.mxu0 %v1436
  %2181 = vmatprep.subr.bf16.mxu0 0
  %2182 = vmatpush2.bf16.msra.mxu0 %v1435
  %2183 = vmatprep.subr.bf16.mxu0 0
  %2184 = vmatpush2.bf16.msra.mxu0 %v1434
  %2185 = vmatprep.mubr.bf16.mxu0 %v1548
  %2186 = vmatmul.mubr.bf16.gmra.mxu0 %v694
  %v2187 = vpop.f32.mrf.mxu0
  %v2188 = vadd.f32 %v2091, %v2187
  %v2189 = vpop.f32.mrf.mxu0
  %v2190 = vpop.f32.mrf.mxu0
  %v2191 = vadd.f32 %v2094, %v2190
  %v2192 = vpop.f32.mrf.mxu0
  %2193 = vmatprep.mubr.bf16.mxu0 %v1551
  %2194 = vmatmul.mubr.bf16.gmra.mxu0 %v708
  %v2195 = vpop.f32.mrf.mxu0
  %v2196 = vadd.f32 %v2099, %v2195
  %v2197 = vpop.f32.mrf.mxu0
  %v2198 = vpop.f32.mrf.mxu0
  %v2199 = vadd.f32 %v2102, %v2198
  %v2200 = vpop.f32.mrf.mxu0
  %2201 = vmatprep.mubr.bf16.mxu0 %v1554
  %2202 = vmatmul.mubr.bf16.gmra.mxu0 %v722
  %v2203 = vpop.f32.mrf.mxu0
  %v2204 = vadd.f32 %v2107, %v2203
  %v2205 = vpop.f32.mrf.mxu0
  %v2206 = vpop.f32.mrf.mxu0
  %v2207 = vadd.f32 %v2110, %v2206
  %v2208 = vpop.f32.mrf.mxu0
  %2209 = vmatprep.mubr.bf16.mxu0 %v1557
  %2210 = vmatmul.mubr.bf16.gmra.mxu0 %v736
  %v2211 = vpop.f32.mrf.mxu0
  %v2212 = vadd.f32 %v2115, %v2211
  %v2213 = vpop.f32.mrf.mxu0
  %v2214 = vpop.f32.mrf.mxu0
  %v2215 = vadd.f32 %v2118, %v2214
  %v2216 = vpop.f32.mrf.mxu0
  %2217 = vmatprep.mubr.bf16.mxu0 %v1560
  %2218 = vmatmul.mubr.bf16.gmra.mxu0 %v750
  %v2219 = vpop.f32.mrf.mxu0
  %v2220 = vadd.f32 %v2123, %v2219
  %v2221 = vpop.f32.mrf.mxu0
  %v2222 = vpop.f32.mrf.mxu0
  %v2223 = vadd.f32 %v2126, %v2222
  %v2224 = vpop.f32.mrf.mxu0
  %2225 = vmatprep.mubr.bf16.mxu0 %v1563
  %2226 = vmatmul.mubr.bf16.gmra.mxu0 %v764
  %v2227 = vpop.f32.mrf.mxu0
  %v2228 = vadd.f32 %v2131, %v2227
  %v2229 = vpop.f32.mrf.mxu0
  %v2230 = vpop.f32.mrf.mxu0
  %v2231 = vadd.f32 %v2134, %v2230
  %v2232 = vpop.f32.mrf.mxu0
  %2233 = vmatprep.mubr.bf16.mxu0 %v1566
  %2234 = vmatmul.mubr.bf16.gmra.mxu0 %v778
  %v2235 = vpop.f32.mrf.mxu0
  %v2236 = vadd.f32 %v2139, %v2235
  %v2237 = vpop.f32.mrf.mxu0
  %v2238 = vpop.f32.mrf.mxu0
  %v2239 = vadd.f32 %v2142, %v2238
  %v2240 = vpop.f32.mrf.mxu0
  %2241 = vmatprep.mubr.bf16.mxu0 %v1569
  %2242 = vmatmul.mubr.bf16.gmra.mxu0 %v792
  %v2243 = vpop.f32.mrf.mxu0
  %v2244 = vadd.f32 %v2147, %v2243
  %v2245 = vpop.f32.mrf.mxu0
  %v2246 = vpop.f32.mrf.mxu0
  %v2247 = vadd.f32 %v2150, %v2246
  %v2248 = vpop.f32.mrf.mxu0
  %2249 = vdwg.mxu0
  %v2250 = vmax.f32 %v2188, 0.0
  %v2251 = vmax.f32 %v2191, 0.0
  %v2252 = vmax.f32 %v2196, 0.0
  %v2253 = vmax.f32 %v2199, 0.0
  %v2254 = vmax.f32 %v2204, 0.0
  %v2255 = vmax.f32 %v2207, 0.0
  %v2256 = vmax.f32 %v2212, 0.0
  %v2257 = vmax.f32 %v2215, 0.0
  %v2258 = vmax.f32 %v2220, 0.0
  %v2259 = vmax.f32 %v2223, 0.0
  %v2260 = vmax.f32 %v2228, 0.0
  %v2261 = vmax.f32 %v2231, 0.0
  %v2262 = vmax.f32 %v2236, 0.0
  %v2263 = vmax.f32 %v2239, 0.0
  %v2264 = vmax.f32 %v2244, 0.0
  %v2265 = vmax.f32 %v2247, 0.0
  %v2266 = vpack.c.bf16 %v2251, %v2250
  %v2267 = vpack.c.bf16 %v2253, %v2252
  %v2268 = vpack.c.bf16 %v2255, %v2254
  %v2269 = vpack.c.bf16 %v2257, %v2256
  %v2270 = vpack.c.bf16 %v2259, %v2258
  %v2271 = vpack.c.bf16 %v2261, %v2260
  %v2272 = vpack.c.bf16 %v2263, %v2262
  %v2273 = vpack.c.bf16 %v2265, %v2264
  %v2274 = vld [vmem:[%s0] sm:$0xff]
  %v2275 = vld [vmem:[%s0 + $0x8] sm:$0xff]
  %v2276 = vld [vmem:[%s0 + $0x10] sm:$0xff]
  %v2277 = vld [vmem:[%s0 + $0x18] sm:$0xff]
  %v2278 = vld [vmem:[%s0 + $0x20] sm:$0xff]
  %v2279 = vld [vmem:[%s0 + $0x28] sm:$0xff]
  %v2280 = vld [vmem:[%s0 + $0x30] sm:$0xff]
  %v2281 = vld [vmem:[%s0 + $0x38] sm:$0xff]
  %v2282 = vld [vmem:[%s0 + $0x40] sm:$0xff]
  %v2283 = vld [vmem:[%s0 + $0x48] sm:$0xff]
  %v2284 = vld [vmem:[%s0 + $0x50] sm:$0xff]
  %v2285 = vld [vmem:[%s0 + $0x58] sm:$0xff]
  %v2286 = vld [vmem:[%s0 + $0x60] sm:$0xff]
  %v2287 = vld [vmem:[%s0 + $0x68] sm:$0xff]
  %v2288 = vld [vmem:[%s0 + $0x70] sm:$0xff]
  %v2289 = vld [vmem:[%s0 + $0x78] sm:$0xff]
  %v2290 = vld [vmem:[%s3] sm:$0xf]
  %v2291 = vld [vmem:[%s3 + $0x4] sm:$0xf]
  %v2292 = vld [vmem:[%s3 + $0x8] sm:$0xf]
  %v2293 = vld [vmem:[%s3 + $0xc] sm:$0xf]
  %v2294 = vld [vmem:[%s3 + $0x10] sm:$0xf]
  %v2295 = vld [vmem:[%s3 + $0x14] sm:$0xf]
  %v2296 = vld [vmem:[%s3 + $0x18] sm:$0xf]
  %v2297 = vld [vmem:[%s3 + $0x1c] sm:$0xf]
  %v2306 = vunpack.c.l.b16 %v2290
  %v2307 = vunpack.c.l.b16 %v2291
  %v2308 = vunpack.c.l.b16 %v2292
  %v2309 = vunpack.c.l.b16 %v2293
  %v2310 = vunpack.c.l.b16 %v2294
  %v2311 = vunpack.c.l.b16 %v2295
  %v2312 = vunpack.c.l.b16 %v2296
  %v2313 = vunpack.c.l.b16 %v2297
  %v2314 = vpack.c.b16 %v2307, %v2306
  %v2315 = vpack.c.b16 %v2309, %v2308
  %v2316 = vpack.c.b16 %v2311, %v2310
  %v2317 = vpack.c.b16 %v2313, %v2312
  %v2323 = vsel %vm1546, %v2266, 0
  %v2326 = vsel %vm1546, %v2267, 0
  %v2329 = vsel %vm1546, %v2268, 0
  %v2332 = vsel %vm1546, %v2269, 0
  %v2335 = vsel %vm1546, %v2270, 0
  %v2338 = vsel %vm1546, %v2271, 0
  %v2341 = vsel %vm1546, %v2272, 0
  %v2344 = vsel %vm1546, %v2273, 0
  %2346 = vmatprep.subr.bf16.mxu0 0
  %2347 = vmatpush1.bf16.msra.mxu0 0
  %2348 = vmatprep.subr.bf16.mxu0 0
  %2349 = vmatpush1.bf16.msra.mxu0 0
  %2350 = vmatprep.subr.bf16.mxu0 0
  %2351 = vmatpush1.bf16.msra.mxu0 0
  %2352 = vmatprep.subr.bf16.mxu0 0
  %2353 = vmatpush1.bf16.msra.mxu0 0
  %2354 = vmatprep.subr.bf16.mxu0 0
  %2355 = vmatpush1.bf16.msra.mxu0 %v2317
  %2356 = vmatprep.subr.bf16.mxu0 0
  %2357 = vmatpush1.bf16.msra.mxu0 %v2316
  %2358 = vmatprep.subr.bf16.mxu0 0
  %2359 = vmatpush1.bf16.msra.mxu0 %v2315
  %2360 = vmatprep.subr.bf16.mxu0 0
  %2361 = vmatpush1.bf16.msra.mxu0 %v2314
  %2362 = vmatprep.subr.bf16.mxu0 0
  %2363 = vmatpush2.bf16.msra.mxu0 0
  %2364 = vmatprep.subr.bf16.mxu0 0
  %2365 = vmatpush2.bf16.msra.mxu0 0
  %2366 = vmatprep.subr.bf16.mxu0 0
  %2367 = vmatpush2.bf16.msra.mxu0 0
  %2368 = vmatprep.subr.bf16.mxu0 0
  %2369 = vmatpush2.bf16.msra.mxu0 0
  %2370 = vmatprep.subr.bf16.mxu0 0
  %2371 = vmatpush2.bf16.msra.mxu0 0
  %2372 = vmatprep.subr.bf16.mxu0 0
  %2373 = vmatpush2.bf16.msra.mxu0 0
  %2374 = vmatprep.subr.bf16.mxu0 0
  %2375 = vmatpush2.bf16.msra.mxu0 0
  %2376 = vmatprep.subr.bf16.mxu0 0
  %2377 = vmatpush2.bf16.msra.mxu0 0
  %2378 = vmatprep.mubr.bf16.mxu0 0
  %2379 = vmatmul.mubr.bf16.gmra.mxu0 %v2323
  %v2380 = vpop.f32.mrf.mxu0
  %v2381 = vadd.f32 0.0, %v2380
  %v2382 = vpop.f32.mrf.mxu0
  %v2383 = vpop.f32.mrf.mxu0
  %v2384 = vadd.f32 0.0, %v2383
  %v2385 = vpop.f32.mrf.mxu0
  %2386 = vmatprep.mubr.bf16.mxu0 0
  %2387 = vmatmul.mubr.bf16.gmra.mxu0 %v2326
  %v2388 = vpop.f32.mrf.mxu0
  %v2389 = vadd.f32 0.0, %v2388
  %v2390 = vpop.f32.mrf.mxu0
  %v2391 = vpop.f32.mrf.mxu0
  %v2392 = vadd.f32 0.0, %v2391
  %v2393 = vpop.f32.mrf.mxu0
  %2394 = vmatprep.mubr.bf16.mxu0 0
  %2395 = vmatmul.mubr.bf16.gmra.mxu0 %v2329
  %v2396 = vpop.f32.mrf.mxu0
  %v2397 = vadd.f32 0.0, %v2396
  %v2398 = vpop.f32.mrf.mxu0
  %v2399 = vpop.f32.mrf.mxu0
  %v2400 = vadd.f32 0.0, %v2399
  %v2401 = vpop.f32.mrf.mxu0
  %2402 = vmatprep.mubr.bf16.mxu0 0
  %2403 = vmatmul.mubr.bf16.gmra.mxu0 %v2332
  %v2404 = vpop.f32.mrf.mxu0
  %v2405 = vadd.f32 0.0, %v2404
  %v2406 = vpop.f32.mrf.mxu0
  %v2407 = vpop.f32.mrf.mxu0
  %v2408 = vadd.f32 0.0, %v2407
  %v2409 = vpop.f32.mrf.mxu0
  %2410 = vmatprep.mubr.bf16.mxu0 0
  %2411 = vmatmul.mubr.bf16.gmra.mxu0 %v2335
  %v2412 = vpop.f32.mrf.mxu0
  %v2413 = vadd.f32 0.0, %v2412
  %v2414 = vpop.f32.mrf.mxu0
  %v2415 = vpop.f32.mrf.mxu0
  %v2416 = vadd.f32 0.0, %v2415
  %v2417 = vpop.f32.mrf.mxu0
  %2418 = vmatprep.mubr.bf16.mxu0 0
  %2419 = vmatmul.mubr.bf16.gmra.mxu0 %v2338
  %v2420 = vpop.f32.mrf.mxu0
  %v2421 = vadd.f32 0.0, %v2420
  %v2422 = vpop.f32.mrf.mxu0
  %v2423 = vpop.f32.mrf.mxu0
  %v2424 = vadd.f32 0.0, %v2423
  %v2425 = vpop.f32.mrf.mxu0
  %2426 = vmatprep.mubr.bf16.mxu0 0
  %2427 = vmatmul.mubr.bf16.gmra.mxu0 %v2341
  %v2428 = vpop.f32.mrf.mxu0
  %v2429 = vadd.f32 0.0, %v2428
  %v2430 = vpop.f32.mrf.mxu0
  %v2431 = vpop.f32.mrf.mxu0
  %v2432 = vadd.f32 0.0, %v2431
  %v2433 = vpop.f32.mrf.mxu0
  %2434 = vmatprep.mubr.bf16.mxu0 0
  %2435 = vmatmul.mubr.bf16.gmra.mxu0 %v2344
  %v2436 = vpop.f32.mrf.mxu0
  %v2437 = vadd.f32 0.0, %v2436
  %v2438 = vpop.f32.mrf.mxu0
  %v2439 = vpop.f32.mrf.mxu0
  %v2440 = vadd.f32 0.0, %v2439
  %v2441 = vpop.f32.mrf.mxu0
  %2442 = vdwg.mxu0
  %v2443 = vadd.f32 %v2274, %v2381
  %v2444 = vadd.f32 %v2275, %v2384
  %v2445 = vadd.f32 %v2276, %v2389
  %v2446 = vadd.f32 %v2277, %v2392
  %v2447 = vadd.f32 %v2278, %v2397
  %v2448 = vadd.f32 %v2279, %v2400
  %v2449 = vadd.f32 %v2280, %v2405
  %v2450 = vadd.f32 %v2281, %v2408
  %v2451 = vadd.f32 %v2282, %v2413
  %v2452 = vadd.f32 %v2283, %v2416
  %v2453 = vadd.f32 %v2284, %v2421
  %v2454 = vadd.f32 %v2285, %v2424
  %v2455 = vadd.f32 %v2286, %v2429
  %v2456 = vadd.f32 %v2287, %v2432
  %v2457 = vadd.f32 %v2288, %v2437
  %v2458 = vadd.f32 %v2289, %v2440
  %2459 = vst.msk [vmem:[%s4] sm:$0xff] %vm1546, %v2443
  %2460 = vst.msk [vmem:[%s4 + $0x8] sm:$0xff] %vm1546, %v2444
  %2461 = vst.msk [vmem:[%s4 + $0x10] sm:$0xff] %vm1546, %v2445
  %2462 = vst.msk [vmem:[%s4 + $0x18] sm:$0xff] %vm1546, %v2446
  %2463 = vst.msk [vmem:[%s4 + $0x20] sm:$0xff] %vm1546, %v2447
  %2464 = vst.msk [vmem:[%s4 + $0x28] sm:$0xff] %vm1546, %v2448
  %2465 = vst.msk [vmem:[%s4 + $0x30] sm:$0xff] %vm1546, %v2449
  %2466 = vst.msk [vmem:[%s4 + $0x38] sm:$0xff] %vm1546, %v2450
  %2467 = vst.msk [vmem:[%s4 + $0x40] sm:$0xff] %vm1546, %v2451
  %2468 = vst.msk [vmem:[%s4 + $0x48] sm:$0xff] %vm1546, %v2452
  %2469 = vst.msk [vmem:[%s4 + $0x50] sm:$0xff] %vm1546, %v2453
  %2470 = vst.msk [vmem:[%s4 + $0x58] sm:$0xff] %vm1546, %v2454
  %2471 = vst.msk [vmem:[%s4 + $0x60] sm:$0xff] %vm1546, %v2455
  %2472 = vst.msk [vmem:[%s4 + $0x68] sm:$0xff] %vm1546, %v2456
  %2473 = vst.msk [vmem:[%s4 + $0x70] sm:$0xff] %vm1546, %v2457
  %2474 = vst.msk [vmem:[%s4 + $0x78] sm:$0xff] %vm1546, %v2458
  // Predicated region
  $region18: #{vqvae_forward.23} parent=0 // pred_check
    _
  $region19: #{vqvae_forward.23} parent=0 // pred_check_branch
    %2476 = sbr.rel (0) target = $region21
  $region20: #{vqvae_forward.23} parent=0 // pred_region
    _
  $region21: #{vqvae_forward.23} parent=0 // pred_fallthru
    _
  // Predicated region
  $region22: #{vqvae_forward.23} parent=0 // pred_check
    _
  $region23: #{vqvae_forward.23} parent=0 // pred_check_branch
    %2478 = sbr.rel (0) target = $region25
  $region24: #{vqvae_forward.23} parent=0 // pred_region
    _
  $region25: #{vqvae_forward.23} parent=0 // pred_fallthru
    _

// kernel: vqvae_forward.30
$region0: #{vqvae_forward.30}
  #allocation0 [shape = 'u32[]', space=smem, size = 0x4, offset = 0x4, fixed_abs, tag = 'smem constant byte address 0x4 - core index']
  #allocation1 [shape = 'u32[144,128]{1,0:T(1,128)}', space=vmem, size = 0x12000, scoped, tag = 'internal scratch']
  %s0 = inlined_call_operand.vmem [shape: f32[128,64], index: 0, kind: input, shape index: {}]
  %s1 = inlined_call_operand.vmem [shape: f32[64,512], index: 1, kind: input, shape index: {}]
  %s2 = inlined_call_operand.vmem [shape: f32[512,64], index: 2, kind: input, shape index: {}]
  %s3 = inlined_call_operand.vmem [shape: f32[1,512], index: 3, kind: input, shape index: {}]
  %s4 = inlined_call_operand.vmem [shape: f32[128,64], index: 4, kind: output, shape index: {0}]
  %s5 = inlined_call_operand.hbm [shape: s32[128,1], index: 5, kind: output, shape index: {1}]
  %6 = xla_tuple %s4, %s5
  %s7 = sld [smem:[#allocation0]]
  $region34: #{vqvae_forward.30} parent=0
    _
  %s9 = ssub.s32 1, %s7
  %s10 = scalar_select 0, %s9, %s7
  $region1: #{vqvae_forward.30} parent=0
    #allocation2 [shape = 'u8[65536]{0}', space=vmem, size = 0x10000, scoped, tag = 'output window, operand 1, single buffered']
    #allocation3 [shape = 's32[1]{0}', space=sflag, size = 0x4, scoped, tag = 'scoped memory for vqvae_forward.30']
    %11 = vsyncpa [#allocation3], 0
    // Predicated region
    $region2: #{vqvae_forward.30} parent=1 // pred_check
      _
    $region3: #{vqvae_forward.30} parent=1 // pred_check_branch
      %13 = sbr.rel (0) target = $region5
    $region4: #{vqvae_forward.30} parent=1 // pred_region
      _
    $region5: #{vqvae_forward.30} parent=1 // pred_fallthru
      _
    // Predicated region
    $region6: #{vqvae_forward.30} parent=1 // pred_check
      _
    $region7: #{vqvae_forward.30} parent=1 // pred_check_branch
      %15 = sbr.rel (0) target = $region9
    $region8: #{vqvae_forward.30} parent=1 // pred_region
      _
    $region9: #{vqvae_forward.30} parent=1 // pred_fallthru
      _
    // Predicated region
    $region10: #{vqvae_forward.30} parent=1 // pred_check
      _
    $region11: #{vqvae_forward.30} parent=1 // pred_check_branch
      %17 = sbr.rel (0) target = $region13
    $region12: #{vqvae_forward.30} parent=1 // pred_region
      _
    $region13: #{vqvae_forward.30} parent=1 // pred_fallthru
      _
    // Predicated region
    $region14: #{vqvae_forward.30} parent=1 // pred_check
      _
    $region15: #{vqvae_forward.30} parent=1 // pred_check_branch
      %19 = sbr.rel (0) target = $region17
    $region16: #{vqvae_forward.30} parent=1 // pred_region
      _
    $region17: #{vqvae_forward.30} parent=1 // pred_fallthru
      _
    %v20 = vld [vmem:[%s3] sm:$0xf]
    %v21 = vld [vmem:[%s0] sm:$0xff]
    %v22 = vld [vmem:[%s0 + $0x8] sm:$0xff]
    %v23 = vld [vmem:[%s0 + $0x10] sm:$0xff]
    %v24 = vld [vmem:[%s0 + $0x18] sm:$0xff]
    %v25 = vld [vmem:[%s0 + $0x20] sm:$0xff]
    %v26 = vld [vmem:[%s0 + $0x28] sm:$0xff]
    %v27 = vld [vmem:[%s0 + $0x30] sm:$0xff]
    %v28 = vld [vmem:[%s0 + $0x38] sm:$0xff]
    %v29 = vld [vmem:[%s0 + $0x40] sm:$0xff]
    %v30 = vld [vmem:[%s0 + $0x48] sm:$0xff]
    %v31 = vld [vmem:[%s0 + $0x50] sm:$0xff]
    %v32 = vld [vmem:[%s0 + $0x58] sm:$0xff]
    %v33 = vld [vmem:[%s0 + $0x60] sm:$0xff]
    %v34 = vld [vmem:[%s0 + $0x68] sm:$0xff]
    %v35 = vld [vmem:[%s0 + $0x70] sm:$0xff]
    %v36 = vld [vmem:[%s0 + $0x78] sm:$0xff]
    %v37 = vld [vmem:[%s1] sm:$0xff]
    %v38 = vld [vmem:[%s1 + $0x8] sm:$0xff]
    %v39 = vld [vmem:[%s1 + $0x10] sm:$0xff]
    %v40 = vld [vmem:[%s1 + $0x18] sm:$0xff]
    %v41 = vld [vmem:[%s1 + $0x20] sm:$0xff]
    %v42 = vld [vmem:[%s1 + $0x28] sm:$0xff]
    %v43 = vld [vmem:[%s1 + $0x30] sm:$0xff]
    %v44 = vld [vmem:[%s1 + $0x38] sm:$0xff]
    %v45 = vld [vmem:[%s1 + $0x40] sm:$0xff]
    %v46 = vld [vmem:[%s1 + $0x48] sm:$0xff]
    %v47 = vld [vmem:[%s1 + $0x50] sm:$0xff]
    %v48 = vld [vmem:[%s1 + $0x58] sm:$0xff]
    %v49 = vld [vmem:[%s1 + $0x60] sm:$0xff]
    %v50 = vld [vmem:[%s1 + $0x68] sm:$0xff]
    %v51 = vld [vmem:[%s1 + $0x70] sm:$0xff]
    %v52 = vld [vmem:[%s1 + $0x78] sm:$0xff]
    %v53 = vld [vmem:[%s1 + $0x80] sm:$0xff]
    %v54 = vld [vmem:[%s1 + $0x88] sm:$0xff]
    %v55 = vld [vmem:[%s1 + $0x90] sm:$0xff]
    %v56 = vld [vmem:[%s1 + $0x98] sm:$0xff]
    %v57 = vld [vmem:[%s1 + $0xa0] sm:$0xff]
    %v58 = vld [vmem:[%s1 + $0xa8] sm:$0xff]
    %v59 = vld [vmem:[%s1 + $0xb0] sm:$0xff]
    %v60 = vld [vmem:[%s1 + $0xb8] sm:$0xff]
    %v61 = vld [vmem:[%s1 + $0xc0] sm:$0xff]
    %v62 = vld [vmem:[%s1 + $0xc8] sm:$0xff]
    %v63 = vld [vmem:[%s1 + $0xd0] sm:$0xff]
    %v64 = vld [vmem:[%s1 + $0xd8] sm:$0xff]
    %v65 = vld [vmem:[%s1 + $0xe0] sm:$0xff]
    %v66 = vld [vmem:[%s1 + $0xe8] sm:$0xff]
    %v67 = vld [vmem:[%s1 + $0xf0] sm:$0xff]
    %v68 = vld [vmem:[%s1 + $0xf8] sm:$0xff]
    %vm69 = vcmask 523264
    %v71 = vsel %vm69, %v21, 0
    %v74 = vsel %vm69, %v22, 0
    %v77 = vsel %vm69, %v23, 0
    %v80 = vsel %vm69, %v24, 0
    %v83 = vsel %vm69, %v25, 0
    %v86 = vsel %vm69, %v26, 0
    %v89 = vsel %vm69, %v27, 0
    %v92 = vsel %vm69, %v28, 0
    %v95 = vsel %vm69, %v29, 0
    %v98 = vsel %vm69, %v30, 0
    %v101 = vsel %vm69, %v31, 0
    %v104 = vsel %vm69, %v32, 0
    %v107 = vsel %vm69, %v33, 0
    %v110 = vsel %vm69, %v34, 0
    %v113 = vsel %vm69, %v35, 0
    %v116 = vsel %vm69, %v36, 0
    %118 = vmatprep.subr.mxu0 0.0
    %119 = vmatpush1.msra.mxu0 0.0
    %120 = vmatprep.subr.mxu0 0.0
    %121 = vmatpush1.msra.mxu0 0.0
    %122 = vmatprep.subr.mxu0 0.0
    %123 = vmatpush1.msra.mxu0 0.0
    %124 = vmatprep.subr.mxu0 0.0
    %125 = vmatpush1.msra.mxu0 0.0
    %126 = vmatprep.subr.mxu0 0.0
    %127 = vmatpush1.msra.mxu0 0.0
    %128 = vmatprep.subr.mxu0 0.0
    %129 = vmatpush1.msra.mxu0 0.0
    %130 = vmatprep.subr.mxu0 0.0
    %131 = vmatpush1.msra.mxu0 0.0
    %132 = vmatprep.subr.mxu0 0.0
    %133 = vmatpush1.msra.mxu0 0.0
    %134 = vmatprep.subr.mxu0 %v66
    %135 = vmatpush1.msra.mxu0 %v65
    %136 = vmatprep.subr.mxu0 %v62
    %137 = vmatpush1.msra.mxu0 %v61
    %138 = vmatprep.subr.mxu0 %v58
    %139 = vmatpush1.msra.mxu0 %v57
    %140 = vmatprep.subr.mxu0 %v54
    %141 = vmatpush1.msra.mxu0 %v53
    %142 = vmatprep.subr.mxu0 %v50
    %143 = vmatpush1.msra.mxu0 %v49
    %144 = vmatprep.subr.mxu0 %v46
    %145 = vmatpush1.msra.mxu0 %v45
    %146 = vmatprep.subr.mxu0 %v42
    %147 = vmatpush1.msra.mxu0 %v41
    %148 = vmatprep.subr.mxu0 %v38
    %149 = vmatpush1.msra.mxu0 %v37
    %150 = vmatprep.subr.mxu0 0.0
    %151 = vmatpush2.msra.mxu0 0.0
    %152 = vmatprep.subr.mxu0 0.0
    %153 = vmatpush2.msra.mxu0 0.0
    %154 = vmatprep.subr.mxu0 0.0
    %155 = vmatpush2.msra.mxu0 0.0
    %156 = vmatprep.subr.mxu0 0.0
    %157 = vmatpush2.msra.mxu0 0.0
    %158 = vmatprep.subr.mxu0 0.0
    %159 = vmatpush2.msra.mxu0 0.0
    %160 = vmatprep.subr.mxu0 0.0
    %161 = vmatpush2.msra.mxu0 0.0
    %162 = vmatprep.subr.mxu0 0.0
    %163 = vmatpush2.msra.mxu0 0.0
    %164 = vmatprep.subr.mxu0 0.0
    %165 = vmatpush2.msra.mxu0 0.0
    %166 = vmatprep.subr.mxu0 0.0
    %167 = vmatpush2.msra.mxu0 0.0
    %168 = vmatprep.subr.mxu0 0.0
    %169 = vmatpush2.msra.mxu0 0.0
    %170 = vmatprep.subr.mxu0 0.0
    %171 = vmatpush2.msra.mxu0 0.0
    %172 = vmatprep.subr.mxu0 0.0
    %173 = vmatpush2.msra.mxu0 0.0
    %174 = vmatprep.subr.mxu0 0.0
    %175 = vmatpush2.msra.mxu0 0.0
    %176 = vmatprep.subr.mxu0 0.0
    %177 = vmatpush2.msra.mxu0 0.0
    %178 = vmatprep.subr.mxu0 0.0
    %179 = vmatpush2.msra.mxu0 0.0
    %180 = vmatprep.subr.mxu0 0.0
    %181 = vmatpush2.msra.mxu0 0.0
    %182 = vmatprep.mubr.f32.mxu0 0.0
    %183 = vmatmul.mubr.f32.gmra.mxu0 %v71
    %v184 = vpop.f32.mrf.mxu0
    %v185 = vadd.f32 0.0, %v184
    %v186 = vpop.f32.mrf.mxu0
    %v187 = vadd.f32 0.0, %v186
    %188 = vmatprep.mubr.f32.mxu0 0.0
    %189 = vmatmul.mubr.f32.gmra.mxu0 %v74
    %v190 = vpop.f32.mrf.mxu0
    %v191 = vadd.f32 0.0, %v190
    %v192 = vpop.f32.mrf.mxu0
    %v193 = vadd.f32 0.0, %v192
    %194 = vmatprep.mubr.f32.mxu0 0.0
    %195 = vmatmul.mubr.f32.gmra.mxu0 %v77
    %v196 = vpop.f32.mrf.mxu0
    %v197 = vadd.f32 0.0, %v196
    %v198 = vpop.f32.mrf.mxu0
    %v199 = vadd.f32 0.0, %v198
    %200 = vmatprep.mubr.f32.mxu0 0.0
    %201 = vmatmul.mubr.f32.gmra.mxu0 %v80
    %v202 = vpop.f32.mrf.mxu0
    %v203 = vadd.f32 0.0, %v202
    %v204 = vpop.f32.mrf.mxu0
    %v205 = vadd.f32 0.0, %v204
    %206 = vmatprep.mubr.f32.mxu0 0.0
    %207 = vmatmul.mubr.f32.gmra.mxu0 %v83
    %v208 = vpop.f32.mrf.mxu0
    %v209 = vadd.f32 0.0, %v208
    %v210 = vpop.f32.mrf.mxu0
    %v211 = vadd.f32 0.0, %v210
    %212 = vmatprep.mubr.f32.mxu0 0.0
    %213 = vmatmul.mubr.f32.gmra.mxu0 %v86
    %v214 = vpop.f32.mrf.mxu0
    %v215 = vadd.f32 0.0, %v214
    %v216 = vpop.f32.mrf.mxu0
    %v217 = vadd.f32 0.0, %v216
    %218 = vmatprep.mubr.f32.mxu0 0.0
    %219 = vmatmul.mubr.f32.gmra.mxu0 %v89
    %v220 = vpop.f32.mrf.mxu0
    %v221 = vadd.f32 0.0, %v220
    %v222 = vpop.f32.mrf.mxu0
    %v223 = vadd.f32 0.0, %v222
    %224 = vmatprep.mubr.f32.mxu0 0.0
    %225 = vmatmul.mubr.f32.gmra.mxu0 %v92
    %v226 = vpop.f32.mrf.mxu0
    %v227 = vadd.f32 0.0, %v226
    %v228 = vpop.f32.mrf.mxu0
    %v229 = vadd.f32 0.0, %v228
    %230 = vmatprep.mubr.f32.mxu0 0.0
    %231 = vmatmul.mubr.f32.gmra.mxu0 %v95
    %v232 = vpop.f32.mrf.mxu0
    %v233 = vadd.f32 0.0, %v232
    %v234 = vpop.f32.mrf.mxu0
    %v235 = vadd.f32 0.0, %v234
    %236 = vmatprep.mubr.f32.mxu0 0.0
    %237 = vmatmul.mubr.f32.gmra.mxu0 %v98
    %v238 = vpop.f32.mrf.mxu0
    %v239 = vadd.f32 0.0, %v238
    %v240 = vpop.f32.mrf.mxu0
    %v241 = vadd.f32 0.0, %v240
    %242 = vmatprep.mubr.f32.mxu0 0.0
    %243 = vmatmul.mubr.f32.gmra.mxu0 %v101
    %v244 = vpop.f32.mrf.mxu0
    %v245 = vadd.f32 0.0, %v244
    %v246 = vpop.f32.mrf.mxu0
    %v247 = vadd.f32 0.0, %v246
    %248 = vmatprep.mubr.f32.mxu0 0.0
    %249 = vmatmul.mubr.f32.gmra.mxu0 %v104
    %v250 = vpop.f32.mrf.mxu0
    %v251 = vadd.f32 0.0, %v250
    %v252 = vpop.f32.mrf.mxu0
    %v253 = vadd.f32 0.0, %v252
    %254 = vmatprep.mubr.f32.mxu0 0.0
    %255 = vmatmul.mubr.f32.gmra.mxu0 %v107
    %v256 = vpop.f32.mrf.mxu0
    %v257 = vadd.f32 0.0, %v256
    %v258 = vpop.f32.mrf.mxu0
    %v259 = vadd.f32 0.0, %v258
    %260 = vmatprep.mubr.f32.mxu0 0.0
    %261 = vmatmul.mubr.f32.gmra.mxu0 %v110
    %v262 = vpop.f32.mrf.mxu0
    %v263 = vadd.f32 0.0, %v262
    %v264 = vpop.f32.mrf.mxu0
    %v265 = vadd.f32 0.0, %v264
    %266 = vmatprep.mubr.f32.mxu0 0.0
    %267 = vmatmul.mubr.f32.gmra.mxu0 %v113
    %v268 = vpop.f32.mrf.mxu0
    %v269 = vadd.f32 0.0, %v268
    %v270 = vpop.f32.mrf.mxu0
    %v271 = vadd.f32 0.0, %v270
    %272 = vmatprep.mubr.f32.mxu0 0.0
    %273 = vmatmul.mubr.f32.gmra.mxu0 %v116
    %v274 = vpop.f32.mrf.mxu0
    %v275 = vadd.f32 0.0, %v274
    %v276 = vpop.f32.mrf.mxu0
    %v277 = vadd.f32 0.0, %v276
    %278 = vdwg.mxu0
    %279 = vmatprep.subr.mxu0 0.0
    %280 = vmatpush1.msra.mxu0 0.0
    %281 = vmatprep.subr.mxu0 0.0
    %282 = vmatpush1.msra.mxu0 0.0
    %283 = vmatprep.subr.mxu0 0.0
    %284 = vmatpush1.msra.mxu0 0.0
    %285 = vmatprep.subr.mxu0 0.0
    %286 = vmatpush1.msra.mxu0 0.0
    %287 = vmatprep.subr.mxu0 0.0
    %288 = vmatpush1.msra.mxu0 0.0
    %289 = vmatprep.subr.mxu0 0.0
    %290 = vmatpush1.msra.mxu0 0.0
    %291 = vmatprep.subr.mxu0 0.0
    %292 = vmatpush1.msra.mxu0 0.0
    %293 = vmatprep.subr.mxu0 0.0
    %294 = vmatpush1.msra.mxu0 0.0
    %295 = vmatprep.subr.mxu0 %v68
    %296 = vmatpush1.msra.mxu0 %v67
    %297 = vmatprep.subr.mxu0 %v64
    %298 = vmatpush1.msra.mxu0 %v63
    %299 = vmatprep.subr.mxu0 %v60
    %300 = vmatpush1.msra.mxu0 %v59
    %301 = vmatprep.subr.mxu0 %v56
    %302 = vmatpush1.msra.mxu0 %v55
    %303 = vmatprep.subr.mxu0 %v52
    %304 = vmatpush1.msra.mxu0 %v51
    %305 = vmatprep.subr.mxu0 %v48
    %306 = vmatpush1.msra.mxu0 %v47
    %307 = vmatprep.subr.mxu0 %v44
    %308 = vmatpush1.msra.mxu0 %v43
    %309 = vmatprep.subr.mxu0 %v40
    %310 = vmatpush1.msra.mxu0 %v39
    %311 = vmatprep.subr.mxu0 0.0
    %312 = vmatpush2.msra.mxu0 0.0
    %313 = vmatprep.subr.mxu0 0.0
    %314 = vmatpush2.msra.mxu0 0.0
    %315 = vmatprep.subr.mxu0 0.0
    %316 = vmatpush2.msra.mxu0 0.0
    %317 = vmatprep.subr.mxu0 0.0
    %318 = vmatpush2.msra.mxu0 0.0
    %319 = vmatprep.subr.mxu0 0.0
    %320 = vmatpush2.msra.mxu0 0.0
    %321 = vmatprep.subr.mxu0 0.0
    %322 = vmatpush2.msra.mxu0 0.0
    %323 = vmatprep.subr.mxu0 0.0
    %324 = vmatpush2.msra.mxu0 0.0
    %325 = vmatprep.subr.mxu0 0.0
    %326 = vmatpush2.msra.mxu0 0.0
    %327 = vmatprep.subr.mxu0 0.0
    %328 = vmatpush2.msra.mxu0 0.0
    %329 = vmatprep.subr.mxu0 0.0
    %330 = vmatpush2.msra.mxu0 0.0
    %331 = vmatprep.subr.mxu0 0.0
    %332 = vmatpush2.msra.mxu0 0.0
    %333 = vmatprep.subr.mxu0 0.0
    %334 = vmatpush2.msra.mxu0 0.0
    %335 = vmatprep.subr.mxu0 0.0
    %336 = vmatpush2.msra.mxu0 0.0
    %337 = vmatprep.subr.mxu0 0.0
    %338 = vmatpush2.msra.mxu0 0.0
    %339 = vmatprep.subr.mxu0 0.0
    %340 = vmatpush2.msra.mxu0 0.0
    %341 = vmatprep.subr.mxu0 0.0
    %342 = vmatpush2.msra.mxu0 0.0
    %343 = vmatprep.mubr.f32.mxu0 0.0
    %344 = vmatmul.mubr.f32.gmra.mxu0 %v71
    %v345 = vpop.f32.mrf.mxu0
    %v346 = vadd.f32 0.0, %v345
    %v347 = vpop.f32.mrf.mxu0
    %v348 = vadd.f32 0.0, %v347
    %349 = vmatprep.mubr.f32.mxu0 0.0
    %350 = vmatmul.mubr.f32.gmra.mxu0 %v74
    %v351 = vpop.f32.mrf.mxu0
    %v352 = vadd.f32 0.0, %v351
    %v353 = vpop.f32.mrf.mxu0
    %v354 = vadd.f32 0.0, %v353
    %355 = vmatprep.mubr.f32.mxu0 0.0
    %356 = vmatmul.mubr.f32.gmra.mxu0 %v77
    %v357 = vpop.f32.mrf.mxu0
    %v358 = vadd.f32 0.0, %v357
    %v359 = vpop.f32.mrf.mxu0
    %v360 = vadd.f32 0.0, %v359
    %361 = vmatprep.mubr.f32.mxu0 0.0
    %362 = vmatmul.mubr.f32.gmra.mxu0 %v80
    %v363 = vpop.f32.mrf.mxu0
    %v364 = vadd.f32 0.0, %v363
    %v365 = vpop.f32.mrf.mxu0
    %v366 = vadd.f32 0.0, %v365
    %367 = vmatprep.mubr.f32.mxu0 0.0
    %368 = vmatmul.mubr.f32.gmra.mxu0 %v83
    %v369 = vpop.f32.mrf.mxu0
    %v370 = vadd.f32 0.0, %v369
    %v371 = vpop.f32.mrf.mxu0
    %v372 = vadd.f32 0.0, %v371
    %373 = vmatprep.mubr.f32.mxu0 0.0
    %374 = vmatmul.mubr.f32.gmra.mxu0 %v86
    %v375 = vpop.f32.mrf.mxu0
    %v376 = vadd.f32 0.0, %v375
    %v377 = vpop.f32.mrf.mxu0
    %v378 = vadd.f32 0.0, %v377
    %379 = vmatprep.mubr.f32.mxu0 0.0
    %380 = vmatmul.mubr.f32.gmra.mxu0 %v89
    %v381 = vpop.f32.mrf.mxu0
    %v382 = vadd.f32 0.0, %v381
    %v383 = vpop.f32.mrf.mxu0
    %v384 = vadd.f32 0.0, %v383
    %385 = vmatprep.mubr.f32.mxu0 0.0
    %386 = vmatmul.mubr.f32.gmra.mxu0 %v92
    %v387 = vpop.f32.mrf.mxu0
    %v388 = vadd.f32 0.0, %v387
    %v389 = vpop.f32.mrf.mxu0
    %v390 = vadd.f32 0.0, %v389
    %391 = vmatprep.mubr.f32.mxu0 0.0
    %392 = vmatmul.mubr.f32.gmra.mxu0 %v95
    %v393 = vpop.f32.mrf.mxu0
    %v394 = vadd.f32 0.0, %v393
    %v395 = vpop.f32.mrf.mxu0
    %v396 = vadd.f32 0.0, %v395
    %397 = vmatprep.mubr.f32.mxu0 0.0
    %398 = vmatmul.mubr.f32.gmra.mxu0 %v98
    %v399 = vpop.f32.mrf.mxu0
    %v400 = vadd.f32 0.0, %v399
    %v401 = vpop.f32.mrf.mxu0
    %v402 = vadd.f32 0.0, %v401
    %403 = vmatprep.mubr.f32.mxu0 0.0
    %404 = vmatmul.mubr.f32.gmra.mxu0 %v101
    %v405 = vpop.f32.mrf.mxu0
    %v406 = vadd.f32 0.0, %v405
    %v407 = vpop.f32.mrf.mxu0
    %v408 = vadd.f32 0.0, %v407
    %409 = vmatprep.mubr.f32.mxu0 0.0
    %410 = vmatmul.mubr.f32.gmra.mxu0 %v104
    %v411 = vpop.f32.mrf.mxu0
    %v412 = vadd.f32 0.0, %v411
    %v413 = vpop.f32.mrf.mxu0
    %v414 = vadd.f32 0.0, %v413
    %415 = vmatprep.mubr.f32.mxu0 0.0
    %416 = vmatmul.mubr.f32.gmra.mxu0 %v107
    %v417 = vpop.f32.mrf.mxu0
    %v418 = vadd.f32 0.0, %v417
    %v419 = vpop.f32.mrf.mxu0
    %v420 = vadd.f32 0.0, %v419
    %421 = vmatprep.mubr.f32.mxu0 0.0
    %422 = vmatmul.mubr.f32.gmra.mxu0 %v110
    %v423 = vpop.f32.mrf.mxu0
    %v424 = vadd.f32 0.0, %v423
    %v425 = vpop.f32.mrf.mxu0
    %v426 = vadd.f32 0.0, %v425
    %427 = vmatprep.mubr.f32.mxu0 0.0
    %428 = vmatmul.mubr.f32.gmra.mxu0 %v113
    %v429 = vpop.f32.mrf.mxu0
    %v430 = vadd.f32 0.0, %v429
    %v431 = vpop.f32.mrf.mxu0
    %v432 = vadd.f32 0.0, %v431
    %433 = vmatprep.mubr.f32.mxu0 0.0
    %434 = vmatmul.mubr.f32.gmra.mxu0 %v116
    %v435 = vpop.f32.mrf.mxu0
    %v436 = vadd.f32 0.0, %v435
    %v437 = vpop.f32.mrf.mxu0
    %v438 = vadd.f32 0.0, %v437
    %439 = vdwg.mxu0
    %v440 = vmul.f32 %v185, 2.0
    %v441 = vmul.f32 %v187, 2.0
    %v442 = vmul.f32 %v346, 2.0
    %v443 = vmul.f32 %v348, 2.0
    %v444 = vmul.f32 %v191, 2.0
    %v445 = vmul.f32 %v193, 2.0
    %v446 = vmul.f32 %v352, 2.0
    %v447 = vmul.f32 %v354, 2.0
    %v448 = vmul.f32 %v197, 2.0
    %v449 = vmul.f32 %v199, 2.0
    %v450 = vmul.f32 %v358, 2.0
    %v451 = vmul.f32 %v360, 2.0
    %v452 = vmul.f32 %v203, 2.0
    %v453 = vmul.f32 %v205, 2.0
    %v454 = vmul.f32 %v364, 2.0
    %v455 = vmul.f32 %v366, 2.0
    %v456 = vmul.f32 %v209, 2.0
    %v457 = vmul.f32 %v211, 2.0
    %v458 = vmul.f32 %v370, 2.0
    %v459 = vmul.f32 %v372, 2.0
    %v460 = vmul.f32 %v215, 2.0
    %v461 = vmul.f32 %v217, 2.0
    %v462 = vmul.f32 %v376, 2.0
    %v463 = vmul.f32 %v378, 2.0
    %v464 = vmul.f32 %v221, 2.0
    %v465 = vmul.f32 %v223, 2.0
    %v466 = vmul.f32 %v382, 2.0
    %v467 = vmul.f32 %v384, 2.0
    %v468 = vmul.f32 %v227, 2.0
    %v469 = vmul.f32 %v229, 2.0
    %v470 = vmul.f32 %v388, 2.0
    %v471 = vmul.f32 %v390, 2.0
    %v472 = vmul.f32 %v233, 2.0
    %v473 = vmul.f32 %v235, 2.0
    %v474 = vmul.f32 %v394, 2.0
    %v475 = vmul.f32 %v396, 2.0
    %v476 = vmul.f32 %v239, 2.0
    %v477 = vmul.f32 %v241, 2.0
    %v478 = vmul.f32 %v400, 2.0
    %v479 = vmul.f32 %v402, 2.0
    %v480 = vmul.f32 %v245, 2.0
    %v481 = vmul.f32 %v247, 2.0
    %v482 = vmul.f32 %v406, 2.0
    %v483 = vmul.f32 %v408, 2.0
    %v484 = vmul.f32 %v251, 2.0
    %v485 = vmul.f32 %v253, 2.0
    %v486 = vmul.f32 %v412, 2.0
    %v487 = vmul.f32 %v414, 2.0
    %v488 = vmul.f32 %v257, 2.0
    %v489 = vmul.f32 %v259, 2.0
    %v490 = vmul.f32 %v418, 2.0
    %v491 = vmul.f32 %v420, 2.0
    %v492 = vmul.f32 %v263, 2.0
    %v493 = vmul.f32 %v265, 2.0
    %v494 = vmul.f32 %v424, 2.0
    %v495 = vmul.f32 %v426, 2.0
    %v496 = vmul.f32 %v269, 2.0
    %v497 = vmul.f32 %v271, 2.0
    %v498 = vmul.f32 %v430, 2.0
    %v499 = vmul.f32 %v432, 2.0
    %v500 = vmul.f32 %v275, 2.0
    %v501 = vmul.f32 %v277, 2.0
    %v502 = vmul.f32 %v436, 2.0
    %v503 = vmul.f32 %v438, 2.0
    %v505 = vlaneseq
    %v506 = vshrl.u32 %v505, 7
    %v507 = vsub.s32 0, %v506
    %v508 = vrot.slane %v20, %v507
    %v509 = vlaneseq
    %v510 = vshrl.u32 %v509, 7
    %v511 = vsub.s32 1, %v510
    %v512 = vrot.slane %v20, %v511
    %v513 = vlaneseq
    %v514 = vshrl.u32 %v513, 7
    %v515 = vsub.s32 2, %v514
    %v516 = vrot.slane %v20, %v515
    %v517 = vlaneseq
    %v518 = vshrl.u32 %v517, 7
    %v519 = vsub.s32 3, %v518
    %v520 = vrot.slane %v20, %v519
    %v525 = vsub.f32 %v508, %v440
    %v526 = vsub.f32 %v512, %v441
    %v527 = vsub.f32 %v516, %v442
    %v528 = vsub.f32 %v520, %v443
    %v529 = vsub.f32 %v508, %v444
    %v530 = vsub.f32 %v512, %v445
    %v531 = vsub.f32 %v516, %v446
    %v532 = vsub.f32 %v520, %v447
    %v533 = vsub.f32 %v508, %v448
    %v534 = vsub.f32 %v512, %v449
    %v535 = vsub.f32 %v516, %v450
    %v536 = vsub.f32 %v520, %v451
    %v537 = vsub.f32 %v508, %v452
    %v538 = vsub.f32 %v512, %v453
    %v539 = vsub.f32 %v516, %v454
    %v540 = vsub.f32 %v520, %v455
    %v541 = vsub.f32 %v508, %v456
    %v542 = vsub.f32 %v512, %v457
    %v543 = vsub.f32 %v516, %v458
    %v544 = vsub.f32 %v520, %v459
    %v545 = vsub.f32 %v508, %v460
    %v546 = vsub.f32 %v512, %v461
    %v547 = vsub.f32 %v516, %v462
    %v548 = vsub.f32 %v520, %v463
    %v549 = vsub.f32 %v508, %v464
    %v550 = vsub.f32 %v512, %v465
    %v551 = vsub.f32 %v516, %v466
    %v552 = vsub.f32 %v520, %v467
    %v553 = vsub.f32 %v508, %v468
    %v554 = vsub.f32 %v512, %v469
    %v555 = vsub.f32 %v516, %v470
    %v556 = vsub.f32 %v520, %v471
    %v557 = vsub.f32 %v508, %v472
    %v558 = vsub.f32 %v512, %v473
    %v559 = vsub.f32 %v516, %v474
    %v560 = vsub.f32 %v520, %v475
    %v561 = vsub.f32 %v508, %v476
    %v562 = vsub.f32 %v512, %v477
    %v563 = vsub.f32 %v516, %v478
    %v564 = vsub.f32 %v520, %v479
    %v565 = vsub.f32 %v508, %v480
    %v566 = vsub.f32 %v512, %v481
    %v567 = vsub.f32 %v516, %v482
    %v568 = vsub.f32 %v520, %v483
    %v569 = vsub.f32 %v508, %v484
    %v570 = vsub.f32 %v512, %v485
    %v571 = vsub.f32 %v516, %v486
    %v572 = vsub.f32 %v520, %v487
    %v573 = vsub.f32 %v508, %v488
    %v574 = vsub.f32 %v512, %v489
    %v575 = vsub.f32 %v516, %v490
    %v576 = vsub.f32 %v520, %v491
    %v577 = vsub.f32 %v508, %v492
    %v578 = vsub.f32 %v512, %v493
    %v579 = vsub.f32 %v516, %v494
    %v580 = vsub.f32 %v520, %v495
    %v581 = vsub.f32 %v508, %v496
    %v582 = vsub.f32 %v512, %v497
    %v583 = vsub.f32 %v516, %v498
    %v584 = vsub.f32 %v520, %v499
    %v585 = vsub.f32 %v508, %v500
    %v586 = vsub.f32 %v512, %v501
    %v587 = vsub.f32 %v516, %v502
    %v588 = vsub.f32 %v520, %v503
    %v589 = vlaneseq
    %v590 = vand.u32 %v589, 127
    %v591 = vadd.s32 %v590, 128
    %v592 = vadd.s32 %v590, 256
    %v593 = vadd.s32 %v590, 384
    %v594 = vmin.f32 %v525, %v526
    %v595 = vmin.f32 %v594, %v527
    %v596 = vmin.f32 %v595, %v528
    %597 = vmin.xlane.f32.xlu0 %v596
    %v598 = vpop.xlane.xlu0 %597
    %v599 = vmin.f32 %v529, %v530
    %v600 = vmin.f32 %v599, %v531
    %v601 = vmin.f32 %v600, %v532
    %602 = vmin.xlane.f32.xlu0 %v601
    %v603 = vpop.xlane.xlu0 %602
    %v604 = vmin.f32 %v533, %v534
    %v605 = vmin.f32 %v604, %v535
    %v606 = vmin.f32 %v605, %v536
    %607 = vmin.xlane.f32.xlu0 %v606
    %v608 = vpop.xlane.xlu0 %607
    %v609 = vmin.f32 %v537, %v538
    %v610 = vmin.f32 %v609, %v539
    %v611 = vmin.f32 %v610, %v540
    %612 = vmin.xlane.f32.xlu0 %v611
    %v613 = vpop.xlane.xlu0 %612
    %v614 = vmin.f32 %v541, %v542
    %v615 = vmin.f32 %v614, %v543
    %v616 = vmin.f32 %v615, %v544
    %617 = vmin.xlane.f32.xlu0 %v616
    %v618 = vpop.xlane.xlu0 %617
    %v619 = vmin.f32 %v545, %v546
    %v620 = vmin.f32 %v619, %v547
    %v621 = vmin.f32 %v620, %v548
    %622 = vmin.xlane.f32.xlu0 %v621
    %v623 = vpop.xlane.xlu0 %622
    %v624 = vmin.f32 %v549, %v550
    %v625 = vmin.f32 %v624, %v551
    %v626 = vmin.f32 %v625, %v552
    %627 = vmin.xlane.f32.xlu0 %v626
    %v628 = vpop.xlane.xlu0 %627
    %v629 = vmin.f32 %v553, %v554
    %v630 = vmin.f32 %v629, %v555
    %v631 = vmin.f32 %v630, %v556
    %632 = vmin.xlane.f32.xlu0 %v631
    %v633 = vpop.xlane.xlu0 %632
    %v634 = vmin.f32 %v557, %v558
    %v635 = vmin.f32 %v634, %v559
    %v636 = vmin.f32 %v635, %v560
    %637 = vmin.xlane.f32.xlu0 %v636
    %v638 = vpop.xlane.xlu0 %637
    %v639 = vmin.f32 %v561, %v562
    %v640 = vmin.f32 %v639, %v563
    %v641 = vmin.f32 %v640, %v564
    %642 = vmin.xlane.f32.xlu0 %v641
    %v643 = vpop.xlane.xlu0 %642
    %v644 = vmin.f32 %v565, %v566
    %v645 = vmin.f32 %v644, %v567
    %v646 = vmin.f32 %v645, %v568
    %647 = vmin.xlane.f32.xlu0 %v646
    %v648 = vpop.xlane.xlu0 %647
    %v649 = vmin.f32 %v569, %v570
    %v650 = vmin.f32 %v649, %v571
    %v651 = vmin.f32 %v650, %v572
    %652 = vmin.xlane.f32.xlu0 %v651
    %v653 = vpop.xlane.xlu0 %652
    %v654 = vmin.f32 %v573, %v574
    %v655 = vmin.f32 %v654, %v575
    %v656 = vmin.f32 %v655, %v576
    %657 = vmin.xlane.f32.xlu0 %v656
    %v658 = vpop.xlane.xlu0 %657
    %v659 = vmin.f32 %v577, %v578
    %v660 = vmin.f32 %v659, %v579
    %v661 = vmin.f32 %v660, %v580
    %662 = vmin.xlane.f32.xlu0 %v661
    %v663 = vpop.xlane.xlu0 %662
    %v664 = vmin.f32 %v581, %v582
    %v665 = vmin.f32 %v664, %v583
    %v666 = vmin.f32 %v665, %v584
    %667 = vmin.xlane.f32.xlu0 %v666
    %v668 = vpop.xlane.xlu0 %667
    %v669 = vmin.f32 %v585, %v586
    %v670 = vmin.f32 %v669, %v587
    %v671 = vmin.f32 %v670, %v588
    %672 = vmin.xlane.f32.xlu0 %v671
    %v673 = vpop.xlane.xlu0 %672
    %vm674 = vcmp.eq.f32.partialorder %v525, %v598
    %vm675 = vcmp.eq.f32.partialorder %v526, %v598
    %vm676 = vcmp.eq.f32.partialorder %v527, %v598
    %vm677 = vcmp.eq.f32.partialorder %v528, %v598
    %vm678 = vcmp.eq.f32.partialorder %v529, %v603
    %vm679 = vcmp.eq.f32.partialorder %v530, %v603
    %vm680 = vcmp.eq.f32.partialorder %v531, %v603
    %vm681 = vcmp.eq.f32.partialorder %v532, %v603
    %vm682 = vcmp.eq.f32.partialorder %v533, %v608
    %vm683 = vcmp.eq.f32.partialorder %v534, %v608
    %vm684 = vcmp.eq.f32.partialorder %v535, %v608
    %vm685 = vcmp.eq.f32.partialorder %v536, %v608
    %vm686 = vcmp.eq.f32.partialorder %v537, %v613
    %vm687 = vcmp.eq.f32.partialorder %v538, %v613
    %vm688 = vcmp.eq.f32.partialorder %v539, %v613
    %vm689 = vcmp.eq.f32.partialorder %v540, %v613
    %vm690 = vcmp.eq.f32.partialorder %v541, %v618
    %vm691 = vcmp.eq.f32.partialorder %v542, %v618
    %vm692 = vcmp.eq.f32.partialorder %v543, %v618
    %vm693 = vcmp.eq.f32.partialorder %v544, %v618
    %vm694 = vcmp.eq.f32.partialorder %v545, %v623
    %vm695 = vcmp.eq.f32.partialorder %v546, %v623
    %vm696 = vcmp.eq.f32.partialorder %v547, %v623
    %vm697 = vcmp.eq.f32.partialorder %v548, %v623
    %vm698 = vcmp.eq.f32.partialorder %v549, %v628
    %vm699 = vcmp.eq.f32.partialorder %v550, %v628
    %vm700 = vcmp.eq.f32.partialorder %v551, %v628
    %vm701 = vcmp.eq.f32.partialorder %v552, %v628
    %vm702 = vcmp.eq.f32.partialorder %v553, %v633
    %vm703 = vcmp.eq.f32.partialorder %v554, %v633
    %vm704 = vcmp.eq.f32.partialorder %v555, %v633
    %vm705 = vcmp.eq.f32.partialorder %v556, %v633
    %vm706 = vcmp.eq.f32.partialorder %v557, %v638
    %vm707 = vcmp.eq.f32.partialorder %v558, %v638
    %vm708 = vcmp.eq.f32.partialorder %v559, %v638
    %vm709 = vcmp.eq.f32.partialorder %v560, %v638
    %vm710 = vcmp.eq.f32.partialorder %v561, %v643
    %vm711 = vcmp.eq.f32.partialorder %v562, %v643
    %vm712 = vcmp.eq.f32.partialorder %v563, %v643
    %vm713 = vcmp.eq.f32.partialorder %v564, %v643
    %vm714 = vcmp.eq.f32.partialorder %v565, %v648
    %vm715 = vcmp.eq.f32.partialorder %v566, %v648
    %vm716 = vcmp.eq.f32.partialorder %v567, %v648
    %vm717 = vcmp.eq.f32.partialorder %v568, %v648
    %vm718 = vcmp.eq.f32.partialorder %v569, %v653
    %vm719 = vcmp.eq.f32.partialorder %v570, %v653
    %vm720 = vcmp.eq.f32.partialorder %v571, %v653
    %vm721 = vcmp.eq.f32.partialorder %v572, %v653
    %vm722 = vcmp.eq.f32.partialorder %v573, %v658
    %vm723 = vcmp.eq.f32.partialorder %v574, %v658
    %vm724 = vcmp.eq.f32.partialorder %v575, %v658
    %vm725 = vcmp.eq.f32.partialorder %v576, %v658
    %vm726 = vcmp.eq.f32.partialorder %v577, %v663
    %vm727 = vcmp.eq.f32.partialorder %v578, %v663
    %vm728 = vcmp.eq.f32.partialorder %v579, %v663
    %vm729 = vcmp.eq.f32.partialorder %v580, %v663
    %vm730 = vcmp.eq.f32.partialorder %v581, %v668
    %vm731 = vcmp.eq.f32.partialorder %v582, %v668
    %vm732 = vcmp.eq.f32.partialorder %v583, %v668
    %vm733 = vcmp.eq.f32.partialorder %v584, %v668
    %vm734 = vcmp.eq.f32.partialorder %v585, %v673
    %vm735 = vcmp.eq.f32.partialorder %v586, %v673
    %vm736 = vcmp.eq.f32.partialorder %v587, %v673
    %vm737 = vcmp.eq.f32.partialorder %v588, %v673
    %v738 = vsel %vm674, %v590, 512
    %v739 = vsel %vm675, %v591, 512
    %v740 = vsel %vm676, %v592, 512
    %v741 = vsel %vm677, %v593, 512
    %v742 = vsel %vm678, %v590, 512
    %v743 = vsel %vm679, %v591, 512
    %v744 = vsel %vm680, %v592, 512
    %v745 = vsel %vm681, %v593, 512
    %v746 = vsel %vm682, %v590, 512
    %v747 = vsel %vm683, %v591, 512
    %v748 = vsel %vm684, %v592, 512
    %v749 = vsel %vm685, %v593, 512
    %v750 = vsel %vm686, %v590, 512
    %v751 = vsel %vm687, %v591, 512
    %v752 = vsel %vm688, %v592, 512
    %v753 = vsel %vm689, %v593, 512
    %v754 = vsel %vm690, %v590, 512
    %v755 = vsel %vm691, %v591, 512
    %v756 = vsel %vm692, %v592, 512
    %v757 = vsel %vm693, %v593, 512
    %v758 = vsel %vm694, %v590, 512
    %v759 = vsel %vm695, %v591, 512
    %v760 = vsel %vm696, %v592, 512
    %v761 = vsel %vm697, %v593, 512
    %v762 = vsel %vm698, %v590, 512
    %v763 = vsel %vm699, %v591, 512
    %v764 = vsel %vm700, %v592, 512
    %v765 = vsel %vm701, %v593, 512
    %v766 = vsel %vm702, %v590, 512
    %v767 = vsel %vm703, %v591, 512
    %v768 = vsel %vm704, %v592, 512
    %v769 = vsel %vm705, %v593, 512
    %v770 = vsel %vm706, %v590, 512
    %v771 = vsel %vm707, %v591, 512
    %v772 = vsel %vm708, %v592, 512
    %v773 = vsel %vm709, %v593, 512
    %v774 = vsel %vm710, %v590, 512
    %v775 = vsel %vm711, %v591, 512
    %v776 = vsel %vm712, %v592, 512
    %v777 = vsel %vm713, %v593, 512
    %v778 = vsel %vm714, %v590, 512
    %v779 = vsel %vm715, %v591, 512
    %v780 = vsel %vm716, %v592, 512
    %v781 = vsel %vm717, %v593, 512
    %v782 = vsel %vm718, %v590, 512
    %v783 = vsel %vm719, %v591, 512
    %v784 = vsel %vm720, %v592, 512
    %v785 = vsel %vm721, %v593, 512
    %v786 = vsel %vm722, %v590, 512
    %v787 = vsel %vm723, %v591, 512
    %v788 = vsel %vm724, %v592, 512
    %v789 = vsel %vm725, %v593, 512
    %v790 = vsel %vm726, %v590, 512
    %v791 = vsel %vm727, %v591, 512
    %v792 = vsel %vm728, %v592, 512
    %v793 = vsel %vm729, %v593, 512
    %v794 = vsel %vm730, %v590, 512
    %v795 = vsel %vm731, %v591, 512
    %v796 = vsel %vm732, %v592, 512
    %v797 = vsel %vm733, %v593, 512
    %v798 = vsel %vm734, %v590, 512
    %v799 = vsel %vm735, %v591, 512
    %v800 = vsel %vm736, %v592, 512
    %v801 = vsel %vm737, %v593, 512
    %vm802 = vcmp.lt.s32.totalorder %v738, %v739
    %v803 = vsel %vm802, %v738, %v739
    %vm804 = vcmp.lt.s32.totalorder %v803, %v740
    %v805 = vsel %vm804, %v803, %v740
    %vm806 = vcmp.lt.s32.totalorder %v805, %v741
    %v807 = vsel %vm806, %v805, %v741
    %v808 = vand.u32 %v807, 65535
    %v809 = vshra.s32 %v807, 16
    %v810 = vcvt.s32.f32 %v808
    %v811 = vcvt.s32.f32 %v809
    %812 = vmin.xlane.f32.xlu0 %v811
    %v813 = vpop.xlane.xlu0 %812
    %vm814 = vcmp.eq.f32.partialorder %v811, %v813
    %v815 = vsel %vm814, %v810, inf
    %816 = vmin.xlane.f32.xlu0 %v815
    %v817 = vpop.xlane.xlu0 %816
    %v818 = vcvt.f32.s32 %v817
    %v819 = vcvt.f32.s32 %v813
    %v820 = vshll.u32 %v819, 16
    %v821 = vadd.s32 %v820, %v818
    %vm822 = vcmp.lt.s32.totalorder %v742, %v743
    %v823 = vsel %vm822, %v742, %v743
    %vm824 = vcmp.lt.s32.totalorder %v823, %v744
    %v825 = vsel %vm824, %v823, %v744
    %vm826 = vcmp.lt.s32.totalorder %v825, %v745
    %v827 = vsel %vm826, %v825, %v745
    %v828 = vand.u32 %v827, 65535
    %v829 = vshra.s32 %v827, 16
    %v830 = vcvt.s32.f32 %v828
    %v831 = vcvt.s32.f32 %v829
    %832 = vmin.xlane.f32.xlu0 %v831
    %v833 = vpop.xlane.xlu0 %832
    %vm834 = vcmp.eq.f32.partialorder %v831, %v833
    %v835 = vsel %vm834, %v830, inf
    %836 = vmin.xlane.f32.xlu0 %v835
    %v837 = vpop.xlane.xlu0 %836
    %v838 = vcvt.f32.s32 %v837
    %v839 = vcvt.f32.s32 %v833
    %v840 = vshll.u32 %v839, 16
    %v841 = vadd.s32 %v840, %v838
    %vm842 = vcmp.lt.s32.totalorder %v746, %v747
    %v843 = vsel %vm842, %v746, %v747
    %vm844 = vcmp.lt.s32.totalorder %v843, %v748
    %v845 = vsel %vm844, %v843, %v748
    %vm846 = vcmp.lt.s32.totalorder %v845, %v749
    %v847 = vsel %vm846, %v845, %v749
    %v848 = vand.u32 %v847, 65535
    %v849 = vshra.s32 %v847, 16
    %v850 = vcvt.s32.f32 %v848
    %v851 = vcvt.s32.f32 %v849
    %852 = vmin.xlane.f32.xlu0 %v851
    %v853 = vpop.xlane.xlu0 %852
    %vm854 = vcmp.eq.f32.partialorder %v851, %v853
    %v855 = vsel %vm854, %v850, inf
    %856 = vmin.xlane.f32.xlu0 %v855
    %v857 = vpop.xlane.xlu0 %856
    %v858 = vcvt.f32.s32 %v857
    %v859 = vcvt.f32.s32 %v853
    %v860 = vshll.u32 %v859, 16
    %v861 = vadd.s32 %v860, %v858
    %vm862 = vcmp.lt.s32.totalorder %v750, %v751
    %v863 = vsel %vm862, %v750, %v751
    %vm864 = vcmp.lt.s32.totalorder %v863, %v752
    %v865 = vsel %vm864, %v863, %v752
    %vm866 = vcmp.lt.s32.totalorder %v865, %v753
    %v867 = vsel %vm866, %v865, %v753
    %v868 = vand.u32 %v867, 65535
    %v869 = vshra.s32 %v867, 16
    %v870 = vcvt.s32.f32 %v868
    %v871 = vcvt.s32.f32 %v869
    %872 = vmin.xlane.f32.xlu0 %v871
    %v873 = vpop.xlane.xlu0 %872
    %vm874 = vcmp.eq.f32.partialorder %v871, %v873
    %v875 = vsel %vm874, %v870, inf
    %876 = vmin.xlane.f32.xlu0 %v875
    %v877 = vpop.xlane.xlu0 %876
    %v878 = vcvt.f32.s32 %v877
    %v879 = vcvt.f32.s32 %v873
    %v880 = vshll.u32 %v879, 16
    %v881 = vadd.s32 %v880, %v878
    %vm882 = vcmp.lt.s32.totalorder %v754, %v755
    %v883 = vsel %vm882, %v754, %v755
    %vm884 = vcmp.lt.s32.totalorder %v883, %v756
    %v885 = vsel %vm884, %v883, %v756
    %vm886 = vcmp.lt.s32.totalorder %v885, %v757
    %v887 = vsel %vm886, %v885, %v757
    %v888 = vand.u32 %v887, 65535
    %v889 = vshra.s32 %v887, 16
    %v890 = vcvt.s32.f32 %v888
    %v891 = vcvt.s32.f32 %v889
    %892 = vmin.xlane.f32.xlu0 %v891
    %v893 = vpop.xlane.xlu0 %892
    %vm894 = vcmp.eq.f32.partialorder %v891, %v893
    %v895 = vsel %vm894, %v890, inf
    %896 = vmin.xlane.f32.xlu0 %v895
    %v897 = vpop.xlane.xlu0 %896
    %v898 = vcvt.f32.s32 %v897
    %v899 = vcvt.f32.s32 %v893
    %v900 = vshll.u32 %v899, 16
    %v901 = vadd.s32 %v900, %v898
    %vm902 = vcmp.lt.s32.totalorder %v758, %v759
    %v903 = vsel %vm902, %v758, %v759
    %vm904 = vcmp.lt.s32.totalorder %v903, %v760
    %v905 = vsel %vm904, %v903, %v760
    %vm906 = vcmp.lt.s32.totalorder %v905, %v761
    %v907 = vsel %vm906, %v905, %v761
    %v908 = vand.u32 %v907, 65535
    %v909 = vshra.s32 %v907, 16
    %v910 = vcvt.s32.f32 %v908
    %v911 = vcvt.s32.f32 %v909
    %912 = vmin.xlane.f32.xlu0 %v911
    %v913 = vpop.xlane.xlu0 %912
    %vm914 = vcmp.eq.f32.partialorder %v911, %v913
    %v915 = vsel %vm914, %v910, inf
    %916 = vmin.xlane.f32.xlu0 %v915
    %v917 = vpop.xlane.xlu0 %916
    %v918 = vcvt.f32.s32 %v917
    %v919 = vcvt.f32.s32 %v913
    %v920 = vshll.u32 %v919, 16
    %v921 = vadd.s32 %v920, %v918
    %vm922 = vcmp.lt.s32.totalorder %v762, %v763
    %v923 = vsel %vm922, %v762, %v763
    %vm924 = vcmp.lt.s32.totalorder %v923, %v764
    %v925 = vsel %vm924, %v923, %v764
    %vm926 = vcmp.lt.s32.totalorder %v925, %v765
    %v927 = vsel %vm926, %v925, %v765
    %v928 = vand.u32 %v927, 65535
    %v929 = vshra.s32 %v927, 16
    %v930 = vcvt.s32.f32 %v928
    %v931 = vcvt.s32.f32 %v929
    %932 = vmin.xlane.f32.xlu0 %v931
    %v933 = vpop.xlane.xlu0 %932
    %vm934 = vcmp.eq.f32.partialorder %v931, %v933
    %v935 = vsel %vm934, %v930, inf
    %936 = vmin.xlane.f32.xlu0 %v935
    %v937 = vpop.xlane.xlu0 %936
    %v938 = vcvt.f32.s32 %v937
    %v939 = vcvt.f32.s32 %v933
    %v940 = vshll.u32 %v939, 16
    %v941 = vadd.s32 %v940, %v938
    %vm942 = vcmp.lt.s32.totalorder %v766, %v767
    %v943 = vsel %vm942, %v766, %v767
    %vm944 = vcmp.lt.s32.totalorder %v943, %v768
    %v945 = vsel %vm944, %v943, %v768
    %vm946 = vcmp.lt.s32.totalorder %v945, %v769
    %v947 = vsel %vm946, %v945, %v769
    %v948 = vand.u32 %v947, 65535
    %v949 = vshra.s32 %v947, 16
    %v950 = vcvt.s32.f32 %v948
    %v951 = vcvt.s32.f32 %v949
    %952 = vmin.xlane.f32.xlu0 %v951
    %v953 = vpop.xlane.xlu0 %952
    %vm954 = vcmp.eq.f32.partialorder %v951, %v953
    %v955 = vsel %vm954, %v950, inf
    %956 = vmin.xlane.f32.xlu0 %v955
    %v957 = vpop.xlane.xlu0 %956
    %v958 = vcvt.f32.s32 %v957
    %v959 = vcvt.f32.s32 %v953
    %v960 = vshll.u32 %v959, 16
    %v961 = vadd.s32 %v960, %v958
    %vm962 = vcmp.lt.s32.totalorder %v770, %v771
    %v963 = vsel %vm962, %v770, %v771
    %vm964 = vcmp.lt.s32.totalorder %v963, %v772
    %v965 = vsel %vm964, %v963, %v772
    %vm966 = vcmp.lt.s32.totalorder %v965, %v773
    %v967 = vsel %vm966, %v965, %v773
    %v968 = vand.u32 %v967, 65535
    %v969 = vshra.s32 %v967, 16
    %v970 = vcvt.s32.f32 %v968
    %v971 = vcvt.s32.f32 %v969
    %972 = vmin.xlane.f32.xlu0 %v971
    %v973 = vpop.xlane.xlu0 %972
    %vm974 = vcmp.eq.f32.partialorder %v971, %v973
    %v975 = vsel %vm974, %v970, inf
    %976 = vmin.xlane.f32.xlu0 %v975
    %v977 = vpop.xlane.xlu0 %976
    %v978 = vcvt.f32.s32 %v977
    %v979 = vcvt.f32.s32 %v973
    %v980 = vshll.u32 %v979, 16
    %v981 = vadd.s32 %v980, %v978
    %vm982 = vcmp.lt.s32.totalorder %v774, %v775
    %v983 = vsel %vm982, %v774, %v775
    %vm984 = vcmp.lt.s32.totalorder %v983, %v776
    %v985 = vsel %vm984, %v983, %v776
    %vm986 = vcmp.lt.s32.totalorder %v985, %v777
    %v987 = vsel %vm986, %v985, %v777
    %v988 = vand.u32 %v987, 65535
    %v989 = vshra.s32 %v987, 16
    %v990 = vcvt.s32.f32 %v988
    %v991 = vcvt.s32.f32 %v989
    %992 = vmin.xlane.f32.xlu0 %v991
    %v993 = vpop.xlane.xlu0 %992
    %vm994 = vcmp.eq.f32.partialorder %v991, %v993
    %v995 = vsel %vm994, %v990, inf
    %996 = vmin.xlane.f32.xlu0 %v995
    %v997 = vpop.xlane.xlu0 %996
    %v998 = vcvt.f32.s32 %v997
    %v999 = vcvt.f32.s32 %v993
    %v1000 = vshll.u32 %v999, 16
    %v1001 = vadd.s32 %v1000, %v998
    %vm1002 = vcmp.lt.s32.totalorder %v778, %v779
    %v1003 = vsel %vm1002, %v778, %v779
    %vm1004 = vcmp.lt.s32.totalorder %v1003, %v780
    %v1005 = vsel %vm1004, %v1003, %v780
    %vm1006 = vcmp.lt.s32.totalorder %v1005, %v781
    %v1007 = vsel %vm1006, %v1005, %v781
    %v1008 = vand.u32 %v1007, 65535
    %v1009 = vshra.s32 %v1007, 16
    %v1010 = vcvt.s32.f32 %v1008
    %v1011 = vcvt.s32.f32 %v1009
    %1012 = vmin.xlane.f32.xlu0 %v1011
    %v1013 = vpop.xlane.xlu0 %1012
    %vm1014 = vcmp.eq.f32.partialorder %v1011, %v1013
    %v1015 = vsel %vm1014, %v1010, inf
    %1016 = vmin.xlane.f32.xlu0 %v1015
    %v1017 = vpop.xlane.xlu0 %1016
    %v1018 = vcvt.f32.s32 %v1017
    %v1019 = vcvt.f32.s32 %v1013
    %v1020 = vshll.u32 %v1019, 16
    %v1021 = vadd.s32 %v1020, %v1018
    %vm1022 = vcmp.lt.s32.totalorder %v782, %v783
    %v1023 = vsel %vm1022, %v782, %v783
    %vm1024 = vcmp.lt.s32.totalorder %v1023, %v784
    %v1025 = vsel %vm1024, %v1023, %v784
    %vm1026 = vcmp.lt.s32.totalorder %v1025, %v785
    %v1027 = vsel %vm1026, %v1025, %v785
    %v1028 = vand.u32 %v1027, 65535
    %v1029 = vshra.s32 %v1027, 16
    %v1030 = vcvt.s32.f32 %v1028
    %v1031 = vcvt.s32.f32 %v1029
    %1032 = vmin.xlane.f32.xlu0 %v1031
    %v1033 = vpop.xlane.xlu0 %1032
    %vm1034 = vcmp.eq.f32.partialorder %v1031, %v1033
    %v1035 = vsel %vm1034, %v1030, inf
    %1036 = vmin.xlane.f32.xlu0 %v1035
    %v1037 = vpop.xlane.xlu0 %1036
    %v1038 = vcvt.f32.s32 %v1037
    %v1039 = vcvt.f32.s32 %v1033
    %v1040 = vshll.u32 %v1039, 16
    %v1041 = vadd.s32 %v1040, %v1038
    %vm1042 = vcmp.lt.s32.totalorder %v786, %v787
    %v1043 = vsel %vm1042, %v786, %v787
    %vm1044 = vcmp.lt.s32.totalorder %v1043, %v788
    %v1045 = vsel %vm1044, %v1043, %v788
    %vm1046 = vcmp.lt.s32.totalorder %v1045, %v789
    %v1047 = vsel %vm1046, %v1045, %v789
    %v1048 = vand.u32 %v1047, 65535
    %v1049 = vshra.s32 %v1047, 16
    %v1050 = vcvt.s32.f32 %v1048
    %v1051 = vcvt.s32.f32 %v1049
    %1052 = vmin.xlane.f32.xlu0 %v1051
    %v1053 = vpop.xlane.xlu0 %1052
    %vm1054 = vcmp.eq.f32.partialorder %v1051, %v1053
    %v1055 = vsel %vm1054, %v1050, inf
    %1056 = vmin.xlane.f32.xlu0 %v1055
    %v1057 = vpop.xlane.xlu0 %1056
    %v1058 = vcvt.f32.s32 %v1057
    %v1059 = vcvt.f32.s32 %v1053
    %v1060 = vshll.u32 %v1059, 16
    %v1061 = vadd.s32 %v1060, %v1058
    %vm1062 = vcmp.lt.s32.totalorder %v790, %v791
    %v1063 = vsel %vm1062, %v790, %v791
    %vm1064 = vcmp.lt.s32.totalorder %v1063, %v792
    %v1065 = vsel %vm1064, %v1063, %v792
    %vm1066 = vcmp.lt.s32.totalorder %v1065, %v793
    %v1067 = vsel %vm1066, %v1065, %v793
    %v1068 = vand.u32 %v1067, 65535
    %v1069 = vshra.s32 %v1067, 16
    %v1070 = vcvt.s32.f32 %v1068
    %v1071 = vcvt.s32.f32 %v1069
    %1072 = vmin.xlane.f32.xlu0 %v1071
    %v1073 = vpop.xlane.xlu0 %1072
    %vm1074 = vcmp.eq.f32.partialorder %v1071, %v1073
    %v1075 = vsel %vm1074, %v1070, inf
    %1076 = vmin.xlane.f32.xlu0 %v1075
    %v1077 = vpop.xlane.xlu0 %1076
    %v1078 = vcvt.f32.s32 %v1077
    %v1079 = vcvt.f32.s32 %v1073
    %v1080 = vshll.u32 %v1079, 16
    %v1081 = vadd.s32 %v1080, %v1078
    %vm1082 = vcmp.lt.s32.totalorder %v794, %v795
    %v1083 = vsel %vm1082, %v794, %v795
    %vm1084 = vcmp.lt.s32.totalorder %v1083, %v796
    %v1085 = vsel %vm1084, %v1083, %v796
    %vm1086 = vcmp.lt.s32.totalorder %v1085, %v797
    %v1087 = vsel %vm1086, %v1085, %v797
    %v1088 = vand.u32 %v1087, 65535
    %v1089 = vshra.s32 %v1087, 16
    %v1090 = vcvt.s32.f32 %v1088
    %v1091 = vcvt.s32.f32 %v1089
    %1092 = vmin.xlane.f32.xlu0 %v1091
    %v1093 = vpop.xlane.xlu0 %1092
    %vm1094 = vcmp.eq.f32.partialorder %v1091, %v1093
    %v1095 = vsel %vm1094, %v1090, inf
    %1096 = vmin.xlane.f32.xlu0 %v1095
    %v1097 = vpop.xlane.xlu0 %1096
    %v1098 = vcvt.f32.s32 %v1097
    %v1099 = vcvt.f32.s32 %v1093
    %v1100 = vshll.u32 %v1099, 16
    %v1101 = vadd.s32 %v1100, %v1098
    %vm1102 = vcmp.lt.s32.totalorder %v798, %v799
    %v1103 = vsel %vm1102, %v798, %v799
    %vm1104 = vcmp.lt.s32.totalorder %v1103, %v800
    %v1105 = vsel %vm1104, %v1103, %v800
    %vm1106 = vcmp.lt.s32.totalorder %v1105, %v801
    %v1107 = vsel %vm1106, %v1105, %v801
    %v1108 = vand.u32 %v1107, 65535
    %v1109 = vshra.s32 %v1107, 16
    %v1110 = vcvt.s32.f32 %v1108
    %v1111 = vcvt.s32.f32 %v1109
    %1112 = vmin.xlane.f32.xlu0 %v1111
    %v1113 = vpop.xlane.xlu0 %1112
    %vm1114 = vcmp.eq.f32.partialorder %v1111, %v1113
    %v1115 = vsel %vm1114, %v1110, inf
    %1116 = vmin.xlane.f32.xlu0 %v1115
    %v1117 = vpop.xlane.xlu0 %1116
    %v1118 = vcvt.f32.s32 %v1117
    %v1119 = vcvt.f32.s32 %v1113
    %v1120 = vshll.u32 %v1119, 16
    %v1121 = vadd.s32 %v1120, %v1118
    %vm1122 = vcmask 7168
    %1123 = vst.msk [vmem:[#allocation2] sm:$0xff] %vm1122, %v821
    %1124 = vst.msk [vmem:[#allocation2 + $0x8] sm:$0xff] %vm1122, %v841
    %1125 = vst.msk [vmem:[#allocation2 + $0x10] sm:$0xff] %vm1122, %v861
    %1126 = vst.msk [vmem:[#allocation2 + $0x18] sm:$0xff] %vm1122, %v881
    %1127 = vst.msk [vmem:[#allocation2 + $0x20] sm:$0xff] %vm1122, %v901
    %1128 = vst.msk [vmem:[#allocation2 + $0x28] sm:$0xff] %vm1122, %v921
    %1129 = vst.msk [vmem:[#allocation2 + $0x30] sm:$0xff] %vm1122, %v941
    %1130 = vst.msk [vmem:[#allocation2 + $0x38] sm:$0xff] %vm1122, %v961
    %1131 = vst.msk [vmem:[#allocation2 + $0x40] sm:$0xff] %vm1122, %v981
    %1132 = vst.msk [vmem:[#allocation2 + $0x48] sm:$0xff] %vm1122, %v1001
    %1133 = vst.msk [vmem:[#allocation2 + $0x50] sm:$0xff] %vm1122, %v1021
    %1134 = vst.msk [vmem:[#allocation2 + $0x58] sm:$0xff] %vm1122, %v1041
    %1135 = vst.msk [vmem:[#allocation2 + $0x60] sm:$0xff] %vm1122, %v1061
    %1136 = vst.msk [vmem:[#allocation2 + $0x68] sm:$0xff] %vm1122, %v1081
    %1137 = vst.msk [vmem:[#allocation2 + $0x70] sm:$0xff] %vm1122, %v1101
    %1138 = vst.msk [vmem:[#allocation2 + $0x78] sm:$0xff] %vm1122, %v1121
    %vm1139 = vcmp.eq.s32.totalorder %v590, %v821
    %vm1140 = vcmp.eq.s32.totalorder %v591, %v821
    %vm1141 = vcmp.eq.s32.totalorder %v592, %v821
    %vm1142 = vcmp.eq.s32.totalorder %v593, %v821
    %vm1143 = vcmp.eq.s32.totalorder %v590, %v841
    %vm1144 = vcmp.eq.s32.totalorder %v591, %v841
    %vm1145 = vcmp.eq.s32.totalorder %v592, %v841
    %vm1146 = vcmp.eq.s32.totalorder %v593, %v841
    %vm1147 = vcmp.eq.s32.totalorder %v590, %v861
    %vm1148 = vcmp.eq.s32.totalorder %v591, %v861
    %vm1149 = vcmp.eq.s32.totalorder %v592, %v861
    %vm1150 = vcmp.eq.s32.totalorder %v593, %v861
    %vm1151 = vcmp.eq.s32.totalorder %v590, %v881
    %vm1152 = vcmp.eq.s32.totalorder %v591, %v881
    %vm1153 = vcmp.eq.s32.totalorder %v592, %v881
    %vm1154 = vcmp.eq.s32.totalorder %v593, %v881
    %vm1155 = vcmp.eq.s32.totalorder %v590, %v901
    %vm1156 = vcmp.eq.s32.totalorder %v591, %v901
    %vm1157 = vcmp.eq.s32.totalorder %v592, %v901
    %vm1158 = vcmp.eq.s32.totalorder %v593, %v901
    %vm1159 = vcmp.eq.s32.totalorder %v590, %v921
    %vm1160 = vcmp.eq.s32.totalorder %v591, %v921
    %vm1161 = vcmp.eq.s32.totalorder %v592, %v921
    %vm1162 = vcmp.eq.s32.totalorder %v593, %v921
    %vm1163 = vcmp.eq.s32.totalorder %v590, %v941
    %vm1164 = vcmp.eq.s32.totalorder %v591, %v941
    %vm1165 = vcmp.eq.s32.totalorder %v592, %v941
    %vm1166 = vcmp.eq.s32.totalorder %v593, %v941
    %vm1167 = vcmp.eq.s32.totalorder %v590, %v961
    %vm1168 = vcmp.eq.s32.totalorder %v591, %v961
    %vm1169 = vcmp.eq.s32.totalorder %v592, %v961
    %vm1170 = vcmp.eq.s32.totalorder %v593, %v961
    %vm1171 = vcmp.eq.s32.totalorder %v590, %v981
    %vm1172 = vcmp.eq.s32.totalorder %v591, %v981
    %vm1173 = vcmp.eq.s32.totalorder %v592, %v981
    %vm1174 = vcmp.eq.s32.totalorder %v593, %v981
    %vm1175 = vcmp.eq.s32.totalorder %v590, %v1001
    %vm1176 = vcmp.eq.s32.totalorder %v591, %v1001
    %vm1177 = vcmp.eq.s32.totalorder %v592, %v1001
    %vm1178 = vcmp.eq.s32.totalorder %v593, %v1001
    %vm1179 = vcmp.eq.s32.totalorder %v590, %v1021
    %vm1180 = vcmp.eq.s32.totalorder %v591, %v1021
    %vm1181 = vcmp.eq.s32.totalorder %v592, %v1021
    %vm1182 = vcmp.eq.s32.totalorder %v593, %v1021
    %vm1183 = vcmp.eq.s32.totalorder %v590, %v1041
    %vm1184 = vcmp.eq.s32.totalorder %v591, %v1041
    %vm1185 = vcmp.eq.s32.totalorder %v592, %v1041
    %vm1186 = vcmp.eq.s32.totalorder %v593, %v1041
    %vm1187 = vcmp.eq.s32.totalorder %v590, %v1061
    %vm1188 = vcmp.eq.s32.totalorder %v591, %v1061
    %vm1189 = vcmp.eq.s32.totalorder %v592, %v1061
    %vm1190 = vcmp.eq.s32.totalorder %v593, %v1061
    %vm1191 = vcmp.eq.s32.totalorder %v590, %v1081
    %vm1192 = vcmp.eq.s32.totalorder %v591, %v1081
    %vm1193 = vcmp.eq.s32.totalorder %v592, %v1081
    %vm1194 = vcmp.eq.s32.totalorder %v593, %v1081
    %vm1195 = vcmp.eq.s32.totalorder %v590, %v1101
    %vm1196 = vcmp.eq.s32.totalorder %v591, %v1101
    %vm1197 = vcmp.eq.s32.totalorder %v592, %v1101
    %vm1198 = vcmp.eq.s32.totalorder %v593, %v1101
    %vm1199 = vcmp.eq.s32.totalorder %v590, %v1121
    %vm1200 = vcmp.eq.s32.totalorder %v591, %v1121
    %vm1201 = vcmp.eq.s32.totalorder %v592, %v1121
    %vm1202 = vcmp.eq.s32.totalorder %v593, %v1121
    %v1203 = vsel %vm1139, 1, 0
    %v1204 = vsel %vm1140, 1, 0
    %v1205 = vsel %vm1141, 1, 0
    %v1206 = vsel %vm1142, 1, 0
    %v1207 = vsel %vm1143, 1, 0
    %v1208 = vsel %vm1144, 1, 0
    %v1209 = vsel %vm1145, 1, 0
    %v1210 = vsel %vm1146, 1, 0
    %v1211 = vsel %vm1147, 1, 0
    %v1212 = vsel %vm1148, 1, 0
    %v1213 = vsel %vm1149, 1, 0
    %v1214 = vsel %vm1150, 1, 0
    %v1215 = vsel %vm1151, 1, 0
    %v1216 = vsel %vm1152, 1, 0
    %v1217 = vsel %vm1153, 1, 0
    %v1218 = vsel %vm1154, 1, 0
    %v1219 = vsel %vm1155, 1, 0
    %v1220 = vsel %vm1156, 1, 0
    %v1221 = vsel %vm1157, 1, 0
    %v1222 = vsel %vm1158, 1, 0
    %v1223 = vsel %vm1159, 1, 0
    %v1224 = vsel %vm1160, 1, 0
    %v1225 = vsel %vm1161, 1, 0
    %v1226 = vsel %vm1162, 1, 0
    %v1227 = vsel %vm1163, 1, 0
    %v1228 = vsel %vm1164, 1, 0
    %v1229 = vsel %vm1165, 1, 0
    %v1230 = vsel %vm1166, 1, 0
    %v1231 = vsel %vm1167, 1, 0
    %v1232 = vsel %vm1168, 1, 0
    %v1233 = vsel %vm1169, 1, 0
    %v1234 = vsel %vm1170, 1, 0
    %v1235 = vsel %vm1171, 1, 0
    %v1236 = vsel %vm1172, 1, 0
    %v1237 = vsel %vm1173, 1, 0
    %v1238 = vsel %vm1174, 1, 0
    %v1239 = vsel %vm1175, 1, 0
    %v1240 = vsel %vm1176, 1, 0
    %v1241 = vsel %vm1177, 1, 0
    %v1242 = vsel %vm1178, 1, 0
    %v1243 = vsel %vm1179, 1, 0
    %v1244 = vsel %vm1180, 1, 0
    %v1245 = vsel %vm1181, 1, 0
    %v1246 = vsel %vm1182, 1, 0
    %v1247 = vsel %vm1183, 1, 0
    %v1248 = vsel %vm1184, 1, 0
    %v1249 = vsel %vm1185, 1, 0
    %v1250 = vsel %vm1186, 1, 0
    %v1251 = vsel %vm1187, 1, 0
    %v1252 = vsel %vm1188, 1, 0
    %v1253 = vsel %vm1189, 1, 0
    %v1254 = vsel %vm1190, 1, 0
    %v1255 = vsel %vm1191, 1, 0
    %v1256 = vsel %vm1192, 1, 0
    %v1257 = vsel %vm1193, 1, 0
    %v1258 = vsel %vm1194, 1, 0
    %v1259 = vsel %vm1195, 1, 0
    %v1260 = vsel %vm1196, 1, 0
    %v1261 = vsel %vm1197, 1, 0
    %v1262 = vsel %vm1198, 1, 0
    %v1263 = vsel %vm1199, 1, 0
    %v1264 = vsel %vm1200, 1, 0
    %v1265 = vsel %vm1201, 1, 0
    %v1266 = vsel %vm1202, 1, 0
    %v1267 = vcvt.s32.f32 %v1203
    %v1268 = vcvt.s32.f32 %v1204
    %v1269 = vcvt.s32.f32 %v1205
    %v1270 = vcvt.s32.f32 %v1206
    %v1271 = vcvt.s32.f32 %v1207
    %v1272 = vcvt.s32.f32 %v1208
    %v1273 = vcvt.s32.f32 %v1209
    %v1274 = vcvt.s32.f32 %v1210
    %v1275 = vcvt.s32.f32 %v1211
    %v1276 = vcvt.s32.f32 %v1212
    %v1277 = vcvt.s32.f32 %v1213
    %v1278 = vcvt.s32.f32 %v1214
    %v1279 = vcvt.s32.f32 %v1215
    %v1280 = vcvt.s32.f32 %v1216
    %v1281 = vcvt.s32.f32 %v1217
    %v1282 = vcvt.s32.f32 %v1218
    %v1283 = vcvt.s32.f32 %v1219
    %v1284 = vcvt.s32.f32 %v1220
    %v1285 = vcvt.s32.f32 %v1221
    %v1286 = vcvt.s32.f32 %v1222
    %v1287 = vcvt.s32.f32 %v1223
    %v1288 = vcvt.s32.f32 %v1224
    %v1289 = vcvt.s32.f32 %v1225
    %v1290 = vcvt.s32.f32 %v1226
    %v1291 = vcvt.s32.f32 %v1227
    %v1292 = vcvt.s32.f32 %v1228
    %v1293 = vcvt.s32.f32 %v1229
    %v1294 = vcvt.s32.f32 %v1230
    %v1295 = vcvt.s32.f32 %v1231
    %v1296 = vcvt.s32.f32 %v1232
    %v1297 = vcvt.s32.f32 %v1233
    %v1298 = vcvt.s32.f32 %v1234
    %v1299 = vcvt.s32.f32 %v1235
    %v1300 = vcvt.s32.f32 %v1236
    %v1301 = vcvt.s32.f32 %v1237
    %v1302 = vcvt.s32.f32 %v1238
    %v1303 = vcvt.s32.f32 %v1239
    %v1304 = vcvt.s32.f32 %v1240
    %v1305 = vcvt.s32.f32 %v1241
    %v1306 = vcvt.s32.f32 %v1242
    %v1307 = vcvt.s32.f32 %v1243
    %v1308 = vcvt.s32.f32 %v1244
    %v1309 = vcvt.s32.f32 %v1245
    %v1310 = vcvt.s32.f32 %v1246
    %v1311 = vcvt.s32.f32 %v1247
    %v1312 = vcvt.s32.f32 %v1248
    %v1313 = vcvt.s32.f32 %v1249
    %v1314 = vcvt.s32.f32 %v1250
    %v1315 = vcvt.s32.f32 %v1251
    %v1316 = vcvt.s32.f32 %v1252
    %v1317 = vcvt.s32.f32 %v1253
    %v1318 = vcvt.s32.f32 %v1254
    %v1319 = vcvt.s32.f32 %v1255
    %v1320 = vcvt.s32.f32 %v1256
    %v1321 = vcvt.s32.f32 %v1257
    %v1322 = vcvt.s32.f32 %v1258
    %v1323 = vcvt.s32.f32 %v1259
    %v1324 = vcvt.s32.f32 %v1260
    %v1325 = vcvt.s32.f32 %v1261
    %v1326 = vcvt.s32.f32 %v1262
    %v1327 = vcvt.s32.f32 %v1263
    %v1328 = vcvt.s32.f32 %v1264
    %v1329 = vcvt.s32.f32 %v1265
    %v1330 = vcvt.s32.f32 %v1266
    %v1331 = vld [vmem:[%s2] sm:$0xff]
    %v1332 = vld [vmem:[%s2 + $0x8] sm:$0xff]
    %v1333 = vld [vmem:[%s2 + $0x10] sm:$0xff]
    %v1334 = vld [vmem:[%s2 + $0x18] sm:$0xff]
    %v1335 = vld [vmem:[%s2 + $0x20] sm:$0xff]
    %v1336 = vld [vmem:[%s2 + $0x28] sm:$0xff]
    %v1337 = vld [vmem:[%s2 + $0x30] sm:$0xff]
    %v1338 = vld [vmem:[%s2 + $0x38] sm:$0xff]
    %v1339 = vld [vmem:[%s2 + $0x40] sm:$0xff]
    %v1340 = vld [vmem:[%s2 + $0x48] sm:$0xff]
    %v1341 = vld [vmem:[%s2 + $0x50] sm:$0xff]
    %v1342 = vld [vmem:[%s2 + $0x58] sm:$0xff]
    %v1343 = vld [vmem:[%s2 + $0x60] sm:$0xff]
    %v1344 = vld [vmem:[%s2 + $0x68] sm:$0xff]
    %v1345 = vld [vmem:[%s2 + $0x70] sm:$0xff]
    %v1346 = vld [vmem:[%s2 + $0x78] sm:$0xff]
    %v1347 = vld [vmem:[%s2 + $0x80] sm:$0xff]
    %v1348 = vld [vmem:[%s2 + $0x88] sm:$0xff]
    %v1349 = vld [vmem:[%s2 + $0x90] sm:$0xff]
    %v1350 = vld [vmem:[%s2 + $0x98] sm:$0xff]
    %v1351 = vld [vmem:[%s2 + $0xa0] sm:$0xff]
    %v1352 = vld [vmem:[%s2 + $0xa8] sm:$0xff]
    %v1353 = vld [vmem:[%s2 + $0xb0] sm:$0xff]
    %v1354 = vld [vmem:[%s2 + $0xb8] sm:$0xff]
    %v1355 = vld [vmem:[%s2 + $0xc0] sm:$0xff]
    %v1356 = vld [vmem:[%s2 + $0xc8] sm:$0xff]
    %v1357 = vld [vmem:[%s2 + $0xd0] sm:$0xff]
    %v1358 = vld [vmem:[%s2 + $0xd8] sm:$0xff]
    %v1359 = vld [vmem:[%s2 + $0xe0] sm:$0xff]
    %v1360 = vld [vmem:[%s2 + $0xe8] sm:$0xff]
    %v1361 = vld [vmem:[%s2 + $0xf0] sm:$0xff]
    %v1362 = vld [vmem:[%s2 + $0xf8] sm:$0xff]
    %v1363 = vld [vmem:[%s2 + $0x100] sm:$0xff]
    %v1364 = vld [vmem:[%s2 + $0x108] sm:$0xff]
    %v1365 = vld [vmem:[%s2 + $0x110] sm:$0xff]
    %v1366 = vld [vmem:[%s2 + $0x118] sm:$0xff]
    %v1367 = vld [vmem:[%s2 + $0x120] sm:$0xff]
    %v1368 = vld [vmem:[%s2 + $0x128] sm:$0xff]
    %v1369 = vld [vmem:[%s2 + $0x130] sm:$0xff]
    %v1370 = vld [vmem:[%s2 + $0x138] sm:$0xff]
    %v1371 = vld [vmem:[%s2 + $0x140] sm:$0xff]
    %v1372 = vld [vmem:[%s2 + $0x148] sm:$0xff]
    %v1373 = vld [vmem:[%s2 + $0x150] sm:$0xff]
    %v1374 = vld [vmem:[%s2 + $0x158] sm:$0xff]
    %v1375 = vld [vmem:[%s2 + $0x160] sm:$0xff]
    %v1376 = vld [vmem:[%s2 + $0x168] sm:$0xff]
    %v1377 = vld [vmem:[%s2 + $0x170] sm:$0xff]
    %v1378 = vld [vmem:[%s2 + $0x178] sm:$0xff]
    %v1379 = vld [vmem:[%s2 + $0x180] sm:$0xff]
    %v1380 = vld [vmem:[%s2 + $0x188] sm:$0xff]
    %v1381 = vld [vmem:[%s2 + $0x190] sm:$0xff]
    %v1382 = vld [vmem:[%s2 + $0x198] sm:$0xff]
    %v1383 = vld [vmem:[%s2 + $0x1a0] sm:$0xff]
    %v1384 = vld [vmem:[%s2 + $0x1a8] sm:$0xff]
    %v1385 = vld [vmem:[%s2 + $0x1b0] sm:$0xff]
    %v1386 = vld [vmem:[%s2 + $0x1b8] sm:$0xff]
    %v1387 = vld [vmem:[%s2 + $0x1c0] sm:$0xff]
    %v1388 = vld [vmem:[%s2 + $0x1c8] sm:$0xff]
    %v1389 = vld [vmem:[%s2 + $0x1d0] sm:$0xff]
    %v1390 = vld [vmem:[%s2 + $0x1d8] sm:$0xff]
    %v1391 = vld [vmem:[%s2 + $0x1e0] sm:$0xff]
    %v1392 = vld [vmem:[%s2 + $0x1e8] sm:$0xff]
    %v1393 = vld [vmem:[%s2 + $0x1f0] sm:$0xff]
    %v1394 = vld [vmem:[%s2 + $0x1f8] sm:$0xff]
    %1395 = vmatprep.subr.mxu0 0.0
    %1396 = vmatpush1.msra.mxu0 %v1346
    %1397 = vmatprep.subr.mxu0 0.0
    %1398 = vmatpush1.msra.mxu0 %v1345
    %1399 = vmatprep.subr.mxu0 0.0
    %1400 = vmatpush1.msra.mxu0 %v1344
    %1401 = vmatprep.subr.mxu0 0.0
    %1402 = vmatpush1.msra.mxu0 %v1343
    %1403 = vmatprep.subr.mxu0 0.0
    %1404 = vmatpush1.msra.mxu0 %v1342
    %1405 = vmatprep.subr.mxu0 0.0
    %1406 = vmatpush1.msra.mxu0 %v1341
    %1407 = vmatprep.subr.mxu0 0.0
    %1408 = vmatpush1.msra.mxu0 %v1340
    %1409 = vmatprep.subr.mxu0 0.0
    %1410 = vmatpush1.msra.mxu0 %v1339
    %1411 = vmatprep.subr.mxu0 0.0
    %1412 = vmatpush1.msra.mxu0 %v1338
    %1413 = vmatprep.subr.mxu0 0.0
    %1414 = vmatpush1.msra.mxu0 %v1337
    %1415 = vmatprep.subr.mxu0 0.0
    %1416 = vmatpush1.msra.mxu0 %v1336
    %1417 = vmatprep.subr.mxu0 0.0
    %1418 = vmatpush1.msra.mxu0 %v1335
    %1419 = vmatprep.subr.mxu0 0.0
    %1420 = vmatpush1.msra.mxu0 %v1334
    %1421 = vmatprep.subr.mxu0 0.0
    %1422 = vmatpush1.msra.mxu0 %v1333
    %1423 = vmatprep.subr.mxu0 0.0
    %1424 = vmatpush1.msra.mxu0 %v1332
    %1425 = vmatprep.subr.mxu0 0.0
    %1426 = vmatpush1.msra.mxu0 %v1331
    %1427 = vmatprep.subr.mxu0 0.0
    %1428 = vmatpush2.msra.mxu0 %v1362
    %1429 = vmatprep.subr.mxu0 0.0
    %1430 = vmatpush2.msra.mxu0 %v1361
    %1431 = vmatprep.subr.mxu0 0.0
    %1432 = vmatpush2.msra.mxu0 %v1360
    %1433 = vmatprep.subr.mxu0 0.0
    %1434 = vmatpush2.msra.mxu0 %v1359
    %1435 = vmatprep.subr.mxu0 0.0
    %1436 = vmatpush2.msra.mxu0 %v1358
    %1437 = vmatprep.subr.mxu0 0.0
    %1438 = vmatpush2.msra.mxu0 %v1357
    %1439 = vmatprep.subr.mxu0 0.0
    %1440 = vmatpush2.msra.mxu0 %v1356
    %1441 = vmatprep.subr.mxu0 0.0
    %1442 = vmatpush2.msra.mxu0 %v1355
    %1443 = vmatprep.subr.mxu0 0.0
    %1444 = vmatpush2.msra.mxu0 %v1354
    %1445 = vmatprep.subr.mxu0 0.0
    %1446 = vmatpush2.msra.mxu0 %v1353
    %1447 = vmatprep.subr.mxu0 0.0
    %1448 = vmatpush2.msra.mxu0 %v1352
    %1449 = vmatprep.subr.mxu0 0.0
    %1450 = vmatpush2.msra.mxu0 %v1351
    %1451 = vmatprep.subr.mxu0 0.0
    %1452 = vmatpush2.msra.mxu0 %v1350
    %1453 = vmatprep.subr.mxu0 0.0
    %1454 = vmatpush2.msra.mxu0 %v1349
    %1455 = vmatprep.subr.mxu0 0.0
    %1456 = vmatpush2.msra.mxu0 %v1348
    %1457 = vmatprep.subr.mxu0 0.0
    %1458 = vmatpush2.msra.mxu0 %v1347
    %1459 = vmatprep.mubr.f32.mxu0 %v1268
    %1460 = vmatmul.mubr.f32.gmra.mxu0 %v1267
    %v1461 = vpop.f32.mrf.mxu0
    %v1462 = vadd.f32 0.0, %v1461
    %v1463 = vpop.f32.mrf.mxu0
    %1464 = vmatprep.mubr.f32.mxu0 %v1272
    %1465 = vmatmul.mubr.f32.gmra.mxu0 %v1271
    %v1466 = vpop.f32.mrf.mxu0
    %v1467 = vadd.f32 0.0, %v1466
    %v1468 = vpop.f32.mrf.mxu0
    %1469 = vmatprep.mubr.f32.mxu0 %v1276
    %1470 = vmatmul.mubr.f32.gmra.mxu0 %v1275
    %v1471 = vpop.f32.mrf.mxu0
    %v1472 = vadd.f32 0.0, %v1471
    %v1473 = vpop.f32.mrf.mxu0
    %1474 = vmatprep.mubr.f32.mxu0 %v1280
    %1475 = vmatmul.mubr.f32.gmra.mxu0 %v1279
    %v1476 = vpop.f32.mrf.mxu0
    %v1477 = vadd.f32 0.0, %v1476
    %v1478 = vpop.f32.mrf.mxu0
    %1479 = vmatprep.mubr.f32.mxu0 %v1284
    %1480 = vmatmul.mubr.f32.gmra.mxu0 %v1283
    %v1481 = vpop.f32.mrf.mxu0
    %v1482 = vadd.f32 0.0, %v1481
    %v1483 = vpop.f32.mrf.mxu0
    %1484 = vmatprep.mubr.f32.mxu0 %v1288
    %1485 = vmatmul.mubr.f32.gmra.mxu0 %v1287
    %v1486 = vpop.f32.mrf.mxu0
    %v1487 = vadd.f32 0.0, %v1486
    %v1488 = vpop.f32.mrf.mxu0
    %1489 = vmatprep.mubr.f32.mxu0 %v1292
    %1490 = vmatmul.mubr.f32.gmra.mxu0 %v1291
    %v1491 = vpop.f32.mrf.mxu0
    %v1492 = vadd.f32 0.0, %v1491
    %v1493 = vpop.f32.mrf.mxu0
    %1494 = vmatprep.mubr.f32.mxu0 %v1296
    %1495 = vmatmul.mubr.f32.gmra.mxu0 %v1295
    %v1496 = vpop.f32.mrf.mxu0
    %v1497 = vadd.f32 0.0, %v1496
    %v1498 = vpop.f32.mrf.mxu0
    %1499 = vmatprep.mubr.f32.mxu0 %v1300
    %1500 = vmatmul.mubr.f32.gmra.mxu0 %v1299
    %v1501 = vpop.f32.mrf.mxu0
    %v1502 = vadd.f32 0.0, %v1501
    %v1503 = vpop.f32.mrf.mxu0
    %1504 = vmatprep.mubr.f32.mxu0 %v1304
    %1505 = vmatmul.mubr.f32.gmra.mxu0 %v1303
    %v1506 = vpop.f32.mrf.mxu0
    %v1507 = vadd.f32 0.0, %v1506
    %v1508 = vpop.f32.mrf.mxu0
    %1509 = vmatprep.mubr.f32.mxu0 %v1308
    %1510 = vmatmul.mubr.f32.gmra.mxu0 %v1307
    %v1511 = vpop.f32.mrf.mxu0
    %v1512 = vadd.f32 0.0, %v1511
    %v1513 = vpop.f32.mrf.mxu0
    %1514 = vmatprep.mubr.f32.mxu0 %v1312
    %1515 = vmatmul.mubr.f32.gmra.mxu0 %v1311
    %v1516 = vpop.f32.mrf.mxu0
    %v1517 = vadd.f32 0.0, %v1516
    %v1518 = vpop.f32.mrf.mxu0
    %1519 = vmatprep.mubr.f32.mxu0 %v1316
    %1520 = vmatmul.mubr.f32.gmra.mxu0 %v1315
    %v1521 = vpop.f32.mrf.mxu0
    %v1522 = vadd.f32 0.0, %v1521
    %v1523 = vpop.f32.mrf.mxu0
    %1524 = vmatprep.mubr.f32.mxu0 %v1320
    %1525 = vmatmul.mubr.f32.gmra.mxu0 %v1319
    %v1526 = vpop.f32.mrf.mxu0
    %v1527 = vadd.f32 0.0, %v1526
    %v1528 = vpop.f32.mrf.mxu0
    %1529 = vmatprep.mubr.f32.mxu0 %v1324
    %1530 = vmatmul.mubr.f32.gmra.mxu0 %v1323
    %v1531 = vpop.f32.mrf.mxu0
    %v1532 = vadd.f32 0.0, %v1531
    %v1533 = vpop.f32.mrf.mxu0
    %1534 = vmatprep.mubr.f32.mxu0 %v1328
    %1535 = vmatmul.mubr.f32.gmra.mxu0 %v1327
    %v1536 = vpop.f32.mrf.mxu0
    %v1537 = vadd.f32 0.0, %v1536
    %v1538 = vpop.f32.mrf.mxu0
    %1539 = vdwg.mxu0
    %1540 = vmatprep.subr.mxu0 0.0
    %1541 = vmatpush1.msra.mxu0 %v1378
    %1542 = vmatprep.subr.mxu0 0.0
    %1543 = vmatpush1.msra.mxu0 %v1377
    %1544 = vmatprep.subr.mxu0 0.0
    %1545 = vmatpush1.msra.mxu0 %v1376
    %1546 = vmatprep.subr.mxu0 0.0
    %1547 = vmatpush1.msra.mxu0 %v1375
    %1548 = vmatprep.subr.mxu0 0.0
    %1549 = vmatpush1.msra.mxu0 %v1374
    %1550 = vmatprep.subr.mxu0 0.0
    %1551 = vmatpush1.msra.mxu0 %v1373
    %1552 = vmatprep.subr.mxu0 0.0
    %1553 = vmatpush1.msra.mxu0 %v1372
    %1554 = vmatprep.subr.mxu0 0.0
    %1555 = vmatpush1.msra.mxu0 %v1371
    %1556 = vmatprep.subr.mxu0 0.0
    %1557 = vmatpush1.msra.mxu0 %v1370
    %1558 = vmatprep.subr.mxu0 0.0
    %1559 = vmatpush1.msra.mxu0 %v1369
    %1560 = vmatprep.subr.mxu0 0.0
    %1561 = vmatpush1.msra.mxu0 %v1368
    %1562 = vmatprep.subr.mxu0 0.0
    %1563 = vmatpush1.msra.mxu0 %v1367
    %1564 = vmatprep.subr.mxu0 0.0
    %1565 = vmatpush1.msra.mxu0 %v1366
    %1566 = vmatprep.subr.mxu0 0.0
    %1567 = vmatpush1.msra.mxu0 %v1365
    %1568 = vmatprep.subr.mxu0 0.0
    %1569 = vmatpush1.msra.mxu0 %v1364
    %1570 = vmatprep.subr.mxu0 0.0
    %1571 = vmatpush1.msra.mxu0 %v1363
    %1572 = vmatprep.subr.mxu0 0.0
    %1573 = vmatpush2.msra.mxu0 %v1394
    %1574 = vmatprep.subr.mxu0 0.0
    %1575 = vmatpush2.msra.mxu0 %v1393
    %1576 = vmatprep.subr.mxu0 0.0
    %1577 = vmatpush2.msra.mxu0 %v1392
    %1578 = vmatprep.subr.mxu0 0.0
    %1579 = vmatpush2.msra.mxu0 %v1391
    %1580 = vmatprep.subr.mxu0 0.0
    %1581 = vmatpush2.msra.mxu0 %v1390
    %1582 = vmatprep.subr.mxu0 0.0
    %1583 = vmatpush2.msra.mxu0 %v1389
    %1584 = vmatprep.subr.mxu0 0.0
    %1585 = vmatpush2.msra.mxu0 %v1388
    %1586 = vmatprep.subr.mxu0 0.0
    %1587 = vmatpush2.msra.mxu0 %v1387
    %1588 = vmatprep.subr.mxu0 0.0
    %1589 = vmatpush2.msra.mxu0 %v1386
    %1590 = vmatprep.subr.mxu0 0.0
    %1591 = vmatpush2.msra.mxu0 %v1385
    %1592 = vmatprep.subr.mxu0 0.0
    %1593 = vmatpush2.msra.mxu0 %v1384
    %1594 = vmatprep.subr.mxu0 0.0
    %1595 = vmatpush2.msra.mxu0 %v1383
    %1596 = vmatprep.subr.mxu0 0.0
    %1597 = vmatpush2.msra.mxu0 %v1382
    %1598 = vmatprep.subr.mxu0 0.0
    %1599 = vmatpush2.msra.mxu0 %v1381
    %1600 = vmatprep.subr.mxu0 0.0
    %1601 = vmatpush2.msra.mxu0 %v1380
    %1602 = vmatprep.subr.mxu0 0.0
    %1603 = vmatpush2.msra.mxu0 %v1379
    %1604 = vmatprep.mubr.f32.mxu0 %v1270
    %1605 = vmatmul.mubr.f32.gmra.mxu0 %v1269
    %v1606 = vpop.f32.mrf.mxu0
    %v1607 = vadd.f32 %v1462, %v1606
    %v1608 = vpop.f32.mrf.mxu0
    %1609 = vmatprep.mubr.f32.mxu0 %v1274
    %1610 = vmatmul.mubr.f32.gmra.mxu0 %v1273
    %v1611 = vpop.f32.mrf.mxu0
    %v1612 = vadd.f32 %v1467, %v1611
    %v1613 = vpop.f32.mrf.mxu0
    %1614 = vmatprep.mubr.f32.mxu0 %v1278
    %1615 = vmatmul.mubr.f32.gmra.mxu0 %v1277
    %v1616 = vpop.f32.mrf.mxu0
    %v1617 = vadd.f32 %v1472, %v1616
    %v1618 = vpop.f32.mrf.mxu0
    %1619 = vmatprep.mubr.f32.mxu0 %v1282
    %1620 = vmatmul.mubr.f32.gmra.mxu0 %v1281
    %v1621 = vpop.f32.mrf.mxu0
    %v1622 = vadd.f32 %v1477, %v1621
    %v1623 = vpop.f32.mrf.mxu0
    %1624 = vmatprep.mubr.f32.mxu0 %v1286
    %1625 = vmatmul.mubr.f32.gmra.mxu0 %v1285
    %v1626 = vpop.f32.mrf.mxu0
    %v1627 = vadd.f32 %v1482, %v1626
    %v1628 = vpop.f32.mrf.mxu0
    %1629 = vmatprep.mubr.f32.mxu0 %v1290
    %1630 = vmatmul.mubr.f32.gmra.mxu0 %v1289
    %v1631 = vpop.f32.mrf.mxu0
    %v1632 = vadd.f32 %v1487, %v1631
    %v1633 = vpop.f32.mrf.mxu0
    %1634 = vmatprep.mubr.f32.mxu0 %v1294
    %1635 = vmatmul.mubr.f32.gmra.mxu0 %v1293
    %v1636 = vpop.f32.mrf.mxu0
    %v1637 = vadd.f32 %v1492, %v1636
    %v1638 = vpop.f32.mrf.mxu0
    %1639 = vmatprep.mubr.f32.mxu0 %v1298
    %1640 = vmatmul.mubr.f32.gmra.mxu0 %v1297
    %v1641 = vpop.f32.mrf.mxu0
    %v1642 = vadd.f32 %v1497, %v1641
    %v1643 = vpop.f32.mrf.mxu0
    %1644 = vmatprep.mubr.f32.mxu0 %v1302
    %1645 = vmatmul.mubr.f32.gmra.mxu0 %v1301
    %v1646 = vpop.f32.mrf.mxu0
    %v1647 = vadd.f32 %v1502, %v1646
    %v1648 = vpop.f32.mrf.mxu0
    %1649 = vmatprep.mubr.f32.mxu0 %v1306
    %1650 = vmatmul.mubr.f32.gmra.mxu0 %v1305
    %v1651 = vpop.f32.mrf.mxu0
    %v1652 = vadd.f32 %v1507, %v1651
    %v1653 = vpop.f32.mrf.mxu0
    %1654 = vmatprep.mubr.f32.mxu0 %v1310
    %1655 = vmatmul.mubr.f32.gmra.mxu0 %v1309
    %v1656 = vpop.f32.mrf.mxu0
    %v1657 = vadd.f32 %v1512, %v1656
    %v1658 = vpop.f32.mrf.mxu0
    %1659 = vmatprep.mubr.f32.mxu0 %v1314
    %1660 = vmatmul.mubr.f32.gmra.mxu0 %v1313
    %v1661 = vpop.f32.mrf.mxu0
    %v1662 = vadd.f32 %v1517, %v1661
    %v1663 = vpop.f32.mrf.mxu0
    %1664 = vmatprep.mubr.f32.mxu0 %v1318
    %1665 = vmatmul.mubr.f32.gmra.mxu0 %v1317
    %v1666 = vpop.f32.mrf.mxu0
    %v1667 = vadd.f32 %v1522, %v1666
    %v1668 = vpop.f32.mrf.mxu0
    %1669 = vmatprep.mubr.f32.mxu0 %v1322
    %1670 = vmatmul.mubr.f32.gmra.mxu0 %v1321
    %v1671 = vpop.f32.mrf.mxu0
    %v1672 = vadd.f32 %v1527, %v1671
    %v1673 = vpop.f32.mrf.mxu0
    %1674 = vmatprep.mubr.f32.mxu0 %v1326
    %1675 = vmatmul.mubr.f32.gmra.mxu0 %v1325
    %v1676 = vpop.f32.mrf.mxu0
    %v1677 = vadd.f32 %v1532, %v1676
    %v1678 = vpop.f32.mrf.mxu0
    %1679 = vmatprep.mubr.f32.mxu0 %v1330
    %1680 = vmatmul.mubr.f32.gmra.mxu0 %v1329
    %v1681 = vpop.f32.mrf.mxu0
    %v1682 = vadd.f32 %v1537, %v1681
    %v1683 = vpop.f32.mrf.mxu0
    %1684 = vdwg.mxu0
    %1685 = vst.msk [vmem:[%s4] sm:$0xff] %vm69, %v1607
    %1686 = vst.msk [vmem:[%s4 + $0x8] sm:$0xff] %vm69, %v1612
    %1687 = vst.msk [vmem:[%s4 + $0x10] sm:$0xff] %vm69, %v1617
    %1688 = vst.msk [vmem:[%s4 + $0x18] sm:$0xff] %vm69, %v1622
    %1689 = vst.msk [vmem:[%s4 + $0x20] sm:$0xff] %vm69, %v1627
    %1690 = vst.msk [vmem:[%s4 + $0x28] sm:$0xff] %vm69, %v1632
    %1691 = vst.msk [vmem:[%s4 + $0x30] sm:$0xff] %vm69, %v1637
    %1692 = vst.msk [vmem:[%s4 + $0x38] sm:$0xff] %vm69, %v1642
    %1693 = vst.msk [vmem:[%s4 + $0x40] sm:$0xff] %vm69, %v1647
    %1694 = vst.msk [vmem:[%s4 + $0x48] sm:$0xff] %vm69, %v1652
    %1695 = vst.msk [vmem:[%s4 + $0x50] sm:$0xff] %vm69, %v1657
    %1696 = vst.msk [vmem:[%s4 + $0x58] sm:$0xff] %vm69, %v1662
    %1697 = vst.msk [vmem:[%s4 + $0x60] sm:$0xff] %vm69, %v1667
    %1698 = vst.msk [vmem:[%s4 + $0x68] sm:$0xff] %vm69, %v1672
    %1699 = vst.msk [vmem:[%s4 + $0x70] sm:$0xff] %vm69, %v1677
    %1700 = vst.msk [vmem:[%s4 + $0x78] sm:$0xff] %vm69, %v1682
    // Predicated region
    $region18: #{vqvae_forward.30} parent=1 // pred_check
      _
    $region19: #{vqvae_forward.30} parent=1 // pred_check_branch
      %1702 = sbr.rel (0) target = $region21
    $region20: #{vqvae_forward.30} parent=1 // pred_region
      _
    $region21: #{vqvae_forward.30} parent=1 // pred_fallthru
      _
    // Predicated region
    $region22: #{vqvae_forward.30} parent=1 // pred_check
      _
    $region23: #{vqvae_forward.30} parent=1 // pred_check_branch
      %1704 = sbr.rel (0) target = $region25
    $region24: #{vqvae_forward.30} parent=1 // pred_region
      %s1706 = ssub.s32 2048, 2048
      %1707 = vsyncadd [#allocation3], %s1706
      %s1708 = sshll.u32 [#allocation2], 4
      %s1709 = int_to_ptr.vmem [resolvable:$true] %s1708
      %1714 = dma.vmem_to_hbm [thread:$0]  %s1709, 2048, %s5, [#allocation3], 128, 128, 8
    $region25: #{vqvae_forward.30} parent=1 // pred_fallthru
      _
    // Predicated region
    $region26: #{vqvae_forward.30} parent=1 // pred_check
      _
    $region27: #{vqvae_forward.30} parent=1 // pred_check_branch
      %1716 = sbr.rel (0) target = $region29
    $region28: #{vqvae_forward.30} parent=1 // pred_region
      _
    $region29: #{vqvae_forward.30} parent=1 // pred_fallthru
      _
    // Predicated region
    $region30: #{vqvae_forward.30} parent=1 // pred_check
      _
    $region31: #{vqvae_forward.30} parent=1 // pred_check_branch
      %1718 = sbr.rel (0) target = $region33
    $region32: #{vqvae_forward.30} parent=1 // pred_region
      %1719 = dma.done [#allocation3], 2048
    $region33: #{vqvae_forward.30} parent=1 // pred_fallthru
      _
    %1720 = vsyncpa [#allocation3], 1

// kernel: tile.14
$region0: #{tile.14}
  %s0 = inlined_call_operand.vmem [shape: f32[8,32], index: 0, kind: input, shape index: {}]
  %s1 = inlined_call_operand.vmem [shape: f32[1,256], index: 1, kind: output, shape index: {}]
  $region1: #{tile.14} parent=0
    #allocation0 [shape = 'u8[8192]{0}', space=vmem, size = 0x2000, scoped, tag = 'scoped mem for output reshape']
    %s2 = smov 3
    %v3 = vld [vmem:[%s0] ss:$4 sm:%s2]
    %vm4 = vcmask 261120
    %5 = vst.msk [vmem:[#allocation0] ss:$8 sm:$0x3] %vm4, %v3
    %s6 = scalar_lea.vmem %s0, 3
    %s7 = smov 3
    %v8 = vld [vmem:[%s6] ss:$4 sm:%s7]
    %9 = vrot.lane.b32.xlu0 %v8, 96
    %v10 = vpop.permute.xlu0 %9
    %vm11 = vcmask 1048320
    %12 = vst.msk [vmem:[#allocation0] ss:$8 sm:$0x3] %vm11, %v10
    %s13 = scalar_lea.vmem %s0, 2
    %s14 = smov 3
    %v15 = vld [vmem:[%s13] ss:$4 sm:%s14]
    %16 = vrot.lane.b32.xlu0 %v15, 64
    %v17 = vpop.permute.xlu0 %16
    %vm18 = vcmask 785920
    %19 = vst.msk [vmem:[#allocation0] ss:$8 sm:$0x3] %vm18, %v17
    %s20 = scalar_lea.vmem %s0, 1
    %s21 = smov 3
    %v22 = vld [vmem:[%s20] ss:$4 sm:%s21]
    %23 = vrot.lane.b32.xlu0 %v22, 32
    %v24 = vpop.permute.xlu0 %23
    %vm25 = vcmask 523520
    %26 = vst.msk [vmem:[#allocation0] ss:$8 sm:$0x3] %vm25, %v24
    %s28 = sshll.u32 1, 1
    %s29 = ssub.s32 %s28, 1
    %v31 = vld [vmem:[#allocation0] sm:%s29]
    %s32 = sshll.u32 1, 1
    %s33 = ssub.s32 %s32, 1
    %34 = vst [vmem:[%s1] sm:%s33] %v31
    %s35 = scalar_lea.vmem [#allocation0], 8
    %v36 = vld [vmem:[%s35] sm:%s29]
    %s37 = sshll.u32 1, 1
    %s38 = ssub.s32 %s37, 1
    %s39 = scalar_lea.vmem %s1, 1
    %40 = vst [vmem:[%s39] sm:%s38] %v36

// kernel: tile.13
$region0: #{tile.13}
  #allocation0 [shape = 's32[1]{0}', space=sflag, size = 0x4, scoped, tag = 'scoped memory for tile.13']
  %s0 = inlined_call_operand.vmem [shape: f32[32], index: 0, kind: input, shape index: {}]
  %s1 = inlined_call_operand.vmem [shape: f32[8,32], index: 1, kind: output, shape index: {}]
  // Predicated region
  $region2: #{tile.13} parent=0 // pred_check
    _
  $region3: #{tile.13} parent=0 // pred_check_branch
    %3 = sbr.rel (0) target = $region5
  $region4: #{tile.13} parent=0 // pred_region
    _
  $region5: #{tile.13} parent=0 // pred_fallthru
    _
  %v4 = vld [vmem:[%s0] ss:$0 sm:$0xff]
  %5 = vst [vmem:[%s1] sm:$0xff] %v4

// kernel: vqvae_forward.38
$region0: #{vqvae_forward.38}
  #allocation0 [shape = 'u32[]', space=smem, size = 0x4, offset = 0x4, fixed_abs, tag = 'smem constant byte address 0x4 - core index']
  #allocation1 [shape = 'u32[144,128]{1,0:T(1,128)}', space=vmem, size = 0x12000, scoped, tag = 'internal scratch']
  %s0 = inlined_call_operand.vmem [shape: bf16[256,512], index: 0, kind: input, shape index: {}]
  %s1 = inlined_call_operand.vmem [shape: bf16[512,256], index: 1, kind: input, shape index: {}]
  %s2 = inlined_call_operand.vmem [shape: f32[1,256], index: 2, kind: input, shape index: {}]
  %s3 = inlined_call_operand.vmem [shape: f32[256,256], index: 3, kind: output, shape index: {}]
  %s4 = sld [smem:[#allocation0]]
  $region22: #{vqvae_forward.38} parent=0
    _
  %s6 = ssub.s32 1, %s4
  %s7 = scalar_select 0, %s6, %s4
  // Predicated region
  $region2: #{vqvae_forward.38} parent=0 // pred_check
    _
  $region3: #{vqvae_forward.38} parent=0 // pred_check_branch
    %9 = sbr.rel (0) target = $region5
  $region4: #{vqvae_forward.38} parent=0 // pred_region
    _
  $region5: #{vqvae_forward.38} parent=0 // pred_fallthru
    _
  // Predicated region
  $region6: #{vqvae_forward.38} parent=0 // pred_check
    _
  $region7: #{vqvae_forward.38} parent=0 // pred_check_branch
    %11 = sbr.rel (0) target = $region9
  $region8: #{vqvae_forward.38} parent=0 // pred_region
    _
  $region9: #{vqvae_forward.38} parent=0 // pred_fallthru
    _
  // Predicated region
  $region10: #{vqvae_forward.38} parent=0 // pred_check
    _
  $region11: #{vqvae_forward.38} parent=0 // pred_check_branch
    %13 = sbr.rel (0) target = $region13
  $region12: #{vqvae_forward.38} parent=0 // pred_region
    _
  $region13: #{vqvae_forward.38} parent=0 // pred_fallthru
    _
  %v14 = vld [vmem:[%s0] sm:$0xff]
  %v15 = vld [vmem:[%s0 + $0x8] sm:$0xff]
  %v16 = vld [vmem:[%s0 + $0x10] sm:$0xff]
  %v17 = vld [vmem:[%s0 + $0x18] sm:$0xff]
  %v18 = vld [vmem:[%s0 + $0x20] sm:$0xff]
  %v19 = vld [vmem:[%s0 + $0x28] sm:$0xff]
  %v20 = vld [vmem:[%s0 + $0x30] sm:$0xff]
  %v21 = vld [vmem:[%s0 + $0x38] sm:$0xff]
  %v22 = vld [vmem:[%s0 + $0x40] sm:$0xff]
  %v23 = vld [vmem:[%s0 + $0x48] sm:$0xff]
  %v24 = vld [vmem:[%s0 + $0x50] sm:$0xff]
  %v25 = vld [vmem:[%s0 + $0x58] sm:$0xff]
  %v26 = vld [vmem:[%s0 + $0x60] sm:$0xff]
  %v27 = vld [vmem:[%s0 + $0x68] sm:$0xff]
  %v28 = vld [vmem:[%s0 + $0x70] sm:$0xff]
  %v29 = vld [vmem:[%s0 + $0x78] sm:$0xff]
  %v30 = vld [vmem:[%s0 + $0x80] sm:$0xff]
  %v31 = vld [vmem:[%s0 + $0x88] sm:$0xff]
  %v32 = vld [vmem:[%s0 + $0x90] sm:$0xff]
  %v33 = vld [vmem:[%s0 + $0x98] sm:$0xff]
  %v34 = vld [vmem:[%s0 + $0xa0] sm:$0xff]
  %v35 = vld [vmem:[%s0 + $0xa8] sm:$0xff]
  %v36 = vld [vmem:[%s0 + $0xb0] sm:$0xff]
  %v37 = vld [vmem:[%s0 + $0xb8] sm:$0xff]
  %v38 = vld [vmem:[%s0 + $0xc0] sm:$0xff]
  %v39 = vld [vmem:[%s0 + $0xc8] sm:$0xff]
  %v40 = vld [vmem:[%s0 + $0xd0] sm:$0xff]
  %v41 = vld [vmem:[%s0 + $0xd8] sm:$0xff]
  %v42 = vld [vmem:[%s0 + $0xe0] sm:$0xff]
  %v43 = vld [vmem:[%s0 + $0xe8] sm:$0xff]
  %v44 = vld [vmem:[%s0 + $0xf0] sm:$0xff]
  %v45 = vld [vmem:[%s0 + $0xf8] sm:$0xff]
  %v46 = vld [vmem:[%s0 + $0x100] sm:$0xff]
  %v47 = vld [vmem:[%s0 + $0x108] sm:$0xff]
  %v48 = vld [vmem:[%s0 + $0x110] sm:$0xff]
  %v49 = vld [vmem:[%s0 + $0x118] sm:$0xff]
  %v50 = vld [vmem:[%s0 + $0x120] sm:$0xff]
  %v51 = vld [vmem:[%s0 + $0x128] sm:$0xff]
  %v52 = vld [vmem:[%s0 + $0x130] sm:$0xff]
  %v53 = vld [vmem:[%s0 + $0x138] sm:$0xff]
  %v54 = vld [vmem:[%s0 + $0x140] sm:$0xff]
  %v55 = vld [vmem:[%s0 + $0x148] sm:$0xff]
  %v56 = vld [vmem:[%s0 + $0x150] sm:$0xff]
  %v57 = vld [vmem:[%s0 + $0x158] sm:$0xff]
  %v58 = vld [vmem:[%s0 + $0x160] sm:$0xff]
  %v59 = vld [vmem:[%s0 + $0x168] sm:$0xff]
  %v60 = vld [vmem:[%s0 + $0x170] sm:$0xff]
  %v61 = vld [vmem:[%s0 + $0x178] sm:$0xff]
  %v62 = vld [vmem:[%s0 + $0x180] sm:$0xff]
  %v63 = vld [vmem:[%s0 + $0x188] sm:$0xff]
  %v64 = vld [vmem:[%s0 + $0x190] sm:$0xff]
  %v65 = vld [vmem:[%s0 + $0x198] sm:$0xff]
  %v66 = vld [vmem:[%s0 + $0x1a0] sm:$0xff]
  %v67 = vld [vmem:[%s0 + $0x1a8] sm:$0xff]
  %v68 = vld [vmem:[%s0 + $0x1b0] sm:$0xff]
  %v69 = vld [vmem:[%s0 + $0x1b8] sm:$0xff]
  %v70 = vld [vmem:[%s0 + $0x1c0] sm:$0xff]
  %v71 = vld [vmem:[%s0 + $0x1c8] sm:$0xff]
  %v72 = vld [vmem:[%s0 + $0x1d0] sm:$0xff]
  %v73 = vld [vmem:[%s0 + $0x1d8] sm:$0xff]
  %v74 = vld [vmem:[%s0 + $0x1e0] sm:$0xff]
  %v75 = vld [vmem:[%s0 + $0x1e8] sm:$0xff]
  %v76 = vld [vmem:[%s0 + $0x1f0] sm:$0xff]
  %v77 = vld [vmem:[%s0 + $0x1f8] sm:$0xff]
  %v78 = vld [vmem:[%s1] sm:$0xff]
  %v79 = vld [vmem:[%s1 + $0x8] sm:$0xff]
  %v80 = vld [vmem:[%s1 + $0x10] sm:$0xff]
  %v81 = vld [vmem:[%s1 + $0x18] sm:$0xff]
  %v82 = vld [vmem:[%s1 + $0x20] sm:$0xff]
  %v83 = vld [vmem:[%s1 + $0x28] sm:$0xff]
  %v84 = vld [vmem:[%s1 + $0x30] sm:$0xff]
  %v85 = vld [vmem:[%s1 + $0x38] sm:$0xff]
  %v86 = vld [vmem:[%s1 + $0x40] sm:$0xff]
  %v87 = vld [vmem:[%s1 + $0x48] sm:$0xff]
  %v88 = vld [vmem:[%s1 + $0x50] sm:$0xff]
  %v89 = vld [vmem:[%s1 + $0x58] sm:$0xff]
  %v90 = vld [vmem:[%s1 + $0x60] sm:$0xff]
  %v91 = vld [vmem:[%s1 + $0x68] sm:$0xff]
  %v92 = vld [vmem:[%s1 + $0x70] sm:$0xff]
  %v93 = vld [vmem:[%s1 + $0x78] sm:$0xff]
  %v94 = vld [vmem:[%s1 + $0x80] sm:$0xff]
  %v95 = vld [vmem:[%s1 + $0x88] sm:$0xff]
  %v96 = vld [vmem:[%s1 + $0x90] sm:$0xff]
  %v97 = vld [vmem:[%s1 + $0x98] sm:$0xff]
  %v98 = vld [vmem:[%s1 + $0xa0] sm:$0xff]
  %v99 = vld [vmem:[%s1 + $0xa8] sm:$0xff]
  %v100 = vld [vmem:[%s1 + $0xb0] sm:$0xff]
  %v101 = vld [vmem:[%s1 + $0xb8] sm:$0xff]
  %v102 = vld [vmem:[%s1 + $0xc0] sm:$0xff]
  %v103 = vld [vmem:[%s1 + $0xc8] sm:$0xff]
  %v104 = vld [vmem:[%s1 + $0xd0] sm:$0xff]
  %v105 = vld [vmem:[%s1 + $0xd8] sm:$0xff]
  %v106 = vld [vmem:[%s1 + $0xe0] sm:$0xff]
  %v107 = vld [vmem:[%s1 + $0xe8] sm:$0xff]
  %v108 = vld [vmem:[%s1 + $0xf0] sm:$0xff]
  %v109 = vld [vmem:[%s1 + $0xf8] sm:$0xff]
  %v110 = vld [vmem:[%s1 + $0x100] sm:$0xff]
  %v111 = vld [vmem:[%s1 + $0x108] sm:$0xff]
  %v112 = vld [vmem:[%s1 + $0x110] sm:$0xff]
  %v113 = vld [vmem:[%s1 + $0x118] sm:$0xff]
  %v114 = vld [vmem:[%s1 + $0x120] sm:$0xff]
  %v115 = vld [vmem:[%s1 + $0x128] sm:$0xff]
  %v116 = vld [vmem:[%s1 + $0x130] sm:$0xff]
  %v117 = vld [vmem:[%s1 + $0x138] sm:$0xff]
  %v118 = vld [vmem:[%s1 + $0x140] sm:$0xff]
  %v119 = vld [vmem:[%s1 + $0x148] sm:$0xff]
  %v120 = vld [vmem:[%s1 + $0x150] sm:$0xff]
  %v121 = vld [vmem:[%s1 + $0x158] sm:$0xff]
  %v122 = vld [vmem:[%s1 + $0x160] sm:$0xff]
  %v123 = vld [vmem:[%s1 + $0x168] sm:$0xff]
  %v124 = vld [vmem:[%s1 + $0x170] sm:$0xff]
  %v125 = vld [vmem:[%s1 + $0x178] sm:$0xff]
  %v126 = vld [vmem:[%s1 + $0x180] sm:$0xff]
  %v127 = vld [vmem:[%s1 + $0x188] sm:$0xff]
  %v128 = vld [vmem:[%s1 + $0x190] sm:$0xff]
  %v129 = vld [vmem:[%s1 + $0x198] sm:$0xff]
  %v130 = vld [vmem:[%s1 + $0x1a0] sm:$0xff]
  %v131 = vld [vmem:[%s1 + $0x1a8] sm:$0xff]
  %v132 = vld [vmem:[%s1 + $0x1b0] sm:$0xff]
  %v133 = vld [vmem:[%s1 + $0x1b8] sm:$0xff]
  %v134 = vld [vmem:[%s1 + $0x1c0] sm:$0xff]
  %v135 = vld [vmem:[%s1 + $0x1c8] sm:$0xff]
  %v136 = vld [vmem:[%s1 + $0x1d0] sm:$0xff]
  %v137 = vld [vmem:[%s1 + $0x1d8] sm:$0xff]
  %v138 = vld [vmem:[%s1 + $0x1e0] sm:$0xff]
  %v139 = vld [vmem:[%s1 + $0x1e8] sm:$0xff]
  %v140 = vld [vmem:[%s1 + $0x1f0] sm:$0xff]
  %v141 = vld [vmem:[%s1 + $0x1f8] sm:$0xff]
  %v142 = vld [vmem:[%s2] sm:$0x3]
  %v144 = vlaneseq
  %v145 = vshrl.u32 %v144, 7
  %v146 = vsub.s32 0, %v145
  %v147 = vrot.slane %v142, %v146
  %v148 = vlaneseq
  %v149 = vshrl.u32 %v148, 7
  %v150 = vsub.s32 1, %v149
  %v151 = vrot.slane %v142, %v150
  %v218 = vunpack.c.l.b16 %v14
  %v219 = vunpack.c.h.b16 %v14
  %v220 = vunpack.c.l.b16 %v15
  %v221 = vunpack.c.h.b16 %v15
  %v222 = vunpack.c.l.b16 %v16
  %v223 = vunpack.c.h.b16 %v16
  %v224 = vunpack.c.l.b16 %v17
  %v225 = vunpack.c.h.b16 %v17
  %v226 = vunpack.c.l.b16 %v18
  %v227 = vunpack.c.h.b16 %v18
  %v228 = vunpack.c.l.b16 %v19
  %v229 = vunpack.c.h.b16 %v19
  %v230 = vunpack.c.l.b16 %v20
  %v231 = vunpack.c.h.b16 %v20
  %v232 = vunpack.c.l.b16 %v21
  %v233 = vunpack.c.h.b16 %v21
  %v234 = vunpack.c.l.b16 %v22
  %v235 = vunpack.c.h.b16 %v22
  %v236 = vunpack.c.l.b16 %v23
  %v237 = vunpack.c.h.b16 %v23
  %v238 = vunpack.c.l.b16 %v24
  %v239 = vunpack.c.h.b16 %v24
  %v240 = vunpack.c.l.b16 %v25
  %v241 = vunpack.c.h.b16 %v25
  %v242 = vunpack.c.l.b16 %v26
  %v243 = vunpack.c.h.b16 %v26
  %v244 = vunpack.c.l.b16 %v27
  %v245 = vunpack.c.h.b16 %v27
  %v246 = vunpack.c.l.b16 %v28
  %v247 = vunpack.c.h.b16 %v28
  %v248 = vunpack.c.l.b16 %v29
  %v249 = vunpack.c.h.b16 %v29
  %v250 = vunpack.c.l.b16 %v30
  %v251 = vunpack.c.h.b16 %v30
  %v252 = vunpack.c.l.b16 %v31
  %v253 = vunpack.c.h.b16 %v31
  %v254 = vunpack.c.l.b16 %v32
  %v255 = vunpack.c.h.b16 %v32
  %v256 = vunpack.c.l.b16 %v33
  %v257 = vunpack.c.h.b16 %v33
  %v258 = vunpack.c.l.b16 %v34
  %v259 = vunpack.c.h.b16 %v34
  %v260 = vunpack.c.l.b16 %v35
  %v261 = vunpack.c.h.b16 %v35
  %v262 = vunpack.c.l.b16 %v36
  %v263 = vunpack.c.h.b16 %v36
  %v264 = vunpack.c.l.b16 %v37
  %v265 = vunpack.c.h.b16 %v37
  %v266 = vunpack.c.l.b16 %v38
  %v267 = vunpack.c.h.b16 %v38
  %v268 = vunpack.c.l.b16 %v39
  %v269 = vunpack.c.h.b16 %v39
  %v270 = vunpack.c.l.b16 %v40
  %v271 = vunpack.c.h.b16 %v40
  %v272 = vunpack.c.l.b16 %v41
  %v273 = vunpack.c.h.b16 %v41
  %v274 = vunpack.c.l.b16 %v42
  %v275 = vunpack.c.h.b16 %v42
  %v276 = vunpack.c.l.b16 %v43
  %v277 = vunpack.c.h.b16 %v43
  %v278 = vunpack.c.l.b16 %v44
  %v279 = vunpack.c.h.b16 %v44
  %v280 = vunpack.c.l.b16 %v45
  %v281 = vunpack.c.h.b16 %v45
  %v282 = vunpack.c.l.b16 %v46
  %v283 = vunpack.c.h.b16 %v46
  %v284 = vunpack.c.l.b16 %v47
  %v285 = vunpack.c.h.b16 %v47
  %v286 = vunpack.c.l.b16 %v48
  %v287 = vunpack.c.h.b16 %v48
  %v288 = vunpack.c.l.b16 %v49
  %v289 = vunpack.c.h.b16 %v49
  %v290 = vunpack.c.l.b16 %v50
  %v291 = vunpack.c.h.b16 %v50
  %v292 = vunpack.c.l.b16 %v51
  %v293 = vunpack.c.h.b16 %v51
  %v294 = vunpack.c.l.b16 %v52
  %v295 = vunpack.c.h.b16 %v52
  %v296 = vunpack.c.l.b16 %v53
  %v297 = vunpack.c.h.b16 %v53
  %v298 = vunpack.c.l.b16 %v54
  %v299 = vunpack.c.h.b16 %v54
  %v300 = vunpack.c.l.b16 %v55
  %v301 = vunpack.c.h.b16 %v55
  %v302 = vunpack.c.l.b16 %v56
  %v303 = vunpack.c.h.b16 %v56
  %v304 = vunpack.c.l.b16 %v57
  %v305 = vunpack.c.h.b16 %v57
  %v306 = vunpack.c.l.b16 %v58
  %v307 = vunpack.c.h.b16 %v58
  %v308 = vunpack.c.l.b16 %v59
  %v309 = vunpack.c.h.b16 %v59
  %v310 = vunpack.c.l.b16 %v60
  %v311 = vunpack.c.h.b16 %v60
  %v312 = vunpack.c.l.b16 %v61
  %v313 = vunpack.c.h.b16 %v61
  %v314 = vunpack.c.l.b16 %v62
  %v315 = vunpack.c.h.b16 %v62
  %v316 = vunpack.c.l.b16 %v63
  %v317 = vunpack.c.h.b16 %v63
  %v318 = vunpack.c.l.b16 %v64
  %v319 = vunpack.c.h.b16 %v64
  %v320 = vunpack.c.l.b16 %v65
  %v321 = vunpack.c.h.b16 %v65
  %v322 = vunpack.c.l.b16 %v66
  %v323 = vunpack.c.h.b16 %v66
  %v324 = vunpack.c.l.b16 %v67
  %v325 = vunpack.c.h.b16 %v67
  %v326 = vunpack.c.l.b16 %v68
  %v327 = vunpack.c.h.b16 %v68
  %v328 = vunpack.c.l.b16 %v69
  %v329 = vunpack.c.h.b16 %v69
  %v330 = vunpack.c.l.b16 %v70
  %v331 = vunpack.c.h.b16 %v70
  %v332 = vunpack.c.l.b16 %v71
  %v333 = vunpack.c.h.b16 %v71
  %v334 = vunpack.c.l.b16 %v72
  %v335 = vunpack.c.h.b16 %v72
  %v336 = vunpack.c.l.b16 %v73
  %v337 = vunpack.c.h.b16 %v73
  %v338 = vunpack.c.l.b16 %v74
  %v339 = vunpack.c.h.b16 %v74
  %v340 = vunpack.c.l.b16 %v75
  %v341 = vunpack.c.h.b16 %v75
  %v342 = vunpack.c.l.b16 %v76
  %v343 = vunpack.c.h.b16 %v76
  %v344 = vunpack.c.l.b16 %v77
  %v345 = vunpack.c.h.b16 %v77
  %v346 = vpack.c.b16 %v222, %v218
  %v347 = vpack.c.b16 %v223, %v219
  %v348 = vpack.c.b16 %v224, %v220
  %v349 = vpack.c.b16 %v225, %v221
  %v350 = vpack.c.b16 %v230, %v226
  %v351 = vpack.c.b16 %v231, %v227
  %v352 = vpack.c.b16 %v232, %v228
  %v353 = vpack.c.b16 %v233, %v229
  %v354 = vpack.c.b16 %v238, %v234
  %v355 = vpack.c.b16 %v239, %v235
  %v356 = vpack.c.b16 %v240, %v236
  %v357 = vpack.c.b16 %v241, %v237
  %v358 = vpack.c.b16 %v246, %v242
  %v359 = vpack.c.b16 %v247, %v243
  %v360 = vpack.c.b16 %v248, %v244
  %v361 = vpack.c.b16 %v249, %v245
  %v362 = vpack.c.b16 %v254, %v250
  %v363 = vpack.c.b16 %v255, %v251
  %v364 = vpack.c.b16 %v256, %v252
  %v365 = vpack.c.b16 %v257, %v253
  %v366 = vpack.c.b16 %v262, %v258
  %v367 = vpack.c.b16 %v263, %v259
  %v368 = vpack.c.b16 %v264, %v260
  %v369 = vpack.c.b16 %v265, %v261
  %v370 = vpack.c.b16 %v270, %v266
  %v371 = vpack.c.b16 %v271, %v267
  %v372 = vpack.c.b16 %v272, %v268
  %v373 = vpack.c.b16 %v273, %v269
  %v374 = vpack.c.b16 %v278, %v274
  %v375 = vpack.c.b16 %v279, %v275
  %v376 = vpack.c.b16 %v280, %v276
  %v377 = vpack.c.b16 %v281, %v277
  %v378 = vpack.c.b16 %v286, %v282
  %v379 = vpack.c.b16 %v287, %v283
  %v380 = vpack.c.b16 %v288, %v284
  %v381 = vpack.c.b16 %v289, %v285
  %v382 = vpack.c.b16 %v294, %v290
  %v383 = vpack.c.b16 %v295, %v291
  %v384 = vpack.c.b16 %v296, %v292
  %v385 = vpack.c.b16 %v297, %v293
  %v386 = vpack.c.b16 %v302, %v298
  %v387 = vpack.c.b16 %v303, %v299
  %v388 = vpack.c.b16 %v304, %v300
  %v389 = vpack.c.b16 %v305, %v301
  %v390 = vpack.c.b16 %v310, %v306
  %v391 = vpack.c.b16 %v311, %v307
  %v392 = vpack.c.b16 %v312, %v308
  %v393 = vpack.c.b16 %v313, %v309
  %v394 = vpack.c.b16 %v318, %v314
  %v395 = vpack.c.b16 %v319, %v315
  %v396 = vpack.c.b16 %v320, %v316
  %v397 = vpack.c.b16 %v321, %v317
  %v398 = vpack.c.b16 %v326, %v322
  %v399 = vpack.c.b16 %v327, %v323
  %v400 = vpack.c.b16 %v328, %v324
  %v401 = vpack.c.b16 %v329, %v325
  %v402 = vpack.c.b16 %v334, %v330
  %v403 = vpack.c.b16 %v335, %v331
  %v404 = vpack.c.b16 %v336, %v332
  %v405 = vpack.c.b16 %v337, %v333
  %v406 = vpack.c.b16 %v342, %v338
  %v407 = vpack.c.b16 %v343, %v339
  %v408 = vpack.c.b16 %v344, %v340
  %v409 = vpack.c.b16 %v345, %v341
  %v538 = vunpack.c.l.b16 %v78
  %v539 = vunpack.c.h.b16 %v78
  %v540 = vunpack.c.l.b16 %v79
  %v541 = vunpack.c.h.b16 %v79
  %v542 = vunpack.c.l.b16 %v80
  %v543 = vunpack.c.h.b16 %v80
  %v544 = vunpack.c.l.b16 %v81
  %v545 = vunpack.c.h.b16 %v81
  %v546 = vunpack.c.l.b16 %v82
  %v547 = vunpack.c.h.b16 %v82
  %v548 = vunpack.c.l.b16 %v83
  %v549 = vunpack.c.h.b16 %v83
  %v550 = vunpack.c.l.b16 %v84
  %v551 = vunpack.c.h.b16 %v84
  %v552 = vunpack.c.l.b16 %v85
  %v553 = vunpack.c.h.b16 %v85
  %v554 = vunpack.c.l.b16 %v86
  %v555 = vunpack.c.h.b16 %v86
  %v556 = vunpack.c.l.b16 %v87
  %v557 = vunpack.c.h.b16 %v87
  %v558 = vunpack.c.l.b16 %v88
  %v559 = vunpack.c.h.b16 %v88
  %v560 = vunpack.c.l.b16 %v89
  %v561 = vunpack.c.h.b16 %v89
  %v562 = vunpack.c.l.b16 %v90
  %v563 = vunpack.c.h.b16 %v90
  %v564 = vunpack.c.l.b16 %v91
  %v565 = vunpack.c.h.b16 %v91
  %v566 = vunpack.c.l.b16 %v92
  %v567 = vunpack.c.h.b16 %v92
  %v568 = vunpack.c.l.b16 %v93
  %v569 = vunpack.c.h.b16 %v93
  %v570 = vunpack.c.l.b16 %v94
  %v571 = vunpack.c.h.b16 %v94
  %v572 = vunpack.c.l.b16 %v95
  %v573 = vunpack.c.h.b16 %v95
  %v574 = vunpack.c.l.b16 %v96
  %v575 = vunpack.c.h.b16 %v96
  %v576 = vunpack.c.l.b16 %v97
  %v577 = vunpack.c.h.b16 %v97
  %v578 = vunpack.c.l.b16 %v98
  %v579 = vunpack.c.h.b16 %v98
  %v580 = vunpack.c.l.b16 %v99
  %v581 = vunpack.c.h.b16 %v99
  %v582 = vunpack.c.l.b16 %v100
  %v583 = vunpack.c.h.b16 %v100
  %v584 = vunpack.c.l.b16 %v101
  %v585 = vunpack.c.h.b16 %v101
  %v586 = vunpack.c.l.b16 %v102
  %v587 = vunpack.c.h.b16 %v102
  %v588 = vunpack.c.l.b16 %v103
  %v589 = vunpack.c.h.b16 %v103
  %v590 = vunpack.c.l.b16 %v104
  %v591 = vunpack.c.h.b16 %v104
  %v592 = vunpack.c.l.b16 %v105
  %v593 = vunpack.c.h.b16 %v105
  %v594 = vunpack.c.l.b16 %v106
  %v595 = vunpack.c.h.b16 %v106
  %v596 = vunpack.c.l.b16 %v107
  %v597 = vunpack.c.h.b16 %v107
  %v598 = vunpack.c.l.b16 %v108
  %v599 = vunpack.c.h.b16 %v108
  %v600 = vunpack.c.l.b16 %v109
  %v601 = vunpack.c.h.b16 %v109
  %v602 = vunpack.c.l.b16 %v110
  %v603 = vunpack.c.h.b16 %v110
  %v604 = vunpack.c.l.b16 %v111
  %v605 = vunpack.c.h.b16 %v111
  %v606 = vunpack.c.l.b16 %v112
  %v607 = vunpack.c.h.b16 %v112
  %v608 = vunpack.c.l.b16 %v113
  %v609 = vunpack.c.h.b16 %v113
  %v610 = vunpack.c.l.b16 %v114
  %v611 = vunpack.c.h.b16 %v114
  %v612 = vunpack.c.l.b16 %v115
  %v613 = vunpack.c.h.b16 %v115
  %v614 = vunpack.c.l.b16 %v116
  %v615 = vunpack.c.h.b16 %v116
  %v616 = vunpack.c.l.b16 %v117
  %v617 = vunpack.c.h.b16 %v117
  %v618 = vunpack.c.l.b16 %v118
  %v619 = vunpack.c.h.b16 %v118
  %v620 = vunpack.c.l.b16 %v119
  %v621 = vunpack.c.h.b16 %v119
  %v622 = vunpack.c.l.b16 %v120
  %v623 = vunpack.c.h.b16 %v120
  %v624 = vunpack.c.l.b16 %v121
  %v625 = vunpack.c.h.b16 %v121
  %v626 = vunpack.c.l.b16 %v122
  %v627 = vunpack.c.h.b16 %v122
  %v628 = vunpack.c.l.b16 %v123
  %v629 = vunpack.c.h.b16 %v123
  %v630 = vunpack.c.l.b16 %v124
  %v631 = vunpack.c.h.b16 %v124
  %v632 = vunpack.c.l.b16 %v125
  %v633 = vunpack.c.h.b16 %v125
  %v634 = vunpack.c.l.b16 %v126
  %v635 = vunpack.c.h.b16 %v126
  %v636 = vunpack.c.l.b16 %v127
  %v637 = vunpack.c.h.b16 %v127
  %v638 = vunpack.c.l.b16 %v128
  %v639 = vunpack.c.h.b16 %v128
  %v640 = vunpack.c.l.b16 %v129
  %v641 = vunpack.c.h.b16 %v129
  %v642 = vunpack.c.l.b16 %v130
  %v643 = vunpack.c.h.b16 %v130
  %v644 = vunpack.c.l.b16 %v131
  %v645 = vunpack.c.h.b16 %v131
  %v646 = vunpack.c.l.b16 %v132
  %v647 = vunpack.c.h.b16 %v132
  %v648 = vunpack.c.l.b16 %v133
  %v649 = vunpack.c.h.b16 %v133
  %v650 = vunpack.c.l.b16 %v134
  %v651 = vunpack.c.h.b16 %v134
  %v652 = vunpack.c.l.b16 %v135
  %v653 = vunpack.c.h.b16 %v135
  %v654 = vunpack.c.l.b16 %v136
  %v655 = vunpack.c.h.b16 %v136
  %v656 = vunpack.c.l.b16 %v137
  %v657 = vunpack.c.h.b16 %v137
  %v658 = vunpack.c.l.b16 %v138
  %v659 = vunpack.c.h.b16 %v138
  %v660 = vunpack.c.l.b16 %v139
  %v661 = vunpack.c.h.b16 %v139
  %v662 = vunpack.c.l.b16 %v140
  %v663 = vunpack.c.h.b16 %v140
  %v664 = vunpack.c.l.b16 %v141
  %v665 = vunpack.c.h.b16 %v141
  %v666 = vpack.c.b16 %v540, %v538
  %v667 = vpack.c.b16 %v541, %v539
  %v668 = vpack.c.b16 %v544, %v542
  %v669 = vpack.c.b16 %v545, %v543
  %v670 = vpack.c.b16 %v548, %v546
  %v671 = vpack.c.b16 %v549, %v547
  %v672 = vpack.c.b16 %v552, %v550
  %v673 = vpack.c.b16 %v553, %v551
  %v674 = vpack.c.b16 %v556, %v554
  %v675 = vpack.c.b16 %v557, %v555
  %v676 = vpack.c.b16 %v560, %v558
  %v677 = vpack.c.b16 %v561, %v559
  %v678 = vpack.c.b16 %v564, %v562
  %v679 = vpack.c.b16 %v565, %v563
  %v680 = vpack.c.b16 %v568, %v566
  %v681 = vpack.c.b16 %v569, %v567
  %v682 = vpack.c.b16 %v572, %v570
  %v683 = vpack.c.b16 %v573, %v571
  %v684 = vpack.c.b16 %v576, %v574
  %v685 = vpack.c.b16 %v577, %v575
  %v686 = vpack.c.b16 %v580, %v578
  %v687 = vpack.c.b16 %v581, %v579
  %v688 = vpack.c.b16 %v584, %v582
  %v689 = vpack.c.b16 %v585, %v583
  %v690 = vpack.c.b16 %v588, %v586
  %v691 = vpack.c.b16 %v589, %v587
  %v692 = vpack.c.b16 %v592, %v590
  %v693 = vpack.c.b16 %v593, %v591
  %v694 = vpack.c.b16 %v596, %v594
  %v695 = vpack.c.b16 %v597, %v595
  %v696 = vpack.c.b16 %v600, %v598
  %v697 = vpack.c.b16 %v601, %v599
  %v698 = vpack.c.b16 %v604, %v602
  %v699 = vpack.c.b16 %v605, %v603
  %v700 = vpack.c.b16 %v608, %v606
  %v701 = vpack.c.b16 %v609, %v607
  %v702 = vpack.c.b16 %v612, %v610
  %v703 = vpack.c.b16 %v613, %v611
  %v704 = vpack.c.b16 %v616, %v614
  %v705 = vpack.c.b16 %v617, %v615
  %v706 = vpack.c.b16 %v620, %v618
  %v707 = vpack.c.b16 %v621, %v619
  %v708 = vpack.c.b16 %v624, %v622
  %v709 = vpack.c.b16 %v625, %v623
  %v710 = vpack.c.b16 %v628, %v626
  %v711 = vpack.c.b16 %v629, %v627
  %v712 = vpack.c.b16 %v632, %v630
  %v713 = vpack.c.b16 %v633, %v631
  %v714 = vpack.c.b16 %v636, %v634
  %v715 = vpack.c.b16 %v637, %v635
  %v716 = vpack.c.b16 %v640, %v638
  %v717 = vpack.c.b16 %v641, %v639
  %v718 = vpack.c.b16 %v644, %v642
  %v719 = vpack.c.b16 %v645, %v643
  %v720 = vpack.c.b16 %v648, %v646
  %v721 = vpack.c.b16 %v649, %v647
  %v722 = vpack.c.b16 %v652, %v650
  %v723 = vpack.c.b16 %v653, %v651
  %v724 = vpack.c.b16 %v656, %v654
  %v725 = vpack.c.b16 %v657, %v655
  %v726 = vpack.c.b16 %v660, %v658
  %v727 = vpack.c.b16 %v661, %v659
  %v728 = vpack.c.b16 %v664, %v662
  %v729 = vpack.c.b16 %v665, %v663
  %794 = vmatprep.subr.bf16.mxu0 %v681
  %795 = vmatpush1.bf16.msra.mxu0 %v680
  %796 = vmatprep.subr.bf16.mxu0 %v679
  %797 = vmatpush1.bf16.msra.mxu0 %v678
  %798 = vmatprep.subr.bf16.mxu0 %v677
  %799 = vmatpush1.bf16.msra.mxu0 %v676
  %800 = vmatprep.subr.bf16.mxu0 %v675
  %801 = vmatpush1.bf16.msra.mxu0 %v674
  %802 = vmatprep.subr.bf16.mxu0 %v673
  %803 = vmatpush1.bf16.msra.mxu0 %v672
  %804 = vmatprep.subr.bf16.mxu0 %v671
  %805 = vmatpush1.bf16.msra.mxu0 %v670
  %806 = vmatprep.subr.bf16.mxu0 %v669
  %807 = vmatpush1.bf16.msra.mxu0 %v668
  %808 = vmatprep.subr.bf16.mxu0 %v667
  %809 = vmatpush1.bf16.msra.mxu0 %v666
  %810 = vmatprep.subr.bf16.mxu0 %v697
  %811 = vmatpush2.bf16.msra.mxu0 %v696
  %812 = vmatprep.subr.bf16.mxu0 %v695
  %813 = vmatpush2.bf16.msra.mxu0 %v694
  %814 = vmatprep.subr.bf16.mxu0 %v693
  %815 = vmatpush2.bf16.msra.mxu0 %v692
  %816 = vmatprep.subr.bf16.mxu0 %v691
  %817 = vmatpush2.bf16.msra.mxu0 %v690
  %818 = vmatprep.subr.bf16.mxu0 %v689
  %819 = vmatpush2.bf16.msra.mxu0 %v688
  %820 = vmatprep.subr.bf16.mxu0 %v687
  %821 = vmatpush2.bf16.msra.mxu0 %v686
  %822 = vmatprep.subr.bf16.mxu0 %v685
  %823 = vmatpush2.bf16.msra.mxu0 %v684
  %824 = vmatprep.subr.bf16.mxu0 %v683
  %825 = vmatpush2.bf16.msra.mxu0 %v682
  %826 = vmatprep.mubr.bf16.mxu0 %v347
  %827 = vmatmul.mubr.bf16.gmra.mxu0 %v346
  %v828 = vpop.f32.mrf.mxu0
  %v829 = vadd.f32 %v147, %v828
  %v830 = vpop.f32.mrf.mxu0
  %v831 = vadd.f32 %v151, %v830
  %v832 = vpop.f32.mrf.mxu0
  %v833 = vadd.f32 %v147, %v832
  %v834 = vpop.f32.mrf.mxu0
  %v835 = vadd.f32 %v151, %v834
  %836 = vmatprep.mubr.bf16.mxu0 %v351
  %837 = vmatmul.mubr.bf16.gmra.mxu0 %v350
  %v838 = vpop.f32.mrf.mxu0
  %v839 = vadd.f32 %v147, %v838
  %v840 = vpop.f32.mrf.mxu0
  %v841 = vadd.f32 %v151, %v840
  %v842 = vpop.f32.mrf.mxu0
  %v843 = vadd.f32 %v147, %v842
  %v844 = vpop.f32.mrf.mxu0
  %v845 = vadd.f32 %v151, %v844
  %846 = vmatprep.mubr.bf16.mxu0 %v355
  %847 = vmatmul.mubr.bf16.gmra.mxu0 %v354
  %v848 = vpop.f32.mrf.mxu0
  %v849 = vadd.f32 %v147, %v848
  %v850 = vpop.f32.mrf.mxu0
  %v851 = vadd.f32 %v151, %v850
  %v852 = vpop.f32.mrf.mxu0
  %v853 = vadd.f32 %v147, %v852
  %v854 = vpop.f32.mrf.mxu0
  %v855 = vadd.f32 %v151, %v854
  %856 = vmatprep.mubr.bf16.mxu0 %v359
  %857 = vmatmul.mubr.bf16.gmra.mxu0 %v358
  %v858 = vpop.f32.mrf.mxu0
  %v859 = vadd.f32 %v147, %v858
  %v860 = vpop.f32.mrf.mxu0
  %v861 = vadd.f32 %v151, %v860
  %v862 = vpop.f32.mrf.mxu0
  %v863 = vadd.f32 %v147, %v862
  %v864 = vpop.f32.mrf.mxu0
  %v865 = vadd.f32 %v151, %v864
  %866 = vmatprep.mubr.bf16.mxu0 %v363
  %867 = vmatmul.mubr.bf16.gmra.mxu0 %v362
  %v868 = vpop.f32.mrf.mxu0
  %v869 = vadd.f32 %v147, %v868
  %v870 = vpop.f32.mrf.mxu0
  %v871 = vadd.f32 %v151, %v870
  %v872 = vpop.f32.mrf.mxu0
  %v873 = vadd.f32 %v147, %v872
  %v874 = vpop.f32.mrf.mxu0
  %v875 = vadd.f32 %v151, %v874
  %876 = vmatprep.mubr.bf16.mxu0 %v367
  %877 = vmatmul.mubr.bf16.gmra.mxu0 %v366
  %v878 = vpop.f32.mrf.mxu0
  %v879 = vadd.f32 %v147, %v878
  %v880 = vpop.f32.mrf.mxu0
  %v881 = vadd.f32 %v151, %v880
  %v882 = vpop.f32.mrf.mxu0
  %v883 = vadd.f32 %v147, %v882
  %v884 = vpop.f32.mrf.mxu0
  %v885 = vadd.f32 %v151, %v884
  %886 = vmatprep.mubr.bf16.mxu0 %v371
  %887 = vmatmul.mubr.bf16.gmra.mxu0 %v370
  %v888 = vpop.f32.mrf.mxu0
  %v889 = vadd.f32 %v147, %v888
  %v890 = vpop.f32.mrf.mxu0
  %v891 = vadd.f32 %v151, %v890
  %v892 = vpop.f32.mrf.mxu0
  %v893 = vadd.f32 %v147, %v892
  %v894 = vpop.f32.mrf.mxu0
  %v895 = vadd.f32 %v151, %v894
  %896 = vmatprep.mubr.bf16.mxu0 %v375
  %897 = vmatmul.mubr.bf16.gmra.mxu0 %v374
  %v898 = vpop.f32.mrf.mxu0
  %v899 = vadd.f32 %v147, %v898
  %v900 = vpop.f32.mrf.mxu0
  %v901 = vadd.f32 %v151, %v900
  %v902 = vpop.f32.mrf.mxu0
  %v903 = vadd.f32 %v147, %v902
  %v904 = vpop.f32.mrf.mxu0
  %v905 = vadd.f32 %v151, %v904
  %906 = vmatprep.mubr.bf16.mxu0 %v379
  %907 = vmatmul.mubr.bf16.gmra.mxu0 %v378
  %v908 = vpop.f32.mrf.mxu0
  %v909 = vadd.f32 %v147, %v908
  %v910 = vpop.f32.mrf.mxu0
  %v911 = vadd.f32 %v151, %v910
  %v912 = vpop.f32.mrf.mxu0
  %v913 = vadd.f32 %v147, %v912
  %v914 = vpop.f32.mrf.mxu0
  %v915 = vadd.f32 %v151, %v914
  %916 = vmatprep.mubr.bf16.mxu0 %v383
  %917 = vmatmul.mubr.bf16.gmra.mxu0 %v382
  %v918 = vpop.f32.mrf.mxu0
  %v919 = vadd.f32 %v147, %v918
  %v920 = vpop.f32.mrf.mxu0
  %v921 = vadd.f32 %v151, %v920
  %v922 = vpop.f32.mrf.mxu0
  %v923 = vadd.f32 %v147, %v922
  %v924 = vpop.f32.mrf.mxu0
  %v925 = vadd.f32 %v151, %v924
  %926 = vmatprep.mubr.bf16.mxu0 %v387
  %927 = vmatmul.mubr.bf16.gmra.mxu0 %v386
  %v928 = vpop.f32.mrf.mxu0
  %v929 = vadd.f32 %v147, %v928
  %v930 = vpop.f32.mrf.mxu0
  %v931 = vadd.f32 %v151, %v930
  %v932 = vpop.f32.mrf.mxu0
  %v933 = vadd.f32 %v147, %v932
  %v934 = vpop.f32.mrf.mxu0
  %v935 = vadd.f32 %v151, %v934
  %936 = vmatprep.mubr.bf16.mxu0 %v391
  %937 = vmatmul.mubr.bf16.gmra.mxu0 %v390
  %v938 = vpop.f32.mrf.mxu0
  %v939 = vadd.f32 %v147, %v938
  %v940 = vpop.f32.mrf.mxu0
  %v941 = vadd.f32 %v151, %v940
  %v942 = vpop.f32.mrf.mxu0
  %v943 = vadd.f32 %v147, %v942
  %v944 = vpop.f32.mrf.mxu0
  %v945 = vadd.f32 %v151, %v944
  %946 = vmatprep.mubr.bf16.mxu0 %v395
  %947 = vmatmul.mubr.bf16.gmra.mxu0 %v394
  %v948 = vpop.f32.mrf.mxu0
  %v949 = vadd.f32 %v147, %v948
  %v950 = vpop.f32.mrf.mxu0
  %v951 = vadd.f32 %v151, %v950
  %v952 = vpop.f32.mrf.mxu0
  %v953 = vadd.f32 %v147, %v952
  %v954 = vpop.f32.mrf.mxu0
  %v955 = vadd.f32 %v151, %v954
  %956 = vmatprep.mubr.bf16.mxu0 %v399
  %957 = vmatmul.mubr.bf16.gmra.mxu0 %v398
  %v958 = vpop.f32.mrf.mxu0
  %v959 = vadd.f32 %v147, %v958
  %v960 = vpop.f32.mrf.mxu0
  %v961 = vadd.f32 %v151, %v960
  %v962 = vpop.f32.mrf.mxu0
  %v963 = vadd.f32 %v147, %v962
  %v964 = vpop.f32.mrf.mxu0
  %v965 = vadd.f32 %v151, %v964
  %966 = vmatprep.mubr.bf16.mxu0 %v403
  %967 = vmatmul.mubr.bf16.gmra.mxu0 %v402
  %v968 = vpop.f32.mrf.mxu0
  %v969 = vadd.f32 %v147, %v968
  %v970 = vpop.f32.mrf.mxu0
  %v971 = vadd.f32 %v151, %v970
  %v972 = vpop.f32.mrf.mxu0
  %v973 = vadd.f32 %v147, %v972
  %v974 = vpop.f32.mrf.mxu0
  %v975 = vadd.f32 %v151, %v974
  %976 = vmatprep.mubr.bf16.mxu0 %v407
  %977 = vmatmul.mubr.bf16.gmra.mxu0 %v406
  %v978 = vpop.f32.mrf.mxu0
  %v979 = vadd.f32 %v147, %v978
  %v980 = vpop.f32.mrf.mxu0
  %v981 = vadd.f32 %v151, %v980
  %v982 = vpop.f32.mrf.mxu0
  %v983 = vadd.f32 %v147, %v982
  %v984 = vpop.f32.mrf.mxu0
  %v985 = vadd.f32 %v151, %v984
  %986 = vdwg.mxu0
  %987 = vmatprep.subr.bf16.mxu0 %v713
  %988 = vmatpush1.bf16.msra.mxu0 %v712
  %989 = vmatprep.subr.bf16.mxu0 %v711
  %990 = vmatpush1.bf16.msra.mxu0 %v710
  %991 = vmatprep.subr.bf16.mxu0 %v709
  %992 = vmatpush1.bf16.msra.mxu0 %v708
  %993 = vmatprep.subr.bf16.mxu0 %v707
  %994 = vmatpush1.bf16.msra.mxu0 %v706
  %995 = vmatprep.subr.bf16.mxu0 %v705
  %996 = vmatpush1.bf16.msra.mxu0 %v704
  %997 = vmatprep.subr.bf16.mxu0 %v703
  %998 = vmatpush1.bf16.msra.mxu0 %v702
  %999 = vmatprep.subr.bf16.mxu0 %v701
  %1000 = vmatpush1.bf16.msra.mxu0 %v700
  %1001 = vmatprep.subr.bf16.mxu0 %v699
  %1002 = vmatpush1.bf16.msra.mxu0 %v698
  %1003 = vmatprep.subr.bf16.mxu0 %v729
  %1004 = vmatpush2.bf16.msra.mxu0 %v728
  %1005 = vmatprep.subr.bf16.mxu0 %v727
  %1006 = vmatpush2.bf16.msra.mxu0 %v726
  %1007 = vmatprep.subr.bf16.mxu0 %v725
  %1008 = vmatpush2.bf16.msra.mxu0 %v724
  %1009 = vmatprep.subr.bf16.mxu0 %v723
  %1010 = vmatpush2.bf16.msra.mxu0 %v722
  %1011 = vmatprep.subr.bf16.mxu0 %v721
  %1012 = vmatpush2.bf16.msra.mxu0 %v720
  %1013 = vmatprep.subr.bf16.mxu0 %v719
  %1014 = vmatpush2.bf16.msra.mxu0 %v718
  %1015 = vmatprep.subr.bf16.mxu0 %v717
  %1016 = vmatpush2.bf16.msra.mxu0 %v716
  %1017 = vmatprep.subr.bf16.mxu0 %v715
  %1018 = vmatpush2.bf16.msra.mxu0 %v714
  %1019 = vmatprep.mubr.bf16.mxu0 %v349
  %1020 = vmatmul.mubr.bf16.gmra.mxu0 %v348
  %v1021 = vpop.f32.mrf.mxu0
  %v1022 = vadd.f32 %v829, %v1021
  %v1023 = vpop.f32.mrf.mxu0
  %v1024 = vadd.f32 %v831, %v1023
  %v1025 = vpop.f32.mrf.mxu0
  %v1026 = vadd.f32 %v833, %v1025
  %v1027 = vpop.f32.mrf.mxu0
  %v1028 = vadd.f32 %v835, %v1027
  %1029 = vmatprep.mubr.bf16.mxu0 %v353
  %1030 = vmatmul.mubr.bf16.gmra.mxu0 %v352
  %v1031 = vpop.f32.mrf.mxu0
  %v1032 = vadd.f32 %v839, %v1031
  %v1033 = vpop.f32.mrf.mxu0
  %v1034 = vadd.f32 %v841, %v1033
  %v1035 = vpop.f32.mrf.mxu0
  %v1036 = vadd.f32 %v843, %v1035
  %v1037 = vpop.f32.mrf.mxu0
  %v1038 = vadd.f32 %v845, %v1037
  %1039 = vmatprep.mubr.bf16.mxu0 %v357
  %1040 = vmatmul.mubr.bf16.gmra.mxu0 %v356
  %v1041 = vpop.f32.mrf.mxu0
  %v1042 = vadd.f32 %v849, %v1041
  %v1043 = vpop.f32.mrf.mxu0
  %v1044 = vadd.f32 %v851, %v1043
  %v1045 = vpop.f32.mrf.mxu0
  %v1046 = vadd.f32 %v853, %v1045
  %v1047 = vpop.f32.mrf.mxu0
  %v1048 = vadd.f32 %v855, %v1047
  %1049 = vmatprep.mubr.bf16.mxu0 %v361
  %1050 = vmatmul.mubr.bf16.gmra.mxu0 %v360
  %v1051 = vpop.f32.mrf.mxu0
  %v1052 = vadd.f32 %v859, %v1051
  %v1053 = vpop.f32.mrf.mxu0
  %v1054 = vadd.f32 %v861, %v1053
  %v1055 = vpop.f32.mrf.mxu0
  %v1056 = vadd.f32 %v863, %v1055
  %v1057 = vpop.f32.mrf.mxu0
  %v1058 = vadd.f32 %v865, %v1057
  %1059 = vmatprep.mubr.bf16.mxu0 %v365
  %1060 = vmatmul.mubr.bf16.gmra.mxu0 %v364
  %v1061 = vpop.f32.mrf.mxu0
  %v1062 = vadd.f32 %v869, %v1061
  %v1063 = vpop.f32.mrf.mxu0
  %v1064 = vadd.f32 %v871, %v1063
  %v1065 = vpop.f32.mrf.mxu0
  %v1066 = vadd.f32 %v873, %v1065
  %v1067 = vpop.f32.mrf.mxu0
  %v1068 = vadd.f32 %v875, %v1067
  %1069 = vmatprep.mubr.bf16.mxu0 %v369
  %1070 = vmatmul.mubr.bf16.gmra.mxu0 %v368
  %v1071 = vpop.f32.mrf.mxu0
  %v1072 = vadd.f32 %v879, %v1071
  %v1073 = vpop.f32.mrf.mxu0
  %v1074 = vadd.f32 %v881, %v1073
  %v1075 = vpop.f32.mrf.mxu0
  %v1076 = vadd.f32 %v883, %v1075
  %v1077 = vpop.f32.mrf.mxu0
  %v1078 = vadd.f32 %v885, %v1077
  %1079 = vmatprep.mubr.bf16.mxu0 %v373
  %1080 = vmatmul.mubr.bf16.gmra.mxu0 %v372
  %v1081 = vpop.f32.mrf.mxu0
  %v1082 = vadd.f32 %v889, %v1081
  %v1083 = vpop.f32.mrf.mxu0
  %v1084 = vadd.f32 %v891, %v1083
  %v1085 = vpop.f32.mrf.mxu0
  %v1086 = vadd.f32 %v893, %v1085
  %v1087 = vpop.f32.mrf.mxu0
  %v1088 = vadd.f32 %v895, %v1087
  %1089 = vmatprep.mubr.bf16.mxu0 %v377
  %1090 = vmatmul.mubr.bf16.gmra.mxu0 %v376
  %v1091 = vpop.f32.mrf.mxu0
  %v1092 = vadd.f32 %v899, %v1091
  %v1093 = vpop.f32.mrf.mxu0
  %v1094 = vadd.f32 %v901, %v1093
  %v1095 = vpop.f32.mrf.mxu0
  %v1096 = vadd.f32 %v903, %v1095
  %v1097 = vpop.f32.mrf.mxu0
  %v1098 = vadd.f32 %v905, %v1097
  %1099 = vmatprep.mubr.bf16.mxu0 %v381
  %1100 = vmatmul.mubr.bf16.gmra.mxu0 %v380
  %v1101 = vpop.f32.mrf.mxu0
  %v1102 = vadd.f32 %v909, %v1101
  %v1103 = vpop.f32.mrf.mxu0
  %v1104 = vadd.f32 %v911, %v1103
  %v1105 = vpop.f32.mrf.mxu0
  %v1106 = vadd.f32 %v913, %v1105
  %v1107 = vpop.f32.mrf.mxu0
  %v1108 = vadd.f32 %v915, %v1107
  %1109 = vmatprep.mubr.bf16.mxu0 %v385
  %1110 = vmatmul.mubr.bf16.gmra.mxu0 %v384
  %v1111 = vpop.f32.mrf.mxu0
  %v1112 = vadd.f32 %v919, %v1111
  %v1113 = vpop.f32.mrf.mxu0
  %v1114 = vadd.f32 %v921, %v1113
  %v1115 = vpop.f32.mrf.mxu0
  %v1116 = vadd.f32 %v923, %v1115
  %v1117 = vpop.f32.mrf.mxu0
  %v1118 = vadd.f32 %v925, %v1117
  %1119 = vmatprep.mubr.bf16.mxu0 %v389
  %1120 = vmatmul.mubr.bf16.gmra.mxu0 %v388
  %v1121 = vpop.f32.mrf.mxu0
  %v1122 = vadd.f32 %v929, %v1121
  %v1123 = vpop.f32.mrf.mxu0
  %v1124 = vadd.f32 %v931, %v1123
  %v1125 = vpop.f32.mrf.mxu0
  %v1126 = vadd.f32 %v933, %v1125
  %v1127 = vpop.f32.mrf.mxu0
  %v1128 = vadd.f32 %v935, %v1127
  %1129 = vmatprep.mubr.bf16.mxu0 %v393
  %1130 = vmatmul.mubr.bf16.gmra.mxu0 %v392
  %v1131 = vpop.f32.mrf.mxu0
  %v1132 = vadd.f32 %v939, %v1131
  %v1133 = vpop.f32.mrf.mxu0
  %v1134 = vadd.f32 %v941, %v1133
  %v1135 = vpop.f32.mrf.mxu0
  %v1136 = vadd.f32 %v943, %v1135
  %v1137 = vpop.f32.mrf.mxu0
  %v1138 = vadd.f32 %v945, %v1137
  %1139 = vmatprep.mubr.bf16.mxu0 %v397
  %1140 = vmatmul.mubr.bf16.gmra.mxu0 %v396
  %v1141 = vpop.f32.mrf.mxu0
  %v1142 = vadd.f32 %v949, %v1141
  %v1143 = vpop.f32.mrf.mxu0
  %v1144 = vadd.f32 %v951, %v1143
  %v1145 = vpop.f32.mrf.mxu0
  %v1146 = vadd.f32 %v953, %v1145
  %v1147 = vpop.f32.mrf.mxu0
  %v1148 = vadd.f32 %v955, %v1147
  %1149 = vmatprep.mubr.bf16.mxu0 %v401
  %1150 = vmatmul.mubr.bf16.gmra.mxu0 %v400
  %v1151 = vpop.f32.mrf.mxu0
  %v1152 = vadd.f32 %v959, %v1151
  %v1153 = vpop.f32.mrf.mxu0
  %v1154 = vadd.f32 %v961, %v1153
  %v1155 = vpop.f32.mrf.mxu0
  %v1156 = vadd.f32 %v963, %v1155
  %v1157 = vpop.f32.mrf.mxu0
  %v1158 = vadd.f32 %v965, %v1157
  %1159 = vmatprep.mubr.bf16.mxu0 %v405
  %1160 = vmatmul.mubr.bf16.gmra.mxu0 %v404
  %v1161 = vpop.f32.mrf.mxu0
  %v1162 = vadd.f32 %v969, %v1161
  %v1163 = vpop.f32.mrf.mxu0
  %v1164 = vadd.f32 %v971, %v1163
  %v1165 = vpop.f32.mrf.mxu0
  %v1166 = vadd.f32 %v973, %v1165
  %v1167 = vpop.f32.mrf.mxu0
  %v1168 = vadd.f32 %v975, %v1167
  %1169 = vmatprep.mubr.bf16.mxu0 %v409
  %1170 = vmatmul.mubr.bf16.gmra.mxu0 %v408
  %v1171 = vpop.f32.mrf.mxu0
  %v1172 = vadd.f32 %v979, %v1171
  %v1173 = vpop.f32.mrf.mxu0
  %v1174 = vadd.f32 %v981, %v1173
  %v1175 = vpop.f32.mrf.mxu0
  %v1176 = vadd.f32 %v983, %v1175
  %v1177 = vpop.f32.mrf.mxu0
  %v1178 = vadd.f32 %v985, %v1177
  %1179 = vdwg.mxu0
  %vm1180 = vcmp.gt.f32.partialorder %v1022, 0.0
  %vm1181 = vcmp.gt.f32.partialorder %v1024, 0.0
  %vm1182 = vcmp.gt.f32.partialorder %v1026, 0.0
  %vm1183 = vcmp.gt.f32.partialorder %v1028, 0.0
  %vm1184 = vcmp.gt.f32.partialorder %v1032, 0.0
  %vm1185 = vcmp.gt.f32.partialorder %v1034, 0.0
  %vm1186 = vcmp.gt.f32.partialorder %v1036, 0.0
  %vm1187 = vcmp.gt.f32.partialorder %v1038, 0.0
  %vm1188 = vcmp.gt.f32.partialorder %v1042, 0.0
  %vm1189 = vcmp.gt.f32.partialorder %v1044, 0.0
  %vm1190 = vcmp.gt.f32.partialorder %v1046, 0.0
  %vm1191 = vcmp.gt.f32.partialorder %v1048, 0.0
  %vm1192 = vcmp.gt.f32.partialorder %v1052, 0.0
  %vm1193 = vcmp.gt.f32.partialorder %v1054, 0.0
  %vm1194 = vcmp.gt.f32.partialorder %v1056, 0.0
  %vm1195 = vcmp.gt.f32.partialorder %v1058, 0.0
  %vm1196 = vcmp.gt.f32.partialorder %v1062, 0.0
  %vm1197 = vcmp.gt.f32.partialorder %v1064, 0.0
  %vm1198 = vcmp.gt.f32.partialorder %v1066, 0.0
  %vm1199 = vcmp.gt.f32.partialorder %v1068, 0.0
  %vm1200 = vcmp.gt.f32.partialorder %v1072, 0.0
  %vm1201 = vcmp.gt.f32.partialorder %v1074, 0.0
  %vm1202 = vcmp.gt.f32.partialorder %v1076, 0.0
  %vm1203 = vcmp.gt.f32.partialorder %v1078, 0.0
  %vm1204 = vcmp.gt.f32.partialorder %v1082, 0.0
  %vm1205 = vcmp.gt.f32.partialorder %v1084, 0.0
  %vm1206 = vcmp.gt.f32.partialorder %v1086, 0.0
  %vm1207 = vcmp.gt.f32.partialorder %v1088, 0.0
  %vm1208 = vcmp.gt.f32.partialorder %v1092, 0.0
  %vm1209 = vcmp.gt.f32.partialorder %v1094, 0.0
  %vm1210 = vcmp.gt.f32.partialorder %v1096, 0.0
  %vm1211 = vcmp.gt.f32.partialorder %v1098, 0.0
  %vm1212 = vcmp.gt.f32.partialorder %v1102, 0.0
  %vm1213 = vcmp.gt.f32.partialorder %v1104, 0.0
  %vm1214 = vcmp.gt.f32.partialorder %v1106, 0.0
  %vm1215 = vcmp.gt.f32.partialorder %v1108, 0.0
  %vm1216 = vcmp.gt.f32.partialorder %v1112, 0.0
  %vm1217 = vcmp.gt.f32.partialorder %v1114, 0.0
  %vm1218 = vcmp.gt.f32.partialorder %v1116, 0.0
  %vm1219 = vcmp.gt.f32.partialorder %v1118, 0.0
  %vm1220 = vcmp.gt.f32.partialorder %v1122, 0.0
  %vm1221 = vcmp.gt.f32.partialorder %v1124, 0.0
  %vm1222 = vcmp.gt.f32.partialorder %v1126, 0.0
  %vm1223 = vcmp.gt.f32.partialorder %v1128, 0.0
  %vm1224 = vcmp.gt.f32.partialorder %v1132, 0.0
  %vm1225 = vcmp.gt.f32.partialorder %v1134, 0.0
  %vm1226 = vcmp.gt.f32.partialorder %v1136, 0.0
  %vm1227 = vcmp.gt.f32.partialorder %v1138, 0.0
  %vm1228 = vcmp.gt.f32.partialorder %v1142, 0.0
  %vm1229 = vcmp.gt.f32.partialorder %v1144, 0.0
  %vm1230 = vcmp.gt.f32.partialorder %v1146, 0.0
  %vm1231 = vcmp.gt.f32.partialorder %v1148, 0.0
  %vm1232 = vcmp.gt.f32.partialorder %v1152, 0.0
  %vm1233 = vcmp.gt.f32.partialorder %v1154, 0.0
  %vm1234 = vcmp.gt.f32.partialorder %v1156, 0.0
  %vm1235 = vcmp.gt.f32.partialorder %v1158, 0.0
  %vm1236 = vcmp.gt.f32.partialorder %v1162, 0.0
  %vm1237 = vcmp.gt.f32.partialorder %v1164, 0.0
  %vm1238 = vcmp.gt.f32.partialorder %v1166, 0.0
  %vm1239 = vcmp.gt.f32.partialorder %v1168, 0.0
  %vm1240 = vcmp.gt.f32.partialorder %v1172, 0.0
  %vm1241 = vcmp.gt.f32.partialorder %v1174, 0.0
  %vm1242 = vcmp.gt.f32.partialorder %v1176, 0.0
  %vm1243 = vcmp.gt.f32.partialorder %v1178, 0.0
  %v1244 = vmul.f32 %v1022, 0.01
  %v1245 = vmul.f32 %v1024, 0.01
  %v1246 = vmul.f32 %v1026, 0.01
  %v1247 = vmul.f32 %v1028, 0.01
  %v1248 = vmul.f32 %v1032, 0.01
  %v1249 = vmul.f32 %v1034, 0.01
  %v1250 = vmul.f32 %v1036, 0.01
  %v1251 = vmul.f32 %v1038, 0.01
  %v1252 = vmul.f32 %v1042, 0.01
  %v1253 = vmul.f32 %v1044, 0.01
  %v1254 = vmul.f32 %v1046, 0.01
  %v1255 = vmul.f32 %v1048, 0.01
  %v1256 = vmul.f32 %v1052, 0.01
  %v1257 = vmul.f32 %v1054, 0.01
  %v1258 = vmul.f32 %v1056, 0.01
  %v1259 = vmul.f32 %v1058, 0.01
  %v1260 = vmul.f32 %v1062, 0.01
  %v1261 = vmul.f32 %v1064, 0.01
  %v1262 = vmul.f32 %v1066, 0.01
  %v1263 = vmul.f32 %v1068, 0.01
  %v1264 = vmul.f32 %v1072, 0.01
  %v1265 = vmul.f32 %v1074, 0.01
  %v1266 = vmul.f32 %v1076, 0.01
  %v1267 = vmul.f32 %v1078, 0.01
  %v1268 = vmul.f32 %v1082, 0.01
  %v1269 = vmul.f32 %v1084, 0.01
  %v1270 = vmul.f32 %v1086, 0.01
  %v1271 = vmul.f32 %v1088, 0.01
  %v1272 = vmul.f32 %v1092, 0.01
  %v1273 = vmul.f32 %v1094, 0.01
  %v1274 = vmul.f32 %v1096, 0.01
  %v1275 = vmul.f32 %v1098, 0.01
  %v1276 = vmul.f32 %v1102, 0.01
  %v1277 = vmul.f32 %v1104, 0.01
  %v1278 = vmul.f32 %v1106, 0.01
  %v1279 = vmul.f32 %v1108, 0.01
  %v1280 = vmul.f32 %v1112, 0.01
  %v1281 = vmul.f32 %v1114, 0.01
  %v1282 = vmul.f32 %v1116, 0.01
  %v1283 = vmul.f32 %v1118, 0.01
  %v1284 = vmul.f32 %v1122, 0.01
  %v1285 = vmul.f32 %v1124, 0.01
  %v1286 = vmul.f32 %v1126, 0.01
  %v1287 = vmul.f32 %v1128, 0.01
  %v1288 = vmul.f32 %v1132, 0.01
  %v1289 = vmul.f32 %v1134, 0.01
  %v1290 = vmul.f32 %v1136, 0.01
  %v1291 = vmul.f32 %v1138, 0.01
  %v1292 = vmul.f32 %v1142, 0.01
  %v1293 = vmul.f32 %v1144, 0.01
  %v1294 = vmul.f32 %v1146, 0.01
  %v1295 = vmul.f32 %v1148, 0.01
  %v1296 = vmul.f32 %v1152, 0.01
  %v1297 = vmul.f32 %v1154, 0.01
  %v1298 = vmul.f32 %v1156, 0.01
  %v1299 = vmul.f32 %v1158, 0.01
  %v1300 = vmul.f32 %v1162, 0.01
  %v1301 = vmul.f32 %v1164, 0.01
  %v1302 = vmul.f32 %v1166, 0.01
  %v1303 = vmul.f32 %v1168, 0.01
  %v1304 = vmul.f32 %v1172, 0.01
  %v1305 = vmul.f32 %v1174, 0.01
  %v1306 = vmul.f32 %v1176, 0.01
  %v1307 = vmul.f32 %v1178, 0.01
  %v1308 = vsel %vm1180, %v1022, %v1244
  %v1309 = vsel %vm1181, %v1024, %v1245
  %v1310 = vsel %vm1182, %v1026, %v1246
  %v1311 = vsel %vm1183, %v1028, %v1247
  %v1312 = vsel %vm1184, %v1032, %v1248
  %v1313 = vsel %vm1185, %v1034, %v1249
  %v1314 = vsel %vm1186, %v1036, %v1250
  %v1315 = vsel %vm1187, %v1038, %v1251
  %v1316 = vsel %vm1188, %v1042, %v1252
  %v1317 = vsel %vm1189, %v1044, %v1253
  %v1318 = vsel %vm1190, %v1046, %v1254
  %v1319 = vsel %vm1191, %v1048, %v1255
  %v1320 = vsel %vm1192, %v1052, %v1256
  %v1321 = vsel %vm1193, %v1054, %v1257
  %v1322 = vsel %vm1194, %v1056, %v1258
  %v1323 = vsel %vm1195, %v1058, %v1259
  %v1324 = vsel %vm1196, %v1062, %v1260
  %v1325 = vsel %vm1197, %v1064, %v1261
  %v1326 = vsel %vm1198, %v1066, %v1262
  %v1327 = vsel %vm1199, %v1068, %v1263
  %v1328 = vsel %vm1200, %v1072, %v1264
  %v1329 = vsel %vm1201, %v1074, %v1265
  %v1330 = vsel %vm1202, %v1076, %v1266
  %v1331 = vsel %vm1203, %v1078, %v1267
  %v1332 = vsel %vm1204, %v1082, %v1268
  %v1333 = vsel %vm1205, %v1084, %v1269
  %v1334 = vsel %vm1206, %v1086, %v1270
  %v1335 = vsel %vm1207, %v1088, %v1271
  %v1336 = vsel %vm1208, %v1092, %v1272
  %v1337 = vsel %vm1209, %v1094, %v1273
  %v1338 = vsel %vm1210, %v1096, %v1274
  %v1339 = vsel %vm1211, %v1098, %v1275
  %v1340 = vsel %vm1212, %v1102, %v1276
  %v1341 = vsel %vm1213, %v1104, %v1277
  %v1342 = vsel %vm1214, %v1106, %v1278
  %v1343 = vsel %vm1215, %v1108, %v1279
  %v1344 = vsel %vm1216, %v1112, %v1280
  %v1345 = vsel %vm1217, %v1114, %v1281
  %v1346 = vsel %vm1218, %v1116, %v1282
  %v1347 = vsel %vm1219, %v1118, %v1283
  %v1348 = vsel %vm1220, %v1122, %v1284
  %v1349 = vsel %vm1221, %v1124, %v1285
  %v1350 = vsel %vm1222, %v1126, %v1286
  %v1351 = vsel %vm1223, %v1128, %v1287
  %v1352 = vsel %vm1224, %v1132, %v1288
  %v1353 = vsel %vm1225, %v1134, %v1289
  %v1354 = vsel %vm1226, %v1136, %v1290
  %v1355 = vsel %vm1227, %v1138, %v1291
  %v1356 = vsel %vm1228, %v1142, %v1292
  %v1357 = vsel %vm1229, %v1144, %v1293
  %v1358 = vsel %vm1230, %v1146, %v1294
  %v1359 = vsel %vm1231, %v1148, %v1295
  %v1360 = vsel %vm1232, %v1152, %v1296
  %v1361 = vsel %vm1233, %v1154, %v1297
  %v1362 = vsel %vm1234, %v1156, %v1298
  %v1363 = vsel %vm1235, %v1158, %v1299
  %v1364 = vsel %vm1236, %v1162, %v1300
  %v1365 = vsel %vm1237, %v1164, %v1301
  %v1366 = vsel %vm1238, %v1166, %v1302
  %v1367 = vsel %vm1239, %v1168, %v1303
  %v1368 = vsel %vm1240, %v1172, %v1304
  %v1369 = vsel %vm1241, %v1174, %v1305
  %v1370 = vsel %vm1242, %v1176, %v1306
  %v1371 = vsel %vm1243, %v1178, %v1307
  %1372 = vst [vmem:[%s3] sm:$0xff] %v1308
  %1373 = vst [vmem:[%s3 + $0x8] sm:$0xff] %v1309
  %1374 = vst [vmem:[%s3 + $0x10] sm:$0xff] %v1310
  %1375 = vst [vmem:[%s3 + $0x18] sm:$0xff] %v1311
  %1376 = vst [vmem:[%s3 + $0x20] sm:$0xff] %v1312
  %1377 = vst [vmem:[%s3 + $0x28] sm:$0xff] %v1313
  %1378 = vst [vmem:[%s3 + $0x30] sm:$0xff] %v1314
  %1379 = vst [vmem:[%s3 + $0x38] sm:$0xff] %v1315
  %1380 = vst [vmem:[%s3 + $0x40] sm:$0xff] %v1316
  %1381 = vst [vmem:[%s3 + $0x48] sm:$0xff] %v1317
  %1382 = vst [vmem:[%s3 + $0x50] sm:$0xff] %v1318
  %1383 = vst [vmem:[%s3 + $0x58] sm:$0xff] %v1319
  %1384 = vst [vmem:[%s3 + $0x60] sm:$0xff] %v1320
  %1385 = vst [vmem:[%s3 + $0x68] sm:$0xff] %v1321
  %1386 = vst [vmem:[%s3 + $0x70] sm:$0xff] %v1322
  %1387 = vst [vmem:[%s3 + $0x78] sm:$0xff] %v1323
  %1388 = vst [vmem:[%s3 + $0x80] sm:$0xff] %v1324
  %1389 = vst [vmem:[%s3 + $0x88] sm:$0xff] %v1325
  %1390 = vst [vmem:[%s3 + $0x90] sm:$0xff] %v1326
  %1391 = vst [vmem:[%s3 + $0x98] sm:$0xff] %v1327
  %1392 = vst [vmem:[%s3 + $0xa0] sm:$0xff] %v1328
  %1393 = vst [vmem:[%s3 + $0xa8] sm:$0xff] %v1329
  %1394 = vst [vmem:[%s3 + $0xb0] sm:$0xff] %v1330
  %1395 = vst [vmem:[%s3 + $0xb8] sm:$0xff] %v1331
  %1396 = vst [vmem:[%s3 + $0xc0] sm:$0xff] %v1332
  %1397 = vst [vmem:[%s3 + $0xc8] sm:$0xff] %v1333
  %1398 = vst [vmem:[%s3 + $0xd0] sm:$0xff] %v1334
  %1399 = vst [vmem:[%s3 + $0xd8] sm:$0xff] %v1335
  %1400 = vst [vmem:[%s3 + $0xe0] sm:$0xff] %v1336
  %1401 = vst [vmem:[%s3 + $0xe8] sm:$0xff] %v1337
  %1402 = vst [vmem:[%s3 + $0xf0] sm:$0xff] %v1338
  %1403 = vst [vmem:[%s3 + $0xf8] sm:$0xff] %v1339
  %1404 = vst [vmem:[%s3 + $0x100] sm:$0xff] %v1340
  %1405 = vst [vmem:[%s3 + $0x108] sm:$0xff] %v1341
  %1406 = vst [vmem:[%s3 + $0x110] sm:$0xff] %v1342
  %1407 = vst [vmem:[%s3 + $0x118] sm:$0xff] %v1343
  %1408 = vst [vmem:[%s3 + $0x120] sm:$0xff] %v1344
  %1409 = vst [vmem:[%s3 + $0x128] sm:$0xff] %v1345
  %1410 = vst [vmem:[%s3 + $0x130] sm:$0xff] %v1346
  %1411 = vst [vmem:[%s3 + $0x138] sm:$0xff] %v1347
  %1412 = vst [vmem:[%s3 + $0x140] sm:$0xff] %v1348
  %1413 = vst [vmem:[%s3 + $0x148] sm:$0xff] %v1349
  %1414 = vst [vmem:[%s3 + $0x150] sm:$0xff] %v1350
  %1415 = vst [vmem:[%s3 + $0x158] sm:$0xff] %v1351
  %1416 = vst [vmem:[%s3 + $0x160] sm:$0xff] %v1352
  %1417 = vst [vmem:[%s3 + $0x168] sm:$0xff] %v1353
  %1418 = vst [vmem:[%s3 + $0x170] sm:$0xff] %v1354
  %1419 = vst [vmem:[%s3 + $0x178] sm:$0xff] %v1355
  %1420 = vst [vmem:[%s3 + $0x180] sm:$0xff] %v1356
  %1421 = vst [vmem:[%s3 + $0x188] sm:$0xff] %v1357
  %1422 = vst [vmem:[%s3 + $0x190] sm:$0xff] %v1358
  %1423 = vst [vmem:[%s3 + $0x198] sm:$0xff] %v1359
  %1424 = vst [vmem:[%s3 + $0x1a0] sm:$0xff] %v1360
  %1425 = vst [vmem:[%s3 + $0x1a8] sm:$0xff] %v1361
  %1426 = vst [vmem:[%s3 + $0x1b0] sm:$0xff] %v1362
  %1427 = vst [vmem:[%s3 + $0x1b8] sm:$0xff] %v1363
  %1428 = vst [vmem:[%s3 + $0x1c0] sm:$0xff] %v1364
  %1429 = vst [vmem:[%s3 + $0x1c8] sm:$0xff] %v1365
  %1430 = vst [vmem:[%s3 + $0x1d0] sm:$0xff] %v1366
  %1431 = vst [vmem:[%s3 + $0x1d8] sm:$0xff] %v1367
  %1432 = vst [vmem:[%s3 + $0x1e0] sm:$0xff] %v1368
  %1433 = vst [vmem:[%s3 + $0x1e8] sm:$0xff] %v1369
  %1434 = vst [vmem:[%s3 + $0x1f0] sm:$0xff] %v1370
  %1435 = vst [vmem:[%s3 + $0x1f8] sm:$0xff] %v1371
  // Predicated region
  $region14: #{vqvae_forward.38} parent=0 // pred_check
    _
  $region15: #{vqvae_forward.38} parent=0 // pred_check_branch
    %1437 = sbr.rel (0) target = $region17
  $region16: #{vqvae_forward.38} parent=0 // pred_region
    _
  $region17: #{vqvae_forward.38} parent=0 // pred_fallthru
    _
  // Predicated region
  $region18: #{vqvae_forward.38} parent=0 // pred_check
    _
  $region19: #{vqvae_forward.38} parent=0 // pred_check_branch
    %1439 = sbr.rel (0) target = $region21
  $region20: #{vqvae_forward.38} parent=0 // pred_region
    _
  $region21: #{vqvae_forward.38} parent=0 // pred_fallthru
    _

// kernel: vqvae_forward.39
$region0: #{vqvae_forward.39}
  #allocation0 [shape = 'u32[]', space=smem, size = 0x4, offset = 0x4, fixed_abs, tag = 'smem constant byte address 0x4 - core index']
  #allocation1 [shape = 'u32[144,128]{1,0:T(1,128)}', space=vmem, size = 0x12000, scoped, tag = 'internal scratch']
  %s0 = inlined_call_operand.vmem [shape: bf16[1536,256], index: 0, kind: input, shape index: {}]
  %s1 = inlined_call_operand.vmem [shape: bf16[256,8], index: 1, kind: input, shape index: {}]
  %s2 = inlined_call_operand.vmem [shape: f32[1,8], index: 2, kind: input, shape index: {}]
  %s3 = inlined_call_operand.vmem [shape: f32[1536,8], index: 3, kind: output, shape index: {}]
  %s4 = sld [smem:[#allocation0]]
  $region45: #{vqvae_forward.39} parent=0
    _
  %s6 = ssub.s32 1, %s4
  %s7 = scalar_select 0, %s6, %s4
  loop: start=0, step=1, limit=5
  $region2: #{vqvae_forward.39} parent=0 // loop_pre_header
    _
  $region3: #{vqvae_forward.39} parent=0 // loop_header
    %s9 = sphi 0, %s13
    %p10 = scmp.ge.s32.totalorder %s9, 5
    %s19 = sphi 0, %s21
    %s22 = sphi 0, %s19
    %s23 = sphi 0, %s22
    %s39 = sphi 0, %s23
    %s43 = sphi 0, %s43
    %s45 = sphi 0, %s43
    %s46 = sphi 0, %s45
    %s60 = sphi 0, %s46
    %s64 = sphi 0, %s64
    %s66 = sphi 0, %s64
    %s67 = sphi 0, %s66
    %s81 = sphi 0, %s67
    %s87 = sphi 0, %s89
    %s90 = sphi 0, %s87
    %s91 = sphi 0, %s90
    %s107 = sphi 0, %s91
  $region4: #{vqvae_forward.39} parent=0 // loop_header_branch
    %12 = sbr.rel (%p10) target = $region8
  $region5: #{vqvae_forward.39} parent=0 // loop_body
    %s14 = ssub.s32 %s9, 1
    %s15 = ssub.s32 %s9, 2
    %s16 = sadd.s32 %s9, 1
    %s17 = ssub.s32 %s9, %s16
    %p18 = scmp.eq.s32.totalorder %s17, 0
    %s20 = sadd.s32 %s19, 1
    %s21 = scalar_select %p18, %s19, %s20
    %p24 = pneg %p18
    %p25 = scmp.eq.s32.totalorder %s9, 2
    %p26 = por %p24, %p25
    %p27 = scmp.ne.s32.totalorder %s19, %s22
    %p28 = scmp.eq.s32.totalorder %s9, 0
    %p29 = por %p27, %p28
    %p30 = scmp.ne.s32.totalorder %s19, %s22
    %p31 = scmp.eq.s32.totalorder %s14, 2
    %p32 = por %p30, %p31
    %p33 = scmp.ne.s32.totalorder %s22, %s23
    %p34 = scmp.eq.s32.totalorder %s14, 0
    %p35 = por %p33, %p34
    %p36 = scmp.ne.s32.totalorder %s22, %s23
    %p37 = scmp.eq.s32.totalorder %s15, 2
    %p38 = por %p36, %p37
    %p40 = scmp.ne.s32.totalorder %s23, %s39
    %p41 = scmp.eq.s32.totalorder %s15, 0
    %p42 = por %p40, %p41
    %s44 = sadd.s32 %s43, 1
    %p47 = scmp.eq.s32.totalorder %s9, 2
    %p48 = scmp.ne.s32.totalorder %s43, %s45
    %p49 = scmp.eq.s32.totalorder %s9, 0
    %p50 = por %p48, %p49
    %p51 = scmp.ne.s32.totalorder %s43, %s45
    %p52 = scmp.eq.s32.totalorder %s14, 2
    %p53 = por %p51, %p52
    %p54 = scmp.ne.s32.totalorder %s45, %s46
    %p55 = scmp.eq.s32.totalorder %s14, 0
    %p56 = por %p54, %p55
    %p57 = scmp.ne.s32.totalorder %s45, %s46
    %p58 = scmp.eq.s32.totalorder %s15, 2
    %p59 = por %p57, %p58
    %p61 = scmp.ne.s32.totalorder %s46, %s60
    %p62 = scmp.eq.s32.totalorder %s15, 0
    %p63 = por %p61, %p62
    %s65 = sadd.s32 %s64, 1
    %p68 = scmp.eq.s32.totalorder %s9, 2
    %p69 = scmp.ne.s32.totalorder %s64, %s66
    %p70 = scmp.eq.s32.totalorder %s9, 0
    %p71 = por %p69, %p70
    %p72 = scmp.ne.s32.totalorder %s64, %s66
    %p73 = scmp.eq.s32.totalorder %s14, 2
    %p74 = por %p72, %p73
    %p75 = scmp.ne.s32.totalorder %s66, %s67
    %p76 = scmp.eq.s32.totalorder %s14, 0
    %p77 = por %p75, %p76
    %p78 = scmp.ne.s32.totalorder %s66, %s67
    %p79 = scmp.eq.s32.totalorder %s15, 2
    %p80 = por %p78, %p79
    %p82 = scmp.ne.s32.totalorder %s67, %s81
    %p83 = scmp.eq.s32.totalorder %s15, 0
    %p84 = por %p82, %p83
    %s85 = ssub.s32 %s9, %s16
    %p86 = scmp.eq.s32.totalorder %s85, 0
    %s88 = sadd.s32 %s87, 1
    %s89 = scalar_select %p86, %s87, %s88
    %p92 = pneg %p86
    %p93 = scmp.eq.s32.totalorder %s9, 2
    %p94 = por %p92, %p93
    %p95 = scmp.ne.s32.totalorder %s87, %s90
    %p96 = scmp.eq.s32.totalorder %s9, 0
    %p97 = por %p95, %p96
    %p98 = scmp.ne.s32.totalorder %s87, %s90
    %p99 = scmp.eq.s32.totalorder %s14, 2
    %p100 = por %p98, %p99
    %p101 = scmp.ne.s32.totalorder %s90, %s91
    %p102 = scmp.eq.s32.totalorder %s14, 0
    %p103 = por %p101, %p102
    %p104 = scmp.ne.s32.totalorder %s90, %s91
    %p105 = scmp.eq.s32.totalorder %s15, 2
    %p106 = por %p104, %p105
    %p108 = scmp.ne.s32.totalorder %s91, %s107
    %p109 = scmp.eq.s32.totalorder %s15, 0
    %p110 = por %p108, %p109
    %p111 = scmp.le.s32.totalorder 1, %s9
    %p112 = scmp.lt.s32.totalorder %s9, 4
    %p113 = pnand %p111, %p112
    %p114 = pneg %p113
    // Predicated region
    $region9: #{vqvae_forward.39} parent=5 // pred_check
      _
    $region10: #{vqvae_forward.39} parent=5 // pred_check_branch
      %116 = sbr.rel (%p113) target = $region12
    $region11: #{vqvae_forward.39} parent=5 // pred_region
      %s117 = ssub.s32 %s9, 1
      // Predicated region
      $region13: #{vqvae_forward.39} parent=11 // pred_check
        %p118 = pneg %p56
      $region14: #{vqvae_forward.39} parent=11 // pred_check_branch
        %120 = sbr.rel (%p118) target = $region16
      $region15: #{vqvae_forward.39} parent=11 // pred_region
        _
      $region16: #{vqvae_forward.39} parent=11 // pred_fallthru
        _
      // Predicated region
      $region17: #{vqvae_forward.39} parent=11 // pred_check
        %p121 = pneg %p77
      $region18: #{vqvae_forward.39} parent=11 // pred_check_branch
        %123 = sbr.rel (%p121) target = $region20
      $region19: #{vqvae_forward.39} parent=11 // pred_region
        _
      $region20: #{vqvae_forward.39} parent=11 // pred_fallthru
        _
    $region12: #{vqvae_forward.39} parent=5 // pred_fallthru
      _
    %p124 = scmp.lt.s32.totalorder %s9, 3
    // Predicated region
    $region21: #{vqvae_forward.39} parent=5 // pred_check
      %p125 = pneg %p124
    $region22: #{vqvae_forward.39} parent=5 // pred_check_branch
      %127 = sbr.rel (%p125) target = $region24
    $region23: #{vqvae_forward.39} parent=5 // pred_region
      // Predicated region
      $region25: #{vqvae_forward.39} parent=23 // pred_check
        %p128 = pneg %p29
      $region26: #{vqvae_forward.39} parent=23 // pred_check_branch
        %130 = sbr.rel (%p128) target = $region28
      $region27: #{vqvae_forward.39} parent=23 // pred_region
        %s131 = smul.u32 64, %s9
        %p132 = scmp.lt.s32.totalorder %s131, 191
        %s133 = scalar_select %p132, %s131, 191
        %s134 = smul.addr %s133, 2
        %s135 = smul.addr %s134, 4
        %s136 = scalar_lea.vmem %s0, %s135
        %s137 = smul.u32 64, %s9
      $region28: #{vqvae_forward.39} parent=23 // pred_fallthru
        _
    $region24: #{vqvae_forward.39} parent=5 // pred_fallthru
      _
    %p138 = scmp.le.s32.totalorder 1, %s9
    %p139 = scmp.lt.s32.totalorder %s9, 4
    %p140 = pnand %p138, %p139
    %p141 = pneg %p140
    // Predicated region
    $region29: #{vqvae_forward.39} parent=5 // pred_check
      _
    $region30: #{vqvae_forward.39} parent=5 // pred_check_branch
      %143 = sbr.rel (%p140) target = $region32
    $region31: #{vqvae_forward.39} parent=5 // pred_region
      %s144 = ssub.s32 %s9, 1
      %s145 = smul.u32 64, %s14
      %p146 = scmp.lt.s32.totalorder %s145, 191
      %s147 = scalar_select %p146, %s145, 191
      %s148 = smul.addr %s147, 2
      %s149 = smul.addr %s148, 4
      %s150 = scalar_lea.vmem %s0, %s149
      %p151 = pneg %p35
      %p152 = pneg %p32
      %p153 = pneg %p56
      %p154 = pneg %p53
      %p155 = pneg %p77
      %p156 = pneg %p74
      %p157 = pneg %p103
      %p158 = pneg %p100
      %s159 = smul.u32 64, %s14
      %p160 = scmp.lt.s32.totalorder %s159, 191
      %s161 = scalar_select %p160, %s159, 191
      %s162 = smul.addr %s161, 8
      %s163 = scalar_lea.vmem %s3, %s162
      %s164 = smul.u32 64, %s14
      %p165 = scmp.lt.s32.totalorder %s164, 191
      %s166 = scalar_select %p165, %s164, 191
      %s167 = smul.addr %s166, 2
      %s168 = smul.addr %s167, 4
      %s169 = scalar_lea.vmem %s0, %s168
      %s170 = smul.u32 64, %s14
      %s171 = smul.u32 64, %s14
      %p172 = scmp.lt.s32.totalorder %s171, 191
      %s173 = scalar_select %p172, %s171, 191
      %s174 = smul.addr %s173, 8
      %s175 = scalar_lea.vmem %s3, %s174
      %s176 = smul.u32 64, %s14
      %v178 = vld [vmem:[%s169] sm:$0xff]
      %v179 = vld [vmem:[%s169 + $0x8] sm:$0xff]
      %v180 = vld [vmem:[%s169 + $0x10] sm:$0xff]
      %v181 = vld [vmem:[%s169 + $0x18] sm:$0xff]
      %v182 = vld [vmem:[%s169 + $0x20] sm:$0xff]
      %v183 = vld [vmem:[%s169 + $0x28] sm:$0xff]
      %v184 = vld [vmem:[%s169 + $0x30] sm:$0xff]
      %v185 = vld [vmem:[%s169 + $0x38] sm:$0xff]
      %v186 = vld [vmem:[%s169 + $0x40] sm:$0xff]
      %v187 = vld [vmem:[%s169 + $0x48] sm:$0xff]
      %v188 = vld [vmem:[%s169 + $0x50] sm:$0xff]
      %v189 = vld [vmem:[%s169 + $0x58] sm:$0xff]
      %v190 = vld [vmem:[%s169 + $0x60] sm:$0xff]
      %v191 = vld [vmem:[%s169 + $0x68] sm:$0xff]
      %v192 = vld [vmem:[%s169 + $0x70] sm:$0xff]
      %v193 = vld [vmem:[%s169 + $0x78] sm:$0xff]
      %v194 = vld [vmem:[%s169 + $0x80] sm:$0xff]
      %v195 = vld [vmem:[%s169 + $0x88] sm:$0xff]
      %v196 = vld [vmem:[%s169 + $0x90] sm:$0xff]
      %v197 = vld [vmem:[%s169 + $0x98] sm:$0xff]
      %v198 = vld [vmem:[%s169 + $0xa0] sm:$0xff]
      %v199 = vld [vmem:[%s169 + $0xa8] sm:$0xff]
      %v200 = vld [vmem:[%s169 + $0xb0] sm:$0xff]
      %v201 = vld [vmem:[%s169 + $0xb8] sm:$0xff]
      %v202 = vld [vmem:[%s169 + $0xc0] sm:$0xff]
      %v203 = vld [vmem:[%s169 + $0xc8] sm:$0xff]
      %v204 = vld [vmem:[%s169 + $0xd0] sm:$0xff]
      %v205 = vld [vmem:[%s169 + $0xd8] sm:$0xff]
      %v206 = vld [vmem:[%s169 + $0xe0] sm:$0xff]
      %v207 = vld [vmem:[%s169 + $0xe8] sm:$0xff]
      %v208 = vld [vmem:[%s169 + $0xf0] sm:$0xff]
      %v209 = vld [vmem:[%s169 + $0xf8] sm:$0xff]
      %v210 = vld [vmem:[%s169 + $0x100] sm:$0xff]
      %v211 = vld [vmem:[%s169 + $0x108] sm:$0xff]
      %v212 = vld [vmem:[%s169 + $0x110] sm:$0xff]
      %v213 = vld [vmem:[%s169 + $0x118] sm:$0xff]
      %v214 = vld [vmem:[%s169 + $0x120] sm:$0xff]
      %v215 = vld [vmem:[%s169 + $0x128] sm:$0xff]
      %v216 = vld [vmem:[%s169 + $0x130] sm:$0xff]
      %v217 = vld [vmem:[%s169 + $0x138] sm:$0xff]
      %v218 = vld [vmem:[%s169 + $0x140] sm:$0xff]
      %v219 = vld [vmem:[%s169 + $0x148] sm:$0xff]
      %v220 = vld [vmem:[%s169 + $0x150] sm:$0xff]
      %v221 = vld [vmem:[%s169 + $0x158] sm:$0xff]
      %v222 = vld [vmem:[%s169 + $0x160] sm:$0xff]
      %v223 = vld [vmem:[%s169 + $0x168] sm:$0xff]
      %v224 = vld [vmem:[%s169 + $0x170] sm:$0xff]
      %v225 = vld [vmem:[%s169 + $0x178] sm:$0xff]
      %v226 = vld [vmem:[%s169 + $0x180] sm:$0xff]
      %v227 = vld [vmem:[%s169 + $0x188] sm:$0xff]
      %v228 = vld [vmem:[%s169 + $0x190] sm:$0xff]
      %v229 = vld [vmem:[%s169 + $0x198] sm:$0xff]
      %v230 = vld [vmem:[%s169 + $0x1a0] sm:$0xff]
      %v231 = vld [vmem:[%s169 + $0x1a8] sm:$0xff]
      %v232 = vld [vmem:[%s169 + $0x1b0] sm:$0xff]
      %v233 = vld [vmem:[%s169 + $0x1b8] sm:$0xff]
      %v234 = vld [vmem:[%s169 + $0x1c0] sm:$0xff]
      %v235 = vld [vmem:[%s169 + $0x1c8] sm:$0xff]
      %v236 = vld [vmem:[%s169 + $0x1d0] sm:$0xff]
      %v237 = vld [vmem:[%s169 + $0x1d8] sm:$0xff]
      %v238 = vld [vmem:[%s169 + $0x1e0] sm:$0xff]
      %v239 = vld [vmem:[%s169 + $0x1e8] sm:$0xff]
      %v240 = vld [vmem:[%s169 + $0x1f0] sm:$0xff]
      %v241 = vld [vmem:[%s169 + $0x1f8] sm:$0xff]
      %v242 = vld [vmem:[%s1] sm:$0xf]
      %v243 = vld [vmem:[%s1 + $0x4] sm:$0xf]
      %v244 = vld [vmem:[%s1 + $0x8] sm:$0xf]
      %v245 = vld [vmem:[%s1 + $0xc] sm:$0xf]
      %v246 = vld [vmem:[%s1 + $0x10] sm:$0xf]
      %v247 = vld [vmem:[%s1 + $0x14] sm:$0xf]
      %v248 = vld [vmem:[%s1 + $0x18] sm:$0xf]
      %v249 = vld [vmem:[%s1 + $0x1c] sm:$0xf]
      %v250 = vld [vmem:[%s1 + $0x20] sm:$0xf]
      %v251 = vld [vmem:[%s1 + $0x24] sm:$0xf]
      %v252 = vld [vmem:[%s1 + $0x28] sm:$0xf]
      %v253 = vld [vmem:[%s1 + $0x2c] sm:$0xf]
      %v254 = vld [vmem:[%s1 + $0x30] sm:$0xf]
      %v255 = vld [vmem:[%s1 + $0x34] sm:$0xf]
      %v256 = vld [vmem:[%s1 + $0x38] sm:$0xf]
      %v257 = vld [vmem:[%s1 + $0x3c] sm:$0xf]
      %v258 = vld [vmem:[%s1 + $0x40] sm:$0xf]
      %v259 = vld [vmem:[%s1 + $0x44] sm:$0xf]
      %v260 = vld [vmem:[%s1 + $0x48] sm:$0xf]
      %v261 = vld [vmem:[%s1 + $0x4c] sm:$0xf]
      %v262 = vld [vmem:[%s1 + $0x50] sm:$0xf]
      %v263 = vld [vmem:[%s1 + $0x54] sm:$0xf]
      %v264 = vld [vmem:[%s1 + $0x58] sm:$0xf]
      %v265 = vld [vmem:[%s1 + $0x5c] sm:$0xf]
      %v266 = vld [vmem:[%s1 + $0x60] sm:$0xf]
      %v267 = vld [vmem:[%s1 + $0x64] sm:$0xf]
      %v268 = vld [vmem:[%s1 + $0x68] sm:$0xf]
      %v269 = vld [vmem:[%s1 + $0x6c] sm:$0xf]
      %v270 = vld [vmem:[%s1 + $0x70] sm:$0xf]
      %v271 = vld [vmem:[%s1 + $0x74] sm:$0xf]
      %v272 = vld [vmem:[%s1 + $0x78] sm:$0xf]
      %v273 = vld [vmem:[%s1 + $0x7c] sm:$0xf]
      %v274 = vld [vmem:[%s2] sm:$0x1]
      %v276 = vlaneseq
      %v277 = vshrl.u32 %v276, 7
      %v278 = vsub.s32 0, %v277
      %v279 = vrot.slane %v274, %v278
      %v345 = vunpack.c.l.b16 %v178
      %v346 = vunpack.c.h.b16 %v178
      %v347 = vunpack.c.l.b16 %v179
      %v348 = vunpack.c.h.b16 %v179
      %v349 = vunpack.c.l.b16 %v180
      %v350 = vunpack.c.h.b16 %v180
      %v351 = vunpack.c.l.b16 %v181
      %v352 = vunpack.c.h.b16 %v181
      %v353 = vunpack.c.l.b16 %v182
      %v354 = vunpack.c.h.b16 %v182
      %v355 = vunpack.c.l.b16 %v183
      %v356 = vunpack.c.h.b16 %v183
      %v357 = vunpack.c.l.b16 %v184
      %v358 = vunpack.c.h.b16 %v184
      %v359 = vunpack.c.l.b16 %v185
      %v360 = vunpack.c.h.b16 %v185
      %v361 = vunpack.c.l.b16 %v186
      %v362 = vunpack.c.h.b16 %v186
      %v363 = vunpack.c.l.b16 %v187
      %v364 = vunpack.c.h.b16 %v187
      %v365 = vunpack.c.l.b16 %v188
      %v366 = vunpack.c.h.b16 %v188
      %v367 = vunpack.c.l.b16 %v189
      %v368 = vunpack.c.h.b16 %v189
      %v369 = vunpack.c.l.b16 %v190
      %v370 = vunpack.c.h.b16 %v190
      %v371 = vunpack.c.l.b16 %v191
      %v372 = vunpack.c.h.b16 %v191
      %v373 = vunpack.c.l.b16 %v192
      %v374 = vunpack.c.h.b16 %v192
      %v375 = vunpack.c.l.b16 %v193
      %v376 = vunpack.c.h.b16 %v193
      %v377 = vunpack.c.l.b16 %v194
      %v378 = vunpack.c.h.b16 %v194
      %v379 = vunpack.c.l.b16 %v195
      %v380 = vunpack.c.h.b16 %v195
      %v381 = vunpack.c.l.b16 %v196
      %v382 = vunpack.c.h.b16 %v196
      %v383 = vunpack.c.l.b16 %v197
      %v384 = vunpack.c.h.b16 %v197
      %v385 = vunpack.c.l.b16 %v198
      %v386 = vunpack.c.h.b16 %v198
      %v387 = vunpack.c.l.b16 %v199
      %v388 = vunpack.c.h.b16 %v199
      %v389 = vunpack.c.l.b16 %v200
      %v390 = vunpack.c.h.b16 %v200
      %v391 = vunpack.c.l.b16 %v201
      %v392 = vunpack.c.h.b16 %v201
      %v393 = vunpack.c.l.b16 %v202
      %v394 = vunpack.c.h.b16 %v202
      %v395 = vunpack.c.l.b16 %v203
      %v396 = vunpack.c.h.b16 %v203
      %v397 = vunpack.c.l.b16 %v204
      %v398 = vunpack.c.h.b16 %v204
      %v399 = vunpack.c.l.b16 %v205
      %v400 = vunpack.c.h.b16 %v205
      %v401 = vunpack.c.l.b16 %v206
      %v402 = vunpack.c.h.b16 %v206
      %v403 = vunpack.c.l.b16 %v207
      %v404 = vunpack.c.h.b16 %v207
      %v405 = vunpack.c.l.b16 %v208
      %v406 = vunpack.c.h.b16 %v208
      %v407 = vunpack.c.l.b16 %v209
      %v408 = vunpack.c.h.b16 %v209
      %v409 = vunpack.c.l.b16 %v210
      %v410 = vunpack.c.h.b16 %v210
      %v411 = vunpack.c.l.b16 %v211
      %v412 = vunpack.c.h.b16 %v211
      %v413 = vunpack.c.l.b16 %v212
      %v414 = vunpack.c.h.b16 %v212
      %v415 = vunpack.c.l.b16 %v213
      %v416 = vunpack.c.h.b16 %v213
      %v417 = vunpack.c.l.b16 %v214
      %v418 = vunpack.c.h.b16 %v214
      %v419 = vunpack.c.l.b16 %v215
      %v420 = vunpack.c.h.b16 %v215
      %v421 = vunpack.c.l.b16 %v216
      %v422 = vunpack.c.h.b16 %v216
      %v423 = vunpack.c.l.b16 %v217
      %v424 = vunpack.c.h.b16 %v217
      %v425 = vunpack.c.l.b16 %v218
      %v426 = vunpack.c.h.b16 %v218
      %v427 = vunpack.c.l.b16 %v219
      %v428 = vunpack.c.h.b16 %v219
      %v429 = vunpack.c.l.b16 %v220
      %v430 = vunpack.c.h.b16 %v220
      %v431 = vunpack.c.l.b16 %v221
      %v432 = vunpack.c.h.b16 %v221
      %v433 = vunpack.c.l.b16 %v222
      %v434 = vunpack.c.h.b16 %v222
      %v435 = vunpack.c.l.b16 %v223
      %v436 = vunpack.c.h.b16 %v223
      %v437 = vunpack.c.l.b16 %v224
      %v438 = vunpack.c.h.b16 %v224
      %v439 = vunpack.c.l.b16 %v225
      %v440 = vunpack.c.h.b16 %v225
      %v441 = vunpack.c.l.b16 %v226
      %v442 = vunpack.c.h.b16 %v226
      %v443 = vunpack.c.l.b16 %v227
      %v444 = vunpack.c.h.b16 %v227
      %v445 = vunpack.c.l.b16 %v228
      %v446 = vunpack.c.h.b16 %v228
      %v447 = vunpack.c.l.b16 %v229
      %v448 = vunpack.c.h.b16 %v229
      %v449 = vunpack.c.l.b16 %v230
      %v450 = vunpack.c.h.b16 %v230
      %v451 = vunpack.c.l.b16 %v231
      %v452 = vunpack.c.h.b16 %v231
      %v453 = vunpack.c.l.b16 %v232
      %v454 = vunpack.c.h.b16 %v232
      %v455 = vunpack.c.l.b16 %v233
      %v456 = vunpack.c.h.b16 %v233
      %v457 = vunpack.c.l.b16 %v234
      %v458 = vunpack.c.h.b16 %v234
      %v459 = vunpack.c.l.b16 %v235
      %v460 = vunpack.c.h.b16 %v235
      %v461 = vunpack.c.l.b16 %v236
      %v462 = vunpack.c.h.b16 %v236
      %v463 = vunpack.c.l.b16 %v237
      %v464 = vunpack.c.h.b16 %v237
      %v465 = vunpack.c.l.b16 %v238
      %v466 = vunpack.c.h.b16 %v238
      %v467 = vunpack.c.l.b16 %v239
      %v468 = vunpack.c.h.b16 %v239
      %v469 = vunpack.c.l.b16 %v240
      %v470 = vunpack.c.h.b16 %v240
      %v471 = vunpack.c.l.b16 %v241
      %v472 = vunpack.c.h.b16 %v241
      %v473 = vpack.c.b16 %v347, %v345
      %v474 = vpack.c.b16 %v348, %v346
      %v475 = vpack.c.b16 %v351, %v349
      %v476 = vpack.c.b16 %v352, %v350
      %v477 = vpack.c.b16 %v355, %v353
      %v478 = vpack.c.b16 %v356, %v354
      %v479 = vpack.c.b16 %v359, %v357
      %v480 = vpack.c.b16 %v360, %v358
      %v481 = vpack.c.b16 %v363, %v361
      %v482 = vpack.c.b16 %v364, %v362
      %v483 = vpack.c.b16 %v367, %v365
      %v484 = vpack.c.b16 %v368, %v366
      %v485 = vpack.c.b16 %v371, %v369
      %v486 = vpack.c.b16 %v372, %v370
      %v487 = vpack.c.b16 %v375, %v373
      %v488 = vpack.c.b16 %v376, %v374
      %v489 = vpack.c.b16 %v379, %v377
      %v490 = vpack.c.b16 %v380, %v378
      %v491 = vpack.c.b16 %v383, %v381
      %v492 = vpack.c.b16 %v384, %v382
      %v493 = vpack.c.b16 %v387, %v385
      %v494 = vpack.c.b16 %v388, %v386
      %v495 = vpack.c.b16 %v391, %v389
      %v496 = vpack.c.b16 %v392, %v390
      %v497 = vpack.c.b16 %v395, %v393
      %v498 = vpack.c.b16 %v396, %v394
      %v499 = vpack.c.b16 %v399, %v397
      %v500 = vpack.c.b16 %v400, %v398
      %v501 = vpack.c.b16 %v403, %v401
      %v502 = vpack.c.b16 %v404, %v402
      %v503 = vpack.c.b16 %v407, %v405
      %v504 = vpack.c.b16 %v408, %v406
      %v505 = vpack.c.b16 %v411, %v409
      %v506 = vpack.c.b16 %v412, %v410
      %v507 = vpack.c.b16 %v415, %v413
      %v508 = vpack.c.b16 %v416, %v414
      %v509 = vpack.c.b16 %v419, %v417
      %v510 = vpack.c.b16 %v420, %v418
      %v511 = vpack.c.b16 %v423, %v421
      %v512 = vpack.c.b16 %v424, %v422
      %v513 = vpack.c.b16 %v427, %v425
      %v514 = vpack.c.b16 %v428, %v426
      %v515 = vpack.c.b16 %v431, %v429
      %v516 = vpack.c.b16 %v432, %v430
      %v517 = vpack.c.b16 %v435, %v433
      %v518 = vpack.c.b16 %v436, %v434
      %v519 = vpack.c.b16 %v439, %v437
      %v520 = vpack.c.b16 %v440, %v438
      %v521 = vpack.c.b16 %v443, %v441
      %v522 = vpack.c.b16 %v444, %v442
      %v523 = vpack.c.b16 %v447, %v445
      %v524 = vpack.c.b16 %v448, %v446
      %v525 = vpack.c.b16 %v451, %v449
      %v526 = vpack.c.b16 %v452, %v450
      %v527 = vpack.c.b16 %v455, %v453
      %v528 = vpack.c.b16 %v456, %v454
      %v529 = vpack.c.b16 %v459, %v457
      %v530 = vpack.c.b16 %v460, %v458
      %v531 = vpack.c.b16 %v463, %v461
      %v532 = vpack.c.b16 %v464, %v462
      %v533 = vpack.c.b16 %v467, %v465
      %v534 = vpack.c.b16 %v468, %v466
      %v535 = vpack.c.b16 %v471, %v469
      %v536 = vpack.c.b16 %v472, %v470
      %v633 = vunpack.c.l.b16 %v242
      %v634 = vunpack.c.l.b16 %v243
      %v635 = vunpack.c.l.b16 %v244
      %v636 = vunpack.c.l.b16 %v245
      %v637 = vunpack.c.l.b16 %v246
      %v638 = vunpack.c.l.b16 %v247
      %v639 = vunpack.c.l.b16 %v248
      %v640 = vunpack.c.l.b16 %v249
      %v641 = vunpack.c.l.b16 %v250
      %v642 = vunpack.c.l.b16 %v251
      %v643 = vunpack.c.l.b16 %v252
      %v644 = vunpack.c.l.b16 %v253
      %v645 = vunpack.c.l.b16 %v254
      %v646 = vunpack.c.l.b16 %v255
      %v647 = vunpack.c.l.b16 %v256
      %v648 = vunpack.c.l.b16 %v257
      %v649 = vunpack.c.l.b16 %v258
      %v650 = vunpack.c.l.b16 %v259
      %v651 = vunpack.c.l.b16 %v260
      %v652 = vunpack.c.l.b16 %v261
      %v653 = vunpack.c.l.b16 %v262
      %v654 = vunpack.c.l.b16 %v263
      %v655 = vunpack.c.l.b16 %v264
      %v656 = vunpack.c.l.b16 %v265
      %v657 = vunpack.c.l.b16 %v266
      %v658 = vunpack.c.l.b16 %v267
      %v659 = vunpack.c.l.b16 %v268
      %v660 = vunpack.c.l.b16 %v269
      %v661 = vunpack.c.l.b16 %v270
      %v662 = vunpack.c.l.b16 %v271
      %v663 = vunpack.c.l.b16 %v272
      %v664 = vunpack.c.l.b16 %v273
      %v665 = vpack.c.b16 %v634, %v633
      %v666 = vpack.c.b16 %v636, %v635
      %v667 = vpack.c.b16 %v638, %v637
      %v668 = vpack.c.b16 %v640, %v639
      %v669 = vpack.c.b16 %v642, %v641
      %v670 = vpack.c.b16 %v644, %v643
      %v671 = vpack.c.b16 %v646, %v645
      %v672 = vpack.c.b16 %v648, %v647
      %v673 = vpack.c.b16 %v650, %v649
      %v674 = vpack.c.b16 %v652, %v651
      %v675 = vpack.c.b16 %v654, %v653
      %v676 = vpack.c.b16 %v656, %v655
      %v677 = vpack.c.b16 %v658, %v657
      %v678 = vpack.c.b16 %v660, %v659
      %v679 = vpack.c.b16 %v662, %v661
      %v680 = vpack.c.b16 %v664, %v663
      %697 = vmatprep.subr.bf16.mxu0 0
      %698 = vmatpush1.bf16.msra.mxu0 %v672
      %699 = vmatprep.subr.bf16.mxu0 0
      %700 = vmatpush1.bf16.msra.mxu0 %v671
      %701 = vmatprep.subr.bf16.mxu0 0
      %702 = vmatpush1.bf16.msra.mxu0 %v670
      %703 = vmatprep.subr.bf16.mxu0 0
      %704 = vmatpush1.bf16.msra.mxu0 %v669
      %705 = vmatprep.subr.bf16.mxu0 0
      %706 = vmatpush1.bf16.msra.mxu0 %v668
      %707 = vmatprep.subr.bf16.mxu0 0
      %708 = vmatpush1.bf16.msra.mxu0 %v667
      %709 = vmatprep.subr.bf16.mxu0 0
      %710 = vmatpush1.bf16.msra.mxu0 %v666
      %711 = vmatprep.subr.bf16.mxu0 0
      %712 = vmatpush1.bf16.msra.mxu0 %v665
      %713 = vmatprep.subr.bf16.mxu0 0
      %714 = vmatpush2.bf16.msra.mxu0 %v680
      %715 = vmatprep.subr.bf16.mxu0 0
      %716 = vmatpush2.bf16.msra.mxu0 %v679
      %717 = vmatprep.subr.bf16.mxu0 0
      %718 = vmatpush2.bf16.msra.mxu0 %v678
      %719 = vmatprep.subr.bf16.mxu0 0
      %720 = vmatpush2.bf16.msra.mxu0 %v677
      %721 = vmatprep.subr.bf16.mxu0 0
      %722 = vmatpush2.bf16.msra.mxu0 %v676
      %723 = vmatprep.subr.bf16.mxu0 0
      %724 = vmatpush2.bf16.msra.mxu0 %v675
      %725 = vmatprep.subr.bf16.mxu0 0
      %726 = vmatpush2.bf16.msra.mxu0 %v674
      %727 = vmatprep.subr.bf16.mxu0 0
      %728 = vmatpush2.bf16.msra.mxu0 %v673
      %729 = vmatprep.mubr.bf16.mxu0 %v474
      %730 = vmatmul.mubr.bf16.gmra.mxu0 %v473
      %v731 = vpop.f32.mrf.mxu0
      %v732 = vadd.f32 %v279, %v731
      %v733 = vpop.f32.mrf.mxu0
      %v734 = vpop.f32.mrf.mxu0
      %v735 = vadd.f32 %v279, %v734
      %v736 = vpop.f32.mrf.mxu0
      %737 = vmatprep.mubr.bf16.mxu0 %v476
      %738 = vmatmul.mubr.bf16.gmra.mxu0 %v475
      %v739 = vpop.f32.mrf.mxu0
      %v740 = vadd.f32 %v279, %v739
      %v741 = vpop.f32.mrf.mxu0
      %v742 = vpop.f32.mrf.mxu0
      %v743 = vadd.f32 %v279, %v742
      %v744 = vpop.f32.mrf.mxu0
      %745 = vmatprep.mubr.bf16.mxu0 %v478
      %746 = vmatmul.mubr.bf16.gmra.mxu0 %v477
      %v747 = vpop.f32.mrf.mxu0
      %v748 = vadd.f32 %v279, %v747
      %v749 = vpop.f32.mrf.mxu0
      %v750 = vpop.f32.mrf.mxu0
      %v751 = vadd.f32 %v279, %v750
      %v752 = vpop.f32.mrf.mxu0
      %753 = vmatprep.mubr.bf16.mxu0 %v480
      %754 = vmatmul.mubr.bf16.gmra.mxu0 %v479
      %v755 = vpop.f32.mrf.mxu0
      %v756 = vadd.f32 %v279, %v755
      %v757 = vpop.f32.mrf.mxu0
      %v758 = vpop.f32.mrf.mxu0
      %v759 = vadd.f32 %v279, %v758
      %v760 = vpop.f32.mrf.mxu0
      %761 = vmatprep.mubr.bf16.mxu0 %v482
      %762 = vmatmul.mubr.bf16.gmra.mxu0 %v481
      %v763 = vpop.f32.mrf.mxu0
      %v764 = vadd.f32 %v279, %v763
      %v765 = vpop.f32.mrf.mxu0
      %v766 = vpop.f32.mrf.mxu0
      %v767 = vadd.f32 %v279, %v766
      %v768 = vpop.f32.mrf.mxu0
      %769 = vmatprep.mubr.bf16.mxu0 %v484
      %770 = vmatmul.mubr.bf16.gmra.mxu0 %v483
      %v771 = vpop.f32.mrf.mxu0
      %v772 = vadd.f32 %v279, %v771
      %v773 = vpop.f32.mrf.mxu0
      %v774 = vpop.f32.mrf.mxu0
      %v775 = vadd.f32 %v279, %v774
      %v776 = vpop.f32.mrf.mxu0
      %777 = vmatprep.mubr.bf16.mxu0 %v486
      %778 = vmatmul.mubr.bf16.gmra.mxu0 %v485
      %v779 = vpop.f32.mrf.mxu0
      %v780 = vadd.f32 %v279, %v779
      %v781 = vpop.f32.mrf.mxu0
      %v782 = vpop.f32.mrf.mxu0
      %v783 = vadd.f32 %v279, %v782
      %v784 = vpop.f32.mrf.mxu0
      %785 = vmatprep.mubr.bf16.mxu0 %v488
      %786 = vmatmul.mubr.bf16.gmra.mxu0 %v487
      %v787 = vpop.f32.mrf.mxu0
      %v788 = vadd.f32 %v279, %v787
      %v789 = vpop.f32.mrf.mxu0
      %v790 = vpop.f32.mrf.mxu0
      %v791 = vadd.f32 %v279, %v790
      %v792 = vpop.f32.mrf.mxu0
      %793 = vmatprep.mubr.bf16.mxu0 %v490
      %794 = vmatmul.mubr.bf16.gmra.mxu0 %v489
      %v795 = vpop.f32.mrf.mxu0
      %v796 = vadd.f32 %v279, %v795
      %v797 = vpop.f32.mrf.mxu0
      %v798 = vpop.f32.mrf.mxu0
      %v799 = vadd.f32 %v279, %v798
      %v800 = vpop.f32.mrf.mxu0
      %801 = vmatprep.mubr.bf16.mxu0 %v492
      %802 = vmatmul.mubr.bf16.gmra.mxu0 %v491
      %v803 = vpop.f32.mrf.mxu0
      %v804 = vadd.f32 %v279, %v803
      %v805 = vpop.f32.mrf.mxu0
      %v806 = vpop.f32.mrf.mxu0
      %v807 = vadd.f32 %v279, %v806
      %v808 = vpop.f32.mrf.mxu0
      %809 = vmatprep.mubr.bf16.mxu0 %v494
      %810 = vmatmul.mubr.bf16.gmra.mxu0 %v493
      %v811 = vpop.f32.mrf.mxu0
      %v812 = vadd.f32 %v279, %v811
      %v813 = vpop.f32.mrf.mxu0
      %v814 = vpop.f32.mrf.mxu0
      %v815 = vadd.f32 %v279, %v814
      %v816 = vpop.f32.mrf.mxu0
      %817 = vmatprep.mubr.bf16.mxu0 %v496
      %818 = vmatmul.mubr.bf16.gmra.mxu0 %v495
      %v819 = vpop.f32.mrf.mxu0
      %v820 = vadd.f32 %v279, %v819
      %v821 = vpop.f32.mrf.mxu0
      %v822 = vpop.f32.mrf.mxu0
      %v823 = vadd.f32 %v279, %v822
      %v824 = vpop.f32.mrf.mxu0
      %825 = vmatprep.mubr.bf16.mxu0 %v498
      %826 = vmatmul.mubr.bf16.gmra.mxu0 %v497
      %v827 = vpop.f32.mrf.mxu0
      %v828 = vadd.f32 %v279, %v827
      %v829 = vpop.f32.mrf.mxu0
      %v830 = vpop.f32.mrf.mxu0
      %v831 = vadd.f32 %v279, %v830
      %v832 = vpop.f32.mrf.mxu0
      %833 = vmatprep.mubr.bf16.mxu0 %v500
      %834 = vmatmul.mubr.bf16.gmra.mxu0 %v499
      %v835 = vpop.f32.mrf.mxu0
      %v836 = vadd.f32 %v279, %v835
      %v837 = vpop.f32.mrf.mxu0
      %v838 = vpop.f32.mrf.mxu0
      %v839 = vadd.f32 %v279, %v838
      %v840 = vpop.f32.mrf.mxu0
      %841 = vmatprep.mubr.bf16.mxu0 %v502
      %842 = vmatmul.mubr.bf16.gmra.mxu0 %v501
      %v843 = vpop.f32.mrf.mxu0
      %v844 = vadd.f32 %v279, %v843
      %v845 = vpop.f32.mrf.mxu0
      %v846 = vpop.f32.mrf.mxu0
      %v847 = vadd.f32 %v279, %v846
      %v848 = vpop.f32.mrf.mxu0
      %849 = vmatprep.mubr.bf16.mxu0 %v504
      %850 = vmatmul.mubr.bf16.gmra.mxu0 %v503
      %v851 = vpop.f32.mrf.mxu0
      %v852 = vadd.f32 %v279, %v851
      %v853 = vpop.f32.mrf.mxu0
      %v854 = vpop.f32.mrf.mxu0
      %v855 = vadd.f32 %v279, %v854
      %v856 = vpop.f32.mrf.mxu0
      %857 = vmatprep.mubr.bf16.mxu0 %v506
      %858 = vmatmul.mubr.bf16.gmra.mxu0 %v505
      %v859 = vpop.f32.mrf.mxu0
      %v860 = vadd.f32 %v279, %v859
      %v861 = vpop.f32.mrf.mxu0
      %v862 = vpop.f32.mrf.mxu0
      %v863 = vadd.f32 %v279, %v862
      %v864 = vpop.f32.mrf.mxu0
      %865 = vmatprep.mubr.bf16.mxu0 %v508
      %866 = vmatmul.mubr.bf16.gmra.mxu0 %v507
      %v867 = vpop.f32.mrf.mxu0
      %v868 = vadd.f32 %v279, %v867
      %v869 = vpop.f32.mrf.mxu0
      %v870 = vpop.f32.mrf.mxu0
      %v871 = vadd.f32 %v279, %v870
      %v872 = vpop.f32.mrf.mxu0
      %873 = vmatprep.mubr.bf16.mxu0 %v510
      %874 = vmatmul.mubr.bf16.gmra.mxu0 %v509
      %v875 = vpop.f32.mrf.mxu0
      %v876 = vadd.f32 %v279, %v875
      %v877 = vpop.f32.mrf.mxu0
      %v878 = vpop.f32.mrf.mxu0
      %v879 = vadd.f32 %v279, %v878
      %v880 = vpop.f32.mrf.mxu0
      %881 = vmatprep.mubr.bf16.mxu0 %v512
      %882 = vmatmul.mubr.bf16.gmra.mxu0 %v511
      %v883 = vpop.f32.mrf.mxu0
      %v884 = vadd.f32 %v279, %v883
      %v885 = vpop.f32.mrf.mxu0
      %v886 = vpop.f32.mrf.mxu0
      %v887 = vadd.f32 %v279, %v886
      %v888 = vpop.f32.mrf.mxu0
      %889 = vmatprep.mubr.bf16.mxu0 %v514
      %890 = vmatmul.mubr.bf16.gmra.mxu0 %v513
      %v891 = vpop.f32.mrf.mxu0
      %v892 = vadd.f32 %v279, %v891
      %v893 = vpop.f32.mrf.mxu0
      %v894 = vpop.f32.mrf.mxu0
      %v895 = vadd.f32 %v279, %v894
      %v896 = vpop.f32.mrf.mxu0
      %897 = vmatprep.mubr.bf16.mxu0 %v516
      %898 = vmatmul.mubr.bf16.gmra.mxu0 %v515
      %v899 = vpop.f32.mrf.mxu0
      %v900 = vadd.f32 %v279, %v899
      %v901 = vpop.f32.mrf.mxu0
      %v902 = vpop.f32.mrf.mxu0
      %v903 = vadd.f32 %v279, %v902
      %v904 = vpop.f32.mrf.mxu0
      %905 = vmatprep.mubr.bf16.mxu0 %v518
      %906 = vmatmul.mubr.bf16.gmra.mxu0 %v517
      %v907 = vpop.f32.mrf.mxu0
      %v908 = vadd.f32 %v279, %v907
      %v909 = vpop.f32.mrf.mxu0
      %v910 = vpop.f32.mrf.mxu0
      %v911 = vadd.f32 %v279, %v910
      %v912 = vpop.f32.mrf.mxu0
      %913 = vmatprep.mubr.bf16.mxu0 %v520
      %914 = vmatmul.mubr.bf16.gmra.mxu0 %v519
      %v915 = vpop.f32.mrf.mxu0
      %v916 = vadd.f32 %v279, %v915
      %v917 = vpop.f32.mrf.mxu0
      %v918 = vpop.f32.mrf.mxu0
      %v919 = vadd.f32 %v279, %v918
      %v920 = vpop.f32.mrf.mxu0
      %921 = vmatprep.mubr.bf16.mxu0 %v522
      %922 = vmatmul.mubr.bf16.gmra.mxu0 %v521
      %v923 = vpop.f32.mrf.mxu0
      %v924 = vadd.f32 %v279, %v923
      %v925 = vpop.f32.mrf.mxu0
      %v926 = vpop.f32.mrf.mxu0
      %v927 = vadd.f32 %v279, %v926
      %v928 = vpop.f32.mrf.mxu0
      %929 = vmatprep.mubr.bf16.mxu0 %v524
      %930 = vmatmul.mubr.bf16.gmra.mxu0 %v523
      %v931 = vpop.f32.mrf.mxu0
      %v932 = vadd.f32 %v279, %v931
      %v933 = vpop.f32.mrf.mxu0
      %v934 = vpop.f32.mrf.mxu0
      %v935 = vadd.f32 %v279, %v934
      %v936 = vpop.f32.mrf.mxu0
      %937 = vmatprep.mubr.bf16.mxu0 %v526
      %938 = vmatmul.mubr.bf16.gmra.mxu0 %v525
      %v939 = vpop.f32.mrf.mxu0
      %v940 = vadd.f32 %v279, %v939
      %v941 = vpop.f32.mrf.mxu0
      %v942 = vpop.f32.mrf.mxu0
      %v943 = vadd.f32 %v279, %v942
      %v944 = vpop.f32.mrf.mxu0
      %945 = vmatprep.mubr.bf16.mxu0 %v528
      %946 = vmatmul.mubr.bf16.gmra.mxu0 %v527
      %v947 = vpop.f32.mrf.mxu0
      %v948 = vadd.f32 %v279, %v947
      %v949 = vpop.f32.mrf.mxu0
      %v950 = vpop.f32.mrf.mxu0
      %v951 = vadd.f32 %v279, %v950
      %v952 = vpop.f32.mrf.mxu0
      %953 = vmatprep.mubr.bf16.mxu0 %v530
      %954 = vmatmul.mubr.bf16.gmra.mxu0 %v529
      %v955 = vpop.f32.mrf.mxu0
      %v956 = vadd.f32 %v279, %v955
      %v957 = vpop.f32.mrf.mxu0
      %v958 = vpop.f32.mrf.mxu0
      %v959 = vadd.f32 %v279, %v958
      %v960 = vpop.f32.mrf.mxu0
      %961 = vmatprep.mubr.bf16.mxu0 %v532
      %962 = vmatmul.mubr.bf16.gmra.mxu0 %v531
      %v963 = vpop.f32.mrf.mxu0
      %v964 = vadd.f32 %v279, %v963
      %v965 = vpop.f32.mrf.mxu0
      %v966 = vpop.f32.mrf.mxu0
      %v967 = vadd.f32 %v279, %v966
      %v968 = vpop.f32.mrf.mxu0
      %969 = vmatprep.mubr.bf16.mxu0 %v534
      %970 = vmatmul.mubr.bf16.gmra.mxu0 %v533
      %v971 = vpop.f32.mrf.mxu0
      %v972 = vadd.f32 %v279, %v971
      %v973 = vpop.f32.mrf.mxu0
      %v974 = vpop.f32.mrf.mxu0
      %v975 = vadd.f32 %v279, %v974
      %v976 = vpop.f32.mrf.mxu0
      %977 = vmatprep.mubr.bf16.mxu0 %v536
      %978 = vmatmul.mubr.bf16.gmra.mxu0 %v535
      %v979 = vpop.f32.mrf.mxu0
      %v980 = vadd.f32 %v279, %v979
      %v981 = vpop.f32.mrf.mxu0
      %v982 = vpop.f32.mrf.mxu0
      %v983 = vadd.f32 %v279, %v982
      %v984 = vpop.f32.mrf.mxu0
      %985 = vdwg.mxu0
      %vm986 = vcmask 64512
      %987 = vst.msk [vmem:[%s175] sm:$0xff] %vm986, %v732
      %988 = vst.msk [vmem:[%s175 + $0x8] sm:$0xff] %vm986, %v735
      %989 = vst.msk [vmem:[%s175 + $0x10] sm:$0xff] %vm986, %v740
      %990 = vst.msk [vmem:[%s175 + $0x18] sm:$0xff] %vm986, %v743
      %991 = vst.msk [vmem:[%s175 + $0x20] sm:$0xff] %vm986, %v748
      %992 = vst.msk [vmem:[%s175 + $0x28] sm:$0xff] %vm986, %v751
      %993 = vst.msk [vmem:[%s175 + $0x30] sm:$0xff] %vm986, %v756
      %994 = vst.msk [vmem:[%s175 + $0x38] sm:$0xff] %vm986, %v759
      %995 = vst.msk [vmem:[%s175 + $0x40] sm:$0xff] %vm986, %v764
      %996 = vst.msk [vmem:[%s175 + $0x48] sm:$0xff] %vm986, %v767
      %997 = vst.msk [vmem:[%s175 + $0x50] sm:$0xff] %vm986, %v772
      %998 = vst.msk [vmem:[%s175 + $0x58] sm:$0xff] %vm986, %v775
      %999 = vst.msk [vmem:[%s175 + $0x60] sm:$0xff] %vm986, %v780
      %1000 = vst.msk [vmem:[%s175 + $0x68] sm:$0xff] %vm986, %v783
      %1001 = vst.msk [vmem:[%s175 + $0x70] sm:$0xff] %vm986, %v788
      %1002 = vst.msk [vmem:[%s175 + $0x78] sm:$0xff] %vm986, %v791
      %1003 = vst.msk [vmem:[%s175 + $0x80] sm:$0xff] %vm986, %v796
      %1004 = vst.msk [vmem:[%s175 + $0x88] sm:$0xff] %vm986, %v799
      %1005 = vst.msk [vmem:[%s175 + $0x90] sm:$0xff] %vm986, %v804
      %1006 = vst.msk [vmem:[%s175 + $0x98] sm:$0xff] %vm986, %v807
      %1007 = vst.msk [vmem:[%s175 + $0xa0] sm:$0xff] %vm986, %v812
      %1008 = vst.msk [vmem:[%s175 + $0xa8] sm:$0xff] %vm986, %v815
      %1009 = vst.msk [vmem:[%s175 + $0xb0] sm:$0xff] %vm986, %v820
      %1010 = vst.msk [vmem:[%s175 + $0xb8] sm:$0xff] %vm986, %v823
      %1011 = vst.msk [vmem:[%s175 + $0xc0] sm:$0xff] %vm986, %v828
      %1012 = vst.msk [vmem:[%s175 + $0xc8] sm:$0xff] %vm986, %v831
      %1013 = vst.msk [vmem:[%s175 + $0xd0] sm:$0xff] %vm986, %v836
      %1014 = vst.msk [vmem:[%s175 + $0xd8] sm:$0xff] %vm986, %v839
      %1015 = vst.msk [vmem:[%s175 + $0xe0] sm:$0xff] %vm986, %v844
      %1016 = vst.msk [vmem:[%s175 + $0xe8] sm:$0xff] %vm986, %v847
      %1017 = vst.msk [vmem:[%s175 + $0xf0] sm:$0xff] %vm986, %v852
      %1018 = vst.msk [vmem:[%s175 + $0xf8] sm:$0xff] %vm986, %v855
      %1019 = vst.msk [vmem:[%s175 + $0x100] sm:$0xff] %vm986, %v860
      %1020 = vst.msk [vmem:[%s175 + $0x108] sm:$0xff] %vm986, %v863
      %1021 = vst.msk [vmem:[%s175 + $0x110] sm:$0xff] %vm986, %v868
      %1022 = vst.msk [vmem:[%s175 + $0x118] sm:$0xff] %vm986, %v871
      %1023 = vst.msk [vmem:[%s175 + $0x120] sm:$0xff] %vm986, %v876
      %1024 = vst.msk [vmem:[%s175 + $0x128] sm:$0xff] %vm986, %v879
      %1025 = vst.msk [vmem:[%s175 + $0x130] sm:$0xff] %vm986, %v884
      %1026 = vst.msk [vmem:[%s175 + $0x138] sm:$0xff] %vm986, %v887
      %1027 = vst.msk [vmem:[%s175 + $0x140] sm:$0xff] %vm986, %v892
      %1028 = vst.msk [vmem:[%s175 + $0x148] sm:$0xff] %vm986, %v895
      %1029 = vst.msk [vmem:[%s175 + $0x150] sm:$0xff] %vm986, %v900
      %1030 = vst.msk [vmem:[%s175 + $0x158] sm:$0xff] %vm986, %v903
      %1031 = vst.msk [vmem:[%s175 + $0x160] sm:$0xff] %vm986, %v908
      %1032 = vst.msk [vmem:[%s175 + $0x168] sm:$0xff] %vm986, %v911
      %1033 = vst.msk [vmem:[%s175 + $0x170] sm:$0xff] %vm986, %v916
      %1034 = vst.msk [vmem:[%s175 + $0x178] sm:$0xff] %vm986, %v919
      %1035 = vst.msk [vmem:[%s175 + $0x180] sm:$0xff] %vm986, %v924
      %1036 = vst.msk [vmem:[%s175 + $0x188] sm:$0xff] %vm986, %v927
      %1037 = vst.msk [vmem:[%s175 + $0x190] sm:$0xff] %vm986, %v932
      %1038 = vst.msk [vmem:[%s175 + $0x198] sm:$0xff] %vm986, %v935
      %1039 = vst.msk [vmem:[%s175 + $0x1a0] sm:$0xff] %vm986, %v940
      %1040 = vst.msk [vmem:[%s175 + $0x1a8] sm:$0xff] %vm986, %v943
      %1041 = vst.msk [vmem:[%s175 + $0x1b0] sm:$0xff] %vm986, %v948
      %1042 = vst.msk [vmem:[%s175 + $0x1b8] sm:$0xff] %vm986, %v951
      %1043 = vst.msk [vmem:[%s175 + $0x1c0] sm:$0xff] %vm986, %v956
      %1044 = vst.msk [vmem:[%s175 + $0x1c8] sm:$0xff] %vm986, %v959
      %1045 = vst.msk [vmem:[%s175 + $0x1d0] sm:$0xff] %vm986, %v964
      %1046 = vst.msk [vmem:[%s175 + $0x1d8] sm:$0xff] %vm986, %v967
      %1047 = vst.msk [vmem:[%s175 + $0x1e0] sm:$0xff] %vm986, %v972
      %1048 = vst.msk [vmem:[%s175 + $0x1e8] sm:$0xff] %vm986, %v975
      %1049 = vst.msk [vmem:[%s175 + $0x1f0] sm:$0xff] %vm986, %v980
      %1050 = vst.msk [vmem:[%s175 + $0x1f8] sm:$0xff] %vm986, %v983
      %s1051 = smul.u32 64, %s14
      %p1052 = scmp.lt.s32.totalorder %s1051, 191
      %s1053 = scalar_select %p1052, %s1051, 191
      %s1054 = smul.addr %s1053, 8
      %s1055 = scalar_lea.vmem %s3, %s1054
      // Predicated region
      $region33: #{vqvae_forward.39} parent=31 // pred_check
        %p1056 = pneg %p100
      $region34: #{vqvae_forward.39} parent=31 // pred_check_branch
        %1058 = sbr.rel (%p1056) target = $region36
      $region35: #{vqvae_forward.39} parent=31 // pred_region
        %s1059 = smul.u32 64, %s14
      $region36: #{vqvae_forward.39} parent=31 // pred_fallthru
        _
    $region32: #{vqvae_forward.39} parent=5 // pred_fallthru
      _
    %p1060 = scmp.le.s32.totalorder 2, %s9
    // Predicated region
    $region37: #{vqvae_forward.39} parent=5 // pred_check
      %p1061 = pneg %p1060
    $region38: #{vqvae_forward.39} parent=5 // pred_check_branch
      %1063 = sbr.rel (%p1061) target = $region40
    $region39: #{vqvae_forward.39} parent=5 // pred_region
      %s1064 = ssub.s32 %s9, 2
      // Predicated region
      $region41: #{vqvae_forward.39} parent=39 // pred_check
        %p1065 = pneg %p106
      $region42: #{vqvae_forward.39} parent=39 // pred_check_branch
        %1067 = sbr.rel (%p1065) target = $region44
      $region43: #{vqvae_forward.39} parent=39 // pred_region
        %s1068 = smul.u32 64, %s15
        %p1069 = scmp.lt.s32.totalorder %s1068, 191
        %s1070 = scalar_select %p1069, %s1068, 191
        %s1071 = smul.addr %s1070, 8
        %s1072 = scalar_lea.vmem %s3, %s1071
      $region44: #{vqvae_forward.39} parent=39 // pred_fallthru
        _
    $region40: #{vqvae_forward.39} parent=5 // pred_fallthru
      _
  $region6: #{vqvae_forward.39} parent=0 // loop_footer
    %s13 = sadd.s32 1, %s9
  $region7: #{vqvae_forward.39} parent=0 // loop_footer_branch
    %8 = sbr.rel target = $region3
  $region8: #{vqvae_forward.39} parent=0 // loop_exit
    _

</llo_original>
